<compile_context>
chip_gen: v7x
topology: tpu7x:2x2x1
jax: 0.10.0
libtpu: 0.0.40
codegen_flags: <defaults>
</compile_context>

<pallas_src>
import functools

import jax
import jax.numpy as jnp
import numpy as np
from jax.experimental import pallas as pl
from jax.experimental.pallas import tpu as pltpu

RASF_CHANNEL = 16          # cfg.rasf_channel — small synthetic value
C_IN = RASF_CHANNEL + 3    # 19
C1 = RASF_CHANNEL * 2      # 32
C2 = RASF_CHANNEL * 4      # 64
C3 = RASF_CHANNEL * 8      # 128
F1 = RASF_CHANNEL * 8 * 2  # 256
F2 = 1024 * 3              # 3072
_POOL_LANES = 128          # lane width of the pooled-max scratch (>= batch tile)


def _lrelu(v):
    return jnp.where(v > 0, v, 0.02 * v)


# ---------------------------------------------------------------------------
# Fused kernel: conv1/2/3 + leaky_relu + running global max + fc1/fc2 head.
# Grid = (B // bt, N // nt); batch axis parallel, point axis arbitrary.
# ---------------------------------------------------------------------------
def generator_kernel(x_ref,
                     w1_ref, b1_ref, w2_ref, b2_ref, w3_ref, b3_ref,
                     wf1_ref, bf1_ref, wf2_ref, bf2_ref,
                     o_ref, pooled_ref):
    bt = x_ref.shape[0]
    n_id = pl.program_id(1)
    n_last = pl.num_programs(1) - 1

    # ---- conv trunk, channels on sublanes / points on lanes ----
    cols = []
    for bi in range(bt):
        xb = x_ref[bi]                                              # (C_IN, nt) f32
        # conv1 in f32: K = C_IN = 19 is tiny, avoids padding x in HBM.
        h = _lrelu(jnp.dot(w1_ref[...], xb,
                           preferred_element_type=jnp.float32) + b1_ref[...])
        h = _lrelu(jnp.dot(w2_ref[...], h.astype(jnp.bfloat16),
                           preferred_element_type=jnp.float32) + b2_ref[...])
        h = _lrelu(jnp.dot(w3_ref[...], h.astype(jnp.bfloat16),
                           preferred_element_type=jnp.float32) + b3_ref[...])
        # Global-max over this point tile: one cross-lane reduce -> (C3, 1).
        cols.append(jnp.max(h, axis=-1, keepdims=True))
    tile_max = cols[0] if bt == 1 else jnp.concatenate(cols, axis=-1)   # (C3, bt)

    # ---- running max across point tiles, resident in VMEM scratch ----
    @pl.when(n_id == 0)
    def _first():
        pooled_ref[:, :bt] = tile_max          # first tile: direct write

    @pl.when(n_id != 0)
    def _accum():
        pooled_ref[:, :bt] = jnp.maximum(pooled_ref[:, :bt], tile_max)

    # ---- FC head fused into the last point step ----
    @pl.when(n_id == n_last)
    def _head():
        # (C3, 128) -> (128, C3): aligned square f32 transpose; keep bt rows.
        pooled_t = pooled_ref[...].T                                # (128, C3)
        p = pooled_t[:bt, :].astype(jnp.bfloat16)                   # (bt, C3)
        f = _lrelu(jnp.dot(p, wf1_ref[...],
                           preferred_element_type=jnp.float32) + bf1_ref[...])
        out = jnp.dot(f.astype(jnp.bfloat16), wf2_ref[...],
                      preferred_element_type=jnp.float32) + bf2_ref[...]
        o_ref[...] = out.astype(o_ref.dtype)                        # (bt, F2)


def _const_spec(shape):
    # Full-array block, constant block index -> fetched once, kept resident.
    return pl.BlockSpec(shape, lambda b, n: (0,) * len(shape))


@functools.partial(jax.jit, static_argnames=("batch_tile", "point_tile"))
def generator_forward(x, params, *, batch_tile=8, point_tile=1024):
    """x: (B, C_IN, N) float32 (NCL layout, matching the PyTorch module)."""
    (w1, b1, w2, b2, w3, b3, wf1, bf1, wf2, bf2) = params
    B, c_in, N = x.shape
    assert c_in == C_IN

    bt = min(batch_tile, B)
    nt = min(point_tile, N)
    # TODO(synk): no remainder masking; require even tiling of B and N.
    assert B % bt == 0 and N % nt == 0
    assert (nt % 128 == 0) or nt == N
    assert (bt % 8 == 0) or bt == B
    assert bt <= _POOL_LANES

    # Transposed weights so convs run as (C_out, C_in) @ (C_in, nt).
    # x itself is passed to the kernel untouched (no transpose/pad/cast copy).
    w1t = w1.T                                   # (C1, C_IN) f32
    w2t = w2.T.astype(jnp.bfloat16)              # (C2, C1)
    w3t = w3.T.astype(jnp.bfloat16)              # (C3, C2)
    wf1b = wf1.astype(jnp.bfloat16)              # (C3, F1)
    wf2b = wf2.astype(jnp.bfloat16)              # (F1, F2)
    b1c = b1.reshape(C1, 1).astype(jnp.float32)  # column biases broadcast over lanes
    b2c = b2.reshape(C2, 1).astype(jnp.float32)
    b3c = b3.reshape(C3, 1).astype(jnp.float32)
    bf1r = bf1.reshape(1, F1).astype(jnp.float32)
    bf2r = bf2.reshape(1, F2).astype(jnp.float32)

    out = pl.pallas_call(
        generator_kernel,
        out_shape=jax.ShapeDtypeStruct((B, F2), jnp.float32),
        grid_spec=pltpu.PrefetchScalarGridSpec(
            num_scalar_prefetch=0,
            grid=(B // bt, N // nt),
            in_specs=[
                pl.BlockSpec((bt, C_IN, nt), lambda b, n: (b, 0, n)),
                _const_spec(w1t.shape), _const_spec(b1c.shape),
                _const_spec(w2t.shape), _const_spec(b2c.shape),
                _const_spec(w3t.shape), _const_spec(b3c.shape),
                _const_spec(wf1b.shape), _const_spec(bf1r.shape),
                _const_spec(wf2b.shape), _const_spec(bf2r.shape),
            ],
            out_specs=pl.BlockSpec((bt, F2), lambda b, n: (b, 0)),
            scratch_shapes=[pltpu.VMEM((C3, _POOL_LANES), jnp.float32)],
        ),
        compiler_params=pltpu.CompilerParams(
            dimension_semantics=("parallel", "arbitrary"),
            vmem_limit_bytes=48 * 1024 * 1024),
    )(x, w1t, b1c, w2t, b2c, w3t, b3c, wf1b, bf1r, wf2b, bf2r)

    return out.reshape(B, 1024, 3)


def init_params(key):
    """Deterministic synthetic parameters (shapes follow the nn.Module)."""
    ks = jax.random.split(key, 10)
    scale = 0.05

    def w(k, shape):
        return (scale * jax.random.normal(k, shape)).astype(jnp.float32)

    # Conv1d(k=1) weight (out, in, 1) stored transposed as (in, out) so that
    # einsum('bcn,cd->bdn') matches PyTorch's conv; Linear weights likewise
    # stored as (in, out).
    w1 = w(ks[0], (C_IN, C1));  b1 = w(ks[1], (C1,))
    w2 = w(ks[2], (C1, C2));    b2 = w(ks[3], (C2,))
    w3 = w(ks[4], (C2, C3));    b3 = w(ks[5], (C3,))
    wf1 = w(ks[6], (C3, F1));   bf1 = w(ks[7], (F1,))
    wf2 = w(ks[8], (F1, F2));   bf2 = w(ks[9], (F2,))
    return (w1, b1, w2, b2, w3, b3, wf1, bf1, wf2, bf2)


def reference_forward(x, params):
    """Pure-JAX f32 reference mirroring the PyTorch forward."""
    (w1, b1, w2, b2, w3, b3, wf1, bf1, wf2, bf2) = params
    h = jnp.einsum('bcn,cd->bdn', x, w1) + b1[None, :, None]
    h = jnp.where(h > 0, h, 0.02 * h)
    h = jnp.einsum('bcn,cd->bdn', h, w2) + b2[None, :, None]
    h = jnp.where(h > 0, h, 0.02 * h)
    h = jnp.einsum('bcn,cd->bdn', h, w3) + b3[None, :, None]
    h = jnp.where(h > 0, h, 0.02 * h)
    m = jnp.max(h, axis=-1)                       # (B, C3)
    f = m @ wf1 + bf1
    f = jnp.where(f > 0, f, 0.02 * f)
    f = f @ wf2 + bf2
    return f.reshape(f.shape[0], -1, 3)


if __name__ == "__main__":
    key = jax.random.PRNGKey(0)
    k_x, k_p = jax.random.split(key)

    B, N = 16, 256
    x = jax.random.normal(k_x, (B, C_IN, N), dtype=jnp.float32)
    params = init_params(k_p)

    # batch_tile=8 -> 2 parallel batch tiles (both v7x cores busy);
    # point_tile=128 -> 2 point steps: exercises init / running-max / fused
    # head-on-last-step paths.
    out = generator_forward(x, params, batch_tile=8, point_tile=128)
    out = jax.block_until_ready(out)

    ref = reference_forward(x, params)
    # conv2/3 + fc head use bf16 operands (f32 accumulation) -> relaxed tol.
    np.testing.assert_allclose(np.asarray(out), np.asarray(ref),
                               rtol=2e-2, atol=1e-2)
    assert out.shape == (B, 1024, 3)

    print("KERNEL_OK")
</pallas_src>

<mosaic_0001>
module attributes {stable_mosaic.version = 11 : i64} {
  func.func @generator_kernel(%arg0: i32, %arg1: i32, %arg2: memref<8x19x128xf32, #tpu.memory_space<vmem>>, %arg3: memref<32x19xf32, #tpu.memory_space<vmem>>, %arg4: memref<32x1xf32, #tpu.memory_space<vmem>>, %arg5: memref<64x32xbf16, #tpu.memory_space<vmem>>, %arg6: memref<64x1xf32, #tpu.memory_space<vmem>>, %arg7: memref<128x64xbf16, #tpu.memory_space<vmem>>, %arg8: memref<128x1xf32, #tpu.memory_space<vmem>>, %arg9: memref<128x256xbf16, #tpu.memory_space<vmem>>, %arg10: memref<1x256xf32, #tpu.memory_space<vmem>>, %arg11: memref<256x3072xbf16, #tpu.memory_space<vmem>>, %arg12: memref<1x3072xf32, #tpu.memory_space<vmem>>, %arg13: memref<8x3072xf32, #tpu.memory_space<vmem>>, %arg14: memref<128x128xf32, #tpu.memory_space<vmem>>) attributes {dimension_semantics = [#tpu.dimension_semantics<parallel>, #tpu.dimension_semantics<arbitrary>], iteration_bounds = array<i64: 2, 2>, scalar_prefetch = 0 : i64, scratch_operands = 1 : i64, tpu.core_type = #tpu.core_type<tc>, window_params = [{transform_indices = @transform_0, window_bounds = array<i64: 8, 19, 128>}, {pipeline_mode = #tpu.pipeline_mode<synchronous>, transform_indices = @transform_1, window_bounds = array<i64: 32, 19>}, {pipeline_mode = #tpu.pipeline_mode<synchronous>, transform_indices = @transform_2, window_bounds = array<i64: 32, 1>}, {pipeline_mode = #tpu.pipeline_mode<synchronous>, transform_indices = @transform_3, window_bounds = array<i64: 64, 32>}, {pipeline_mode = #tpu.pipeline_mode<synchronous>, transform_indices = @transform_4, window_bounds = array<i64: 64, 1>}, {pipeline_mode = #tpu.pipeline_mode<synchronous>, transform_indices = @transform_5, window_bounds = array<i64: 128, 64>}, {pipeline_mode = #tpu.pipeline_mode<synchronous>, transform_indices = @transform_6, window_bounds = array<i64: 128, 1>}, {pipeline_mode = #tpu.pipeline_mode<synchronous>, transform_indices = @transform_7, window_bounds = array<i64: 128, 256>}, {pipeline_mode = #tpu.pipeline_mode<synchronous>, transform_indices = @transform_8, window_bounds = array<i64: 1, 256>}, {pipeline_mode = #tpu.pipeline_mode<synchronous>, transform_indices = @transform_9, window_bounds = array<i64: 256, 3072>}, {pipeline_mode = #tpu.pipeline_mode<synchronous>, transform_indices = @transform_10, window_bounds = array<i64: 1, 3072>}, {transform_indices = @transform_11, window_bounds = array<i64: 8, 3072>}]} {
    %c0 = arith.constant 0 : index
    %c0_0 = arith.constant 0 : index
    %c0_1 = arith.constant 0 : index
    %0 = vector.load %arg2[%c0, %c0_0, %c0_1] : memref<8x19x128xf32, #tpu.memory_space<vmem>>, vector<1x19x128xf32>
    %1 = vector.shape_cast %0 : vector<1x19x128xf32> to vector<19x128xf32>
    %c0_2 = arith.constant 0 : index
    %c0_3 = arith.constant 0 : index
    %2 = vector.load %arg3[%c0_2, %c0_3] : memref<32x19xf32, #tpu.memory_space<vmem>>, vector<32x19xf32>
    %cst = arith.constant dense<0.000000e+00> : vector<32x128xf32>
    %3 = tpu.matmul %2, %1, %cst {dimension_numbers = #tpu.dot_dimension_numbers<[1], [0], [0], [1], [0, 0, 1, 1], [], []>} : vector<32x19xf32>, vector<19x128xf32>, vector<32x128xf32> -> vector<32x128xf32>
    %c0_4 = arith.constant 0 : index
    %c0_5 = arith.constant 0 : index
    %4 = vector.load %arg4[%c0_4, %c0_5] : memref<32x1xf32, #tpu.memory_space<vmem>>, vector<32x1xf32>
    %5 = vector.broadcast %4 : vector<32x1xf32> to vector<32x128xf32>
    %6 = arith.addf %3, %5 : vector<32x128xf32>
    %cst_6 = arith.constant 0.000000e+00 : f32
    %7 = vector.broadcast %cst_6 : f32 to vector<32x128xf32>
    %8 = arith.cmpf ogt, %6, %7 : vector<32x128xf32>
    %cst_7 = arith.constant 2.000000e-02 : f32
    %9 = vector.broadcast %cst_7 : f32 to vector<32x128xf32>
    %10 = arith.mulf %9, %6 : vector<32x128xf32>
    %11 = arith.select %8, %6, %10 : vector<32x128xi1>, vector<32x128xf32>
    %c0_8 = arith.constant 0 : index
    %c0_9 = arith.constant 0 : index
    %12 = vector.load %arg5[%c0_8, %c0_9] : memref<64x32xbf16, #tpu.memory_space<vmem>>, vector<64x32xbf16>
    %13 = arith.truncf %11 : vector<32x128xf32> to vector<32x128xbf16>
    %cst_10 = arith.constant dense<0.000000e+00> : vector<64x128xf32>
    %14 = tpu.matmul %12, %13, %cst_10 {dimension_numbers = #tpu.dot_dimension_numbers<[1], [0], [0], [1], [0, 0, 1, 1], [], []>} : vector<64x32xbf16>, vector<32x128xbf16>, vector<64x128xf32> -> vector<64x128xf32>
    %c0_11 = arith.constant 0 : index
    %c0_12 = arith.constant 0 : index
    %15 = vector.load %arg6[%c0_11, %c0_12] : memref<64x1xf32, #tpu.memory_space<vmem>>, vector<64x1xf32>
    %16 = vector.broadcast %15 : vector<64x1xf32> to vector<64x128xf32>
    %17 = arith.addf %14, %16 : vector<64x128xf32>
    %cst_13 = arith.constant 0.000000e+00 : f32
    %18 = vector.broadcast %cst_13 : f32 to vector<64x128xf32>
    %19 = arith.cmpf ogt, %17, %18 : vector<64x128xf32>
    %cst_14 = arith.constant 2.000000e-02 : f32
    %20 = vector.broadcast %cst_14 : f32 to vector<64x128xf32>
    %21 = arith.mulf %20, %17 : vector<64x128xf32>
    %22 = arith.select %19, %17, %21 : vector<64x128xi1>, vector<64x128xf32>
    %c0_15 = arith.constant 0 : index
    %c0_16 = arith.constant 0 : index
    %23 = vector.load %arg7[%c0_15, %c0_16] : memref<128x64xbf16, #tpu.memory_space<vmem>>, vector<128x64xbf16>
    %24 = arith.truncf %22 : vector<64x128xf32> to vector<64x128xbf16>
    %cst_17 = arith.constant dense<0.000000e+00> : vector<128x128xf32>
    %25 = tpu.matmul %23, %24, %cst_17 {dimension_numbers = #tpu.dot_dimension_numbers<[1], [0], [0], [1], [0, 0, 1, 1], [], []>} : vector<128x64xbf16>, vector<64x128xbf16>, vector<128x128xf32> -> vector<128x128xf32>
    %c0_18 = arith.constant 0 : index
    %c0_19 = arith.constant 0 : index
    %26 = vector.load %arg8[%c0_18, %c0_19] : memref<128x1xf32, #tpu.memory_space<vmem>>, vector<128x1xf32>
    %27 = vector.broadcast %26 : vector<128x1xf32> to vector<128x128xf32>
    %28 = arith.addf %25, %27 : vector<128x128xf32>
    %cst_20 = arith.constant 0.000000e+00 : f32
    %29 = vector.broadcast %cst_20 : f32 to vector<128x128xf32>
    %30 = arith.cmpf ogt, %28, %29 : vector<128x128xf32>
    %cst_21 = arith.constant 2.000000e-02 : f32
    %31 = vector.broadcast %cst_21 : f32 to vector<128x128xf32>
    %32 = arith.mulf %31, %28 : vector<128x128xf32>
    %33 = arith.select %30, %28, %32 : vector<128x128xi1>, vector<128x128xf32>
    %cst_22 = arith.constant dense<0xFF800000> : vector<128xf32>
    %34 = vector.multi_reduction <maximumf>, %33, %cst_22 [1] : vector<128x128xf32> to vector<128xf32>
    %35 = vector.shape_cast %34 : vector<128xf32> to vector<128x1xf32>
    %c1 = arith.constant 1 : index
    %c0_23 = arith.constant 0 : index
    %c0_24 = arith.constant 0 : index
    %36 = vector.load %arg2[%c1, %c0_23, %c0_24] : memref<8x19x128xf32, #tpu.memory_space<vmem>>, vector<1x19x128xf32>
    %37 = vector.shape_cast %36 : vector<1x19x128xf32> to vector<19x128xf32>
    %c0_25 = arith.constant 0 : index
    %c0_26 = arith.constant 0 : index
    %38 = vector.load %arg3[%c0_25, %c0_26] : memref<32x19xf32, #tpu.memory_space<vmem>>, vector<32x19xf32>
    %cst_27 = arith.constant dense<0.000000e+00> : vector<32x128xf32>
    %39 = tpu.matmul %38, %37, %cst_27 {dimension_numbers = #tpu.dot_dimension_numbers<[1], [0], [0], [1], [0, 0, 1, 1], [], []>} : vector<32x19xf32>, vector<19x128xf32>, vector<32x128xf32> -> vector<32x128xf32>
    %c0_28 = arith.constant 0 : index
    %c0_29 = arith.constant 0 : index
    %40 = vector.load %arg4[%c0_28, %c0_29] : memref<32x1xf32, #tpu.memory_space<vmem>>, vector<32x1xf32>
    %41 = vector.broadcast %40 : vector<32x1xf32> to vector<32x128xf32>
    %42 = arith.addf %39, %41 : vector<32x128xf32>
    %cst_30 = arith.constant 0.000000e+00 : f32
    %43 = vector.broadcast %cst_30 : f32 to vector<32x128xf32>
    %44 = arith.cmpf ogt, %42, %43 : vector<32x128xf32>
    %cst_31 = arith.constant 2.000000e-02 : f32
    %45 = vector.broadcast %cst_31 : f32 to vector<32x128xf32>
    %46 = arith.mulf %45, %42 : vector<32x128xf32>
    %47 = arith.select %44, %42, %46 : vector<32x128xi1>, vector<32x128xf32>
    %c0_32 = arith.constant 0 : index
    %c0_33 = arith.constant 0 : index
    %48 = vector.load %arg5[%c0_32, %c0_33] : memref<64x32xbf16, #tpu.memory_space<vmem>>, vector<64x32xbf16>
    %49 = arith.truncf %47 : vector<32x128xf32> to vector<32x128xbf16>
    %cst_34 = arith.constant dense<0.000000e+00> : vector<64x128xf32>
    %50 = tpu.matmul %48, %49, %cst_34 {dimension_numbers = #tpu.dot_dimension_numbers<[1], [0], [0], [1], [0, 0, 1, 1], [], []>} : vector<64x32xbf16>, vector<32x128xbf16>, vector<64x128xf32> -> vector<64x128xf32>
    %c0_35 = arith.constant 0 : index
    %c0_36 = arith.constant 0 : index
    %51 = vector.load %arg6[%c0_35, %c0_36] : memref<64x1xf32, #tpu.memory_space<vmem>>, vector<64x1xf32>
    %52 = vector.broadcast %51 : vector<64x1xf32> to vector<64x128xf32>
    %53 = arith.addf %50, %52 : vector<64x128xf32>
    %cst_37 = arith.constant 0.000000e+00 : f32
    %54 = vector.broadcast %cst_37 : f32 to vector<64x128xf32>
    %55 = arith.cmpf ogt, %53, %54 : vector<64x128xf32>
    %cst_38 = arith.constant 2.000000e-02 : f32
    %56 = vector.broadcast %cst_38 : f32 to vector<64x128xf32>
    %57 = arith.mulf %56, %53 : vector<64x128xf32>
    %58 = arith.select %55, %53, %57 : vector<64x128xi1>, vector<64x128xf32>
    %c0_39 = arith.constant 0 : index
    %c0_40 = arith.constant 0 : index
    %59 = vector.load %arg7[%c0_39, %c0_40] : memref<128x64xbf16, #tpu.memory_space<vmem>>, vector<128x64xbf16>
    %60 = arith.truncf %58 : vector<64x128xf32> to vector<64x128xbf16>
    %cst_41 = arith.constant dense<0.000000e+00> : vector<128x128xf32>
    %61 = tpu.matmul %59, %60, %cst_41 {dimension_numbers = #tpu.dot_dimension_numbers<[1], [0], [0], [1], [0, 0, 1, 1], [], []>} : vector<128x64xbf16>, vector<64x128xbf16>, vector<128x128xf32> -> vector<128x128xf32>
    %c0_42 = arith.constant 0 : index
    %c0_43 = arith.constant 0 : index
    %62 = vector.load %arg8[%c0_42, %c0_43] : memref<128x1xf32, #tpu.memory_space<vmem>>, vector<128x1xf32>
    %63 = vector.broadcast %62 : vector<128x1xf32> to vector<128x128xf32>
    %64 = arith.addf %61, %63 : vector<128x128xf32>
    %cst_44 = arith.constant 0.000000e+00 : f32
    %65 = vector.broadcast %cst_44 : f32 to vector<128x128xf32>
    %66 = arith.cmpf ogt, %64, %65 : vector<128x128xf32>
    %cst_45 = arith.constant 2.000000e-02 : f32
    %67 = vector.broadcast %cst_45 : f32 to vector<128x128xf32>
    %68 = arith.mulf %67, %64 : vector<128x128xf32>
    %69 = arith.select %66, %64, %68 : vector<128x128xi1>, vector<128x128xf32>
    %cst_46 = arith.constant dense<0xFF800000> : vector<128xf32>
    %70 = vector.multi_reduction <maximumf>, %69, %cst_46 [1] : vector<128x128xf32> to vector<128xf32>
    %71 = vector.shape_cast %70 : vector<128xf32> to vector<128x1xf32>
    %c2 = arith.constant 2 : index
    %c0_47 = arith.constant 0 : index
    %c0_48 = arith.constant 0 : index
    %72 = vector.load %arg2[%c2, %c0_47, %c0_48] : memref<8x19x128xf32, #tpu.memory_space<vmem>>, vector<1x19x128xf32>
    %73 = vector.shape_cast %72 : vector<1x19x128xf32> to vector<19x128xf32>
    %c0_49 = arith.constant 0 : index
    %c0_50 = arith.constant 0 : index
    %74 = vector.load %arg3[%c0_49, %c0_50] : memref<32x19xf32, #tpu.memory_space<vmem>>, vector<32x19xf32>
    %cst_51 = arith.constant dense<0.000000e+00> : vector<32x128xf32>
    %75 = tpu.matmul %74, %73, %cst_51 {dimension_numbers = #tpu.dot_dimension_numbers<[1], [0], [0], [1], [0, 0, 1, 1], [], []>} : vector<32x19xf32>, vector<19x128xf32>, vector<32x128xf32> -> vector<32x128xf32>
    %c0_52 = arith.constant 0 : index
    %c0_53 = arith.constant 0 : index
    %76 = vector.load %arg4[%c0_52, %c0_53] : memref<32x1xf32, #tpu.memory_space<vmem>>, vector<32x1xf32>
    %77 = vector.broadcast %76 : vector<32x1xf32> to vector<32x128xf32>
    %78 = arith.addf %75, %77 : vector<32x128xf32>
    %cst_54 = arith.constant 0.000000e+00 : f32
    %79 = vector.broadcast %cst_54 : f32 to vector<32x128xf32>
    %80 = arith.cmpf ogt, %78, %79 : vector<32x128xf32>
    %cst_55 = arith.constant 2.000000e-02 : f32
    %81 = vector.broadcast %cst_55 : f32 to vector<32x128xf32>
    %82 = arith.mulf %81, %78 : vector<32x128xf32>
    %83 = arith.select %80, %78, %82 : vector<32x128xi1>, vector<32x128xf32>
    %c0_56 = arith.constant 0 : index
    %c0_57 = arith.constant 0 : index
    %84 = vector.load %arg5[%c0_56, %c0_57] : memref<64x32xbf16, #tpu.memory_space<vmem>>, vector<64x32xbf16>
    %85 = arith.truncf %83 : vector<32x128xf32> to vector<32x128xbf16>
    %cst_58 = arith.constant dense<0.000000e+00> : vector<64x128xf32>
    %86 = tpu.matmul %84, %85, %cst_58 {dimension_numbers = #tpu.dot_dimension_numbers<[1], [0], [0], [1], [0, 0, 1, 1], [], []>} : vector<64x32xbf16>, vector<32x128xbf16>, vector<64x128xf32> -> vector<64x128xf32>
    %c0_59 = arith.constant 0 : index
    %c0_60 = arith.constant 0 : index
    %87 = vector.load %arg6[%c0_59, %c0_60] : memref<64x1xf32, #tpu.memory_space<vmem>>, vector<64x1xf32>
    %88 = vector.broadcast %87 : vector<64x1xf32> to vector<64x128xf32>
    %89 = arith.addf %86, %88 : vector<64x128xf32>
    %cst_61 = arith.constant 0.000000e+00 : f32
    %90 = vector.broadcast %cst_61 : f32 to vector<64x128xf32>
    %91 = arith.cmpf ogt, %89, %90 : vector<64x128xf32>
    %cst_62 = arith.constant 2.000000e-02 : f32
    %92 = vector.broadcast %cst_62 : f32 to vector<64x128xf32>
    %93 = arith.mulf %92, %89 : vector<64x128xf32>
    %94 = arith.select %91, %89, %93 : vector<64x128xi1>, vector<64x128xf32>
    %c0_63 = arith.constant 0 : index
    %c0_64 = arith.constant 0 : index
    %95 = vector.load %arg7[%c0_63, %c0_64] : memref<128x64xbf16, #tpu.memory_space<vmem>>, vector<128x64xbf16>
    %96 = arith.truncf %94 : vector<64x128xf32> to vector<64x128xbf16>
    %cst_65 = arith.constant dense<0.000000e+00> : vector<128x128xf32>
    %97 = tpu.matmul %95, %96, %cst_65 {dimension_numbers = #tpu.dot_dimension_numbers<[1], [0], [0], [1], [0, 0, 1, 1], [], []>} : vector<128x64xbf16>, vector<64x128xbf16>, vector<128x128xf32> -> vector<128x128xf32>
    %c0_66 = arith.constant 0 : index
    %c0_67 = arith.constant 0 : index
    %98 = vector.load %arg8[%c0_66, %c0_67] : memref<128x1xf32, #tpu.memory_space<vmem>>, vector<128x1xf32>
    %99 = vector.broadcast %98 : vector<128x1xf32> to vector<128x128xf32>
    %100 = arith.addf %97, %99 : vector<128x128xf32>
    %cst_68 = arith.constant 0.000000e+00 : f32
    %101 = vector.broadcast %cst_68 : f32 to vector<128x128xf32>
    %102 = arith.cmpf ogt, %100, %101 : vector<128x128xf32>
    %cst_69 = arith.constant 2.000000e-02 : f32
    %103 = vector.broadcast %cst_69 : f32 to vector<128x128xf32>
    %104 = arith.mulf %103, %100 : vector<128x128xf32>
    %105 = arith.select %102, %100, %104 : vector<128x128xi1>, vector<128x128xf32>
    %cst_70 = arith.constant dense<0xFF800000> : vector<128xf32>
    %106 = vector.multi_reduction <maximumf>, %105, %cst_70 [1] : vector<128x128xf32> to vector<128xf32>
    %107 = vector.shape_cast %106 : vector<128xf32> to vector<128x1xf32>
    %c3 = arith.constant 3 : index
    %c0_71 = arith.constant 0 : index
    %c0_72 = arith.constant 0 : index
    %108 = vector.load %arg2[%c3, %c0_71, %c0_72] : memref<8x19x128xf32, #tpu.memory_space<vmem>>, vector<1x19x128xf32>
    %109 = vector.shape_cast %108 : vector<1x19x128xf32> to vector<19x128xf32>
    %c0_73 = arith.constant 0 : index
    %c0_74 = arith.constant 0 : index
    %110 = vector.load %arg3[%c0_73, %c0_74] : memref<32x19xf32, #tpu.memory_space<vmem>>, vector<32x19xf32>
    %cst_75 = arith.constant dense<0.000000e+00> : vector<32x128xf32>
    %111 = tpu.matmul %110, %109, %cst_75 {dimension_numbers = #tpu.dot_dimension_numbers<[1], [0], [0], [1], [0, 0, 1, 1], [], []>} : vector<32x19xf32>, vector<19x128xf32>, vector<32x128xf32> -> vector<32x128xf32>
    %c0_76 = arith.constant 0 : index
    %c0_77 = arith.constant 0 : index
    %112 = vector.load %arg4[%c0_76, %c0_77] : memref<32x1xf32, #tpu.memory_space<vmem>>, vector<32x1xf32>
    %113 = vector.broadcast %112 : vector<32x1xf32> to vector<32x128xf32>
    %114 = arith.addf %111, %113 : vector<32x128xf32>
    %cst_78 = arith.constant 0.000000e+00 : f32
    %115 = vector.broadcast %cst_78 : f32 to vector<32x128xf32>
    %116 = arith.cmpf ogt, %114, %115 : vector<32x128xf32>
    %cst_79 = arith.constant 2.000000e-02 : f32
    %117 = vector.broadcast %cst_79 : f32 to vector<32x128xf32>
    %118 = arith.mulf %117, %114 : vector<32x128xf32>
    %119 = arith.select %116, %114, %118 : vector<32x128xi1>, vector<32x128xf32>
    %c0_80 = arith.constant 0 : index
    %c0_81 = arith.constant 0 : index
    %120 = vector.load %arg5[%c0_80, %c0_81] : memref<64x32xbf16, #tpu.memory_space<vmem>>, vector<64x32xbf16>
    %121 = arith.truncf %119 : vector<32x128xf32> to vector<32x128xbf16>
    %cst_82 = arith.constant dense<0.000000e+00> : vector<64x128xf32>
    %122 = tpu.matmul %120, %121, %cst_82 {dimension_numbers = #tpu.dot_dimension_numbers<[1], [0], [0], [1], [0, 0, 1, 1], [], []>} : vector<64x32xbf16>, vector<32x128xbf16>, vector<64x128xf32> -> vector<64x128xf32>
    %c0_83 = arith.constant 0 : index
    %c0_84 = arith.constant 0 : index
    %123 = vector.load %arg6[%c0_83, %c0_84] : memref<64x1xf32, #tpu.memory_space<vmem>>, vector<64x1xf32>
    %124 = vector.broadcast %123 : vector<64x1xf32> to vector<64x128xf32>
    %125 = arith.addf %122, %124 : vector<64x128xf32>
    %cst_85 = arith.constant 0.000000e+00 : f32
    %126 = vector.broadcast %cst_85 : f32 to vector<64x128xf32>
    %127 = arith.cmpf ogt, %125, %126 : vector<64x128xf32>
    %cst_86 = arith.constant 2.000000e-02 : f32
    %128 = vector.broadcast %cst_86 : f32 to vector<64x128xf32>
    %129 = arith.mulf %128, %125 : vector<64x128xf32>
    %130 = arith.select %127, %125, %129 : vector<64x128xi1>, vector<64x128xf32>
    %c0_87 = arith.constant 0 : index
    %c0_88 = arith.constant 0 : index
    %131 = vector.load %arg7[%c0_87, %c0_88] : memref<128x64xbf16, #tpu.memory_space<vmem>>, vector<128x64xbf16>
    %132 = arith.truncf %130 : vector<64x128xf32> to vector<64x128xbf16>
    %cst_89 = arith.constant dense<0.000000e+00> : vector<128x128xf32>
    %133 = tpu.matmul %131, %132, %cst_89 {dimension_numbers = #tpu.dot_dimension_numbers<[1], [0], [0], [1], [0, 0, 1, 1], [], []>} : vector<128x64xbf16>, vector<64x128xbf16>, vector<128x128xf32> -> vector<128x128xf32>
    %c0_90 = arith.constant 0 : index
    %c0_91 = arith.constant 0 : index
    %134 = vector.load %arg8[%c0_90, %c0_91] : memref<128x1xf32, #tpu.memory_space<vmem>>, vector<128x1xf32>
    %135 = vector.broadcast %134 : vector<128x1xf32> to vector<128x128xf32>
    %136 = arith.addf %133, %135 : vector<128x128xf32>
    %cst_92 = arith.constant 0.000000e+00 : f32
    %137 = vector.broadcast %cst_92 : f32 to vector<128x128xf32>
    %138 = arith.cmpf ogt, %136, %137 : vector<128x128xf32>
    %cst_93 = arith.constant 2.000000e-02 : f32
    %139 = vector.broadcast %cst_93 : f32 to vector<128x128xf32>
    %140 = arith.mulf %139, %136 : vector<128x128xf32>
    %141 = arith.select %138, %136, %140 : vector<128x128xi1>, vector<128x128xf32>
    %cst_94 = arith.constant dense<0xFF800000> : vector<128xf32>
    %142 = vector.multi_reduction <maximumf>, %141, %cst_94 [1] : vector<128x128xf32> to vector<128xf32>
    %143 = vector.shape_cast %142 : vector<128xf32> to vector<128x1xf32>
    %c4 = arith.constant 4 : index
    %c0_95 = arith.constant 0 : index
    %c0_96 = arith.constant 0 : index
    %144 = vector.load %arg2[%c4, %c0_95, %c0_96] : memref<8x19x128xf32, #tpu.memory_space<vmem>>, vector<1x19x128xf32>
    %145 = vector.shape_cast %144 : vector<1x19x128xf32> to vector<19x128xf32>
    %c0_97 = arith.constant 0 : index
    %c0_98 = arith.constant 0 : index
    %146 = vector.load %arg3[%c0_97, %c0_98] : memref<32x19xf32, #tpu.memory_space<vmem>>, vector<32x19xf32>
    %cst_99 = arith.constant dense<0.000000e+00> : vector<32x128xf32>
    %147 = tpu.matmul %146, %145, %cst_99 {dimension_numbers = #tpu.dot_dimension_numbers<[1], [0], [0], [1], [0, 0, 1, 1], [], []>} : vector<32x19xf32>, vector<19x128xf32>, vector<32x128xf32> -> vector<32x128xf32>
    %c0_100 = arith.constant 0 : index
    %c0_101 = arith.constant 0 : index
    %148 = vector.load %arg4[%c0_100, %c0_101] : memref<32x1xf32, #tpu.memory_space<vmem>>, vector<32x1xf32>
    %149 = vector.broadcast %148 : vector<32x1xf32> to vector<32x128xf32>
    %150 = arith.addf %147, %149 : vector<32x128xf32>
    %cst_102 = arith.constant 0.000000e+00 : f32
    %151 = vector.broadcast %cst_102 : f32 to vector<32x128xf32>
    %152 = arith.cmpf ogt, %150, %151 : vector<32x128xf32>
    %cst_103 = arith.constant 2.000000e-02 : f32
    %153 = vector.broadcast %cst_103 : f32 to vector<32x128xf32>
    %154 = arith.mulf %153, %150 : vector<32x128xf32>
    %155 = arith.select %152, %150, %154 : vector<32x128xi1>, vector<32x128xf32>
    %c0_104 = arith.constant 0 : index
    %c0_105 = arith.constant 0 : index
    %156 = vector.load %arg5[%c0_104, %c0_105] : memref<64x32xbf16, #tpu.memory_space<vmem>>, vector<64x32xbf16>
    %157 = arith.truncf %155 : vector<32x128xf32> to vector<32x128xbf16>
    %cst_106 = arith.constant dense<0.000000e+00> : vector<64x128xf32>
    %158 = tpu.matmul %156, %157, %cst_106 {dimension_numbers = #tpu.dot_dimension_numbers<[1], [0], [0], [1], [0, 0, 1, 1], [], []>} : vector<64x32xbf16>, vector<32x128xbf16>, vector<64x128xf32> -> vector<64x128xf32>
    %c0_107 = arith.constant 0 : index
    %c0_108 = arith.constant 0 : index
    %159 = vector.load %arg6[%c0_107, %c0_108] : memref<64x1xf32, #tpu.memory_space<vmem>>, vector<64x1xf32>
    %160 = vector.broadcast %159 : vector<64x1xf32> to vector<64x128xf32>
    %161 = arith.addf %158, %160 : vector<64x128xf32>
    %cst_109 = arith.constant 0.000000e+00 : f32
    %162 = vector.broadcast %cst_109 : f32 to vector<64x128xf32>
    %163 = arith.cmpf ogt, %161, %162 : vector<64x128xf32>
    %cst_110 = arith.constant 2.000000e-02 : f32
    %164 = vector.broadcast %cst_110 : f32 to vector<64x128xf32>
    %165 = arith.mulf %164, %161 : vector<64x128xf32>
    %166 = arith.select %163, %161, %165 : vector<64x128xi1>, vector<64x128xf32>
    %c0_111 = arith.constant 0 : index
    %c0_112 = arith.constant 0 : index
    %167 = vector.load %arg7[%c0_111, %c0_112] : memref<128x64xbf16, #tpu.memory_space<vmem>>, vector<128x64xbf16>
    %168 = arith.truncf %166 : vector<64x128xf32> to vector<64x128xbf16>
    %cst_113 = arith.constant dense<0.000000e+00> : vector<128x128xf32>
    %169 = tpu.matmul %167, %168, %cst_113 {dimension_numbers = #tpu.dot_dimension_numbers<[1], [0], [0], [1], [0, 0, 1, 1], [], []>} : vector<128x64xbf16>, vector<64x128xbf16>, vector<128x128xf32> -> vector<128x128xf32>
    %c0_114 = arith.constant 0 : index
    %c0_115 = arith.constant 0 : index
    %170 = vector.load %arg8[%c0_114, %c0_115] : memref<128x1xf32, #tpu.memory_space<vmem>>, vector<128x1xf32>
    %171 = vector.broadcast %170 : vector<128x1xf32> to vector<128x128xf32>
    %172 = arith.addf %169, %171 : vector<128x128xf32>
    %cst_116 = arith.constant 0.000000e+00 : f32
    %173 = vector.broadcast %cst_116 : f32 to vector<128x128xf32>
    %174 = arith.cmpf ogt, %172, %173 : vector<128x128xf32>
    %cst_117 = arith.constant 2.000000e-02 : f32
    %175 = vector.broadcast %cst_117 : f32 to vector<128x128xf32>
    %176 = arith.mulf %175, %172 : vector<128x128xf32>
    %177 = arith.select %174, %172, %176 : vector<128x128xi1>, vector<128x128xf32>
    %cst_118 = arith.constant dense<0xFF800000> : vector<128xf32>
    %178 = vector.multi_reduction <maximumf>, %177, %cst_118 [1] : vector<128x128xf32> to vector<128xf32>
    %179 = vector.shape_cast %178 : vector<128xf32> to vector<128x1xf32>
    %c5 = arith.constant 5 : index
    %c0_119 = arith.constant 0 : index
    %c0_120 = arith.constant 0 : index
    %180 = vector.load %arg2[%c5, %c0_119, %c0_120] : memref<8x19x128xf32, #tpu.memory_space<vmem>>, vector<1x19x128xf32>
    %181 = vector.shape_cast %180 : vector<1x19x128xf32> to vector<19x128xf32>
    %c0_121 = arith.constant 0 : index
    %c0_122 = arith.constant 0 : index
    %182 = vector.load %arg3[%c0_121, %c0_122] : memref<32x19xf32, #tpu.memory_space<vmem>>, vector<32x19xf32>
    %cst_123 = arith.constant dense<0.000000e+00> : vector<32x128xf32>
    %183 = tpu.matmul %182, %181, %cst_123 {dimension_numbers = #tpu.dot_dimension_numbers<[1], [0], [0], [1], [0, 0, 1, 1], [], []>} : vector<32x19xf32>, vector<19x128xf32>, vector<32x128xf32> -> vector<32x128xf32>
    %c0_124 = arith.constant 0 : index
    %c0_125 = arith.constant 0 : index
    %184 = vector.load %arg4[%c0_124, %c0_125] : memref<32x1xf32, #tpu.memory_space<vmem>>, vector<32x1xf32>
    %185 = vector.broadcast %184 : vector<32x1xf32> to vector<32x128xf32>
    %186 = arith.addf %183, %185 : vector<32x128xf32>
    %cst_126 = arith.constant 0.000000e+00 : f32
    %187 = vector.broadcast %cst_126 : f32 to vector<32x128xf32>
    %188 = arith.cmpf ogt, %186, %187 : vector<32x128xf32>
    %cst_127 = arith.constant 2.000000e-02 : f32
    %189 = vector.broadcast %cst_127 : f32 to vector<32x128xf32>
    %190 = arith.mulf %189, %186 : vector<32x128xf32>
    %191 = arith.select %188, %186, %190 : vector<32x128xi1>, vector<32x128xf32>
    %c0_128 = arith.constant 0 : index
    %c0_129 = arith.constant 0 : index
    %192 = vector.load %arg5[%c0_128, %c0_129] : memref<64x32xbf16, #tpu.memory_space<vmem>>, vector<64x32xbf16>
    %193 = arith.truncf %191 : vector<32x128xf32> to vector<32x128xbf16>
    %cst_130 = arith.constant dense<0.000000e+00> : vector<64x128xf32>
    %194 = tpu.matmul %192, %193, %cst_130 {dimension_numbers = #tpu.dot_dimension_numbers<[1], [0], [0], [1], [0, 0, 1, 1], [], []>} : vector<64x32xbf16>, vector<32x128xbf16>, vector<64x128xf32> -> vector<64x128xf32>
    %c0_131 = arith.constant 0 : index
    %c0_132 = arith.constant 0 : index
    %195 = vector.load %arg6[%c0_131, %c0_132] : memref<64x1xf32, #tpu.memory_space<vmem>>, vector<64x1xf32>
    %196 = vector.broadcast %195 : vector<64x1xf32> to vector<64x128xf32>
    %197 = arith.addf %194, %196 : vector<64x128xf32>
    %cst_133 = arith.constant 0.000000e+00 : f32
    %198 = vector.broadcast %cst_133 : f32 to vector<64x128xf32>
    %199 = arith.cmpf ogt, %197, %198 : vector<64x128xf32>
    %cst_134 = arith.constant 2.000000e-02 : f32
    %200 = vector.broadcast %cst_134 : f32 to vector<64x128xf32>
    %201 = arith.mulf %200, %197 : vector<64x128xf32>
    %202 = arith.select %199, %197, %201 : vector<64x128xi1>, vector<64x128xf32>
    %c0_135 = arith.constant 0 : index
    %c0_136 = arith.constant 0 : index
    %203 = vector.load %arg7[%c0_135, %c0_136] : memref<128x64xbf16, #tpu.memory_space<vmem>>, vector<128x64xbf16>
    %204 = arith.truncf %202 : vector<64x128xf32> to vector<64x128xbf16>
    %cst_137 = arith.constant dense<0.000000e+00> : vector<128x128xf32>
    %205 = tpu.matmul %203, %204, %cst_137 {dimension_numbers = #tpu.dot_dimension_numbers<[1], [0], [0], [1], [0, 0, 1, 1], [], []>} : vector<128x64xbf16>, vector<64x128xbf16>, vector<128x128xf32> -> vector<128x128xf32>
    %c0_138 = arith.constant 0 : index
    %c0_139 = arith.constant 0 : index
    %206 = vector.load %arg8[%c0_138, %c0_139] : memref<128x1xf32, #tpu.memory_space<vmem>>, vector<128x1xf32>
    %207 = vector.broadcast %206 : vector<128x1xf32> to vector<128x128xf32>
    %208 = arith.addf %205, %207 : vector<128x128xf32>
    %cst_140 = arith.constant 0.000000e+00 : f32
    %209 = vector.broadcast %cst_140 : f32 to vector<128x128xf32>
    %210 = arith.cmpf ogt, %208, %209 : vector<128x128xf32>
    %cst_141 = arith.constant 2.000000e-02 : f32
    %211 = vector.broadcast %cst_141 : f32 to vector<128x128xf32>
    %212 = arith.mulf %211, %208 : vector<128x128xf32>
    %213 = arith.select %210, %208, %212 : vector<128x128xi1>, vector<128x128xf32>
    %cst_142 = arith.constant dense<0xFF800000> : vector<128xf32>
    %214 = vector.multi_reduction <maximumf>, %213, %cst_142 [1] : vector<128x128xf32> to vector<128xf32>
    %215 = vector.shape_cast %214 : vector<128xf32> to vector<128x1xf32>
    %c6 = arith.constant 6 : index
    %c0_143 = arith.constant 0 : index
    %c0_144 = arith.constant 0 : index
    %216 = vector.load %arg2[%c6, %c0_143, %c0_144] : memref<8x19x128xf32, #tpu.memory_space<vmem>>, vector<1x19x128xf32>
    %217 = vector.shape_cast %216 : vector<1x19x128xf32> to vector<19x128xf32>
    %c0_145 = arith.constant 0 : index
    %c0_146 = arith.constant 0 : index
    %218 = vector.load %arg3[%c0_145, %c0_146] : memref<32x19xf32, #tpu.memory_space<vmem>>, vector<32x19xf32>
    %cst_147 = arith.constant dense<0.000000e+00> : vector<32x128xf32>
    %219 = tpu.matmul %218, %217, %cst_147 {dimension_numbers = #tpu.dot_dimension_numbers<[1], [0], [0], [1], [0, 0, 1, 1], [], []>} : vector<32x19xf32>, vector<19x128xf32>, vector<32x128xf32> -> vector<32x128xf32>
    %c0_148 = arith.constant 0 : index
    %c0_149 = arith.constant 0 : index
    %220 = vector.load %arg4[%c0_148, %c0_149] : memref<32x1xf32, #tpu.memory_space<vmem>>, vector<32x1xf32>
    %221 = vector.broadcast %220 : vector<32x1xf32> to vector<32x128xf32>
    %222 = arith.addf %219, %221 : vector<32x128xf32>
    %cst_150 = arith.constant 0.000000e+00 : f32
    %223 = vector.broadcast %cst_150 : f32 to vector<32x128xf32>
    %224 = arith.cmpf ogt, %222, %223 : vector<32x128xf32>
    %cst_151 = arith.constant 2.000000e-02 : f32
    %225 = vector.broadcast %cst_151 : f32 to vector<32x128xf32>
    %226 = arith.mulf %225, %222 : vector<32x128xf32>
    %227 = arith.select %224, %222, %226 : vector<32x128xi1>, vector<32x128xf32>
    %c0_152 = arith.constant 0 : index
    %c0_153 = arith.constant 0 : index
    %228 = vector.load %arg5[%c0_152, %c0_153] : memref<64x32xbf16, #tpu.memory_space<vmem>>, vector<64x32xbf16>
    %229 = arith.truncf %227 : vector<32x128xf32> to vector<32x128xbf16>
    %cst_154 = arith.constant dense<0.000000e+00> : vector<64x128xf32>
    %230 = tpu.matmul %228, %229, %cst_154 {dimension_numbers = #tpu.dot_dimension_numbers<[1], [0], [0], [1], [0, 0, 1, 1], [], []>} : vector<64x32xbf16>, vector<32x128xbf16>, vector<64x128xf32> -> vector<64x128xf32>
    %c0_155 = arith.constant 0 : index
    %c0_156 = arith.constant 0 : index
    %231 = vector.load %arg6[%c0_155, %c0_156] : memref<64x1xf32, #tpu.memory_space<vmem>>, vector<64x1xf32>
    %232 = vector.broadcast %231 : vector<64x1xf32> to vector<64x128xf32>
    %233 = arith.addf %230, %232 : vector<64x128xf32>
    %cst_157 = arith.constant 0.000000e+00 : f32
    %234 = vector.broadcast %cst_157 : f32 to vector<64x128xf32>
    %235 = arith.cmpf ogt, %233, %234 : vector<64x128xf32>
    %cst_158 = arith.constant 2.000000e-02 : f32
    %236 = vector.broadcast %cst_158 : f32 to vector<64x128xf32>
    %237 = arith.mulf %236, %233 : vector<64x128xf32>
    %238 = arith.select %235, %233, %237 : vector<64x128xi1>, vector<64x128xf32>
    %c0_159 = arith.constant 0 : index
    %c0_160 = arith.constant 0 : index
    %239 = vector.load %arg7[%c0_159, %c0_160] : memref<128x64xbf16, #tpu.memory_space<vmem>>, vector<128x64xbf16>
    %240 = arith.truncf %238 : vector<64x128xf32> to vector<64x128xbf16>
    %cst_161 = arith.constant dense<0.000000e+00> : vector<128x128xf32>
    %241 = tpu.matmul %239, %240, %cst_161 {dimension_numbers = #tpu.dot_dimension_numbers<[1], [0], [0], [1], [0, 0, 1, 1], [], []>} : vector<128x64xbf16>, vector<64x128xbf16>, vector<128x128xf32> -> vector<128x128xf32>
    %c0_162 = arith.constant 0 : index
    %c0_163 = arith.constant 0 : index
    %242 = vector.load %arg8[%c0_162, %c0_163] : memref<128x1xf32, #tpu.memory_space<vmem>>, vector<128x1xf32>
    %243 = vector.broadcast %242 : vector<128x1xf32> to vector<128x128xf32>
    %244 = arith.addf %241, %243 : vector<128x128xf32>
    %cst_164 = arith.constant 0.000000e+00 : f32
    %245 = vector.broadcast %cst_164 : f32 to vector<128x128xf32>
    %246 = arith.cmpf ogt, %244, %245 : vector<128x128xf32>
    %cst_165 = arith.constant 2.000000e-02 : f32
    %247 = vector.broadcast %cst_165 : f32 to vector<128x128xf32>
    %248 = arith.mulf %247, %244 : vector<128x128xf32>
    %249 = arith.select %246, %244, %248 : vector<128x128xi1>, vector<128x128xf32>
    %cst_166 = arith.constant dense<0xFF800000> : vector<128xf32>
    %250 = vector.multi_reduction <maximumf>, %249, %cst_166 [1] : vector<128x128xf32> to vector<128xf32>
    %251 = vector.shape_cast %250 : vector<128xf32> to vector<128x1xf32>
    %c7 = arith.constant 7 : index
    %c0_167 = arith.constant 0 : index
    %c0_168 = arith.constant 0 : index
    %252 = vector.load %arg2[%c7, %c0_167, %c0_168] : memref<8x19x128xf32, #tpu.memory_space<vmem>>, vector<1x19x128xf32>
    %253 = vector.shape_cast %252 : vector<1x19x128xf32> to vector<19x128xf32>
    %c0_169 = arith.constant 0 : index
    %c0_170 = arith.constant 0 : index
    %254 = vector.load %arg3[%c0_169, %c0_170] : memref<32x19xf32, #tpu.memory_space<vmem>>, vector<32x19xf32>
    %cst_171 = arith.constant dense<0.000000e+00> : vector<32x128xf32>
    %255 = tpu.matmul %254, %253, %cst_171 {dimension_numbers = #tpu.dot_dimension_numbers<[1], [0], [0], [1], [0, 0, 1, 1], [], []>} : vector<32x19xf32>, vector<19x128xf32>, vector<32x128xf32> -> vector<32x128xf32>
    %c0_172 = arith.constant 0 : index
    %c0_173 = arith.constant 0 : index
    %256 = vector.load %arg4[%c0_172, %c0_173] : memref<32x1xf32, #tpu.memory_space<vmem>>, vector<32x1xf32>
    %257 = vector.broadcast %256 : vector<32x1xf32> to vector<32x128xf32>
    %258 = arith.addf %255, %257 : vector<32x128xf32>
    %cst_174 = arith.constant 0.000000e+00 : f32
    %259 = vector.broadcast %cst_174 : f32 to vector<32x128xf32>
    %260 = arith.cmpf ogt, %258, %259 : vector<32x128xf32>
    %cst_175 = arith.constant 2.000000e-02 : f32
    %261 = vector.broadcast %cst_175 : f32 to vector<32x128xf32>
    %262 = arith.mulf %261, %258 : vector<32x128xf32>
    %263 = arith.select %260, %258, %262 : vector<32x128xi1>, vector<32x128xf32>
    %c0_176 = arith.constant 0 : index
    %c0_177 = arith.constant 0 : index
    %264 = vector.load %arg5[%c0_176, %c0_177] : memref<64x32xbf16, #tpu.memory_space<vmem>>, vector<64x32xbf16>
    %265 = arith.truncf %263 : vector<32x128xf32> to vector<32x128xbf16>
    %cst_178 = arith.constant dense<0.000000e+00> : vector<64x128xf32>
    %266 = tpu.matmul %264, %265, %cst_178 {dimension_numbers = #tpu.dot_dimension_numbers<[1], [0], [0], [1], [0, 0, 1, 1], [], []>} : vector<64x32xbf16>, vector<32x128xbf16>, vector<64x128xf32> -> vector<64x128xf32>
    %c0_179 = arith.constant 0 : index
    %c0_180 = arith.constant 0 : index
    %267 = vector.load %arg6[%c0_179, %c0_180] : memref<64x1xf32, #tpu.memory_space<vmem>>, vector<64x1xf32>
    %268 = vector.broadcast %267 : vector<64x1xf32> to vector<64x128xf32>
    %269 = arith.addf %266, %268 : vector<64x128xf32>
    %cst_181 = arith.constant 0.000000e+00 : f32
    %270 = vector.broadcast %cst_181 : f32 to vector<64x128xf32>
    %271 = arith.cmpf ogt, %269, %270 : vector<64x128xf32>
    %cst_182 = arith.constant 2.000000e-02 : f32
    %272 = vector.broadcast %cst_182 : f32 to vector<64x128xf32>
    %273 = arith.mulf %272, %269 : vector<64x128xf32>
    %274 = arith.select %271, %269, %273 : vector<64x128xi1>, vector<64x128xf32>
    %c0_183 = arith.constant 0 : index
    %c0_184 = arith.constant 0 : index
    %275 = vector.load %arg7[%c0_183, %c0_184] : memref<128x64xbf16, #tpu.memory_space<vmem>>, vector<128x64xbf16>
    %276 = arith.truncf %274 : vector<64x128xf32> to vector<64x128xbf16>
    %cst_185 = arith.constant dense<0.000000e+00> : vector<128x128xf32>
    %277 = tpu.matmul %275, %276, %cst_185 {dimension_numbers = #tpu.dot_dimension_numbers<[1], [0], [0], [1], [0, 0, 1, 1], [], []>} : vector<128x64xbf16>, vector<64x128xbf16>, vector<128x128xf32> -> vector<128x128xf32>
    %c0_186 = arith.constant 0 : index
    %c0_187 = arith.constant 0 : index
    %278 = vector.load %arg8[%c0_186, %c0_187] : memref<128x1xf32, #tpu.memory_space<vmem>>, vector<128x1xf32>
    %279 = vector.broadcast %278 : vector<128x1xf32> to vector<128x128xf32>
    %280 = arith.addf %277, %279 : vector<128x128xf32>
    %cst_188 = arith.constant 0.000000e+00 : f32
    %281 = vector.broadcast %cst_188 : f32 to vector<128x128xf32>
    %282 = arith.cmpf ogt, %280, %281 : vector<128x128xf32>
    %cst_189 = arith.constant 2.000000e-02 : f32
    %283 = vector.broadcast %cst_189 : f32 to vector<128x128xf32>
    %284 = arith.mulf %283, %280 : vector<128x128xf32>
    %285 = arith.select %282, %280, %284 : vector<128x128xi1>, vector<128x128xf32>
    %cst_190 = arith.constant dense<0xFF800000> : vector<128xf32>
    %286 = vector.multi_reduction <maximumf>, %285, %cst_190 [1] : vector<128x128xf32> to vector<128xf32>
    %287 = vector.shape_cast %286 : vector<128xf32> to vector<128x1xf32>
    %288 = tpu.concatenate %35, %71, %107, %143, %179, %215, %251, %287 in 1 : vector<128x1xf32>, vector<128x1xf32>, vector<128x1xf32>, vector<128x1xf32>, vector<128x1xf32>, vector<128x1xf32>, vector<128x1xf32>, vector<128x1xf32> -> vector<128x8xf32>
    %c0_i32 = arith.constant 0 : i32
    %289 = arith.cmpi eq, %arg1, %c0_i32 : i32
    %290 = arith.extui %289 : i1 to i32
    %c0_i32_191 = arith.constant 0 : i32
    %291 = arith.cmpi ne, %290, %c0_i32_191 : i32
    scf.if %291 {
      %c0_195 = arith.constant 0 : index
      %c0_196 = arith.constant 0 : index
      %298 = vector.load %arg14[%c0_195, %c0_196] : memref<128x128xf32, #tpu.memory_space<vmem>>, vector<128x8xf32>
      tpu.vector_store %arg14[%c0_195, %c0_196], %288 {strides = array<i32>} : memref<128x128xf32, #tpu.memory_space<vmem>>, vector<128x8xf32>,
    } else {
    }
    %c0_i32_192 = arith.constant 0 : i32
    %292 = arith.cmpi ne, %arg1, %c0_i32_192 : i32
    %293 = arith.extui %292 : i1 to i32
    %c0_i32_193 = arith.constant 0 : i32
    %294 = arith.cmpi ne, %293, %c0_i32_193 : i32
    scf.if %294 {
      %c0_195 = arith.constant 0 : index
      %c0_196 = arith.constant 0 : index
      %298 = vector.load %arg14[%c0_195, %c0_196] : memref<128x128xf32, #tpu.memory_space<vmem>>, vector<128x8xf32>
      %299 = arith.maximumf %298, %288 : vector<128x8xf32>
      %c0_197 = arith.constant 0 : index
      %c0_198 = arith.constant 0 : index
      %300 = vector.load %arg14[%c0_197, %c0_198] : memref<128x128xf32, #tpu.memory_space<vmem>>, vector<128x8xf32>
      tpu.vector_store %arg14[%c0_197, %c0_198], %299 {strides = array<i32>} : memref<128x128xf32, #tpu.memory_space<vmem>>, vector<128x8xf32>,
    } else {
    }
    %c1_i32 = arith.constant 1 : i32
    %295 = arith.cmpi eq, %arg1, %c1_i32 : i32
    %296 = arith.extui %295 : i1 to i32
    %c0_i32_194 = arith.constant 0 : i32
    %297 = arith.cmpi ne, %296, %c0_i32_194 : i32
    scf.if %297 {
      %c0_195 = arith.constant 0 : index
      %c0_196 = arith.constant 0 : index
      %298 = vector.load %arg14[%c0_195, %c0_196] : memref<128x128xf32, #tpu.memory_space<vmem>>, vector<128x128xf32>
      %299 = tpu.transpose %298, [1, 0] : vector<128x128xf32> -> vector<128x128xf32>
      %300 = vector.extract_strided_slice %299 {offsets = [0, 0], sizes = [8, 128], strides = [1, 1]} : vector<128x128xf32> to vector<8x128xf32>
      %301 = arith.truncf %300 : vector<8x128xf32> to vector<8x128xbf16>
      %c0_197 = arith.constant 0 : index
      %c0_198 = arith.constant 0 : index
      %302 = vector.load %arg9[%c0_197, %c0_198] : memref<128x256xbf16, #tpu.memory_space<vmem>>, vector<128x256xbf16>
      %cst_199 = arith.constant dense<0.000000e+00> : vector<8x256xf32>
      %303 = tpu.matmul %301, %302, %cst_199 {dimension_numbers = #tpu.dot_dimension_numbers<[1], [0], [0], [1], [0, 0, 1, 1], [], []>} : vector<8x128xbf16>, vector<128x256xbf16>, vector<8x256xf32> -> vector<8x256xf32>
      %c0_200 = arith.constant 0 : index
      %c0_201 = arith.constant 0 : index
      %304 = vector.load %arg10[%c0_200, %c0_201] : memref<1x256xf32, #tpu.memory_space<vmem>>, vector<1x256xf32>
      %305 = vector.broadcast %304 : vector<1x256xf32> to vector<8x256xf32>
      %306 = arith.addf %303, %305 : vector<8x256xf32>
      %cst_202 = arith.constant 0.000000e+00 : f32
      %307 = vector.broadcast %cst_202 : f32 to vector<8x256xf32>
      %308 = arith.cmpf ogt, %306, %307 : vector<8x256xf32>
      %cst_203 = arith.constant 2.000000e-02 : f32
      %309 = vector.broadcast %cst_203 : f32 to vector<8x256xf32>
      %310 = arith.mulf %309, %306 : vector<8x256xf32>
      %311 = arith.select %308, %306, %310 : vector<8x256xi1>, vector<8x256xf32>
      %312 = arith.truncf %311 : vector<8x256xf32> to vector<8x256xbf16>
      %c0_204 = arith.constant 0 : index
      %c0_205 = arith.constant 0 : index
      %313 = vector.load %arg11[%c0_204, %c0_205] : memref<256x3072xbf16, #tpu.memory_space<vmem>>, vector<256x3072xbf16>
      %cst_206 = arith.constant dense<0.000000e+00> : vector<8x3072xf32>
      %314 = tpu.matmul %312, %313, %cst_206 {dimension_numbers = #tpu.dot_dimension_numbers<[1], [0], [0], [1], [0, 0, 1, 1], [], []>} : vector<8x256xbf16>, vector<256x3072xbf16>, vector<8x3072xf32> -> vector<8x3072xf32>
      %c0_207 = arith.constant 0 : index
      %c0_208 = arith.constant 0 : index
      %315 = vector.load %arg12[%c0_207, %c0_208] : memref<1x3072xf32, #tpu.memory_space<vmem>>, vector<1x3072xf32>
      %316 = vector.broadcast %315 : vector<1x3072xf32> to vector<8x3072xf32>
      %317 = arith.addf %314, %316 : vector<8x3072xf32>
      %c0_209 = arith.constant 0 : index
      %c0_210 = arith.constant 0 : index
      %318 = vector.load %arg13[%c0_209, %c0_210] : memref<8x3072xf32, #tpu.memory_space<vmem>>, vector<8x3072xf32>
      tpu.vector_store %arg13[%c0_209, %c0_210], %317 {strides = array<i32>} : memref<8x3072xf32, #tpu.memory_space<vmem>>, vector<8x3072xf32>,
    } else {
    }
    return
  }
  func.func @transform_0(%arg0: i32, %arg1: i32) -> (i32, i32, i32) {
    %c0_i32 = arith.constant 0 : i32
    %c0_i32_0 = arith.constant 0 : i32
    return %arg0, %c0_i32, %arg1 : i32, i32, i32
  }
  func.func @transform_1(%arg0: i32, %arg1: i32) -> (i32, i32) {
    %c0_i32 = arith.constant 0 : i32
    %c0_i32_0 = arith.constant 0 : i32
    %c0_i32_1 = arith.constant 0 : i32
    return %c0_i32, %c0_i32_0 : i32, i32
  }
  func.func @transform_2(%arg0: i32, %arg1: i32) -> (i32, i32) {
    %c0_i32 = arith.constant 0 : i32
    %c0_i32_0 = arith.constant 0 : i32
    %c0_i32_1 = arith.constant 0 : i32
    return %c0_i32, %c0_i32_0 : i32, i32
  }
  func.func @transform_3(%arg0: i32, %arg1: i32) -> (i32, i32) {
    %c0_i32 = arith.constant 0 : i32
    %c0_i32_0 = arith.constant 0 : i32
    %c0_i32_1 = arith.constant 0 : i32
    return %c0_i32, %c0_i32_0 : i32, i32
  }
  func.func @transform_4(%arg0: i32, %arg1: i32) -> (i32, i32) {
    %c0_i32 = arith.constant 0 : i32
    %c0_i32_0 = arith.constant 0 : i32
    %c0_i32_1 = arith.constant 0 : i32
    return %c0_i32, %c0_i32_0 : i32, i32
  }
  func.func @transform_5(%arg0: i32, %arg1: i32) -> (i32, i32) {
    %c0_i32 = arith.constant 0 : i32
    %c0_i32_0 = arith.constant 0 : i32
    %c0_i32_1 = arith.constant 0 : i32
    return %c0_i32, %c0_i32_0 : i32, i32
  }
  func.func @transform_6(%arg0: i32, %arg1: i32) -> (i32, i32) {
    %c0_i32 = arith.constant 0 : i32
    %c0_i32_0 = arith.constant 0 : i32
    %c0_i32_1 = arith.constant 0 : i32
    return %c0_i32, %c0_i32_0 : i32, i32
  }
  func.func @transform_7(%arg0: i32, %arg1: i32) -> (i32, i32) {
    %c0_i32 = arith.constant 0 : i32
    %c0_i32_0 = arith.constant 0 : i32
    %c0_i32_1 = arith.constant 0 : i32
    return %c0_i32, %c0_i32_0 : i32, i32
  }
  func.func @transform_8(%arg0: i32, %arg1: i32) -> (i32, i32) {
    %c0_i32 = arith.constant 0 : i32
    %c0_i32_0 = arith.constant 0 : i32
    %c0_i32_1 = arith.constant 0 : i32
    return %c0_i32, %c0_i32_0 : i32, i32
  }
  func.func @transform_9(%arg0: i32, %arg1: i32) -> (i32, i32) {
    %c0_i32 = arith.constant 0 : i32
    %c0_i32_0 = arith.constant 0 : i32
    %c0_i32_1 = arith.constant 0 : i32
    return %c0_i32, %c0_i32_0 : i32, i32
  }
  func.func @transform_10(%arg0: i32, %arg1: i32) -> (i32, i32) {
    %c0_i32 = arith.constant 0 : i32
    %c0_i32_0 = arith.constant 0 : i32
    %c0_i32_1 = arith.constant 0 : i32
    return %c0_i32, %c0_i32_0 : i32, i32
  }
  func.func @transform_11(%arg0: i32, %arg1: i32) -> (i32, i32) {
    %c0_i32 = arith.constant 0 : i32
    %c0_i32_0 = arith.constant 0 : i32
    return %arg0, %c0_i32 : i32, i32
  }
}

</mosaic_0001>

<llo_original>
// kernel: generator_forward.1
$region0: #{generator_forward.1}
  #allocation0 [shape = 'u32[]', space=smem, size = 0x4, offset = 0x4, fixed_abs, tag = 'smem constant byte address 0x4 - core index']
  #allocation1 [shape = 'u32[144,128]{1,0:T(1,128)}', space=vmem, size = 0x12000, scoped, tag = 'internal scratch']
  #allocation2 [shape = 'f32[128,128]{1,0:T(8,128)}', space=vmem, size = 0x10000, scoped, tag = 'scratch operand']
  %s0 = inlined_call_operand.vmem [shape: f32[16,19,256], index: 0, kind: input, shape index: {}]
  %s1 = inlined_call_operand.vmem [shape: f32[32,19], index: 1, kind: input, shape index: {}]
  %s2 = inlined_call_operand.vmem [shape: f32[32,1], index: 2, kind: input, shape index: {}]
  %s3 = inlined_call_operand.vmem [shape: bf16[64,32], index: 3, kind: input, shape index: {}]
  %s4 = inlined_call_operand.vmem [shape: f32[64,1], index: 4, kind: input, shape index: {}]
  %s5 = inlined_call_operand.vmem [shape: bf16[128,64], index: 5, kind: input, shape index: {}]
  %s6 = inlined_call_operand.vmem [shape: f32[128,1], index: 6, kind: input, shape index: {}]
  %s7 = inlined_call_operand.vmem [shape: bf16[128,256], index: 7, kind: input, shape index: {}]
  %s8 = inlined_call_operand.vmem [shape: f32[1,256], index: 8, kind: input, shape index: {}]
  %s9 = inlined_call_operand.vmem [shape: bf16[256,3072], index: 9, kind: input, shape index: {}]
  %s10 = inlined_call_operand.vmem [shape: f32[1,3072], index: 10, kind: input, shape index: {}]
  %s11 = inlined_call_operand.vmem [shape: f32[16,3072], index: 11, kind: output, shape index: {}]
  %s12 = sld [smem:[#allocation0]]
  $region127: #{generator_forward.1} parent=0
    _
  %s14 = ssub.s32 1, %s12
  %s15 = scalar_select 0, %s14, %s12
  $region1: #{generator_forward.1} parent=0
    #allocation3 [shape = 'u8[196608]{0}', space=vmem, size = 0x30000, scoped, tag = 'input window, operand 0']
    loop: start=0, step=1, limit=6
    $region2: #{generator_forward.1} parent=1 // loop_pre_header
      _
    $region3: #{generator_forward.1} parent=1 // loop_header
      %s17 = sphi 0, %s21
      %p18 = scmp.ge.s32.totalorder %s17, 6
      %s24 = sphi 0, %s36
      %s25 = sphi 0, %s32
      %s26 = sphi 0, %s24
      %s27 = sphi 0, %s25
      %s28 = sphi 0, %s26
      %s29 = sphi 0, %s27
      %s41 = sphi 0, %s43
      %s44 = sphi 0, %s41
      %s45 = sphi 0, %s44
      %s61 = sphi 0, %s45
      %s65 = sphi 0, %s65
      %s67 = sphi 0, %s65
      %s68 = sphi 0, %s67
      %s82 = sphi 0, %s68
      %s86 = sphi 0, %s86
      %s88 = sphi 0, %s86
      %s89 = sphi 0, %s88
      %s103 = sphi 0, %s89
      %s107 = sphi 0, %s107
      %s109 = sphi 0, %s107
      %s110 = sphi 0, %s109
      %s124 = sphi 0, %s110
      %s128 = sphi 0, %s128
      %s130 = sphi 0, %s128
      %s131 = sphi 0, %s130
      %s145 = sphi 0, %s131
      %s149 = sphi 0, %s149
      %s151 = sphi 0, %s149
      %s152 = sphi 0, %s151
      %s166 = sphi 0, %s152
      %s170 = sphi 0, %s170
      %s172 = sphi 0, %s170
      %s173 = sphi 0, %s172
      %s187 = sphi 0, %s173
      %s191 = sphi 0, %s191
      %s193 = sphi 0, %s191
      %s194 = sphi 0, %s193
      %s208 = sphi 0, %s194
      %s212 = sphi 0, %s212
      %s214 = sphi 0, %s212
      %s215 = sphi 0, %s214
      %s229 = sphi 0, %s215
      %s233 = sphi 0, %s233
      %s235 = sphi 0, %s233
      %s236 = sphi 0, %s235
      %s250 = sphi 0, %s236
      %s254 = sphi 0, %s254
      %s256 = sphi 0, %s254
      %s257 = sphi 0, %s256
      %s271 = sphi 0, %s257
      %s277 = sphi 0, %s279
      %s280 = sphi 0, %s277
      %s281 = sphi 0, %s280
      %s297 = sphi 0, %s281
    $region4: #{generator_forward.1} parent=1 // loop_header_branch
      %20 = sbr.rel (%p18) target = $region8
    $region5: #{generator_forward.1} parent=1 // loop_body
      %s22 = ssub.s32 %s17, 1
      %s23 = ssub.s32 %s17, 2
      %s30 = sadd.s32 1, %s25
      %p31 = scmp.ge.s32.totalorder %s30, 2
      %s32 = scalar_select %p31, 0, %s30
      %s33 = sadd.s32 1, %s24
      %s34 = scalar_select %p31, %s33, %s24
      %p35 = scmp.ge.s32.totalorder %s34, 2
      %s36 = scalar_select %p35, 0, %s34
      %s37 = ssub.s32 %s24, %s36
      %s38 = ssub.s32 %s25, %s32
      %s39 = sor.u32 %s37, %s38
      %p40 = scmp.eq.s32.totalorder %s39, 0
      %s42 = sadd.s32 %s41, 1
      %s43 = scalar_select %p40, %s41, %s42
      %p46 = pneg %p40
      %p47 = scmp.eq.s32.totalorder %s17, 3
      %p48 = por %p46, %p47
      %p49 = scmp.ne.s32.totalorder %s41, %s44
      %p50 = scmp.eq.s32.totalorder %s17, 0
      %p51 = por %p49, %p50
      %p52 = scmp.ne.s32.totalorder %s41, %s44
      %p53 = scmp.eq.s32.totalorder %s22, 3
      %p54 = por %p52, %p53
      %p55 = scmp.ne.s32.totalorder %s44, %s45
      %p56 = scmp.eq.s32.totalorder %s22, 0
      %p57 = por %p55, %p56
      %p58 = scmp.ne.s32.totalorder %s44, %s45
      %p59 = scmp.eq.s32.totalorder %s23, 3
      %p60 = por %p58, %p59
      %p62 = scmp.ne.s32.totalorder %s45, %s61
      %p63 = scmp.eq.s32.totalorder %s23, 0
      %p64 = por %p62, %p63
      %s66 = sadd.s32 %s65, 1
      %p69 = scmp.eq.s32.totalorder %s17, 3
      %p70 = scmp.ne.s32.totalorder %s65, %s67
      %p71 = scmp.eq.s32.totalorder %s17, 0
      %p72 = por %p70, %p71
      %p73 = scmp.ne.s32.totalorder %s65, %s67
      %p74 = scmp.eq.s32.totalorder %s22, 3
      %p75 = por %p73, %p74
      %p76 = scmp.ne.s32.totalorder %s67, %s68
      %p77 = scmp.eq.s32.totalorder %s22, 0
      %p78 = por %p76, %p77
      %p79 = scmp.ne.s32.totalorder %s67, %s68
      %p80 = scmp.eq.s32.totalorder %s23, 3
      %p81 = por %p79, %p80
      %p83 = scmp.ne.s32.totalorder %s68, %s82
      %p84 = scmp.eq.s32.totalorder %s23, 0
      %p85 = por %p83, %p84
      %s87 = sadd.s32 %s86, 1
      %p90 = scmp.eq.s32.totalorder %s17, 3
      %p91 = scmp.ne.s32.totalorder %s86, %s88
      %p92 = scmp.eq.s32.totalorder %s17, 0
      %p93 = por %p91, %p92
      %p94 = scmp.ne.s32.totalorder %s86, %s88
      %p95 = scmp.eq.s32.totalorder %s22, 3
      %p96 = por %p94, %p95
      %p97 = scmp.ne.s32.totalorder %s88, %s89
      %p98 = scmp.eq.s32.totalorder %s22, 0
      %p99 = por %p97, %p98
      %p100 = scmp.ne.s32.totalorder %s88, %s89
      %p101 = scmp.eq.s32.totalorder %s23, 3
      %p102 = por %p100, %p101
      %p104 = scmp.ne.s32.totalorder %s89, %s103
      %p105 = scmp.eq.s32.totalorder %s23, 0
      %p106 = por %p104, %p105
      %s108 = sadd.s32 %s107, 1
      %p111 = scmp.eq.s32.totalorder %s17, 3
      %p112 = scmp.ne.s32.totalorder %s107, %s109
      %p113 = scmp.eq.s32.totalorder %s17, 0
      %p114 = por %p112, %p113
      %p115 = scmp.ne.s32.totalorder %s107, %s109
      %p116 = scmp.eq.s32.totalorder %s22, 3
      %p117 = por %p115, %p116
      %p118 = scmp.ne.s32.totalorder %s109, %s110
      %p119 = scmp.eq.s32.totalorder %s22, 0
      %p120 = por %p118, %p119
      %p121 = scmp.ne.s32.totalorder %s109, %s110
      %p122 = scmp.eq.s32.totalorder %s23, 3
      %p123 = por %p121, %p122
      %p125 = scmp.ne.s32.totalorder %s110, %s124
      %p126 = scmp.eq.s32.totalorder %s23, 0
      %p127 = por %p125, %p126
      %s129 = sadd.s32 %s128, 1
      %p132 = scmp.eq.s32.totalorder %s17, 3
      %p133 = scmp.ne.s32.totalorder %s128, %s130
      %p134 = scmp.eq.s32.totalorder %s17, 0
      %p135 = por %p133, %p134
      %p136 = scmp.ne.s32.totalorder %s128, %s130
      %p137 = scmp.eq.s32.totalorder %s22, 3
      %p138 = por %p136, %p137
      %p139 = scmp.ne.s32.totalorder %s130, %s131
      %p140 = scmp.eq.s32.totalorder %s22, 0
      %p141 = por %p139, %p140
      %p142 = scmp.ne.s32.totalorder %s130, %s131
      %p143 = scmp.eq.s32.totalorder %s23, 3
      %p144 = por %p142, %p143
      %p146 = scmp.ne.s32.totalorder %s131, %s145
      %p147 = scmp.eq.s32.totalorder %s23, 0
      %p148 = por %p146, %p147
      %s150 = sadd.s32 %s149, 1
      %p153 = scmp.eq.s32.totalorder %s17, 3
      %p154 = scmp.ne.s32.totalorder %s149, %s151
      %p155 = scmp.eq.s32.totalorder %s17, 0
      %p156 = por %p154, %p155
      %p157 = scmp.ne.s32.totalorder %s149, %s151
      %p158 = scmp.eq.s32.totalorder %s22, 3
      %p159 = por %p157, %p158
      %p160 = scmp.ne.s32.totalorder %s151, %s152
      %p161 = scmp.eq.s32.totalorder %s22, 0
      %p162 = por %p160, %p161
      %p163 = scmp.ne.s32.totalorder %s151, %s152
      %p164 = scmp.eq.s32.totalorder %s23, 3
      %p165 = por %p163, %p164
      %p167 = scmp.ne.s32.totalorder %s152, %s166
      %p168 = scmp.eq.s32.totalorder %s23, 0
      %p169 = por %p167, %p168
      %s171 = sadd.s32 %s170, 1
      %p174 = scmp.eq.s32.totalorder %s17, 3
      %p175 = scmp.ne.s32.totalorder %s170, %s172
      %p176 = scmp.eq.s32.totalorder %s17, 0
      %p177 = por %p175, %p176
      %p178 = scmp.ne.s32.totalorder %s170, %s172
      %p179 = scmp.eq.s32.totalorder %s22, 3
      %p180 = por %p178, %p179
      %p181 = scmp.ne.s32.totalorder %s172, %s173
      %p182 = scmp.eq.s32.totalorder %s22, 0
      %p183 = por %p181, %p182
      %p184 = scmp.ne.s32.totalorder %s172, %s173
      %p185 = scmp.eq.s32.totalorder %s23, 3
      %p186 = por %p184, %p185
      %p188 = scmp.ne.s32.totalorder %s173, %s187
      %p189 = scmp.eq.s32.totalorder %s23, 0
      %p190 = por %p188, %p189
      %s192 = sadd.s32 %s191, 1
      %p195 = scmp.eq.s32.totalorder %s17, 3
      %p196 = scmp.ne.s32.totalorder %s191, %s193
      %p197 = scmp.eq.s32.totalorder %s17, 0
      %p198 = por %p196, %p197
      %p199 = scmp.ne.s32.totalorder %s191, %s193
      %p200 = scmp.eq.s32.totalorder %s22, 3
      %p201 = por %p199, %p200
      %p202 = scmp.ne.s32.totalorder %s193, %s194
      %p203 = scmp.eq.s32.totalorder %s22, 0
      %p204 = por %p202, %p203
      %p205 = scmp.ne.s32.totalorder %s193, %s194
      %p206 = scmp.eq.s32.totalorder %s23, 3
      %p207 = por %p205, %p206
      %p209 = scmp.ne.s32.totalorder %s194, %s208
      %p210 = scmp.eq.s32.totalorder %s23, 0
      %p211 = por %p209, %p210
      %s213 = sadd.s32 %s212, 1
      %p216 = scmp.eq.s32.totalorder %s17, 3
      %p217 = scmp.ne.s32.totalorder %s212, %s214
      %p218 = scmp.eq.s32.totalorder %s17, 0
      %p219 = por %p217, %p218
      %p220 = scmp.ne.s32.totalorder %s212, %s214
      %p221 = scmp.eq.s32.totalorder %s22, 3
      %p222 = por %p220, %p221
      %p223 = scmp.ne.s32.totalorder %s214, %s215
      %p224 = scmp.eq.s32.totalorder %s22, 0
      %p225 = por %p223, %p224
      %p226 = scmp.ne.s32.totalorder %s214, %s215
      %p227 = scmp.eq.s32.totalorder %s23, 3
      %p228 = por %p226, %p227
      %p230 = scmp.ne.s32.totalorder %s215, %s229
      %p231 = scmp.eq.s32.totalorder %s23, 0
      %p232 = por %p230, %p231
      %s234 = sadd.s32 %s233, 1
      %p237 = scmp.eq.s32.totalorder %s17, 3
      %p238 = scmp.ne.s32.totalorder %s233, %s235
      %p239 = scmp.eq.s32.totalorder %s17, 0
      %p240 = por %p238, %p239
      %p241 = scmp.ne.s32.totalorder %s233, %s235
      %p242 = scmp.eq.s32.totalorder %s22, 3
      %p243 = por %p241, %p242
      %p244 = scmp.ne.s32.totalorder %s235, %s236
      %p245 = scmp.eq.s32.totalorder %s22, 0
      %p246 = por %p244, %p245
      %p247 = scmp.ne.s32.totalorder %s235, %s236
      %p248 = scmp.eq.s32.totalorder %s23, 3
      %p249 = por %p247, %p248
      %p251 = scmp.ne.s32.totalorder %s236, %s250
      %p252 = scmp.eq.s32.totalorder %s23, 0
      %p253 = por %p251, %p252
      %s255 = sadd.s32 %s254, 1
      %p258 = scmp.eq.s32.totalorder %s17, 3
      %p259 = scmp.ne.s32.totalorder %s254, %s256
      %p260 = scmp.eq.s32.totalorder %s17, 0
      %p261 = por %p259, %p260
      %p262 = scmp.ne.s32.totalorder %s254, %s256
      %p263 = scmp.eq.s32.totalorder %s22, 3
      %p264 = por %p262, %p263
      %p265 = scmp.ne.s32.totalorder %s256, %s257
      %p266 = scmp.eq.s32.totalorder %s22, 0
      %p267 = por %p265, %p266
      %p268 = scmp.ne.s32.totalorder %s256, %s257
      %p269 = scmp.eq.s32.totalorder %s23, 3
      %p270 = por %p268, %p269
      %p272 = scmp.ne.s32.totalorder %s257, %s271
      %p273 = scmp.eq.s32.totalorder %s23, 0
      %p274 = por %p272, %p273
      %s275 = ssub.s32 %s24, %s36
      %p276 = scmp.eq.s32.totalorder %s275, 0
      %s278 = sadd.s32 %s277, 1
      %s279 = scalar_select %p276, %s277, %s278
      %p282 = pneg %p276
      %p283 = scmp.eq.s32.totalorder %s17, 3
      %p284 = por %p282, %p283
      %p285 = scmp.ne.s32.totalorder %s277, %s280
      %p286 = scmp.eq.s32.totalorder %s17, 0
      %p287 = por %p285, %p286
      %p288 = scmp.ne.s32.totalorder %s277, %s280
      %p289 = scmp.eq.s32.totalorder %s22, 3
      %p290 = por %p288, %p289
      %p291 = scmp.ne.s32.totalorder %s280, %s281
      %p292 = scmp.eq.s32.totalorder %s22, 0
      %p293 = por %p291, %p292
      %p294 = scmp.ne.s32.totalorder %s280, %s281
      %p295 = scmp.eq.s32.totalorder %s23, 3
      %p296 = por %p294, %p295
      %p298 = scmp.ne.s32.totalorder %s281, %s297
      %p299 = scmp.eq.s32.totalorder %s23, 0
      %p300 = por %p298, %p299
      %p301 = scmp.le.s32.totalorder 1, %s17
      %p302 = scmp.lt.s32.totalorder %s17, 5
      %p303 = pnand %p301, %p302
      %p304 = pneg %p303
      // Predicated region
      $region9: #{generator_forward.1} parent=5 // pred_check
        _
      $region10: #{generator_forward.1} parent=5 // pred_check_branch
        %306 = sbr.rel (%p303) target = $region12
      $region11: #{generator_forward.1} parent=5 // pred_region
        %s307 = ssub.s32 %s17, 1
        // Predicated region
        $region13: #{generator_forward.1} parent=11 // pred_check
          %p308 = pneg %p78
        $region14: #{generator_forward.1} parent=11 // pred_check_branch
          %310 = sbr.rel (%p308) target = $region16
        $region15: #{generator_forward.1} parent=11 // pred_region
          _
        $region16: #{generator_forward.1} parent=11 // pred_fallthru
          _
        // Predicated region
        $region17: #{generator_forward.1} parent=11 // pred_check
          %p311 = pneg %p99
        $region18: #{generator_forward.1} parent=11 // pred_check_branch
          %313 = sbr.rel (%p311) target = $region20
        $region19: #{generator_forward.1} parent=11 // pred_region
          _
        $region20: #{generator_forward.1} parent=11 // pred_fallthru
          _
        // Predicated region
        $region21: #{generator_forward.1} parent=11 // pred_check
          %p314 = pneg %p120
        $region22: #{generator_forward.1} parent=11 // pred_check_branch
          %316 = sbr.rel (%p314) target = $region24
        $region23: #{generator_forward.1} parent=11 // pred_region
          _
        $region24: #{generator_forward.1} parent=11 // pred_fallthru
          _
        // Predicated region
        $region25: #{generator_forward.1} parent=11 // pred_check
          %p317 = pneg %p141
        $region26: #{generator_forward.1} parent=11 // pred_check_branch
          %319 = sbr.rel (%p317) target = $region28
        $region27: #{generator_forward.1} parent=11 // pred_region
          _
        $region28: #{generator_forward.1} parent=11 // pred_fallthru
          _
        // Predicated region
        $region29: #{generator_forward.1} parent=11 // pred_check
          %p320 = pneg %p162
        $region30: #{generator_forward.1} parent=11 // pred_check_branch
          %322 = sbr.rel (%p320) target = $region32
        $region31: #{generator_forward.1} parent=11 // pred_region
          _
        $region32: #{generator_forward.1} parent=11 // pred_fallthru
          _
        // Predicated region
        $region33: #{generator_forward.1} parent=11 // pred_check
          %p323 = pneg %p183
        $region34: #{generator_forward.1} parent=11 // pred_check_branch
          %325 = sbr.rel (%p323) target = $region36
        $region35: #{generator_forward.1} parent=11 // pred_region
          _
        $region36: #{generator_forward.1} parent=11 // pred_fallthru
          _
        // Predicated region
        $region37: #{generator_forward.1} parent=11 // pred_check
          %p326 = pneg %p204
        $region38: #{generator_forward.1} parent=11 // pred_check_branch
          %328 = sbr.rel (%p326) target = $region40
        $region39: #{generator_forward.1} parent=11 // pred_region
          _
        $region40: #{generator_forward.1} parent=11 // pred_fallthru
          _
        // Predicated region
        $region41: #{generator_forward.1} parent=11 // pred_check
          %p329 = pneg %p225
        $region42: #{generator_forward.1} parent=11 // pred_check_branch
          %331 = sbr.rel (%p329) target = $region44
        $region43: #{generator_forward.1} parent=11 // pred_region
          _
        $region44: #{generator_forward.1} parent=11 // pred_fallthru
          _
        // Predicated region
        $region45: #{generator_forward.1} parent=11 // pred_check
          %p332 = pneg %p246
        $region46: #{generator_forward.1} parent=11 // pred_check_branch
          %334 = sbr.rel (%p332) target = $region48
        $region47: #{generator_forward.1} parent=11 // pred_region
          _
        $region48: #{generator_forward.1} parent=11 // pred_fallthru
          _
        // Predicated region
        $region49: #{generator_forward.1} parent=11 // pred_check
          %p335 = pneg %p267
        $region50: #{generator_forward.1} parent=11 // pred_check_branch
          %337 = sbr.rel (%p335) target = $region52
        $region51: #{generator_forward.1} parent=11 // pred_region
          _
        $region52: #{generator_forward.1} parent=11 // pred_fallthru
          _
      $region12: #{generator_forward.1} parent=5 // pred_fallthru
        _
      %p338 = scmp.lt.s32.totalorder %s17, 4
      // Predicated region
      $region53: #{generator_forward.1} parent=5 // pred_check
        %p339 = pneg %p338
      $region54: #{generator_forward.1} parent=5 // pred_check_branch
        %341 = sbr.rel (%p339) target = $region56
      $region55: #{generator_forward.1} parent=5 // pred_region
        // Predicated region
        $region57: #{generator_forward.1} parent=55 // pred_check
          %p342 = pneg %p51
        $region58: #{generator_forward.1} parent=55 // pred_check_branch
          %344 = sbr.rel (%p342) target = $region60
        $region59: #{generator_forward.1} parent=55 // pred_region
          %s345 = sand.u32 %s41, 1
          %s346 = sand.u32 %s41, 1
          %s347 = smul.addr %s346, 192
          %s348 = scalar_lea.vmem [#allocation3], %s347
          %s349 = smul.u32 8, %s24
          %s350 = smul.addr %s349, 6
          %s351 = sadd.s32 %s25, %s350
          %s352 = smul.addr %s351, 8
          %s353 = scalar_lea.vmem %s0, %s352
          // Predicated region
          $region61: #{generator_forward.1} parent=59 // pred_check
            _
          $region62: #{generator_forward.1} parent=59 // pred_check_branch
            %355 = sbr.rel (0) target = $region64
          $region63: #{generator_forward.1} parent=59 // pred_region
            // Predicated region
            $region65: #{generator_forward.1} parent=63 // pred_check
              _
            $region66: #{generator_forward.1} parent=63 // pred_check_branch
              %357 = sbr.rel (0) target = $region68
            $region67: #{generator_forward.1} parent=63 // pred_region
              // Predicated region
              $region80: #{generator_forward.1} parent=67 // pred_check
                _
              $region81: #{generator_forward.1} parent=67 // pred_check_branch
                %418 = sbr.rel (0) target = $region83
              $region82: #{generator_forward.1} parent=67 // pred_region
                loop: start=0, step=1, limit=1
                $region84: #{generator_forward.1} parent=82 // loop_pre_header
                  _
                $region85: #{generator_forward.1} parent=82 // loop_header
                  %s420 = sphi 0, %s424
                  %p421 = scmp.ge.s32.totalorder %s420, 1
                  %s425 = sphi %s353, %s353
                  %s426 = sphi %s348, %s348
                $region86: #{generator_forward.1} parent=82 // loop_header_branch
                  %423 = sbr.rel (%p421) target = $region90
                $region87: #{generator_forward.1} parent=82 // loop_body
                  %v427 = vld [vmem:[%s425] sm:$0xff]
                  %428 = vst [vmem:[%s426] sm:$0xff] %v427
                  %v429 = vld [vmem:[%s425 + $0x10] sm:$0xff]
                  %430 = vst [vmem:[%s426 + $0x8] sm:$0xff] %v429
                  %v431 = vld [vmem:[%s425 + $0x20] sm:$0xff]
                  %432 = vst [vmem:[%s426 + $0x10] sm:$0xff] %v431
                  %v433 = vld [vmem:[%s425 + $0x30] sm:$0xff]
                  %434 = vst [vmem:[%s426 + $0x18] sm:$0xff] %v433
                  %v435 = vld [vmem:[%s425 + $0x40] sm:$0xff]
                  %436 = vst [vmem:[%s426 + $0x20] sm:$0xff] %v435
                  %v437 = vld [vmem:[%s425 + $0x50] sm:$0xff]
                  %438 = vst [vmem:[%s426 + $0x28] sm:$0xff] %v437
                  %v439 = vld [vmem:[%s425 + $0x60] sm:$0xff]
                  %440 = vst [vmem:[%s426 + $0x30] sm:$0xff] %v439
                  %v441 = vld [vmem:[%s425 + $0x70] sm:$0xff]
                  %442 = vst [vmem:[%s426 + $0x38] sm:$0xff] %v441
                  %v443 = vld [vmem:[%s425 + $0x80] sm:$0xff]
                  %444 = vst [vmem:[%s426 + $0x40] sm:$0xff] %v443
                  %v445 = vld [vmem:[%s425 + $0x90] sm:$0xff]
                  %446 = vst [vmem:[%s426 + $0x48] sm:$0xff] %v445
                  %v447 = vld [vmem:[%s425 + $0xa0] sm:$0xff]
                  %448 = vst [vmem:[%s426 + $0x50] sm:$0xff] %v447
                  %v449 = vld [vmem:[%s425 + $0xb0] sm:$0xff]
                  %450 = vst [vmem:[%s426 + $0x58] sm:$0xff] %v449
                  %v451 = vld [vmem:[%s425 + $0xc0] sm:$0xff]
                  %452 = vst [vmem:[%s426 + $0x60] sm:$0xff] %v451
                  %v453 = vld [vmem:[%s425 + $0xd0] sm:$0xff]
                  %454 = vst [vmem:[%s426 + $0x68] sm:$0xff] %v453
                  %v455 = vld [vmem:[%s425 + $0xe0] sm:$0xff]
                  %456 = vst [vmem:[%s426 + $0x70] sm:$0xff] %v455
                  %v457 = vld [vmem:[%s425 + $0xf0] sm:$0xff]
                  %458 = vst [vmem:[%s426 + $0x78] sm:$0xff] %v457
                  %v459 = vld [vmem:[%s425 + $0x100] sm:$0xff]
                  %460 = vst [vmem:[%s426 + $0x80] sm:$0xff] %v459
                  %v461 = vld [vmem:[%s425 + $0x110] sm:$0xff]
                  %462 = vst [vmem:[%s426 + $0x88] sm:$0xff] %v461
                  %v463 = vld [vmem:[%s425 + $0x120] sm:$0xff]
                  %464 = vst [vmem:[%s426 + $0x90] sm:$0xff] %v463
                  %v465 = vld [vmem:[%s425 + $0x130] sm:$0xff]
                  %466 = vst [vmem:[%s426 + $0x98] sm:$0xff] %v465
                  %v467 = vld [vmem:[%s425 + $0x140] sm:$0xff]
                  %468 = vst [vmem:[%s426 + $0xa0] sm:$0xff] %v467
                  %v469 = vld [vmem:[%s425 + $0x150] sm:$0xff]
                  %470 = vst [vmem:[%s426 + $0xa8] sm:$0xff] %v469
                  %v471 = vld [vmem:[%s425 + $0x160] sm:$0xff]
                  %472 = vst [vmem:[%s426 + $0xb0] sm:$0xff] %v471
                  %v473 = vld [vmem:[%s425 + $0x170] sm:$0xff]
                  %474 = vst [vmem:[%s426 + $0xb8] sm:$0xff] %v473
                $region88: #{generator_forward.1} parent=82 // loop_footer
                  %s424 = sadd.s32 1, %s420
                $region89: #{generator_forward.1} parent=82 // loop_footer_branch
                  %419 = sbr.rel target = $region85
                $region90: #{generator_forward.1} parent=82 // loop_exit
                  _
              $region83: #{generator_forward.1} parent=67 // pred_fallthru
                _
              // Predicated region
              $region91: #{generator_forward.1} parent=67 // pred_check
                _
              $region92: #{generator_forward.1} parent=67 // pred_check_branch
                %476 = sbr.rel target = $region94
              $region93: #{generator_forward.1} parent=67 // pred_region
                _
              $region94: #{generator_forward.1} parent=67 // pred_fallthru
                _
            $region68: #{generator_forward.1} parent=63 // pred_fallthru
              _
            // Predicated region
            $region69: #{generator_forward.1} parent=63 // pred_check
              _
            $region70: #{generator_forward.1} parent=63 // pred_check_branch
              %359 = sbr.rel target = $region72
            $region71: #{generator_forward.1} parent=63 // pred_region
              loop: start=0, step=1, limit=1
              $region73: #{generator_forward.1} parent=71 // loop_pre_header
                _
              $region74: #{generator_forward.1} parent=71 // loop_header
                %s362 = sphi 0, %s366
                %p363 = scmp.ge.s32.totalorder %s362, 1
                %s367 = sphi %s353, %s353
                %s368 = sphi %s348, %s348
              $region75: #{generator_forward.1} parent=71 // loop_header_branch
                %365 = sbr.rel (%p363) target = $region79
              $region76: #{generator_forward.1} parent=71 // loop_body
                %v369 = vld [vmem:[%s367] sm:$0xff]
                %370 = vst [vmem:[%s368] sm:$0xff] %v369
                %v371 = vld [vmem:[%s367 + $0x10] sm:$0xff]
                %372 = vst [vmem:[%s368 + $0x8] sm:$0xff] %v371
                %v373 = vld [vmem:[%s367 + $0x20] sm:$0xff]
                %374 = vst [vmem:[%s368 + $0x10] sm:$0xff] %v373
                %v375 = vld [vmem:[%s367 + $0x30] sm:$0xff]
                %376 = vst [vmem:[%s368 + $0x18] sm:$0xff] %v375
                %v377 = vld [vmem:[%s367 + $0x40] sm:$0xff]
                %378 = vst [vmem:[%s368 + $0x20] sm:$0xff] %v377
                %v379 = vld [vmem:[%s367 + $0x50] sm:$0xff]
                %380 = vst [vmem:[%s368 + $0x28] sm:$0xff] %v379
                %v381 = vld [vmem:[%s367 + $0x60] sm:$0xff]
                %382 = vst [vmem:[%s368 + $0x30] sm:$0xff] %v381
                %v383 = vld [vmem:[%s367 + $0x70] sm:$0xff]
                %384 = vst [vmem:[%s368 + $0x38] sm:$0xff] %v383
                %v385 = vld [vmem:[%s367 + $0x80] sm:$0xff]
                %386 = vst [vmem:[%s368 + $0x40] sm:$0xff] %v385
                %v387 = vld [vmem:[%s367 + $0x90] sm:$0xff]
                %388 = vst [vmem:[%s368 + $0x48] sm:$0xff] %v387
                %v389 = vld [vmem:[%s367 + $0xa0] sm:$0xff]
                %390 = vst [vmem:[%s368 + $0x50] sm:$0xff] %v389
                %v391 = vld [vmem:[%s367 + $0xb0] sm:$0xff]
                %392 = vst [vmem:[%s368 + $0x58] sm:$0xff] %v391
                %v393 = vld [vmem:[%s367 + $0xc0] sm:$0xff]
                %394 = vst [vmem:[%s368 + $0x60] sm:$0xff] %v393
                %v395 = vld [vmem:[%s367 + $0xd0] sm:$0xff]
                %396 = vst [vmem:[%s368 + $0x68] sm:$0xff] %v395
                %v397 = vld [vmem:[%s367 + $0xe0] sm:$0xff]
                %398 = vst [vmem:[%s368 + $0x70] sm:$0xff] %v397
                %v399 = vld [vmem:[%s367 + $0xf0] sm:$0xff]
                %400 = vst [vmem:[%s368 + $0x78] sm:$0xff] %v399
                %v401 = vld [vmem:[%s367 + $0x100] sm:$0xff]
                %402 = vst [vmem:[%s368 + $0x80] sm:$0xff] %v401
                %v403 = vld [vmem:[%s367 + $0x110] sm:$0xff]
                %404 = vst [vmem:[%s368 + $0x88] sm:$0xff] %v403
                %v405 = vld [vmem:[%s367 + $0x120] sm:$0xff]
                %406 = vst [vmem:[%s368 + $0x90] sm:$0xff] %v405
                %v407 = vld [vmem:[%s367 + $0x130] sm:$0xff]
                %408 = vst [vmem:[%s368 + $0x98] sm:$0xff] %v407
                %v409 = vld [vmem:[%s367 + $0x140] sm:$0xff]
                %410 = vst [vmem:[%s368 + $0xa0] sm:$0xff] %v409
                %v411 = vld [vmem:[%s367 + $0x150] sm:$0xff]
                %412 = vst [vmem:[%s368 + $0xa8] sm:$0xff] %v411
                %v413 = vld [vmem:[%s367 + $0x160] sm:$0xff]
                %414 = vst [vmem:[%s368 + $0xb0] sm:$0xff] %v413
                %v415 = vld [vmem:[%s367 + $0x170] sm:$0xff]
                %416 = vst [vmem:[%s368 + $0xb8] sm:$0xff] %v415
              $region77: #{generator_forward.1} parent=71 // loop_footer
                %s366 = sadd.s32 1, %s362
              $region78: #{generator_forward.1} parent=71 // loop_footer_branch
                %361 = sbr.rel target = $region74
              $region79: #{generator_forward.1} parent=71 // loop_exit
                _
            $region72: #{generator_forward.1} parent=63 // pred_fallthru
              _
          $region64: #{generator_forward.1} parent=59 // pred_fallthru
            _
          %477 = vnop
        $region60: #{generator_forward.1} parent=55 // pred_fallthru
          _
      $region56: #{generator_forward.1} parent=5 // pred_fallthru
        _
      %p478 = scmp.le.s32.totalorder 1, %s17
      %p479 = scmp.lt.s32.totalorder %s17, 5
      %p480 = pnand %p478, %p479
      %p481 = pneg %p480
      // Predicated region
      $region95: #{generator_forward.1} parent=5 // pred_check
        _
      $region96: #{generator_forward.1} parent=5 // pred_check_branch
        %483 = sbr.rel (%p480) target = $region98
      $region97: #{generator_forward.1} parent=5 // pred_region
        %s484 = ssub.s32 %s17, 1
        %s485 = sand.u32 %s44, 1
        %s486 = sand.u32 %s44, 1
        %s487 = smul.addr %s486, 192
        %s488 = scalar_lea.vmem [#allocation3], %s487
        // Predicated region
        $region99: #{generator_forward.1} parent=97 // pred_check
          %p489 = pneg %p57
        $region100: #{generator_forward.1} parent=97 // pred_check_branch
          %491 = sbr.rel (%p489) target = $region102
        $region101: #{generator_forward.1} parent=97 // pred_region
          _
        $region102: #{generator_forward.1} parent=97 // pred_fallthru
          _
        %s492 = sand.u32 %s44, 1
        %s493 = sand.u32 %s44, 1
        %s494 = smul.addr %s493, 192
        %s495 = scalar_lea.vmem [#allocation3], %s494
        %p496 = pneg %p57
        %p497 = pneg %p54
        %p498 = pneg %p78
        %p499 = pneg %p75
        %p500 = pneg %p99
        %p501 = pneg %p96
        %p502 = pneg %p120
        %p503 = pneg %p117
        %p504 = pneg %p141
        %p505 = pneg %p138
        %p506 = pneg %p162
        %p507 = pneg %p159
        %p508 = pneg %p183
        %p509 = pneg %p180
        %p510 = pneg %p204
        %p511 = pneg %p201
        %p512 = pneg %p225
        %p513 = pneg %p222
        %p514 = pneg %p246
        %p515 = pneg %p243
        %p516 = pneg %p267
        %p517 = pneg %p264
        %p518 = pneg %p293
        %p519 = pneg %p290
        %p520 = scmp.lt.s32.totalorder %s26, 1
        %s521 = scalar_select %p520, %s26, 1
        %s522 = smul.addr %s521, 24
        %s523 = smul.addr %s522, 8
        %s524 = scalar_lea.vmem %s11, %s523
        %s525 = smul.u32 8, %s26
        %p526 = scmp.lt.s32.totalorder %s26, 1
        %s527 = scalar_select %p526, %s26, 1
        %s528 = smul.addr %s527, 24
        %s529 = smul.addr %s528, 8
        %s530 = scalar_lea.vmem %s11, %s529
        %v532 = vld [vmem:[%s488] sm:$0xff]
        %v533 = vld [vmem:[%s488 + $0x8] sm:$0xff]
        %v534 = vld [vmem:[%s488 + $0x10] sm:$0x7]
        %v535 = vld [vmem:[%s1] sm:$0xff]
        %v536 = vld [vmem:[%s1 + $0x8] sm:$0xff]
        %v537 = vld [vmem:[%s1 + $0x10] sm:$0xff]
        %v538 = vld [vmem:[%s1 + $0x18] sm:$0xff]
        %v539 = vld [vmem:[%s2] sm:$0xff]
        %v540 = vld [vmem:[%s2 + $0x8] sm:$0xff]
        %v541 = vld [vmem:[%s2 + $0x10] sm:$0xff]
        %v542 = vld [vmem:[%s2 + $0x18] sm:$0xff]
        %544 = vset.pattern.permute.xlu0 0
        %545 = vperm.xlu0 %544, %v539
        %v546 = vpop.permute.xlu0 %545
        %549 = vset.pattern.permute.xlu0 0
        %550 = vperm.xlu0 %549, %v540
        %v551 = vpop.permute.xlu0 %550
        %554 = vset.pattern.permute.xlu0 0
        %555 = vperm.xlu0 %554, %v541
        %v556 = vpop.permute.xlu0 %555
        %559 = vset.pattern.permute.xlu0 0
        %560 = vperm.xlu0 %559, %v542
        %v561 = vpop.permute.xlu0 %560
        %vm563 = vcmask 154624
        %v565 = vsel %vm563, %v535, 0
        %v568 = vsel %vm563, %v536, 0
        %v571 = vsel %vm563, %v537, 0
        %v574 = vsel %vm563, %v538, 0
        %vm576 = vcmask 1042432
        %v578 = vsel %vm576, %v534, 0
        %580 = vmatprep.subr.mxu0 0.0
        %581 = vmatpush1.msra.mxu0 %v532
        %582 = vmatprep.subr.mxu0 0.0
        %583 = vmatpush1.msra.mxu0 %v533
        %584 = vmatprep.subr.mxu0 0.0
        %585 = vmatpush1.msra.mxu0 %v578
        %586 = vmatprep.subr.mxu0 0.0
        %587 = vmatpush1.msra.mxu0 0.0
        %588 = vmatprep.subr.mxu0 0.0
        %589 = vmatpush1.msra.mxu0 0.0
        %590 = vmatprep.subr.mxu0 0.0
        %591 = vmatpush1.msra.mxu0 0.0
        %592 = vmatprep.subr.mxu0 0.0
        %593 = vmatpush1.msra.mxu0 0.0
        %594 = vmatprep.subr.mxu0 0.0
        %595 = vmatpush1.msra.mxu0 0.0
        %596 = vmatprep.subr.mxu0 0.0
        %597 = vmatpush1.msra.mxu0 0.0
        %598 = vmatprep.subr.mxu0 0.0
        %599 = vmatpush1.msra.mxu0 0.0
        %600 = vmatprep.subr.mxu0 0.0
        %601 = vmatpush1.msra.mxu0 0.0
        %602 = vmatprep.subr.mxu0 0.0
        %603 = vmatpush1.msra.mxu0 0.0
        %604 = vmatprep.subr.mxu0 0.0
        %605 = vmatpush1.msra.mxu0 0.0
        %606 = vmatprep.subr.mxu0 0.0
        %607 = vmatpush1.msra.mxu0 0.0
        %608 = vmatprep.subr.mxu0 0.0
        %609 = vmatpush1.msra.mxu0 0.0
        %610 = vmatprep.subr.mxu0 0.0
        %611 = vmatpush1.msra.mxu0 0.0
        %612 = vmatprep.subr.mxu0 0.0
        %613 = vmatpush1.msra.mxu0 0.0
        %614 = vmatprep.subr.mxu0 0.0
        %615 = vmatpush1.msra.mxu0 0.0
        %616 = vmatprep.subr.mxu0 0.0
        %617 = vmatpush1.msra.mxu0 0.0
        %618 = vmatprep.subr.mxu0 0.0
        %619 = vmatpush1.msra.mxu0 0.0
        %620 = vmatprep.subr.mxu0 0.0
        %621 = vmatpush1.msra.mxu0 0.0
        %622 = vmatprep.subr.mxu0 0.0
        %623 = vmatpush1.msra.mxu0 0.0
        %624 = vmatprep.subr.mxu0 0.0
        %625 = vmatpush1.msra.mxu0 0.0
        %626 = vmatprep.subr.mxu0 0.0
        %627 = vmatpush1.msra.mxu0 0.0
        %628 = vmatprep.subr.mxu0 0.0
        %629 = vmatpush1.msra.mxu0 0.0
        %630 = vmatprep.subr.mxu0 0.0
        %631 = vmatpush1.msra.mxu0 0.0
        %632 = vmatprep.subr.mxu0 0.0
        %633 = vmatpush1.msra.mxu0 0.0
        %634 = vmatprep.subr.mxu0 0.0
        %635 = vmatpush1.msra.mxu0 0.0
        %636 = vmatprep.subr.mxu0 0.0
        %637 = vmatpush1.msra.mxu0 0.0
        %638 = vmatprep.subr.mxu0 0.0
        %639 = vmatpush1.msra.mxu0 0.0
        %640 = vmatprep.subr.mxu0 0.0
        %641 = vmatpush1.msra.mxu0 0.0
        %642 = vmatprep.subr.mxu0 0.0
        %643 = vmatpush1.msra.mxu0 0.0
        %644 = vmatprep.mubr.f32.mxu0 0.0
        %645 = vmatmul.mubr.f32.gmra.mrb[0].mxu0 %v565
        %v646 = vpop.f32.mrb[0].mxu0
        %v647 = vadd.f32 %v546, %v646
        %v648 = vpop.f32.mrb[0].mxu0
        %649 = vmatprep.mubr.f32.mxu0 0.0
        %650 = vmatmul.mubr.f32.gmra.mrb[0].mxu0 %v568
        %v651 = vpop.f32.mrb[0].mxu0
        %v652 = vadd.f32 %v551, %v651
        %v653 = vpop.f32.mrb[0].mxu0
        %654 = vmatprep.mubr.f32.mxu0 0.0
        %655 = vmatmul.mubr.f32.gmra.mrb[0].mxu0 %v571
        %v656 = vpop.f32.mrb[0].mxu0
        %v657 = vadd.f32 %v556, %v656
        %v658 = vpop.f32.mrb[0].mxu0
        %659 = vmatprep.mubr.f32.mxu0 0.0
        %660 = vmatmul.mubr.f32.gmra.mrb[0].mxu0 %v574
        %v661 = vpop.f32.mrb[0].mxu0
        %v662 = vadd.f32 %v561, %v661
        %v663 = vpop.f32.mrb[0].mxu0
        %664 = vdwg.mxu0
        %vm665 = vcmp.gt.f32.partialorder %v647, 0.0
        %vm666 = vcmp.gt.f32.partialorder %v652, 0.0
        %vm667 = vcmp.gt.f32.partialorder %v657, 0.0
        %vm668 = vcmp.gt.f32.partialorder %v662, 0.0
        %v669 = vmul.f32 %v647, 0.02
        %v670 = vmul.f32 %v652, 0.02
        %v671 = vmul.f32 %v657, 0.02
        %v672 = vmul.f32 %v662, 0.02
        %v673 = vsel %vm665, %v647, %v669
        %v674 = vsel %vm666, %v652, %v670
        %v675 = vsel %vm667, %v657, %v671
        %v676 = vsel %vm668, %v662, %v672
        %v677 = vld [vmem:[%s3] sm:$0xf]
        %v678 = vld [vmem:[%s3 + $0x4] sm:$0xf]
        %v679 = vld [vmem:[%s3 + $0x8] sm:$0xf]
        %v680 = vld [vmem:[%s3 + $0xc] sm:$0xf]
        %v681 = vld [vmem:[%s3 + $0x10] sm:$0xf]
        %v682 = vld [vmem:[%s3 + $0x14] sm:$0xf]
        %v683 = vld [vmem:[%s3 + $0x18] sm:$0xf]
        %v684 = vld [vmem:[%s3 + $0x1c] sm:$0xf]
        %v685 = vpack.c.bf16 %v674, %v673
        %v686 = vpack.c.bf16 %v676, %v675
        %v687 = vld [vmem:[%s4] sm:$0xff]
        %v688 = vld [vmem:[%s4 + $0x8] sm:$0xff]
        %v689 = vld [vmem:[%s4 + $0x10] sm:$0xff]
        %v690 = vld [vmem:[%s4 + $0x18] sm:$0xff]
        %v691 = vld [vmem:[%s4 + $0x20] sm:$0xff]
        %v692 = vld [vmem:[%s4 + $0x28] sm:$0xff]
        %v693 = vld [vmem:[%s4 + $0x30] sm:$0xff]
        %v694 = vld [vmem:[%s4 + $0x38] sm:$0xff]
        %696 = vset.pattern.permute.xlu0 0
        %697 = vperm.xlu0 %696, %v687
        %v698 = vpop.permute.xlu0 %697
        %701 = vset.pattern.permute.xlu0 0
        %702 = vperm.xlu0 %701, %v688
        %v703 = vpop.permute.xlu0 %702
        %706 = vset.pattern.permute.xlu0 0
        %707 = vperm.xlu0 %706, %v689
        %v708 = vpop.permute.xlu0 %707
        %711 = vset.pattern.permute.xlu0 0
        %712 = vperm.xlu0 %711, %v690
        %v713 = vpop.permute.xlu0 %712
        %716 = vset.pattern.permute.xlu0 0
        %717 = vperm.xlu0 %716, %v691
        %v718 = vpop.permute.xlu0 %717
        %721 = vset.pattern.permute.xlu0 0
        %722 = vperm.xlu0 %721, %v692
        %v723 = vpop.permute.xlu0 %722
        %726 = vset.pattern.permute.xlu0 0
        %727 = vperm.xlu0 %726, %v693
        %v728 = vpop.permute.xlu0 %727
        %731 = vset.pattern.permute.xlu0 0
        %732 = vperm.xlu0 %731, %v694
        %v733 = vpop.permute.xlu0 %732
        %v743 = vunpack.c.l.b16 %v677
        %v744 = vunpack.c.l.b16 %v678
        %v745 = vunpack.c.l.b16 %v679
        %v746 = vunpack.c.l.b16 %v680
        %v747 = vunpack.c.l.b16 %v681
        %v748 = vunpack.c.l.b16 %v682
        %v749 = vunpack.c.l.b16 %v683
        %v750 = vunpack.c.l.b16 %v684
        %v751 = vpack.c.b16 %v744, %v743
        %v752 = vpack.c.b16 %v746, %v745
        %v753 = vpack.c.b16 %v748, %v747
        %v754 = vpack.c.b16 %v750, %v749
        %vm755 = vcmask 261120
        %v757 = vsel %vm755, %v751, 0
        %v760 = vsel %vm755, %v752, 0
        %v763 = vsel %vm755, %v753, 0
        %v766 = vsel %vm755, %v754, 0
        %768 = vmatprep.subr.bf16.mxu0 0
        %769 = vmatpush1.bf16.msra.mxu0 %v685
        %770 = vmatprep.subr.bf16.mxu0 0
        %771 = vmatpush1.bf16.msra.mxu0 %v686
        %772 = vmatprep.subr.bf16.mxu0 0
        %773 = vmatpush1.bf16.msra.mxu0 0
        %774 = vmatprep.subr.bf16.mxu0 0
        %775 = vmatpush1.bf16.msra.mxu0 0
        %776 = vmatprep.subr.bf16.mxu0 0
        %777 = vmatpush1.bf16.msra.mxu0 0
        %778 = vmatprep.subr.bf16.mxu0 0
        %779 = vmatpush1.bf16.msra.mxu0 0
        %780 = vmatprep.subr.bf16.mxu0 0
        %781 = vmatpush1.bf16.msra.mxu0 0
        %782 = vmatprep.subr.bf16.mxu0 0
        %783 = vmatpush1.bf16.msra.mxu0 0
        %784 = vmatprep.subr.bf16.mxu0 0
        %785 = vmatpush1.bf16.msra.mxu0 0
        %786 = vmatprep.subr.bf16.mxu0 0
        %787 = vmatpush1.bf16.msra.mxu0 0
        %788 = vmatprep.subr.bf16.mxu0 0
        %789 = vmatpush1.bf16.msra.mxu0 0
        %790 = vmatprep.subr.bf16.mxu0 0
        %791 = vmatpush1.bf16.msra.mxu0 0
        %792 = vmatprep.subr.bf16.mxu0 0
        %793 = vmatpush1.bf16.msra.mxu0 0
        %794 = vmatprep.subr.bf16.mxu0 0
        %795 = vmatpush1.bf16.msra.mxu0 0
        %796 = vmatprep.subr.bf16.mxu0 0
        %797 = vmatpush1.bf16.msra.mxu0 0
        %798 = vmatprep.subr.bf16.mxu0 0
        %799 = vmatpush1.bf16.msra.mxu0 0
        %800 = vmatprep.mubr.bf16.mxu0 0
        %801 = vmatmul.mubr.bf16.gmra.mrb[0].mxu0 %v757
        %v802 = vpop.f32.mrb[0].mxu0
        %v803 = vadd.f32 %v698, %v802
        %v804 = vpop.f32.mrb[0].mxu0
        %v805 = vpop.f32.mrb[0].mxu0
        %v806 = vadd.f32 %v703, %v805
        %v807 = vpop.f32.mrb[0].mxu0
        %808 = vmatprep.mubr.bf16.mxu0 0
        %809 = vmatmul.mubr.bf16.gmra.mrb[0].mxu0 %v760
        %v810 = vpop.f32.mrb[0].mxu0
        %v811 = vadd.f32 %v708, %v810
        %v812 = vpop.f32.mrb[0].mxu0
        %v813 = vpop.f32.mrb[0].mxu0
        %v814 = vadd.f32 %v713, %v813
        %v815 = vpop.f32.mrb[0].mxu0
        %816 = vmatprep.mubr.bf16.mxu0 0
        %817 = vmatmul.mubr.bf16.gmra.mrb[0].mxu0 %v763
        %v818 = vpop.f32.mrb[0].mxu0
        %v819 = vadd.f32 %v718, %v818
        %v820 = vpop.f32.mrb[0].mxu0
        %v821 = vpop.f32.mrb[0].mxu0
        %v822 = vadd.f32 %v723, %v821
        %v823 = vpop.f32.mrb[0].mxu0
        %824 = vmatprep.mubr.bf16.mxu0 0
        %825 = vmatmul.mubr.bf16.gmra.mrb[0].mxu0 %v766
        %v826 = vpop.f32.mrb[0].mxu0
        %v827 = vadd.f32 %v728, %v826
        %v828 = vpop.f32.mrb[0].mxu0
        %v829 = vpop.f32.mrb[0].mxu0
        %v830 = vadd.f32 %v733, %v829
        %v831 = vpop.f32.mrb[0].mxu0
        %832 = vdwg.mxu0
        %vm833 = vcmp.gt.f32.partialorder %v803, 0.0
        %vm834 = vcmp.gt.f32.partialorder %v806, 0.0
        %vm835 = vcmp.gt.f32.partialorder %v811, 0.0
        %vm836 = vcmp.gt.f32.partialorder %v814, 0.0
        %vm837 = vcmp.gt.f32.partialorder %v819, 0.0
        %vm838 = vcmp.gt.f32.partialorder %v822, 0.0
        %vm839 = vcmp.gt.f32.partialorder %v827, 0.0
        %vm840 = vcmp.gt.f32.partialorder %v830, 0.0
        %v841 = vmul.f32 %v803, 0.02
        %v842 = vmul.f32 %v806, 0.02
        %v843 = vmul.f32 %v811, 0.02
        %v844 = vmul.f32 %v814, 0.02
        %v845 = vmul.f32 %v819, 0.02
        %v846 = vmul.f32 %v822, 0.02
        %v847 = vmul.f32 %v827, 0.02
        %v848 = vmul.f32 %v830, 0.02
        %v849 = vsel %vm833, %v803, %v841
        %v850 = vsel %vm834, %v806, %v842
        %v851 = vsel %vm835, %v811, %v843
        %v852 = vsel %vm836, %v814, %v844
        %v853 = vsel %vm837, %v819, %v845
        %v854 = vsel %vm838, %v822, %v846
        %v855 = vsel %vm839, %v827, %v847
        %v856 = vsel %vm840, %v830, %v848
        %v857 = vld [vmem:[%s5] sm:$0xf]
        %v858 = vld [vmem:[%s5 + $0x4] sm:$0xf]
        %v859 = vld [vmem:[%s5 + $0x8] sm:$0xf]
        %v860 = vld [vmem:[%s5 + $0xc] sm:$0xf]
        %v861 = vld [vmem:[%s5 + $0x10] sm:$0xf]
        %v862 = vld [vmem:[%s5 + $0x14] sm:$0xf]
        %v863 = vld [vmem:[%s5 + $0x18] sm:$0xf]
        %v864 = vld [vmem:[%s5 + $0x1c] sm:$0xf]
        %v865 = vld [vmem:[%s5 + $0x20] sm:$0xf]
        %v866 = vld [vmem:[%s5 + $0x24] sm:$0xf]
        %v867 = vld [vmem:[%s5 + $0x28] sm:$0xf]
        %v868 = vld [vmem:[%s5 + $0x2c] sm:$0xf]
        %v869 = vld [vmem:[%s5 + $0x30] sm:$0xf]
        %v870 = vld [vmem:[%s5 + $0x34] sm:$0xf]
        %v871 = vld [vmem:[%s5 + $0x38] sm:$0xf]
        %v872 = vld [vmem:[%s5 + $0x3c] sm:$0xf]
        %v873 = vpack.c.bf16 %v850, %v849
        %v874 = vpack.c.bf16 %v852, %v851
        %v875 = vpack.c.bf16 %v854, %v853
        %v876 = vpack.c.bf16 %v856, %v855
        %v877 = vld [vmem:[%s6] sm:$0xff]
        %v878 = vld [vmem:[%s6 + $0x8] sm:$0xff]
        %v879 = vld [vmem:[%s6 + $0x10] sm:$0xff]
        %v880 = vld [vmem:[%s6 + $0x18] sm:$0xff]
        %v881 = vld [vmem:[%s6 + $0x20] sm:$0xff]
        %v882 = vld [vmem:[%s6 + $0x28] sm:$0xff]
        %v883 = vld [vmem:[%s6 + $0x30] sm:$0xff]
        %v884 = vld [vmem:[%s6 + $0x38] sm:$0xff]
        %v885 = vld [vmem:[%s6 + $0x40] sm:$0xff]
        %v886 = vld [vmem:[%s6 + $0x48] sm:$0xff]
        %v887 = vld [vmem:[%s6 + $0x50] sm:$0xff]
        %v888 = vld [vmem:[%s6 + $0x58] sm:$0xff]
        %v889 = vld [vmem:[%s6 + $0x60] sm:$0xff]
        %v890 = vld [vmem:[%s6 + $0x68] sm:$0xff]
        %v891 = vld [vmem:[%s6 + $0x70] sm:$0xff]
        %v892 = vld [vmem:[%s6 + $0x78] sm:$0xff]
        %894 = vset.pattern.permute.xlu0 0
        %895 = vperm.xlu0 %894, %v877
        %v896 = vpop.permute.xlu0 %895
        %899 = vset.pattern.permute.xlu0 0
        %900 = vperm.xlu0 %899, %v878
        %v901 = vpop.permute.xlu0 %900
        %904 = vset.pattern.permute.xlu0 0
        %905 = vperm.xlu0 %904, %v879
        %v906 = vpop.permute.xlu0 %905
        %909 = vset.pattern.permute.xlu0 0
        %910 = vperm.xlu0 %909, %v880
        %v911 = vpop.permute.xlu0 %910
        %914 = vset.pattern.permute.xlu0 0
        %915 = vperm.xlu0 %914, %v881
        %v916 = vpop.permute.xlu0 %915
        %919 = vset.pattern.permute.xlu0 0
        %920 = vperm.xlu0 %919, %v882
        %v921 = vpop.permute.xlu0 %920
        %924 = vset.pattern.permute.xlu0 0
        %925 = vperm.xlu0 %924, %v883
        %v926 = vpop.permute.xlu0 %925
        %929 = vset.pattern.permute.xlu0 0
        %930 = vperm.xlu0 %929, %v884
        %v931 = vpop.permute.xlu0 %930
        %934 = vset.pattern.permute.xlu0 0
        %935 = vperm.xlu0 %934, %v885
        %v936 = vpop.permute.xlu0 %935
        %939 = vset.pattern.permute.xlu0 0
        %940 = vperm.xlu0 %939, %v886
        %v941 = vpop.permute.xlu0 %940
        %944 = vset.pattern.permute.xlu0 0
        %945 = vperm.xlu0 %944, %v887
        %v946 = vpop.permute.xlu0 %945
        %949 = vset.pattern.permute.xlu0 0
        %950 = vperm.xlu0 %949, %v888
        %v951 = vpop.permute.xlu0 %950
        %954 = vset.pattern.permute.xlu0 0
        %955 = vperm.xlu0 %954, %v889
        %v956 = vpop.permute.xlu0 %955
        %959 = vset.pattern.permute.xlu0 0
        %960 = vperm.xlu0 %959, %v890
        %v961 = vpop.permute.xlu0 %960
        %964 = vset.pattern.permute.xlu0 0
        %965 = vperm.xlu0 %964, %v891
        %v966 = vpop.permute.xlu0 %965
        %969 = vset.pattern.permute.xlu0 0
        %970 = vperm.xlu0 %969, %v892
        %v971 = vpop.permute.xlu0 %970
        %v989 = vunpack.c.l.b16 %v857
        %v990 = vunpack.c.l.b16 %v858
        %v991 = vunpack.c.l.b16 %v859
        %v992 = vunpack.c.l.b16 %v860
        %v993 = vunpack.c.l.b16 %v861
        %v994 = vunpack.c.l.b16 %v862
        %v995 = vunpack.c.l.b16 %v863
        %v996 = vunpack.c.l.b16 %v864
        %v997 = vunpack.c.l.b16 %v865
        %v998 = vunpack.c.l.b16 %v866
        %v999 = vunpack.c.l.b16 %v867
        %v1000 = vunpack.c.l.b16 %v868
        %v1001 = vunpack.c.l.b16 %v869
        %v1002 = vunpack.c.l.b16 %v870
        %v1003 = vunpack.c.l.b16 %v871
        %v1004 = vunpack.c.l.b16 %v872
        %v1005 = vpack.c.b16 %v990, %v989
        %v1006 = vpack.c.b16 %v992, %v991
        %v1007 = vpack.c.b16 %v994, %v993
        %v1008 = vpack.c.b16 %v996, %v995
        %v1009 = vpack.c.b16 %v998, %v997
        %v1010 = vpack.c.b16 %v1000, %v999
        %v1011 = vpack.c.b16 %v1002, %v1001
        %v1012 = vpack.c.b16 %v1004, %v1003
        %vm1013 = vcmask 523264
        %v1015 = vsel %vm1013, %v1005, 0
        %v1018 = vsel %vm1013, %v1006, 0
        %v1021 = vsel %vm1013, %v1007, 0
        %v1024 = vsel %vm1013, %v1008, 0
        %v1027 = vsel %vm1013, %v1009, 0
        %v1030 = vsel %vm1013, %v1010, 0
        %v1033 = vsel %vm1013, %v1011, 0
        %v1036 = vsel %vm1013, %v1012, 0
        %1038 = vmatprep.subr.bf16.mxu0 0
        %1039 = vmatpush1.bf16.msra.mxu0 %v873
        %1040 = vmatprep.subr.bf16.mxu0 0
        %1041 = vmatpush1.bf16.msra.mxu0 %v874
        %1042 = vmatprep.subr.bf16.mxu0 0
        %1043 = vmatpush1.bf16.msra.mxu0 %v875
        %1044 = vmatprep.subr.bf16.mxu0 0
        %1045 = vmatpush1.bf16.msra.mxu0 %v876
        %1046 = vmatprep.subr.bf16.mxu0 0
        %1047 = vmatpush1.bf16.msra.mxu0 0
        %1048 = vmatprep.subr.bf16.mxu0 0
        %1049 = vmatpush1.bf16.msra.mxu0 0
        %1050 = vmatprep.subr.bf16.mxu0 0
        %1051 = vmatpush1.bf16.msra.mxu0 0
        %1052 = vmatprep.subr.bf16.mxu0 0
        %1053 = vmatpush1.bf16.msra.mxu0 0
        %1054 = vmatprep.subr.bf16.mxu0 0
        %1055 = vmatpush1.bf16.msra.mxu0 0
        %1056 = vmatprep.subr.bf16.mxu0 0
        %1057 = vmatpush1.bf16.msra.mxu0 0
        %1058 = vmatprep.subr.bf16.mxu0 0
        %1059 = vmatpush1.bf16.msra.mxu0 0
        %1060 = vmatprep.subr.bf16.mxu0 0
        %1061 = vmatpush1.bf16.msra.mxu0 0
        %1062 = vmatprep.subr.bf16.mxu0 0
        %1063 = vmatpush1.bf16.msra.mxu0 0
        %1064 = vmatprep.subr.bf16.mxu0 0
        %1065 = vmatpush1.bf16.msra.mxu0 0
        %1066 = vmatprep.subr.bf16.mxu0 0
        %1067 = vmatpush1.bf16.msra.mxu0 0
        %1068 = vmatprep.subr.bf16.mxu0 0
        %1069 = vmatpush1.bf16.msra.mxu0 0
        %1070 = vmatprep.mubr.bf16.mxu0 0
        %1071 = vmatmul.mubr.bf16.gmra.mrb[0].mxu0 %v1015
        %v1072 = vpop.f32.mrb[0].mxu0
        %v1073 = vadd.f32 %v896, %v1072
        %v1074 = vpop.f32.mrb[0].mxu0
        %v1075 = vpop.f32.mrb[0].mxu0
        %v1076 = vadd.f32 %v901, %v1075
        %v1077 = vpop.f32.mrb[0].mxu0
        %1078 = vmatprep.mubr.bf16.mxu0 0
        %1079 = vmatmul.mubr.bf16.gmra.mrb[0].mxu0 %v1018
        %v1080 = vpop.f32.mrb[0].mxu0
        %v1081 = vadd.f32 %v906, %v1080
        %v1082 = vpop.f32.mrb[0].mxu0
        %v1083 = vpop.f32.mrb[0].mxu0
        %v1084 = vadd.f32 %v911, %v1083
        %v1085 = vpop.f32.mrb[0].mxu0
        %1086 = vmatprep.mubr.bf16.mxu0 0
        %1087 = vmatmul.mubr.bf16.gmra.mrb[0].mxu0 %v1021
        %v1088 = vpop.f32.mrb[0].mxu0
        %v1089 = vadd.f32 %v916, %v1088
        %v1090 = vpop.f32.mrb[0].mxu0
        %v1091 = vpop.f32.mrb[0].mxu0
        %v1092 = vadd.f32 %v921, %v1091
        %v1093 = vpop.f32.mrb[0].mxu0
        %1094 = vmatprep.mubr.bf16.mxu0 0
        %1095 = vmatmul.mubr.bf16.gmra.mrb[0].mxu0 %v1024
        %v1096 = vpop.f32.mrb[0].mxu0
        %v1097 = vadd.f32 %v926, %v1096
        %v1098 = vpop.f32.mrb[0].mxu0
        %v1099 = vpop.f32.mrb[0].mxu0
        %v1100 = vadd.f32 %v931, %v1099
        %v1101 = vpop.f32.mrb[0].mxu0
        %1102 = vmatprep.mubr.bf16.mxu0 0
        %1103 = vmatmul.mubr.bf16.gmra.mrb[0].mxu0 %v1027
        %v1104 = vpop.f32.mrb[0].mxu0
        %v1105 = vadd.f32 %v936, %v1104
        %v1106 = vpop.f32.mrb[0].mxu0
        %v1107 = vpop.f32.mrb[0].mxu0
        %v1108 = vadd.f32 %v941, %v1107
        %v1109 = vpop.f32.mrb[0].mxu0
        %1110 = vmatprep.mubr.bf16.mxu0 0
        %1111 = vmatmul.mubr.bf16.gmra.mrb[0].mxu0 %v1030
        %v1112 = vpop.f32.mrb[0].mxu0
        %v1113 = vadd.f32 %v946, %v1112
        %v1114 = vpop.f32.mrb[0].mxu0
        %v1115 = vpop.f32.mrb[0].mxu0
        %v1116 = vadd.f32 %v951, %v1115
        %v1117 = vpop.f32.mrb[0].mxu0
        %1118 = vmatprep.mubr.bf16.mxu0 0
        %1119 = vmatmul.mubr.bf16.gmra.mrb[0].mxu0 %v1033
        %v1120 = vpop.f32.mrb[0].mxu0
        %v1121 = vadd.f32 %v956, %v1120
        %v1122 = vpop.f32.mrb[0].mxu0
        %v1123 = vpop.f32.mrb[0].mxu0
        %v1124 = vadd.f32 %v961, %v1123
        %v1125 = vpop.f32.mrb[0].mxu0
        %1126 = vmatprep.mubr.bf16.mxu0 0
        %1127 = vmatmul.mubr.bf16.gmra.mrb[0].mxu0 %v1036
        %v1128 = vpop.f32.mrb[0].mxu0
        %v1129 = vadd.f32 %v966, %v1128
        %v1130 = vpop.f32.mrb[0].mxu0
        %v1131 = vpop.f32.mrb[0].mxu0
        %v1132 = vadd.f32 %v971, %v1131
        %v1133 = vpop.f32.mrb[0].mxu0
        %1134 = vdwg.mxu0
        %vm1135 = vcmp.gt.f32.partialorder %v1073, 0.0
        %vm1136 = vcmp.gt.f32.partialorder %v1076, 0.0
        %vm1137 = vcmp.gt.f32.partialorder %v1081, 0.0
        %vm1138 = vcmp.gt.f32.partialorder %v1084, 0.0
        %vm1139 = vcmp.gt.f32.partialorder %v1089, 0.0
        %vm1140 = vcmp.gt.f32.partialorder %v1092, 0.0
        %vm1141 = vcmp.gt.f32.partialorder %v1097, 0.0
        %vm1142 = vcmp.gt.f32.partialorder %v1100, 0.0
        %vm1143 = vcmp.gt.f32.partialorder %v1105, 0.0
        %vm1144 = vcmp.gt.f32.partialorder %v1108, 0.0
        %vm1145 = vcmp.gt.f32.partialorder %v1113, 0.0
        %vm1146 = vcmp.gt.f32.partialorder %v1116, 0.0
        %vm1147 = vcmp.gt.f32.partialorder %v1121, 0.0
        %vm1148 = vcmp.gt.f32.partialorder %v1124, 0.0
        %vm1149 = vcmp.gt.f32.partialorder %v1129, 0.0
        %vm1150 = vcmp.gt.f32.partialorder %v1132, 0.0
        %v1151 = vmul.f32 %v1073, 0.02
        %v1152 = vmul.f32 %v1076, 0.02
        %v1153 = vmul.f32 %v1081, 0.02
        %v1154 = vmul.f32 %v1084, 0.02
        %v1155 = vmul.f32 %v1089, 0.02
        %v1156 = vmul.f32 %v1092, 0.02
        %v1157 = vmul.f32 %v1097, 0.02
        %v1158 = vmul.f32 %v1100, 0.02
        %v1159 = vmul.f32 %v1105, 0.02
        %v1160 = vmul.f32 %v1108, 0.02
        %v1161 = vmul.f32 %v1113, 0.02
        %v1162 = vmul.f32 %v1116, 0.02
        %v1163 = vmul.f32 %v1121, 0.02
        %v1164 = vmul.f32 %v1124, 0.02
        %v1165 = vmul.f32 %v1129, 0.02
        %v1166 = vmul.f32 %v1132, 0.02
        %v1167 = vsel %vm1135, %v1073, %v1151
        %v1168 = vsel %vm1136, %v1076, %v1152
        %v1169 = vsel %vm1137, %v1081, %v1153
        %v1170 = vsel %vm1138, %v1084, %v1154
        %v1171 = vsel %vm1139, %v1089, %v1155
        %v1172 = vsel %vm1140, %v1092, %v1156
        %v1173 = vsel %vm1141, %v1097, %v1157
        %v1174 = vsel %vm1142, %v1100, %v1158
        %v1175 = vsel %vm1143, %v1105, %v1159
        %v1176 = vsel %vm1144, %v1108, %v1160
        %v1177 = vsel %vm1145, %v1113, %v1161
        %v1178 = vsel %vm1146, %v1116, %v1162
        %v1179 = vsel %vm1147, %v1121, %v1163
        %v1180 = vsel %vm1148, %v1124, %v1164
        %v1181 = vsel %vm1149, %v1129, %v1165
        %v1182 = vsel %vm1150, %v1132, %v1166
        %1183 = vmax.xlane.f32.xlu0 %v1167
        %v1184 = vpop.xlane.xlu0 %1183
        %1185 = vmax.xlane.f32.xlu0 %v1168
        %v1186 = vpop.xlane.xlu0 %1185
        %1187 = vmax.xlane.f32.xlu0 %v1169
        %v1188 = vpop.xlane.xlu0 %1187
        %1189 = vmax.xlane.f32.xlu0 %v1170
        %v1190 = vpop.xlane.xlu0 %1189
        %1191 = vmax.xlane.f32.xlu0 %v1171
        %v1192 = vpop.xlane.xlu0 %1191
        %1193 = vmax.xlane.f32.xlu0 %v1172
        %v1194 = vpop.xlane.xlu0 %1193
        %1195 = vmax.xlane.f32.xlu0 %v1173
        %v1196 = vpop.xlane.xlu0 %1195
        %1197 = vmax.xlane.f32.xlu0 %v1174
        %v1198 = vpop.xlane.xlu0 %1197
        %1199 = vmax.xlane.f32.xlu0 %v1175
        %v1200 = vpop.xlane.xlu0 %1199
        %1201 = vmax.xlane.f32.xlu0 %v1176
        %v1202 = vpop.xlane.xlu0 %1201
        %1203 = vmax.xlane.f32.xlu0 %v1177
        %v1204 = vpop.xlane.xlu0 %1203
        %1205 = vmax.xlane.f32.xlu0 %v1178
        %v1206 = vpop.xlane.xlu0 %1205
        %1207 = vmax.xlane.f32.xlu0 %v1179
        %v1208 = vpop.xlane.xlu0 %1207
        %1209 = vmax.xlane.f32.xlu0 %v1180
        %v1210 = vpop.xlane.xlu0 %1209
        %1211 = vmax.xlane.f32.xlu0 %v1181
        %v1212 = vpop.xlane.xlu0 %1211
        %1213 = vmax.xlane.f32.xlu0 %v1182
        %v1214 = vpop.xlane.xlu0 %1213
        %s1215 = scalar_lea.vmem %s488, 24 [#allocation3]
        %v1216 = vld [vmem:[%s1215] sm:$0xff]
        %v1217 = vld [vmem:[%s1215 + $0x8] sm:$0xff]
        %v1218 = vld [vmem:[%s1215 + $0x10] sm:$0x7]
        %v1220 = vsel %vm576, %v1218, 0
        %1222 = vmatprep.subr.mxu0 0.0
        %1223 = vmatpush1.msra.mxu0 %v1216
        %1224 = vmatprep.subr.mxu0 0.0
        %1225 = vmatpush1.msra.mxu0 %v1217
        %1226 = vmatprep.subr.mxu0 0.0
        %1227 = vmatpush1.msra.mxu0 %v1220
        %1228 = vmatprep.subr.mxu0 0.0
        %1229 = vmatpush1.msra.mxu0 0.0
        %1230 = vmatprep.subr.mxu0 0.0
        %1231 = vmatpush1.msra.mxu0 0.0
        %1232 = vmatprep.subr.mxu0 0.0
        %1233 = vmatpush1.msra.mxu0 0.0
        %1234 = vmatprep.subr.mxu0 0.0
        %1235 = vmatpush1.msra.mxu0 0.0
        %1236 = vmatprep.subr.mxu0 0.0
        %1237 = vmatpush1.msra.mxu0 0.0
        %1238 = vmatprep.subr.mxu0 0.0
        %1239 = vmatpush1.msra.mxu0 0.0
        %1240 = vmatprep.subr.mxu0 0.0
        %1241 = vmatpush1.msra.mxu0 0.0
        %1242 = vmatprep.subr.mxu0 0.0
        %1243 = vmatpush1.msra.mxu0 0.0
        %1244 = vmatprep.subr.mxu0 0.0
        %1245 = vmatpush1.msra.mxu0 0.0
        %1246 = vmatprep.subr.mxu0 0.0
        %1247 = vmatpush1.msra.mxu0 0.0
        %1248 = vmatprep.subr.mxu0 0.0
        %1249 = vmatpush1.msra.mxu0 0.0
        %1250 = vmatprep.subr.mxu0 0.0
        %1251 = vmatpush1.msra.mxu0 0.0
        %1252 = vmatprep.subr.mxu0 0.0
        %1253 = vmatpush1.msra.mxu0 0.0
        %1254 = vmatprep.subr.mxu0 0.0
        %1255 = vmatpush1.msra.mxu0 0.0
        %1256 = vmatprep.subr.mxu0 0.0
        %1257 = vmatpush1.msra.mxu0 0.0
        %1258 = vmatprep.subr.mxu0 0.0
        %1259 = vmatpush1.msra.mxu0 0.0
        %1260 = vmatprep.subr.mxu0 0.0
        %1261 = vmatpush1.msra.mxu0 0.0
        %1262 = vmatprep.subr.mxu0 0.0
        %1263 = vmatpush1.msra.mxu0 0.0
        %1264 = vmatprep.subr.mxu0 0.0
        %1265 = vmatpush1.msra.mxu0 0.0
        %1266 = vmatprep.subr.mxu0 0.0
        %1267 = vmatpush1.msra.mxu0 0.0
        %1268 = vmatprep.subr.mxu0 0.0
        %1269 = vmatpush1.msra.mxu0 0.0
        %1270 = vmatprep.subr.mxu0 0.0
        %1271 = vmatpush1.msra.mxu0 0.0
        %1272 = vmatprep.subr.mxu0 0.0
        %1273 = vmatpush1.msra.mxu0 0.0
        %1274 = vmatprep.subr.mxu0 0.0
        %1275 = vmatpush1.msra.mxu0 0.0
        %1276 = vmatprep.subr.mxu0 0.0
        %1277 = vmatpush1.msra.mxu0 0.0
        %1278 = vmatprep.subr.mxu0 0.0
        %1279 = vmatpush1.msra.mxu0 0.0
        %1280 = vmatprep.subr.mxu0 0.0
        %1281 = vmatpush1.msra.mxu0 0.0
        %1282 = vmatprep.subr.mxu0 0.0
        %1283 = vmatpush1.msra.mxu0 0.0
        %1284 = vmatprep.subr.mxu0 0.0
        %1285 = vmatpush1.msra.mxu0 0.0
        %1286 = vmatprep.mubr.f32.mxu0 0.0
        %1287 = vmatmul.mubr.f32.gmra.mrb[0].mxu0 %v565
        %v1288 = vpop.f32.mrb[0].mxu0
        %v1289 = vadd.f32 %v546, %v1288
        %v1290 = vpop.f32.mrb[0].mxu0
        %1291 = vmatprep.mubr.f32.mxu0 0.0
        %1292 = vmatmul.mubr.f32.gmra.mrb[0].mxu0 %v568
        %v1293 = vpop.f32.mrb[0].mxu0
        %v1294 = vadd.f32 %v551, %v1293
        %v1295 = vpop.f32.mrb[0].mxu0
        %1296 = vmatprep.mubr.f32.mxu0 0.0
        %1297 = vmatmul.mubr.f32.gmra.mrb[0].mxu0 %v571
        %v1298 = vpop.f32.mrb[0].mxu0
        %v1299 = vadd.f32 %v556, %v1298
        %v1300 = vpop.f32.mrb[0].mxu0
        %1301 = vmatprep.mubr.f32.mxu0 0.0
        %1302 = vmatmul.mubr.f32.gmra.mrb[0].mxu0 %v574
        %v1303 = vpop.f32.mrb[0].mxu0
        %v1304 = vadd.f32 %v561, %v1303
        %v1305 = vpop.f32.mrb[0].mxu0
        %1306 = vdwg.mxu0
        %vm1307 = vcmp.gt.f32.partialorder %v1289, 0.0
        %vm1308 = vcmp.gt.f32.partialorder %v1294, 0.0
        %vm1309 = vcmp.gt.f32.partialorder %v1299, 0.0
        %vm1310 = vcmp.gt.f32.partialorder %v1304, 0.0
        %v1311 = vmul.f32 %v1289, 0.02
        %v1312 = vmul.f32 %v1294, 0.02
        %v1313 = vmul.f32 %v1299, 0.02
        %v1314 = vmul.f32 %v1304, 0.02
        %v1315 = vsel %vm1307, %v1289, %v1311
        %v1316 = vsel %vm1308, %v1294, %v1312
        %v1317 = vsel %vm1309, %v1299, %v1313
        %v1318 = vsel %vm1310, %v1304, %v1314
        %v1319 = vpack.c.bf16 %v1316, %v1315
        %v1320 = vpack.c.bf16 %v1318, %v1317
        %1321 = vmatprep.subr.bf16.mxu0 0
        %1322 = vmatpush1.bf16.msra.mxu0 %v1319
        %1323 = vmatprep.subr.bf16.mxu0 0
        %1324 = vmatpush1.bf16.msra.mxu0 %v1320
        %1325 = vmatprep.subr.bf16.mxu0 0
        %1326 = vmatpush1.bf16.msra.mxu0 0
        %1327 = vmatprep.subr.bf16.mxu0 0
        %1328 = vmatpush1.bf16.msra.mxu0 0
        %1329 = vmatprep.subr.bf16.mxu0 0
        %1330 = vmatpush1.bf16.msra.mxu0 0
        %1331 = vmatprep.subr.bf16.mxu0 0
        %1332 = vmatpush1.bf16.msra.mxu0 0
        %1333 = vmatprep.subr.bf16.mxu0 0
        %1334 = vmatpush1.bf16.msra.mxu0 0
        %1335 = vmatprep.subr.bf16.mxu0 0
        %1336 = vmatpush1.bf16.msra.mxu0 0
        %1337 = vmatprep.subr.bf16.mxu0 0
        %1338 = vmatpush1.bf16.msra.mxu0 0
        %1339 = vmatprep.subr.bf16.mxu0 0
        %1340 = vmatpush1.bf16.msra.mxu0 0
        %1341 = vmatprep.subr.bf16.mxu0 0
        %1342 = vmatpush1.bf16.msra.mxu0 0
        %1343 = vmatprep.subr.bf16.mxu0 0
        %1344 = vmatpush1.bf16.msra.mxu0 0
        %1345 = vmatprep.subr.bf16.mxu0 0
        %1346 = vmatpush1.bf16.msra.mxu0 0
        %1347 = vmatprep.subr.bf16.mxu0 0
        %1348 = vmatpush1.bf16.msra.mxu0 0
        %1349 = vmatprep.subr.bf16.mxu0 0
        %1350 = vmatpush1.bf16.msra.mxu0 0
        %1351 = vmatprep.subr.bf16.mxu0 0
        %1352 = vmatpush1.bf16.msra.mxu0 0
        %1353 = vmatprep.mubr.bf16.mxu0 0
        %1354 = vmatmul.mubr.bf16.gmra.mrb[0].mxu0 %v757
        %v1355 = vpop.f32.mrb[0].mxu0
        %v1356 = vadd.f32 %v698, %v1355
        %v1357 = vpop.f32.mrb[0].mxu0
        %v1358 = vpop.f32.mrb[0].mxu0
        %v1359 = vadd.f32 %v703, %v1358
        %v1360 = vpop.f32.mrb[0].mxu0
        %1361 = vmatprep.mubr.bf16.mxu0 0
        %1362 = vmatmul.mubr.bf16.gmra.mrb[0].mxu0 %v760
        %v1363 = vpop.f32.mrb[0].mxu0
        %v1364 = vadd.f32 %v708, %v1363
        %v1365 = vpop.f32.mrb[0].mxu0
        %v1366 = vpop.f32.mrb[0].mxu0
        %v1367 = vadd.f32 %v713, %v1366
        %v1368 = vpop.f32.mrb[0].mxu0
        %1369 = vmatprep.mubr.bf16.mxu0 0
        %1370 = vmatmul.mubr.bf16.gmra.mrb[0].mxu0 %v763
        %v1371 = vpop.f32.mrb[0].mxu0
        %v1372 = vadd.f32 %v718, %v1371
        %v1373 = vpop.f32.mrb[0].mxu0
        %v1374 = vpop.f32.mrb[0].mxu0
        %v1375 = vadd.f32 %v723, %v1374
        %v1376 = vpop.f32.mrb[0].mxu0
        %1377 = vmatprep.mubr.bf16.mxu0 0
        %1378 = vmatmul.mubr.bf16.gmra.mrb[0].mxu0 %v766
        %v1379 = vpop.f32.mrb[0].mxu0
        %v1380 = vadd.f32 %v728, %v1379
        %v1381 = vpop.f32.mrb[0].mxu0
        %v1382 = vpop.f32.mrb[0].mxu0
        %v1383 = vadd.f32 %v733, %v1382
        %v1384 = vpop.f32.mrb[0].mxu0
        %1385 = vdwg.mxu0
        %vm1386 = vcmp.gt.f32.partialorder %v1356, 0.0
        %vm1387 = vcmp.gt.f32.partialorder %v1359, 0.0
        %vm1388 = vcmp.gt.f32.partialorder %v1364, 0.0
        %vm1389 = vcmp.gt.f32.partialorder %v1367, 0.0
        %vm1390 = vcmp.gt.f32.partialorder %v1372, 0.0
        %vm1391 = vcmp.gt.f32.partialorder %v1375, 0.0
        %vm1392 = vcmp.gt.f32.partialorder %v1380, 0.0
        %vm1393 = vcmp.gt.f32.partialorder %v1383, 0.0
        %v1394 = vmul.f32 %v1356, 0.02
        %v1395 = vmul.f32 %v1359, 0.02
        %v1396 = vmul.f32 %v1364, 0.02
        %v1397 = vmul.f32 %v1367, 0.02
        %v1398 = vmul.f32 %v1372, 0.02
        %v1399 = vmul.f32 %v1375, 0.02
        %v1400 = vmul.f32 %v1380, 0.02
        %v1401 = vmul.f32 %v1383, 0.02
        %v1402 = vsel %vm1386, %v1356, %v1394
        %v1403 = vsel %vm1387, %v1359, %v1395
        %v1404 = vsel %vm1388, %v1364, %v1396
        %v1405 = vsel %vm1389, %v1367, %v1397
        %v1406 = vsel %vm1390, %v1372, %v1398
        %v1407 = vsel %vm1391, %v1375, %v1399
        %v1408 = vsel %vm1392, %v1380, %v1400
        %v1409 = vsel %vm1393, %v1383, %v1401
        %v1410 = vpack.c.bf16 %v1403, %v1402
        %v1411 = vpack.c.bf16 %v1405, %v1404
        %v1412 = vpack.c.bf16 %v1407, %v1406
        %v1413 = vpack.c.bf16 %v1409, %v1408
        %1414 = vmatprep.subr.bf16.mxu0 0
        %1415 = vmatpush1.bf16.msra.mxu0 %v1410
        %1416 = vmatprep.subr.bf16.mxu0 0
        %1417 = vmatpush1.bf16.msra.mxu0 %v1411
        %1418 = vmatprep.subr.bf16.mxu0 0
        %1419 = vmatpush1.bf16.msra.mxu0 %v1412
        %1420 = vmatprep.subr.bf16.mxu0 0
        %1421 = vmatpush1.bf16.msra.mxu0 %v1413
        %1422 = vmatprep.subr.bf16.mxu0 0
        %1423 = vmatpush1.bf16.msra.mxu0 0
        %1424 = vmatprep.subr.bf16.mxu0 0
        %1425 = vmatpush1.bf16.msra.mxu0 0
        %1426 = vmatprep.subr.bf16.mxu0 0
        %1427 = vmatpush1.bf16.msra.mxu0 0
        %1428 = vmatprep.subr.bf16.mxu0 0
        %1429 = vmatpush1.bf16.msra.mxu0 0
        %1430 = vmatprep.subr.bf16.mxu0 0
        %1431 = vmatpush1.bf16.msra.mxu0 0
        %1432 = vmatprep.subr.bf16.mxu0 0
        %1433 = vmatpush1.bf16.msra.mxu0 0
        %1434 = vmatprep.subr.bf16.mxu0 0
        %1435 = vmatpush1.bf16.msra.mxu0 0
        %1436 = vmatprep.subr.bf16.mxu0 0
        %1437 = vmatpush1.bf16.msra.mxu0 0
        %1438 = vmatprep.subr.bf16.mxu0 0
        %1439 = vmatpush1.bf16.msra.mxu0 0
        %1440 = vmatprep.subr.bf16.mxu0 0
        %1441 = vmatpush1.bf16.msra.mxu0 0
        %1442 = vmatprep.subr.bf16.mxu0 0
        %1443 = vmatpush1.bf16.msra.mxu0 0
        %1444 = vmatprep.subr.bf16.mxu0 0
        %1445 = vmatpush1.bf16.msra.mxu0 0
        %1446 = vmatprep.mubr.bf16.mxu0 0
        %1447 = vmatmul.mubr.bf16.gmra.mrb[0].mxu0 %v1015
        %v1448 = vpop.f32.mrb[0].mxu0
        %v1449 = vadd.f32 %v896, %v1448
        %v1450 = vpop.f32.mrb[0].mxu0
        %v1451 = vpop.f32.mrb[0].mxu0
        %v1452 = vadd.f32 %v901, %v1451
        %v1453 = vpop.f32.mrb[0].mxu0
        %1454 = vmatprep.mubr.bf16.mxu0 0
        %1455 = vmatmul.mubr.bf16.gmra.mrb[0].mxu0 %v1018
        %v1456 = vpop.f32.mrb[0].mxu0
        %v1457 = vadd.f32 %v906, %v1456
        %v1458 = vpop.f32.mrb[0].mxu0
        %v1459 = vpop.f32.mrb[0].mxu0
        %v1460 = vadd.f32 %v911, %v1459
        %v1461 = vpop.f32.mrb[0].mxu0
        %1462 = vmatprep.mubr.bf16.mxu0 0
        %1463 = vmatmul.mubr.bf16.gmra.mrb[0].mxu0 %v1021
        %v1464 = vpop.f32.mrb[0].mxu0
        %v1465 = vadd.f32 %v916, %v1464
        %v1466 = vpop.f32.mrb[0].mxu0
        %v1467 = vpop.f32.mrb[0].mxu0
        %v1468 = vadd.f32 %v921, %v1467
        %v1469 = vpop.f32.mrb[0].mxu0
        %1470 = vmatprep.mubr.bf16.mxu0 0
        %1471 = vmatmul.mubr.bf16.gmra.mrb[0].mxu0 %v1024
        %v1472 = vpop.f32.mrb[0].mxu0
        %v1473 = vadd.f32 %v926, %v1472
        %v1474 = vpop.f32.mrb[0].mxu0
        %v1475 = vpop.f32.mrb[0].mxu0
        %v1476 = vadd.f32 %v931, %v1475
        %v1477 = vpop.f32.mrb[0].mxu0
        %1478 = vmatprep.mubr.bf16.mxu0 0
        %1479 = vmatmul.mubr.bf16.gmra.mrb[0].mxu0 %v1027
        %v1480 = vpop.f32.mrb[0].mxu0
        %v1481 = vadd.f32 %v936, %v1480
        %v1482 = vpop.f32.mrb[0].mxu0
        %v1483 = vpop.f32.mrb[0].mxu0
        %v1484 = vadd.f32 %v941, %v1483
        %v1485 = vpop.f32.mrb[0].mxu0
        %1486 = vmatprep.mubr.bf16.mxu0 0
        %1487 = vmatmul.mubr.bf16.gmra.mrb[0].mxu0 %v1030
        %v1488 = vpop.f32.mrb[0].mxu0
        %v1489 = vadd.f32 %v946, %v1488
        %v1490 = vpop.f32.mrb[0].mxu0
        %v1491 = vpop.f32.mrb[0].mxu0
        %v1492 = vadd.f32 %v951, %v1491
        %v1493 = vpop.f32.mrb[0].mxu0
        %1494 = vmatprep.mubr.bf16.mxu0 0
        %1495 = vmatmul.mubr.bf16.gmra.mrb[0].mxu0 %v1033
        %v1496 = vpop.f32.mrb[0].mxu0
        %v1497 = vadd.f32 %v956, %v1496
        %v1498 = vpop.f32.mrb[0].mxu0
        %v1499 = vpop.f32.mrb[0].mxu0
        %v1500 = vadd.f32 %v961, %v1499
        %v1501 = vpop.f32.mrb[0].mxu0
        %1502 = vmatprep.mubr.bf16.mxu0 0
        %1503 = vmatmul.mubr.bf16.gmra.mrb[0].mxu0 %v1036
        %v1504 = vpop.f32.mrb[0].mxu0
        %v1505 = vadd.f32 %v966, %v1504
        %v1506 = vpop.f32.mrb[0].mxu0
        %v1507 = vpop.f32.mrb[0].mxu0
        %v1508 = vadd.f32 %v971, %v1507
        %v1509 = vpop.f32.mrb[0].mxu0
        %1510 = vdwg.mxu0
        %vm1511 = vcmp.gt.f32.partialorder %v1449, 0.0
        %vm1512 = vcmp.gt.f32.partialorder %v1452, 0.0
        %vm1513 = vcmp.gt.f32.partialorder %v1457, 0.0
        %vm1514 = vcmp.gt.f32.partialorder %v1460, 0.0
        %vm1515 = vcmp.gt.f32.partialorder %v1465, 0.0
        %vm1516 = vcmp.gt.f32.partialorder %v1468, 0.0
        %vm1517 = vcmp.gt.f32.partialorder %v1473, 0.0
        %vm1518 = vcmp.gt.f32.partialorder %v1476, 0.0
        %vm1519 = vcmp.gt.f32.partialorder %v1481, 0.0
        %vm1520 = vcmp.gt.f32.partialorder %v1484, 0.0
        %vm1521 = vcmp.gt.f32.partialorder %v1489, 0.0
        %vm1522 = vcmp.gt.f32.partialorder %v1492, 0.0
        %vm1523 = vcmp.gt.f32.partialorder %v1497, 0.0
        %vm1524 = vcmp.gt.f32.partialorder %v1500, 0.0
        %vm1525 = vcmp.gt.f32.partialorder %v1505, 0.0
        %vm1526 = vcmp.gt.f32.partialorder %v1508, 0.0
        %v1527 = vmul.f32 %v1449, 0.02
        %v1528 = vmul.f32 %v1452, 0.02
        %v1529 = vmul.f32 %v1457, 0.02
        %v1530 = vmul.f32 %v1460, 0.02
        %v1531 = vmul.f32 %v1465, 0.02
        %v1532 = vmul.f32 %v1468, 0.02
        %v1533 = vmul.f32 %v1473, 0.02
        %v1534 = vmul.f32 %v1476, 0.02
        %v1535 = vmul.f32 %v1481, 0.02
        %v1536 = vmul.f32 %v1484, 0.02
        %v1537 = vmul.f32 %v1489, 0.02
        %v1538 = vmul.f32 %v1492, 0.02
        %v1539 = vmul.f32 %v1497, 0.02
        %v1540 = vmul.f32 %v1500, 0.02
        %v1541 = vmul.f32 %v1505, 0.02
        %v1542 = vmul.f32 %v1508, 0.02
        %v1543 = vsel %vm1511, %v1449, %v1527
        %v1544 = vsel %vm1512, %v1452, %v1528
        %v1545 = vsel %vm1513, %v1457, %v1529
        %v1546 = vsel %vm1514, %v1460, %v1530
        %v1547 = vsel %vm1515, %v1465, %v1531
        %v1548 = vsel %vm1516, %v1468, %v1532
        %v1549 = vsel %vm1517, %v1473, %v1533
        %v1550 = vsel %vm1518, %v1476, %v1534
        %v1551 = vsel %vm1519, %v1481, %v1535
        %v1552 = vsel %vm1520, %v1484, %v1536
        %v1553 = vsel %vm1521, %v1489, %v1537
        %v1554 = vsel %vm1522, %v1492, %v1538
        %v1555 = vsel %vm1523, %v1497, %v1539
        %v1556 = vsel %vm1524, %v1500, %v1540
        %v1557 = vsel %vm1525, %v1505, %v1541
        %v1558 = vsel %vm1526, %v1508, %v1542
        %1559 = vmax.xlane.f32.xlu0 %v1543
        %v1560 = vpop.xlane.xlu0 %1559
        %1561 = vmax.xlane.f32.xlu0 %v1544
        %v1562 = vpop.xlane.xlu0 %1561
        %1563 = vmax.xlane.f32.xlu0 %v1545
        %v1564 = vpop.xlane.xlu0 %1563
        %1565 = vmax.xlane.f32.xlu0 %v1546
        %v1566 = vpop.xlane.xlu0 %1565
        %1567 = vmax.xlane.f32.xlu0 %v1547
        %v1568 = vpop.xlane.xlu0 %1567
        %1569 = vmax.xlane.f32.xlu0 %v1548
        %v1570 = vpop.xlane.xlu0 %1569
        %1571 = vmax.xlane.f32.xlu0 %v1549
        %v1572 = vpop.xlane.xlu0 %1571
        %1573 = vmax.xlane.f32.xlu0 %v1550
        %v1574 = vpop.xlane.xlu0 %1573
        %1575 = vmax.xlane.f32.xlu0 %v1551
        %v1576 = vpop.xlane.xlu0 %1575
        %1577 = vmax.xlane.f32.xlu0 %v1552
        %v1578 = vpop.xlane.xlu0 %1577
        %1579 = vmax.xlane.f32.xlu0 %v1553
        %v1580 = vpop.xlane.xlu0 %1579
        %1581 = vmax.xlane.f32.xlu0 %v1554
        %v1582 = vpop.xlane.xlu0 %1581
        %1583 = vmax.xlane.f32.xlu0 %v1555
        %v1584 = vpop.xlane.xlu0 %1583
        %1585 = vmax.xlane.f32.xlu0 %v1556
        %v1586 = vpop.xlane.xlu0 %1585
        %1587 = vmax.xlane.f32.xlu0 %v1557
        %v1588 = vpop.xlane.xlu0 %1587
        %1589 = vmax.xlane.f32.xlu0 %v1558
        %v1590 = vpop.xlane.xlu0 %1589
        %s1591 = scalar_lea.vmem %s488, 48 [#allocation3]
        %v1592 = vld [vmem:[%s1591] sm:$0xff]
        %v1593 = vld [vmem:[%s1591 + $0x8] sm:$0xff]
        %v1594 = vld [vmem:[%s1591 + $0x10] sm:$0x7]
        %v1596 = vsel %vm576, %v1594, 0
        %1598 = vmatprep.subr.mxu0 0.0
        %1599 = vmatpush1.msra.mxu0 %v1592
        %1600 = vmatprep.subr.mxu0 0.0
        %1601 = vmatpush1.msra.mxu0 %v1593
        %1602 = vmatprep.subr.mxu0 0.0
        %1603 = vmatpush1.msra.mxu0 %v1596
        %1604 = vmatprep.subr.mxu0 0.0
        %1605 = vmatpush1.msra.mxu0 0.0
        %1606 = vmatprep.subr.mxu0 0.0
        %1607 = vmatpush1.msra.mxu0 0.0
        %1608 = vmatprep.subr.mxu0 0.0
        %1609 = vmatpush1.msra.mxu0 0.0
        %1610 = vmatprep.subr.mxu0 0.0
        %1611 = vmatpush1.msra.mxu0 0.0
        %1612 = vmatprep.subr.mxu0 0.0
        %1613 = vmatpush1.msra.mxu0 0.0
        %1614 = vmatprep.subr.mxu0 0.0
        %1615 = vmatpush1.msra.mxu0 0.0
        %1616 = vmatprep.subr.mxu0 0.0
        %1617 = vmatpush1.msra.mxu0 0.0
        %1618 = vmatprep.subr.mxu0 0.0
        %1619 = vmatpush1.msra.mxu0 0.0
        %1620 = vmatprep.subr.mxu0 0.0
        %1621 = vmatpush1.msra.mxu0 0.0
        %1622 = vmatprep.subr.mxu0 0.0
        %1623 = vmatpush1.msra.mxu0 0.0
        %1624 = vmatprep.subr.mxu0 0.0
        %1625 = vmatpush1.msra.mxu0 0.0
        %1626 = vmatprep.subr.mxu0 0.0
        %1627 = vmatpush1.msra.mxu0 0.0
        %1628 = vmatprep.subr.mxu0 0.0
        %1629 = vmatpush1.msra.mxu0 0.0
        %1630 = vmatprep.subr.mxu0 0.0
        %1631 = vmatpush1.msra.mxu0 0.0
        %1632 = vmatprep.subr.mxu0 0.0
        %1633 = vmatpush1.msra.mxu0 0.0
        %1634 = vmatprep.subr.mxu0 0.0
        %1635 = vmatpush1.msra.mxu0 0.0
        %1636 = vmatprep.subr.mxu0 0.0
        %1637 = vmatpush1.msra.mxu0 0.0
        %1638 = vmatprep.subr.mxu0 0.0
        %1639 = vmatpush1.msra.mxu0 0.0
        %1640 = vmatprep.subr.mxu0 0.0
        %1641 = vmatpush1.msra.mxu0 0.0
        %1642 = vmatprep.subr.mxu0 0.0
        %1643 = vmatpush1.msra.mxu0 0.0
        %1644 = vmatprep.subr.mxu0 0.0
        %1645 = vmatpush1.msra.mxu0 0.0
        %1646 = vmatprep.subr.mxu0 0.0
        %1647 = vmatpush1.msra.mxu0 0.0
        %1648 = vmatprep.subr.mxu0 0.0
        %1649 = vmatpush1.msra.mxu0 0.0
        %1650 = vmatprep.subr.mxu0 0.0
        %1651 = vmatpush1.msra.mxu0 0.0
        %1652 = vmatprep.subr.mxu0 0.0
        %1653 = vmatpush1.msra.mxu0 0.0
        %1654 = vmatprep.subr.mxu0 0.0
        %1655 = vmatpush1.msra.mxu0 0.0
        %1656 = vmatprep.subr.mxu0 0.0
        %1657 = vmatpush1.msra.mxu0 0.0
        %1658 = vmatprep.subr.mxu0 0.0
        %1659 = vmatpush1.msra.mxu0 0.0
        %1660 = vmatprep.subr.mxu0 0.0
        %1661 = vmatpush1.msra.mxu0 0.0
        %1662 = vmatprep.mubr.f32.mxu0 0.0
        %1663 = vmatmul.mubr.f32.gmra.mrb[0].mxu0 %v565
        %v1664 = vpop.f32.mrb[0].mxu0
        %v1665 = vadd.f32 %v546, %v1664
        %v1666 = vpop.f32.mrb[0].mxu0
        %1667 = vmatprep.mubr.f32.mxu0 0.0
        %1668 = vmatmul.mubr.f32.gmra.mrb[0].mxu0 %v568
        %v1669 = vpop.f32.mrb[0].mxu0
        %v1670 = vadd.f32 %v551, %v1669
        %v1671 = vpop.f32.mrb[0].mxu0
        %1672 = vmatprep.mubr.f32.mxu0 0.0
        %1673 = vmatmul.mubr.f32.gmra.mrb[0].mxu0 %v571
        %v1674 = vpop.f32.mrb[0].mxu0
        %v1675 = vadd.f32 %v556, %v1674
        %v1676 = vpop.f32.mrb[0].mxu0
        %1677 = vmatprep.mubr.f32.mxu0 0.0
        %1678 = vmatmul.mubr.f32.gmra.mrb[0].mxu0 %v574
        %v1679 = vpop.f32.mrb[0].mxu0
        %v1680 = vadd.f32 %v561, %v1679
        %v1681 = vpop.f32.mrb[0].mxu0
        %1682 = vdwg.mxu0
        %vm1683 = vcmp.gt.f32.partialorder %v1665, 0.0
        %vm1684 = vcmp.gt.f32.partialorder %v1670, 0.0
        %vm1685 = vcmp.gt.f32.partialorder %v1675, 0.0
        %vm1686 = vcmp.gt.f32.partialorder %v1680, 0.0
        %v1687 = vmul.f32 %v1665, 0.02
        %v1688 = vmul.f32 %v1670, 0.02
        %v1689 = vmul.f32 %v1675, 0.02
        %v1690 = vmul.f32 %v1680, 0.02
        %v1691 = vsel %vm1683, %v1665, %v1687
        %v1692 = vsel %vm1684, %v1670, %v1688
        %v1693 = vsel %vm1685, %v1675, %v1689
        %v1694 = vsel %vm1686, %v1680, %v1690
        %v1695 = vpack.c.bf16 %v1692, %v1691
        %v1696 = vpack.c.bf16 %v1694, %v1693
        %1697 = vmatprep.subr.bf16.mxu0 0
        %1698 = vmatpush1.bf16.msra.mxu0 %v1695
        %1699 = vmatprep.subr.bf16.mxu0 0
        %1700 = vmatpush1.bf16.msra.mxu0 %v1696
        %1701 = vmatprep.subr.bf16.mxu0 0
        %1702 = vmatpush1.bf16.msra.mxu0 0
        %1703 = vmatprep.subr.bf16.mxu0 0
        %1704 = vmatpush1.bf16.msra.mxu0 0
        %1705 = vmatprep.subr.bf16.mxu0 0
        %1706 = vmatpush1.bf16.msra.mxu0 0
        %1707 = vmatprep.subr.bf16.mxu0 0
        %1708 = vmatpush1.bf16.msra.mxu0 0
        %1709 = vmatprep.subr.bf16.mxu0 0
        %1710 = vmatpush1.bf16.msra.mxu0 0
        %1711 = vmatprep.subr.bf16.mxu0 0
        %1712 = vmatpush1.bf16.msra.mxu0 0
        %1713 = vmatprep.subr.bf16.mxu0 0
        %1714 = vmatpush1.bf16.msra.mxu0 0
        %1715 = vmatprep.subr.bf16.mxu0 0
        %1716 = vmatpush1.bf16.msra.mxu0 0
        %1717 = vmatprep.subr.bf16.mxu0 0
        %1718 = vmatpush1.bf16.msra.mxu0 0
        %1719 = vmatprep.subr.bf16.mxu0 0
        %1720 = vmatpush1.bf16.msra.mxu0 0
        %1721 = vmatprep.subr.bf16.mxu0 0
        %1722 = vmatpush1.bf16.msra.mxu0 0
        %1723 = vmatprep.subr.bf16.mxu0 0
        %1724 = vmatpush1.bf16.msra.mxu0 0
        %1725 = vmatprep.subr.bf16.mxu0 0
        %1726 = vmatpush1.bf16.msra.mxu0 0
        %1727 = vmatprep.subr.bf16.mxu0 0
        %1728 = vmatpush1.bf16.msra.mxu0 0
        %1729 = vmatprep.mubr.bf16.mxu0 0
        %1730 = vmatmul.mubr.bf16.gmra.mrb[0].mxu0 %v757
        %v1731 = vpop.f32.mrb[0].mxu0
        %v1732 = vadd.f32 %v698, %v1731
        %v1733 = vpop.f32.mrb[0].mxu0
        %v1734 = vpop.f32.mrb[0].mxu0
        %v1735 = vadd.f32 %v703, %v1734
        %v1736 = vpop.f32.mrb[0].mxu0
        %1737 = vmatprep.mubr.bf16.mxu0 0
        %1738 = vmatmul.mubr.bf16.gmra.mrb[0].mxu0 %v760
        %v1739 = vpop.f32.mrb[0].mxu0
        %v1740 = vadd.f32 %v708, %v1739
        %v1741 = vpop.f32.mrb[0].mxu0
        %v1742 = vpop.f32.mrb[0].mxu0
        %v1743 = vadd.f32 %v713, %v1742
        %v1744 = vpop.f32.mrb[0].mxu0
        %1745 = vmatprep.mubr.bf16.mxu0 0
        %1746 = vmatmul.mubr.bf16.gmra.mrb[0].mxu0 %v763
        %v1747 = vpop.f32.mrb[0].mxu0
        %v1748 = vadd.f32 %v718, %v1747
        %v1749 = vpop.f32.mrb[0].mxu0
        %v1750 = vpop.f32.mrb[0].mxu0
        %v1751 = vadd.f32 %v723, %v1750
        %v1752 = vpop.f32.mrb[0].mxu0
        %1753 = vmatprep.mubr.bf16.mxu0 0
        %1754 = vmatmul.mubr.bf16.gmra.mrb[0].mxu0 %v766
        %v1755 = vpop.f32.mrb[0].mxu0
        %v1756 = vadd.f32 %v728, %v1755
        %v1757 = vpop.f32.mrb[0].mxu0
        %v1758 = vpop.f32.mrb[0].mxu0
        %v1759 = vadd.f32 %v733, %v1758
        %v1760 = vpop.f32.mrb[0].mxu0
        %1761 = vdwg.mxu0
        %vm1762 = vcmp.gt.f32.partialorder %v1732, 0.0
        %vm1763 = vcmp.gt.f32.partialorder %v1735, 0.0
        %vm1764 = vcmp.gt.f32.partialorder %v1740, 0.0
        %vm1765 = vcmp.gt.f32.partialorder %v1743, 0.0
        %vm1766 = vcmp.gt.f32.partialorder %v1748, 0.0
        %vm1767 = vcmp.gt.f32.partialorder %v1751, 0.0
        %vm1768 = vcmp.gt.f32.partialorder %v1756, 0.0
        %vm1769 = vcmp.gt.f32.partialorder %v1759, 0.0
        %v1770 = vmul.f32 %v1732, 0.02
        %v1771 = vmul.f32 %v1735, 0.02
        %v1772 = vmul.f32 %v1740, 0.02
        %v1773 = vmul.f32 %v1743, 0.02
        %v1774 = vmul.f32 %v1748, 0.02
        %v1775 = vmul.f32 %v1751, 0.02
        %v1776 = vmul.f32 %v1756, 0.02
        %v1777 = vmul.f32 %v1759, 0.02
        %v1778 = vsel %vm1762, %v1732, %v1770
        %v1779 = vsel %vm1763, %v1735, %v1771
        %v1780 = vsel %vm1764, %v1740, %v1772
        %v1781 = vsel %vm1765, %v1743, %v1773
        %v1782 = vsel %vm1766, %v1748, %v1774
        %v1783 = vsel %vm1767, %v1751, %v1775
        %v1784 = vsel %vm1768, %v1756, %v1776
        %v1785 = vsel %vm1769, %v1759, %v1777
        %v1786 = vpack.c.bf16 %v1779, %v1778
        %v1787 = vpack.c.bf16 %v1781, %v1780
        %v1788 = vpack.c.bf16 %v1783, %v1782
        %v1789 = vpack.c.bf16 %v1785, %v1784
        %1790 = vmatprep.subr.bf16.mxu0 0
        %1791 = vmatpush1.bf16.msra.mxu0 %v1786
        %1792 = vmatprep.subr.bf16.mxu0 0
        %1793 = vmatpush1.bf16.msra.mxu0 %v1787
        %1794 = vmatprep.subr.bf16.mxu0 0
        %1795 = vmatpush1.bf16.msra.mxu0 %v1788
        %1796 = vmatprep.subr.bf16.mxu0 0
        %1797 = vmatpush1.bf16.msra.mxu0 %v1789
        %1798 = vmatprep.subr.bf16.mxu0 0
        %1799 = vmatpush1.bf16.msra.mxu0 0
        %1800 = vmatprep.subr.bf16.mxu0 0
        %1801 = vmatpush1.bf16.msra.mxu0 0
        %1802 = vmatprep.subr.bf16.mxu0 0
        %1803 = vmatpush1.bf16.msra.mxu0 0
        %1804 = vmatprep.subr.bf16.mxu0 0
        %1805 = vmatpush1.bf16.msra.mxu0 0
        %1806 = vmatprep.subr.bf16.mxu0 0
        %1807 = vmatpush1.bf16.msra.mxu0 0
        %1808 = vmatprep.subr.bf16.mxu0 0
        %1809 = vmatpush1.bf16.msra.mxu0 0
        %1810 = vmatprep.subr.bf16.mxu0 0
        %1811 = vmatpush1.bf16.msra.mxu0 0
        %1812 = vmatprep.subr.bf16.mxu0 0
        %1813 = vmatpush1.bf16.msra.mxu0 0
        %1814 = vmatprep.subr.bf16.mxu0 0
        %1815 = vmatpush1.bf16.msra.mxu0 0
        %1816 = vmatprep.subr.bf16.mxu0 0
        %1817 = vmatpush1.bf16.msra.mxu0 0
        %1818 = vmatprep.subr.bf16.mxu0 0
        %1819 = vmatpush1.bf16.msra.mxu0 0
        %1820 = vmatprep.subr.bf16.mxu0 0
        %1821 = vmatpush1.bf16.msra.mxu0 0
        %1822 = vmatprep.mubr.bf16.mxu0 0
        %1823 = vmatmul.mubr.bf16.gmra.mrb[0].mxu0 %v1015
        %v1824 = vpop.f32.mrb[0].mxu0
        %v1825 = vadd.f32 %v896, %v1824
        %v1826 = vpop.f32.mrb[0].mxu0
        %v1827 = vpop.f32.mrb[0].mxu0
        %v1828 = vadd.f32 %v901, %v1827
        %v1829 = vpop.f32.mrb[0].mxu0
        %1830 = vmatprep.mubr.bf16.mxu0 0
        %1831 = vmatmul.mubr.bf16.gmra.mrb[0].mxu0 %v1018
        %v1832 = vpop.f32.mrb[0].mxu0
        %v1833 = vadd.f32 %v906, %v1832
        %v1834 = vpop.f32.mrb[0].mxu0
        %v1835 = vpop.f32.mrb[0].mxu0
        %v1836 = vadd.f32 %v911, %v1835
        %v1837 = vpop.f32.mrb[0].mxu0
        %1838 = vmatprep.mubr.bf16.mxu0 0
        %1839 = vmatmul.mubr.bf16.gmra.mrb[0].mxu0 %v1021
        %v1840 = vpop.f32.mrb[0].mxu0
        %v1841 = vadd.f32 %v916, %v1840
        %v1842 = vpop.f32.mrb[0].mxu0
        %v1843 = vpop.f32.mrb[0].mxu0
        %v1844 = vadd.f32 %v921, %v1843
        %v1845 = vpop.f32.mrb[0].mxu0
        %1846 = vmatprep.mubr.bf16.mxu0 0
        %1847 = vmatmul.mubr.bf16.gmra.mrb[0].mxu0 %v1024
        %v1848 = vpop.f32.mrb[0].mxu0
        %v1849 = vadd.f32 %v926, %v1848
        %v1850 = vpop.f32.mrb[0].mxu0
        %v1851 = vpop.f32.mrb[0].mxu0
        %v1852 = vadd.f32 %v931, %v1851
        %v1853 = vpop.f32.mrb[0].mxu0
        %1854 = vmatprep.mubr.bf16.mxu0 0
        %1855 = vmatmul.mubr.bf16.gmra.mrb[0].mxu0 %v1027
        %v1856 = vpop.f32.mrb[0].mxu0
        %v1857 = vadd.f32 %v936, %v1856
        %v1858 = vpop.f32.mrb[0].mxu0
        %v1859 = vpop.f32.mrb[0].mxu0
        %v1860 = vadd.f32 %v941, %v1859
        %v1861 = vpop.f32.mrb[0].mxu0
        %1862 = vmatprep.mubr.bf16.mxu0 0
        %1863 = vmatmul.mubr.bf16.gmra.mrb[0].mxu0 %v1030
        %v1864 = vpop.f32.mrb[0].mxu0
        %v1865 = vadd.f32 %v946, %v1864
        %v1866 = vpop.f32.mrb[0].mxu0
        %v1867 = vpop.f32.mrb[0].mxu0
        %v1868 = vadd.f32 %v951, %v1867
        %v1869 = vpop.f32.mrb[0].mxu0
        %1870 = vmatprep.mubr.bf16.mxu0 0
        %1871 = vmatmul.mubr.bf16.gmra.mrb[0].mxu0 %v1033
        %v1872 = vpop.f32.mrb[0].mxu0
        %v1873 = vadd.f32 %v956, %v1872
        %v1874 = vpop.f32.mrb[0].mxu0
        %v1875 = vpop.f32.mrb[0].mxu0
        %v1876 = vadd.f32 %v961, %v1875
        %v1877 = vpop.f32.mrb[0].mxu0
        %1878 = vmatprep.mubr.bf16.mxu0 0
        %1879 = vmatmul.mubr.bf16.gmra.mrb[0].mxu0 %v1036
        %v1880 = vpop.f32.mrb[0].mxu0
        %v1881 = vadd.f32 %v966, %v1880
        %v1882 = vpop.f32.mrb[0].mxu0
        %v1883 = vpop.f32.mrb[0].mxu0
        %v1884 = vadd.f32 %v971, %v1883
        %v1885 = vpop.f32.mrb[0].mxu0
        %1886 = vdwg.mxu0
        %vm1887 = vcmp.gt.f32.partialorder %v1825, 0.0
        %vm1888 = vcmp.gt.f32.partialorder %v1828, 0.0
        %vm1889 = vcmp.gt.f32.partialorder %v1833, 0.0
        %vm1890 = vcmp.gt.f32.partialorder %v1836, 0.0
        %vm1891 = vcmp.gt.f32.partialorder %v1841, 0.0
        %vm1892 = vcmp.gt.f32.partialorder %v1844, 0.0
        %vm1893 = vcmp.gt.f32.partialorder %v1849, 0.0
        %vm1894 = vcmp.gt.f32.partialorder %v1852, 0.0
        %vm1895 = vcmp.gt.f32.partialorder %v1857, 0.0
        %vm1896 = vcmp.gt.f32.partialorder %v1860, 0.0
        %vm1897 = vcmp.gt.f32.partialorder %v1865, 0.0
        %vm1898 = vcmp.gt.f32.partialorder %v1868, 0.0
        %vm1899 = vcmp.gt.f32.partialorder %v1873, 0.0
        %vm1900 = vcmp.gt.f32.partialorder %v1876, 0.0
        %vm1901 = vcmp.gt.f32.partialorder %v1881, 0.0
        %vm1902 = vcmp.gt.f32.partialorder %v1884, 0.0
        %v1903 = vmul.f32 %v1825, 0.02
        %v1904 = vmul.f32 %v1828, 0.02
        %v1905 = vmul.f32 %v1833, 0.02
        %v1906 = vmul.f32 %v1836, 0.02
        %v1907 = vmul.f32 %v1841, 0.02
        %v1908 = vmul.f32 %v1844, 0.02
        %v1909 = vmul.f32 %v1849, 0.02
        %v1910 = vmul.f32 %v1852, 0.02
        %v1911 = vmul.f32 %v1857, 0.02
        %v1912 = vmul.f32 %v1860, 0.02
        %v1913 = vmul.f32 %v1865, 0.02
        %v1914 = vmul.f32 %v1868, 0.02
        %v1915 = vmul.f32 %v1873, 0.02
        %v1916 = vmul.f32 %v1876, 0.02
        %v1917 = vmul.f32 %v1881, 0.02
        %v1918 = vmul.f32 %v1884, 0.02
        %v1919 = vsel %vm1887, %v1825, %v1903
        %v1920 = vsel %vm1888, %v1828, %v1904
        %v1921 = vsel %vm1889, %v1833, %v1905
        %v1922 = vsel %vm1890, %v1836, %v1906
        %v1923 = vsel %vm1891, %v1841, %v1907
        %v1924 = vsel %vm1892, %v1844, %v1908
        %v1925 = vsel %vm1893, %v1849, %v1909
        %v1926 = vsel %vm1894, %v1852, %v1910
        %v1927 = vsel %vm1895, %v1857, %v1911
        %v1928 = vsel %vm1896, %v1860, %v1912
        %v1929 = vsel %vm1897, %v1865, %v1913
        %v1930 = vsel %vm1898, %v1868, %v1914
        %v1931 = vsel %vm1899, %v1873, %v1915
        %v1932 = vsel %vm1900, %v1876, %v1916
        %v1933 = vsel %vm1901, %v1881, %v1917
        %v1934 = vsel %vm1902, %v1884, %v1918
        %1935 = vmax.xlane.f32.xlu0 %v1919
        %v1936 = vpop.xlane.xlu0 %1935
        %1937 = vmax.xlane.f32.xlu0 %v1920
        %v1938 = vpop.xlane.xlu0 %1937
        %1939 = vmax.xlane.f32.xlu0 %v1921
        %v1940 = vpop.xlane.xlu0 %1939
        %1941 = vmax.xlane.f32.xlu0 %v1922
        %v1942 = vpop.xlane.xlu0 %1941
        %1943 = vmax.xlane.f32.xlu0 %v1923
        %v1944 = vpop.xlane.xlu0 %1943
        %1945 = vmax.xlane.f32.xlu0 %v1924
        %v1946 = vpop.xlane.xlu0 %1945
        %1947 = vmax.xlane.f32.xlu0 %v1925
        %v1948 = vpop.xlane.xlu0 %1947
        %1949 = vmax.xlane.f32.xlu0 %v1926
        %v1950 = vpop.xlane.xlu0 %1949
        %1951 = vmax.xlane.f32.xlu0 %v1927
        %v1952 = vpop.xlane.xlu0 %1951
        %1953 = vmax.xlane.f32.xlu0 %v1928
        %v1954 = vpop.xlane.xlu0 %1953
        %1955 = vmax.xlane.f32.xlu0 %v1929
        %v1956 = vpop.xlane.xlu0 %1955
        %1957 = vmax.xlane.f32.xlu0 %v1930
        %v1958 = vpop.xlane.xlu0 %1957
        %1959 = vmax.xlane.f32.xlu0 %v1931
        %v1960 = vpop.xlane.xlu0 %1959
        %1961 = vmax.xlane.f32.xlu0 %v1932
        %v1962 = vpop.xlane.xlu0 %1961
        %1963 = vmax.xlane.f32.xlu0 %v1933
        %v1964 = vpop.xlane.xlu0 %1963
        %1965 = vmax.xlane.f32.xlu0 %v1934
        %v1966 = vpop.xlane.xlu0 %1965
        %s1967 = scalar_lea.vmem %s488, 72 [#allocation3]
        %v1968 = vld [vmem:[%s1967] sm:$0xff]
        %v1969 = vld [vmem:[%s1967 + $0x8] sm:$0xff]
        %v1970 = vld [vmem:[%s1967 + $0x10] sm:$0x7]
        %v1972 = vsel %vm576, %v1970, 0
        %1974 = vmatprep.subr.mxu0 0.0
        %1975 = vmatpush1.msra.mxu0 %v1968
        %1976 = vmatprep.subr.mxu0 0.0
        %1977 = vmatpush1.msra.mxu0 %v1969
        %1978 = vmatprep.subr.mxu0 0.0
        %1979 = vmatpush1.msra.mxu0 %v1972
        %1980 = vmatprep.subr.mxu0 0.0
        %1981 = vmatpush1.msra.mxu0 0.0
        %1982 = vmatprep.subr.mxu0 0.0
        %1983 = vmatpush1.msra.mxu0 0.0
        %1984 = vmatprep.subr.mxu0 0.0
        %1985 = vmatpush1.msra.mxu0 0.0
        %1986 = vmatprep.subr.mxu0 0.0
        %1987 = vmatpush1.msra.mxu0 0.0
        %1988 = vmatprep.subr.mxu0 0.0
        %1989 = vmatpush1.msra.mxu0 0.0
        %1990 = vmatprep.subr.mxu0 0.0
        %1991 = vmatpush1.msra.mxu0 0.0
        %1992 = vmatprep.subr.mxu0 0.0
        %1993 = vmatpush1.msra.mxu0 0.0
        %1994 = vmatprep.subr.mxu0 0.0
        %1995 = vmatpush1.msra.mxu0 0.0
        %1996 = vmatprep.subr.mxu0 0.0
        %1997 = vmatpush1.msra.mxu0 0.0
        %1998 = vmatprep.subr.mxu0 0.0
        %1999 = vmatpush1.msra.mxu0 0.0
        %2000 = vmatprep.subr.mxu0 0.0
        %2001 = vmatpush1.msra.mxu0 0.0
        %2002 = vmatprep.subr.mxu0 0.0
        %2003 = vmatpush1.msra.mxu0 0.0
        %2004 = vmatprep.subr.mxu0 0.0
        %2005 = vmatpush1.msra.mxu0 0.0
        %2006 = vmatprep.subr.mxu0 0.0
        %2007 = vmatpush1.msra.mxu0 0.0
        %2008 = vmatprep.subr.mxu0 0.0
        %2009 = vmatpush1.msra.mxu0 0.0
        %2010 = vmatprep.subr.mxu0 0.0
        %2011 = vmatpush1.msra.mxu0 0.0
        %2012 = vmatprep.subr.mxu0 0.0
        %2013 = vmatpush1.msra.mxu0 0.0
        %2014 = vmatprep.subr.mxu0 0.0
        %2015 = vmatpush1.msra.mxu0 0.0
        %2016 = vmatprep.subr.mxu0 0.0
        %2017 = vmatpush1.msra.mxu0 0.0
        %2018 = vmatprep.subr.mxu0 0.0
        %2019 = vmatpush1.msra.mxu0 0.0
        %2020 = vmatprep.subr.mxu0 0.0
        %2021 = vmatpush1.msra.mxu0 0.0
        %2022 = vmatprep.subr.mxu0 0.0
        %2023 = vmatpush1.msra.mxu0 0.0
        %2024 = vmatprep.subr.mxu0 0.0
        %2025 = vmatpush1.msra.mxu0 0.0
        %2026 = vmatprep.subr.mxu0 0.0
        %2027 = vmatpush1.msra.mxu0 0.0
        %2028 = vmatprep.subr.mxu0 0.0
        %2029 = vmatpush1.msra.mxu0 0.0
        %2030 = vmatprep.subr.mxu0 0.0
        %2031 = vmatpush1.msra.mxu0 0.0
        %2032 = vmatprep.subr.mxu0 0.0
        %2033 = vmatpush1.msra.mxu0 0.0
        %2034 = vmatprep.subr.mxu0 0.0
        %2035 = vmatpush1.msra.mxu0 0.0
        %2036 = vmatprep.subr.mxu0 0.0
        %2037 = vmatpush1.msra.mxu0 0.0
        %2038 = vmatprep.mubr.f32.mxu0 0.0
        %2039 = vmatmul.mubr.f32.gmra.mrb[0].mxu0 %v565
        %v2040 = vpop.f32.mrb[0].mxu0
        %v2041 = vadd.f32 %v546, %v2040
        %v2042 = vpop.f32.mrb[0].mxu0
        %2043 = vmatprep.mubr.f32.mxu0 0.0
        %2044 = vmatmul.mubr.f32.gmra.mrb[0].mxu0 %v568
        %v2045 = vpop.f32.mrb[0].mxu0
        %v2046 = vadd.f32 %v551, %v2045
        %v2047 = vpop.f32.mrb[0].mxu0
        %2048 = vmatprep.mubr.f32.mxu0 0.0
        %2049 = vmatmul.mubr.f32.gmra.mrb[0].mxu0 %v571
        %v2050 = vpop.f32.mrb[0].mxu0
        %v2051 = vadd.f32 %v556, %v2050
        %v2052 = vpop.f32.mrb[0].mxu0
        %2053 = vmatprep.mubr.f32.mxu0 0.0
        %2054 = vmatmul.mubr.f32.gmra.mrb[0].mxu0 %v574
        %v2055 = vpop.f32.mrb[0].mxu0
        %v2056 = vadd.f32 %v561, %v2055
        %v2057 = vpop.f32.mrb[0].mxu0
        %2058 = vdwg.mxu0
        %vm2059 = vcmp.gt.f32.partialorder %v2041, 0.0
        %vm2060 = vcmp.gt.f32.partialorder %v2046, 0.0
        %vm2061 = vcmp.gt.f32.partialorder %v2051, 0.0
        %vm2062 = vcmp.gt.f32.partialorder %v2056, 0.0
        %v2063 = vmul.f32 %v2041, 0.02
        %v2064 = vmul.f32 %v2046, 0.02
        %v2065 = vmul.f32 %v2051, 0.02
        %v2066 = vmul.f32 %v2056, 0.02
        %v2067 = vsel %vm2059, %v2041, %v2063
        %v2068 = vsel %vm2060, %v2046, %v2064
        %v2069 = vsel %vm2061, %v2051, %v2065
        %v2070 = vsel %vm2062, %v2056, %v2066
        %v2071 = vpack.c.bf16 %v2068, %v2067
        %v2072 = vpack.c.bf16 %v2070, %v2069
        %2073 = vmatprep.subr.bf16.mxu0 0
        %2074 = vmatpush1.bf16.msra.mxu0 %v2071
        %2075 = vmatprep.subr.bf16.mxu0 0
        %2076 = vmatpush1.bf16.msra.mxu0 %v2072
        %2077 = vmatprep.subr.bf16.mxu0 0
        %2078 = vmatpush1.bf16.msra.mxu0 0
        %2079 = vmatprep.subr.bf16.mxu0 0
        %2080 = vmatpush1.bf16.msra.mxu0 0
        %2081 = vmatprep.subr.bf16.mxu0 0
        %2082 = vmatpush1.bf16.msra.mxu0 0
        %2083 = vmatprep.subr.bf16.mxu0 0
        %2084 = vmatpush1.bf16.msra.mxu0 0
        %2085 = vmatprep.subr.bf16.mxu0 0
        %2086 = vmatpush1.bf16.msra.mxu0 0
        %2087 = vmatprep.subr.bf16.mxu0 0
        %2088 = vmatpush1.bf16.msra.mxu0 0
        %2089 = vmatprep.subr.bf16.mxu0 0
        %2090 = vmatpush1.bf16.msra.mxu0 0
        %2091 = vmatprep.subr.bf16.mxu0 0
        %2092 = vmatpush1.bf16.msra.mxu0 0
        %2093 = vmatprep.subr.bf16.mxu0 0
        %2094 = vmatpush1.bf16.msra.mxu0 0
        %2095 = vmatprep.subr.bf16.mxu0 0
        %2096 = vmatpush1.bf16.msra.mxu0 0
        %2097 = vmatprep.subr.bf16.mxu0 0
        %2098 = vmatpush1.bf16.msra.mxu0 0
        %2099 = vmatprep.subr.bf16.mxu0 0
        %2100 = vmatpush1.bf16.msra.mxu0 0
        %2101 = vmatprep.subr.bf16.mxu0 0
        %2102 = vmatpush1.bf16.msra.mxu0 0
        %2103 = vmatprep.subr.bf16.mxu0 0
        %2104 = vmatpush1.bf16.msra.mxu0 0
        %2105 = vmatprep.mubr.bf16.mxu0 0
        %2106 = vmatmul.mubr.bf16.gmra.mrb[0].mxu0 %v757
        %v2107 = vpop.f32.mrb[0].mxu0
        %v2108 = vadd.f32 %v698, %v2107
        %v2109 = vpop.f32.mrb[0].mxu0
        %v2110 = vpop.f32.mrb[0].mxu0
        %v2111 = vadd.f32 %v703, %v2110
        %v2112 = vpop.f32.mrb[0].mxu0
        %2113 = vmatprep.mubr.bf16.mxu0 0
        %2114 = vmatmul.mubr.bf16.gmra.mrb[0].mxu0 %v760
        %v2115 = vpop.f32.mrb[0].mxu0
        %v2116 = vadd.f32 %v708, %v2115
        %v2117 = vpop.f32.mrb[0].mxu0
        %v2118 = vpop.f32.mrb[0].mxu0
        %v2119 = vadd.f32 %v713, %v2118
        %v2120 = vpop.f32.mrb[0].mxu0
        %2121 = vmatprep.mubr.bf16.mxu0 0
        %2122 = vmatmul.mubr.bf16.gmra.mrb[0].mxu0 %v763
        %v2123 = vpop.f32.mrb[0].mxu0
        %v2124 = vadd.f32 %v718, %v2123
        %v2125 = vpop.f32.mrb[0].mxu0
        %v2126 = vpop.f32.mrb[0].mxu0
        %v2127 = vadd.f32 %v723, %v2126
        %v2128 = vpop.f32.mrb[0].mxu0
        %2129 = vmatprep.mubr.bf16.mxu0 0
        %2130 = vmatmul.mubr.bf16.gmra.mrb[0].mxu0 %v766
        %v2131 = vpop.f32.mrb[0].mxu0
        %v2132 = vadd.f32 %v728, %v2131
        %v2133 = vpop.f32.mrb[0].mxu0
        %v2134 = vpop.f32.mrb[0].mxu0
        %v2135 = vadd.f32 %v733, %v2134
        %v2136 = vpop.f32.mrb[0].mxu0
        %2137 = vdwg.mxu0
        %vm2138 = vcmp.gt.f32.partialorder %v2108, 0.0
        %vm2139 = vcmp.gt.f32.partialorder %v2111, 0.0
        %vm2140 = vcmp.gt.f32.partialorder %v2116, 0.0
        %vm2141 = vcmp.gt.f32.partialorder %v2119, 0.0
        %vm2142 = vcmp.gt.f32.partialorder %v2124, 0.0
        %vm2143 = vcmp.gt.f32.partialorder %v2127, 0.0
        %vm2144 = vcmp.gt.f32.partialorder %v2132, 0.0
        %vm2145 = vcmp.gt.f32.partialorder %v2135, 0.0
        %v2146 = vmul.f32 %v2108, 0.02
        %v2147 = vmul.f32 %v2111, 0.02
        %v2148 = vmul.f32 %v2116, 0.02
        %v2149 = vmul.f32 %v2119, 0.02
        %v2150 = vmul.f32 %v2124, 0.02
        %v2151 = vmul.f32 %v2127, 0.02
        %v2152 = vmul.f32 %v2132, 0.02
        %v2153 = vmul.f32 %v2135, 0.02
        %v2154 = vsel %vm2138, %v2108, %v2146
        %v2155 = vsel %vm2139, %v2111, %v2147
        %v2156 = vsel %vm2140, %v2116, %v2148
        %v2157 = vsel %vm2141, %v2119, %v2149
        %v2158 = vsel %vm2142, %v2124, %v2150
        %v2159 = vsel %vm2143, %v2127, %v2151
        %v2160 = vsel %vm2144, %v2132, %v2152
        %v2161 = vsel %vm2145, %v2135, %v2153
        %v2162 = vpack.c.bf16 %v2155, %v2154
        %v2163 = vpack.c.bf16 %v2157, %v2156
        %v2164 = vpack.c.bf16 %v2159, %v2158
        %v2165 = vpack.c.bf16 %v2161, %v2160
        %2166 = vmatprep.subr.bf16.mxu0 0
        %2167 = vmatpush1.bf16.msra.mxu0 %v2162
        %2168 = vmatprep.subr.bf16.mxu0 0
        %2169 = vmatpush1.bf16.msra.mxu0 %v2163
        %2170 = vmatprep.subr.bf16.mxu0 0
        %2171 = vmatpush1.bf16.msra.mxu0 %v2164
        %2172 = vmatprep.subr.bf16.mxu0 0
        %2173 = vmatpush1.bf16.msra.mxu0 %v2165
        %2174 = vmatprep.subr.bf16.mxu0 0
        %2175 = vmatpush1.bf16.msra.mxu0 0
        %2176 = vmatprep.subr.bf16.mxu0 0
        %2177 = vmatpush1.bf16.msra.mxu0 0
        %2178 = vmatprep.subr.bf16.mxu0 0
        %2179 = vmatpush1.bf16.msra.mxu0 0
        %2180 = vmatprep.subr.bf16.mxu0 0
        %2181 = vmatpush1.bf16.msra.mxu0 0
        %2182 = vmatprep.subr.bf16.mxu0 0
        %2183 = vmatpush1.bf16.msra.mxu0 0
        %2184 = vmatprep.subr.bf16.mxu0 0
        %2185 = vmatpush1.bf16.msra.mxu0 0
        %2186 = vmatprep.subr.bf16.mxu0 0
        %2187 = vmatpush1.bf16.msra.mxu0 0
        %2188 = vmatprep.subr.bf16.mxu0 0
        %2189 = vmatpush1.bf16.msra.mxu0 0
        %2190 = vmatprep.subr.bf16.mxu0 0
        %2191 = vmatpush1.bf16.msra.mxu0 0
        %2192 = vmatprep.subr.bf16.mxu0 0
        %2193 = vmatpush1.bf16.msra.mxu0 0
        %2194 = vmatprep.subr.bf16.mxu0 0
        %2195 = vmatpush1.bf16.msra.mxu0 0
        %2196 = vmatprep.subr.bf16.mxu0 0
        %2197 = vmatpush1.bf16.msra.mxu0 0
        %2198 = vmatprep.mubr.bf16.mxu0 0
        %2199 = vmatmul.mubr.bf16.gmra.mrb[0].mxu0 %v1015
        %v2200 = vpop.f32.mrb[0].mxu0
        %v2201 = vadd.f32 %v896, %v2200
        %v2202 = vpop.f32.mrb[0].mxu0
        %v2203 = vpop.f32.mrb[0].mxu0
        %v2204 = vadd.f32 %v901, %v2203
        %v2205 = vpop.f32.mrb[0].mxu0
        %2206 = vmatprep.mubr.bf16.mxu0 0
        %2207 = vmatmul.mubr.bf16.gmra.mrb[0].mxu0 %v1018
        %v2208 = vpop.f32.mrb[0].mxu0
        %v2209 = vadd.f32 %v906, %v2208
        %v2210 = vpop.f32.mrb[0].mxu0
        %v2211 = vpop.f32.mrb[0].mxu0
        %v2212 = vadd.f32 %v911, %v2211
        %v2213 = vpop.f32.mrb[0].mxu0
        %2214 = vmatprep.mubr.bf16.mxu0 0
        %2215 = vmatmul.mubr.bf16.gmra.mrb[0].mxu0 %v1021
        %v2216 = vpop.f32.mrb[0].mxu0
        %v2217 = vadd.f32 %v916, %v2216
        %v2218 = vpop.f32.mrb[0].mxu0
        %v2219 = vpop.f32.mrb[0].mxu0
        %v2220 = vadd.f32 %v921, %v2219
        %v2221 = vpop.f32.mrb[0].mxu0
        %2222 = vmatprep.mubr.bf16.mxu0 0
        %2223 = vmatmul.mubr.bf16.gmra.mrb[0].mxu0 %v1024
        %v2224 = vpop.f32.mrb[0].mxu0
        %v2225 = vadd.f32 %v926, %v2224
        %v2226 = vpop.f32.mrb[0].mxu0
        %v2227 = vpop.f32.mrb[0].mxu0
        %v2228 = vadd.f32 %v931, %v2227
        %v2229 = vpop.f32.mrb[0].mxu0
        %2230 = vmatprep.mubr.bf16.mxu0 0
        %2231 = vmatmul.mubr.bf16.gmra.mrb[0].mxu0 %v1027
        %v2232 = vpop.f32.mrb[0].mxu0
        %v2233 = vadd.f32 %v936, %v2232
        %v2234 = vpop.f32.mrb[0].mxu0
        %v2235 = vpop.f32.mrb[0].mxu0
        %v2236 = vadd.f32 %v941, %v2235
        %v2237 = vpop.f32.mrb[0].mxu0
        %2238 = vmatprep.mubr.bf16.mxu0 0
        %2239 = vmatmul.mubr.bf16.gmra.mrb[0].mxu0 %v1030
        %v2240 = vpop.f32.mrb[0].mxu0
        %v2241 = vadd.f32 %v946, %v2240
        %v2242 = vpop.f32.mrb[0].mxu0
        %v2243 = vpop.f32.mrb[0].mxu0
        %v2244 = vadd.f32 %v951, %v2243
        %v2245 = vpop.f32.mrb[0].mxu0
        %2246 = vmatprep.mubr.bf16.mxu0 0
        %2247 = vmatmul.mubr.bf16.gmra.mrb[0].mxu0 %v1033
        %v2248 = vpop.f32.mrb[0].mxu0
        %v2249 = vadd.f32 %v956, %v2248
        %v2250 = vpop.f32.mrb[0].mxu0
        %v2251 = vpop.f32.mrb[0].mxu0
        %v2252 = vadd.f32 %v961, %v2251
        %v2253 = vpop.f32.mrb[0].mxu0
        %2254 = vmatprep.mubr.bf16.mxu0 0
        %2255 = vmatmul.mubr.bf16.gmra.mrb[0].mxu0 %v1036
        %v2256 = vpop.f32.mrb[0].mxu0
        %v2257 = vadd.f32 %v966, %v2256
        %v2258 = vpop.f32.mrb[0].mxu0
        %v2259 = vpop.f32.mrb[0].mxu0
        %v2260 = vadd.f32 %v971, %v2259
        %v2261 = vpop.f32.mrb[0].mxu0
        %2262 = vdwg.mxu0
        %vm2263 = vcmp.gt.f32.partialorder %v2201, 0.0
        %vm2264 = vcmp.gt.f32.partialorder %v2204, 0.0
        %vm2265 = vcmp.gt.f32.partialorder %v2209, 0.0
        %vm2266 = vcmp.gt.f32.partialorder %v2212, 0.0
        %vm2267 = vcmp.gt.f32.partialorder %v2217, 0.0
        %vm2268 = vcmp.gt.f32.partialorder %v2220, 0.0
        %vm2269 = vcmp.gt.f32.partialorder %v2225, 0.0
        %vm2270 = vcmp.gt.f32.partialorder %v2228, 0.0
        %vm2271 = vcmp.gt.f32.partialorder %v2233, 0.0
        %vm2272 = vcmp.gt.f32.partialorder %v2236, 0.0
        %vm2273 = vcmp.gt.f32.partialorder %v2241, 0.0
        %vm2274 = vcmp.gt.f32.partialorder %v2244, 0.0
        %vm2275 = vcmp.gt.f32.partialorder %v2249, 0.0
        %vm2276 = vcmp.gt.f32.partialorder %v2252, 0.0
        %vm2277 = vcmp.gt.f32.partialorder %v2257, 0.0
        %vm2278 = vcmp.gt.f32.partialorder %v2260, 0.0
        %v2279 = vmul.f32 %v2201, 0.02
        %v2280 = vmul.f32 %v2204, 0.02
        %v2281 = vmul.f32 %v2209, 0.02
        %v2282 = vmul.f32 %v2212, 0.02
        %v2283 = vmul.f32 %v2217, 0.02
        %v2284 = vmul.f32 %v2220, 0.02
        %v2285 = vmul.f32 %v2225, 0.02
        %v2286 = vmul.f32 %v2228, 0.02
        %v2287 = vmul.f32 %v2233, 0.02
        %v2288 = vmul.f32 %v2236, 0.02
        %v2289 = vmul.f32 %v2241, 0.02
        %v2290 = vmul.f32 %v2244, 0.02
        %v2291 = vmul.f32 %v2249, 0.02
        %v2292 = vmul.f32 %v2252, 0.02
        %v2293 = vmul.f32 %v2257, 0.02
        %v2294 = vmul.f32 %v2260, 0.02
        %v2295 = vsel %vm2263, %v2201, %v2279
        %v2296 = vsel %vm2264, %v2204, %v2280
        %v2297 = vsel %vm2265, %v2209, %v2281
        %v2298 = vsel %vm2266, %v2212, %v2282
        %v2299 = vsel %vm2267, %v2217, %v2283
        %v2300 = vsel %vm2268, %v2220, %v2284
        %v2301 = vsel %vm2269, %v2225, %v2285
        %v2302 = vsel %vm2270, %v2228, %v2286
        %v2303 = vsel %vm2271, %v2233, %v2287
        %v2304 = vsel %vm2272, %v2236, %v2288
        %v2305 = vsel %vm2273, %v2241, %v2289
        %v2306 = vsel %vm2274, %v2244, %v2290
        %v2307 = vsel %vm2275, %v2249, %v2291
        %v2308 = vsel %vm2276, %v2252, %v2292
        %v2309 = vsel %vm2277, %v2257, %v2293
        %v2310 = vsel %vm2278, %v2260, %v2294
        %2311 = vmax.xlane.f32.xlu0 %v2295
        %v2312 = vpop.xlane.xlu0 %2311
        %2313 = vmax.xlane.f32.xlu0 %v2296
        %v2314 = vpop.xlane.xlu0 %2313
        %2315 = vmax.xlane.f32.xlu0 %v2297
        %v2316 = vpop.xlane.xlu0 %2315
        %2317 = vmax.xlane.f32.xlu0 %v2298
        %v2318 = vpop.xlane.xlu0 %2317
        %2319 = vmax.xlane.f32.xlu0 %v2299
        %v2320 = vpop.xlane.xlu0 %2319
        %2321 = vmax.xlane.f32.xlu0 %v2300
        %v2322 = vpop.xlane.xlu0 %2321
        %2323 = vmax.xlane.f32.xlu0 %v2301
        %v2324 = vpop.xlane.xlu0 %2323
        %2325 = vmax.xlane.f32.xlu0 %v2302
        %v2326 = vpop.xlane.xlu0 %2325
        %2327 = vmax.xlane.f32.xlu0 %v2303
        %v2328 = vpop.xlane.xlu0 %2327
        %2329 = vmax.xlane.f32.xlu0 %v2304
        %v2330 = vpop.xlane.xlu0 %2329
        %2331 = vmax.xlane.f32.xlu0 %v2305
        %v2332 = vpop.xlane.xlu0 %2331
        %2333 = vmax.xlane.f32.xlu0 %v2306
        %v2334 = vpop.xlane.xlu0 %2333
        %2335 = vmax.xlane.f32.xlu0 %v2307
        %v2336 = vpop.xlane.xlu0 %2335
        %2337 = vmax.xlane.f32.xlu0 %v2308
        %v2338 = vpop.xlane.xlu0 %2337
        %2339 = vmax.xlane.f32.xlu0 %v2309
        %v2340 = vpop.xlane.xlu0 %2339
        %2341 = vmax.xlane.f32.xlu0 %v2310
        %v2342 = vpop.xlane.xlu0 %2341
        %s2343 = scalar_lea.vmem %s488, 96 [#allocation3]
        %v2344 = vld [vmem:[%s2343] sm:$0xff]
        %v2345 = vld [vmem:[%s2343 + $0x8] sm:$0xff]
        %v2346 = vld [vmem:[%s2343 + $0x10] sm:$0x7]
        %v2348 = vsel %vm576, %v2346, 0
        %2350 = vmatprep.subr.mxu0 0.0
        %2351 = vmatpush1.msra.mxu0 %v2344
        %2352 = vmatprep.subr.mxu0 0.0
        %2353 = vmatpush1.msra.mxu0 %v2345
        %2354 = vmatprep.subr.mxu0 0.0
        %2355 = vmatpush1.msra.mxu0 %v2348
        %2356 = vmatprep.subr.mxu0 0.0
        %2357 = vmatpush1.msra.mxu0 0.0
        %2358 = vmatprep.subr.mxu0 0.0
        %2359 = vmatpush1.msra.mxu0 0.0
        %2360 = vmatprep.subr.mxu0 0.0
        %2361 = vmatpush1.msra.mxu0 0.0
        %2362 = vmatprep.subr.mxu0 0.0
        %2363 = vmatpush1.msra.mxu0 0.0
        %2364 = vmatprep.subr.mxu0 0.0
        %2365 = vmatpush1.msra.mxu0 0.0
        %2366 = vmatprep.subr.mxu0 0.0
        %2367 = vmatpush1.msra.mxu0 0.0
        %2368 = vmatprep.subr.mxu0 0.0
        %2369 = vmatpush1.msra.mxu0 0.0
        %2370 = vmatprep.subr.mxu0 0.0
        %2371 = vmatpush1.msra.mxu0 0.0
        %2372 = vmatprep.subr.mxu0 0.0
        %2373 = vmatpush1.msra.mxu0 0.0
        %2374 = vmatprep.subr.mxu0 0.0
        %2375 = vmatpush1.msra.mxu0 0.0
        %2376 = vmatprep.subr.mxu0 0.0
        %2377 = vmatpush1.msra.mxu0 0.0
        %2378 = vmatprep.subr.mxu0 0.0
        %2379 = vmatpush1.msra.mxu0 0.0
        %2380 = vmatprep.subr.mxu0 0.0
        %2381 = vmatpush1.msra.mxu0 0.0
        %2382 = vmatprep.subr.mxu0 0.0
        %2383 = vmatpush1.msra.mxu0 0.0
        %2384 = vmatprep.subr.mxu0 0.0
        %2385 = vmatpush1.msra.mxu0 0.0
        %2386 = vmatprep.subr.mxu0 0.0
        %2387 = vmatpush1.msra.mxu0 0.0
        %2388 = vmatprep.subr.mxu0 0.0
        %2389 = vmatpush1.msra.mxu0 0.0
        %2390 = vmatprep.subr.mxu0 0.0
        %2391 = vmatpush1.msra.mxu0 0.0
        %2392 = vmatprep.subr.mxu0 0.0
        %2393 = vmatpush1.msra.mxu0 0.0
        %2394 = vmatprep.subr.mxu0 0.0
        %2395 = vmatpush1.msra.mxu0 0.0
        %2396 = vmatprep.subr.mxu0 0.0
        %2397 = vmatpush1.msra.mxu0 0.0
        %2398 = vmatprep.subr.mxu0 0.0
        %2399 = vmatpush1.msra.mxu0 0.0
        %2400 = vmatprep.subr.mxu0 0.0
        %2401 = vmatpush1.msra.mxu0 0.0
        %2402 = vmatprep.subr.mxu0 0.0
        %2403 = vmatpush1.msra.mxu0 0.0
        %2404 = vmatprep.subr.mxu0 0.0
        %2405 = vmatpush1.msra.mxu0 0.0
        %2406 = vmatprep.subr.mxu0 0.0
        %2407 = vmatpush1.msra.mxu0 0.0
        %2408 = vmatprep.subr.mxu0 0.0
        %2409 = vmatpush1.msra.mxu0 0.0
        %2410 = vmatprep.subr.mxu0 0.0
        %2411 = vmatpush1.msra.mxu0 0.0
        %2412 = vmatprep.subr.mxu0 0.0
        %2413 = vmatpush1.msra.mxu0 0.0
        %2414 = vmatprep.mubr.f32.mxu0 0.0
        %2415 = vmatmul.mubr.f32.gmra.mrb[0].mxu0 %v565
        %v2416 = vpop.f32.mrb[0].mxu0
        %v2417 = vadd.f32 %v546, %v2416
        %v2418 = vpop.f32.mrb[0].mxu0
        %2419 = vmatprep.mubr.f32.mxu0 0.0
        %2420 = vmatmul.mubr.f32.gmra.mrb[0].mxu0 %v568
        %v2421 = vpop.f32.mrb[0].mxu0
        %v2422 = vadd.f32 %v551, %v2421
        %v2423 = vpop.f32.mrb[0].mxu0
        %2424 = vmatprep.mubr.f32.mxu0 0.0
        %2425 = vmatmul.mubr.f32.gmra.mrb[0].mxu0 %v571
        %v2426 = vpop.f32.mrb[0].mxu0
        %v2427 = vadd.f32 %v556, %v2426
        %v2428 = vpop.f32.mrb[0].mxu0
        %2429 = vmatprep.mubr.f32.mxu0 0.0
        %2430 = vmatmul.mubr.f32.gmra.mrb[0].mxu0 %v574
        %v2431 = vpop.f32.mrb[0].mxu0
        %v2432 = vadd.f32 %v561, %v2431
        %v2433 = vpop.f32.mrb[0].mxu0
        %2434 = vdwg.mxu0
        %vm2435 = vcmp.gt.f32.partialorder %v2417, 0.0
        %vm2436 = vcmp.gt.f32.partialorder %v2422, 0.0
        %vm2437 = vcmp.gt.f32.partialorder %v2427, 0.0
        %vm2438 = vcmp.gt.f32.partialorder %v2432, 0.0
        %v2439 = vmul.f32 %v2417, 0.02
        %v2440 = vmul.f32 %v2422, 0.02
        %v2441 = vmul.f32 %v2427, 0.02
        %v2442 = vmul.f32 %v2432, 0.02
        %v2443 = vsel %vm2435, %v2417, %v2439
        %v2444 = vsel %vm2436, %v2422, %v2440
        %v2445 = vsel %vm2437, %v2427, %v2441
        %v2446 = vsel %vm2438, %v2432, %v2442
        %v2447 = vpack.c.bf16 %v2444, %v2443
        %v2448 = vpack.c.bf16 %v2446, %v2445
        %2449 = vmatprep.subr.bf16.mxu0 0
        %2450 = vmatpush1.bf16.msra.mxu0 %v2447
        %2451 = vmatprep.subr.bf16.mxu0 0
        %2452 = vmatpush1.bf16.msra.mxu0 %v2448
        %2453 = vmatprep.subr.bf16.mxu0 0
        %2454 = vmatpush1.bf16.msra.mxu0 0
        %2455 = vmatprep.subr.bf16.mxu0 0
        %2456 = vmatpush1.bf16.msra.mxu0 0
        %2457 = vmatprep.subr.bf16.mxu0 0
        %2458 = vmatpush1.bf16.msra.mxu0 0
        %2459 = vmatprep.subr.bf16.mxu0 0
        %2460 = vmatpush1.bf16.msra.mxu0 0
        %2461 = vmatprep.subr.bf16.mxu0 0
        %2462 = vmatpush1.bf16.msra.mxu0 0
        %2463 = vmatprep.subr.bf16.mxu0 0
        %2464 = vmatpush1.bf16.msra.mxu0 0
        %2465 = vmatprep.subr.bf16.mxu0 0
        %2466 = vmatpush1.bf16.msra.mxu0 0
        %2467 = vmatprep.subr.bf16.mxu0 0
        %2468 = vmatpush1.bf16.msra.mxu0 0
        %2469 = vmatprep.subr.bf16.mxu0 0
        %2470 = vmatpush1.bf16.msra.mxu0 0
        %2471 = vmatprep.subr.bf16.mxu0 0
        %2472 = vmatpush1.bf16.msra.mxu0 0
        %2473 = vmatprep.subr.bf16.mxu0 0
        %2474 = vmatpush1.bf16.msra.mxu0 0
        %2475 = vmatprep.subr.bf16.mxu0 0
        %2476 = vmatpush1.bf16.msra.mxu0 0
        %2477 = vmatprep.subr.bf16.mxu0 0
        %2478 = vmatpush1.bf16.msra.mxu0 0
        %2479 = vmatprep.subr.bf16.mxu0 0
        %2480 = vmatpush1.bf16.msra.mxu0 0
        %2481 = vmatprep.mubr.bf16.mxu0 0
        %2482 = vmatmul.mubr.bf16.gmra.mrb[0].mxu0 %v757
        %v2483 = vpop.f32.mrb[0].mxu0
        %v2484 = vadd.f32 %v698, %v2483
        %v2485 = vpop.f32.mrb[0].mxu0
        %v2486 = vpop.f32.mrb[0].mxu0
        %v2487 = vadd.f32 %v703, %v2486
        %v2488 = vpop.f32.mrb[0].mxu0
        %2489 = vmatprep.mubr.bf16.mxu0 0
        %2490 = vmatmul.mubr.bf16.gmra.mrb[0].mxu0 %v760
        %v2491 = vpop.f32.mrb[0].mxu0
        %v2492 = vadd.f32 %v708, %v2491
        %v2493 = vpop.f32.mrb[0].mxu0
        %v2494 = vpop.f32.mrb[0].mxu0
        %v2495 = vadd.f32 %v713, %v2494
        %v2496 = vpop.f32.mrb[0].mxu0
        %2497 = vmatprep.mubr.bf16.mxu0 0
        %2498 = vmatmul.mubr.bf16.gmra.mrb[0].mxu0 %v763
        %v2499 = vpop.f32.mrb[0].mxu0
        %v2500 = vadd.f32 %v718, %v2499
        %v2501 = vpop.f32.mrb[0].mxu0
        %v2502 = vpop.f32.mrb[0].mxu0
        %v2503 = vadd.f32 %v723, %v2502
        %v2504 = vpop.f32.mrb[0].mxu0
        %2505 = vmatprep.mubr.bf16.mxu0 0
        %2506 = vmatmul.mubr.bf16.gmra.mrb[0].mxu0 %v766
        %v2507 = vpop.f32.mrb[0].mxu0
        %v2508 = vadd.f32 %v728, %v2507
        %v2509 = vpop.f32.mrb[0].mxu0
        %v2510 = vpop.f32.mrb[0].mxu0
        %v2511 = vadd.f32 %v733, %v2510
        %v2512 = vpop.f32.mrb[0].mxu0
        %2513 = vdwg.mxu0
        %vm2514 = vcmp.gt.f32.partialorder %v2484, 0.0
        %vm2515 = vcmp.gt.f32.partialorder %v2487, 0.0
        %vm2516 = vcmp.gt.f32.partialorder %v2492, 0.0
        %vm2517 = vcmp.gt.f32.partialorder %v2495, 0.0
        %vm2518 = vcmp.gt.f32.partialorder %v2500, 0.0
        %vm2519 = vcmp.gt.f32.partialorder %v2503, 0.0
        %vm2520 = vcmp.gt.f32.partialorder %v2508, 0.0
        %vm2521 = vcmp.gt.f32.partialorder %v2511, 0.0
        %v2522 = vmul.f32 %v2484, 0.02
        %v2523 = vmul.f32 %v2487, 0.02
        %v2524 = vmul.f32 %v2492, 0.02
        %v2525 = vmul.f32 %v2495, 0.02
        %v2526 = vmul.f32 %v2500, 0.02
        %v2527 = vmul.f32 %v2503, 0.02
        %v2528 = vmul.f32 %v2508, 0.02
        %v2529 = vmul.f32 %v2511, 0.02
        %v2530 = vsel %vm2514, %v2484, %v2522
        %v2531 = vsel %vm2515, %v2487, %v2523
        %v2532 = vsel %vm2516, %v2492, %v2524
        %v2533 = vsel %vm2517, %v2495, %v2525
        %v2534 = vsel %vm2518, %v2500, %v2526
        %v2535 = vsel %vm2519, %v2503, %v2527
        %v2536 = vsel %vm2520, %v2508, %v2528
        %v2537 = vsel %vm2521, %v2511, %v2529
        %v2538 = vpack.c.bf16 %v2531, %v2530
        %v2539 = vpack.c.bf16 %v2533, %v2532
        %v2540 = vpack.c.bf16 %v2535, %v2534
        %v2541 = vpack.c.bf16 %v2537, %v2536
        %2542 = vmatprep.subr.bf16.mxu0 0
        %2543 = vmatpush1.bf16.msra.mxu0 %v2538
        %2544 = vmatprep.subr.bf16.mxu0 0
        %2545 = vmatpush1.bf16.msra.mxu0 %v2539
        %2546 = vmatprep.subr.bf16.mxu0 0
        %2547 = vmatpush1.bf16.msra.mxu0 %v2540
        %2548 = vmatprep.subr.bf16.mxu0 0
        %2549 = vmatpush1.bf16.msra.mxu0 %v2541
        %2550 = vmatprep.subr.bf16.mxu0 0
        %2551 = vmatpush1.bf16.msra.mxu0 0
        %2552 = vmatprep.subr.bf16.mxu0 0
        %2553 = vmatpush1.bf16.msra.mxu0 0
        %2554 = vmatprep.subr.bf16.mxu0 0
        %2555 = vmatpush1.bf16.msra.mxu0 0
        %2556 = vmatprep.subr.bf16.mxu0 0
        %2557 = vmatpush1.bf16.msra.mxu0 0
        %2558 = vmatprep.subr.bf16.mxu0 0
        %2559 = vmatpush1.bf16.msra.mxu0 0
        %2560 = vmatprep.subr.bf16.mxu0 0
        %2561 = vmatpush1.bf16.msra.mxu0 0
        %2562 = vmatprep.subr.bf16.mxu0 0
        %2563 = vmatpush1.bf16.msra.mxu0 0
        %2564 = vmatprep.subr.bf16.mxu0 0
        %2565 = vmatpush1.bf16.msra.mxu0 0
        %2566 = vmatprep.subr.bf16.mxu0 0
        %2567 = vmatpush1.bf16.msra.mxu0 0
        %2568 = vmatprep.subr.bf16.mxu0 0
        %2569 = vmatpush1.bf16.msra.mxu0 0
        %2570 = vmatprep.subr.bf16.mxu0 0
        %2571 = vmatpush1.bf16.msra.mxu0 0
        %2572 = vmatprep.subr.bf16.mxu0 0
        %2573 = vmatpush1.bf16.msra.mxu0 0
        %2574 = vmatprep.mubr.bf16.mxu0 0
        %2575 = vmatmul.mubr.bf16.gmra.mrb[0].mxu0 %v1015
        %v2576 = vpop.f32.mrb[0].mxu0
        %v2577 = vadd.f32 %v896, %v2576
        %v2578 = vpop.f32.mrb[0].mxu0
        %v2579 = vpop.f32.mrb[0].mxu0
        %v2580 = vadd.f32 %v901, %v2579
        %v2581 = vpop.f32.mrb[0].mxu0
        %2582 = vmatprep.mubr.bf16.mxu0 0
        %2583 = vmatmul.mubr.bf16.gmra.mrb[0].mxu0 %v1018
        %v2584 = vpop.f32.mrb[0].mxu0
        %v2585 = vadd.f32 %v906, %v2584
        %v2586 = vpop.f32.mrb[0].mxu0
        %v2587 = vpop.f32.mrb[0].mxu0
        %v2588 = vadd.f32 %v911, %v2587
        %v2589 = vpop.f32.mrb[0].mxu0
        %2590 = vmatprep.mubr.bf16.mxu0 0
        %2591 = vmatmul.mubr.bf16.gmra.mrb[0].mxu0 %v1021
        %v2592 = vpop.f32.mrb[0].mxu0
        %v2593 = vadd.f32 %v916, %v2592
        %v2594 = vpop.f32.mrb[0].mxu0
        %v2595 = vpop.f32.mrb[0].mxu0
        %v2596 = vadd.f32 %v921, %v2595
        %v2597 = vpop.f32.mrb[0].mxu0
        %2598 = vmatprep.mubr.bf16.mxu0 0
        %2599 = vmatmul.mubr.bf16.gmra.mrb[0].mxu0 %v1024
        %v2600 = vpop.f32.mrb[0].mxu0
        %v2601 = vadd.f32 %v926, %v2600
        %v2602 = vpop.f32.mrb[0].mxu0
        %v2603 = vpop.f32.mrb[0].mxu0
        %v2604 = vadd.f32 %v931, %v2603
        %v2605 = vpop.f32.mrb[0].mxu0
        %2606 = vmatprep.mubr.bf16.mxu0 0
        %2607 = vmatmul.mubr.bf16.gmra.mrb[0].mxu0 %v1027
        %v2608 = vpop.f32.mrb[0].mxu0
        %v2609 = vadd.f32 %v936, %v2608
        %v2610 = vpop.f32.mrb[0].mxu0
        %v2611 = vpop.f32.mrb[0].mxu0
        %v2612 = vadd.f32 %v941, %v2611
        %v2613 = vpop.f32.mrb[0].mxu0
        %2614 = vmatprep.mubr.bf16.mxu0 0
        %2615 = vmatmul.mubr.bf16.gmra.mrb[0].mxu0 %v1030
        %v2616 = vpop.f32.mrb[0].mxu0
        %v2617 = vadd.f32 %v946, %v2616
        %v2618 = vpop.f32.mrb[0].mxu0
        %v2619 = vpop.f32.mrb[0].mxu0
        %v2620 = vadd.f32 %v951, %v2619
        %v2621 = vpop.f32.mrb[0].mxu0
        %2622 = vmatprep.mubr.bf16.mxu0 0
        %2623 = vmatmul.mubr.bf16.gmra.mrb[0].mxu0 %v1033
        %v2624 = vpop.f32.mrb[0].mxu0
        %v2625 = vadd.f32 %v956, %v2624
        %v2626 = vpop.f32.mrb[0].mxu0
        %v2627 = vpop.f32.mrb[0].mxu0
        %v2628 = vadd.f32 %v961, %v2627
        %v2629 = vpop.f32.mrb[0].mxu0
        %2630 = vmatprep.mubr.bf16.mxu0 0
        %2631 = vmatmul.mubr.bf16.gmra.mrb[0].mxu0 %v1036
        %v2632 = vpop.f32.mrb[0].mxu0
        %v2633 = vadd.f32 %v966, %v2632
        %v2634 = vpop.f32.mrb[0].mxu0
        %v2635 = vpop.f32.mrb[0].mxu0
        %v2636 = vadd.f32 %v971, %v2635
        %v2637 = vpop.f32.mrb[0].mxu0
        %2638 = vdwg.mxu0
        %vm2639 = vcmp.gt.f32.partialorder %v2577, 0.0
        %vm2640 = vcmp.gt.f32.partialorder %v2580, 0.0
        %vm2641 = vcmp.gt.f32.partialorder %v2585, 0.0
        %vm2642 = vcmp.gt.f32.partialorder %v2588, 0.0
        %vm2643 = vcmp.gt.f32.partialorder %v2593, 0.0
        %vm2644 = vcmp.gt.f32.partialorder %v2596, 0.0
        %vm2645 = vcmp.gt.f32.partialorder %v2601, 0.0
        %vm2646 = vcmp.gt.f32.partialorder %v2604, 0.0
        %vm2647 = vcmp.gt.f32.partialorder %v2609, 0.0
        %vm2648 = vcmp.gt.f32.partialorder %v2612, 0.0
        %vm2649 = vcmp.gt.f32.partialorder %v2617, 0.0
        %vm2650 = vcmp.gt.f32.partialorder %v2620, 0.0
        %vm2651 = vcmp.gt.f32.partialorder %v2625, 0.0
        %vm2652 = vcmp.gt.f32.partialorder %v2628, 0.0
        %vm2653 = vcmp.gt.f32.partialorder %v2633, 0.0
        %vm2654 = vcmp.gt.f32.partialorder %v2636, 0.0
        %v2655 = vmul.f32 %v2577, 0.02
        %v2656 = vmul.f32 %v2580, 0.02
        %v2657 = vmul.f32 %v2585, 0.02
        %v2658 = vmul.f32 %v2588, 0.02
        %v2659 = vmul.f32 %v2593, 0.02
        %v2660 = vmul.f32 %v2596, 0.02
        %v2661 = vmul.f32 %v2601, 0.02
        %v2662 = vmul.f32 %v2604, 0.02
        %v2663 = vmul.f32 %v2609, 0.02
        %v2664 = vmul.f32 %v2612, 0.02
        %v2665 = vmul.f32 %v2617, 0.02
        %v2666 = vmul.f32 %v2620, 0.02
        %v2667 = vmul.f32 %v2625, 0.02
        %v2668 = vmul.f32 %v2628, 0.02
        %v2669 = vmul.f32 %v2633, 0.02
        %v2670 = vmul.f32 %v2636, 0.02
        %v2671 = vsel %vm2639, %v2577, %v2655
        %v2672 = vsel %vm2640, %v2580, %v2656
        %v2673 = vsel %vm2641, %v2585, %v2657
        %v2674 = vsel %vm2642, %v2588, %v2658
        %v2675 = vsel %vm2643, %v2593, %v2659
        %v2676 = vsel %vm2644, %v2596, %v2660
        %v2677 = vsel %vm2645, %v2601, %v2661
        %v2678 = vsel %vm2646, %v2604, %v2662
        %v2679 = vsel %vm2647, %v2609, %v2663
        %v2680 = vsel %vm2648, %v2612, %v2664
        %v2681 = vsel %vm2649, %v2617, %v2665
        %v2682 = vsel %vm2650, %v2620, %v2666
        %v2683 = vsel %vm2651, %v2625, %v2667
        %v2684 = vsel %vm2652, %v2628, %v2668
        %v2685 = vsel %vm2653, %v2633, %v2669
        %v2686 = vsel %vm2654, %v2636, %v2670
        %2687 = vmax.xlane.f32.xlu0 %v2671
        %v2688 = vpop.xlane.xlu0 %2687
        %2689 = vmax.xlane.f32.xlu0 %v2672
        %v2690 = vpop.xlane.xlu0 %2689
        %2691 = vmax.xlane.f32.xlu0 %v2673
        %v2692 = vpop.xlane.xlu0 %2691
        %2693 = vmax.xlane.f32.xlu0 %v2674
        %v2694 = vpop.xlane.xlu0 %2693
        %2695 = vmax.xlane.f32.xlu0 %v2675
        %v2696 = vpop.xlane.xlu0 %2695
        %2697 = vmax.xlane.f32.xlu0 %v2676
        %v2698 = vpop.xlane.xlu0 %2697
        %2699 = vmax.xlane.f32.xlu0 %v2677
        %v2700 = vpop.xlane.xlu0 %2699
        %2701 = vmax.xlane.f32.xlu0 %v2678
        %v2702 = vpop.xlane.xlu0 %2701
        %2703 = vmax.xlane.f32.xlu0 %v2679
        %v2704 = vpop.xlane.xlu0 %2703
        %2705 = vmax.xlane.f32.xlu0 %v2680
        %v2706 = vpop.xlane.xlu0 %2705
        %2707 = vmax.xlane.f32.xlu0 %v2681
        %v2708 = vpop.xlane.xlu0 %2707
        %2709 = vmax.xlane.f32.xlu0 %v2682
        %v2710 = vpop.xlane.xlu0 %2709
        %2711 = vmax.xlane.f32.xlu0 %v2683
        %v2712 = vpop.xlane.xlu0 %2711
        %2713 = vmax.xlane.f32.xlu0 %v2684
        %v2714 = vpop.xlane.xlu0 %2713
        %2715 = vmax.xlane.f32.xlu0 %v2685
        %v2716 = vpop.xlane.xlu0 %2715
        %2717 = vmax.xlane.f32.xlu0 %v2686
        %v2718 = vpop.xlane.xlu0 %2717
        %s2719 = scalar_lea.vmem %s488, 120 [#allocation3]
        %v2720 = vld [vmem:[%s2719] sm:$0xff]
        %v2721 = vld [vmem:[%s2719 + $0x8] sm:$0xff]
        %v2722 = vld [vmem:[%s2719 + $0x10] sm:$0x7]
        %v2724 = vsel %vm576, %v2722, 0
        %2726 = vmatprep.subr.mxu0 0.0
        %2727 = vmatpush1.msra.mxu0 %v2720
        %2728 = vmatprep.subr.mxu0 0.0
        %2729 = vmatpush1.msra.mxu0 %v2721
        %2730 = vmatprep.subr.mxu0 0.0
        %2731 = vmatpush1.msra.mxu0 %v2724
        %2732 = vmatprep.subr.mxu0 0.0
        %2733 = vmatpush1.msra.mxu0 0.0
        %2734 = vmatprep.subr.mxu0 0.0
        %2735 = vmatpush1.msra.mxu0 0.0
        %2736 = vmatprep.subr.mxu0 0.0
        %2737 = vmatpush1.msra.mxu0 0.0
        %2738 = vmatprep.subr.mxu0 0.0
        %2739 = vmatpush1.msra.mxu0 0.0
        %2740 = vmatprep.subr.mxu0 0.0
        %2741 = vmatpush1.msra.mxu0 0.0
        %2742 = vmatprep.subr.mxu0 0.0
        %2743 = vmatpush1.msra.mxu0 0.0
        %2744 = vmatprep.subr.mxu0 0.0
        %2745 = vmatpush1.msra.mxu0 0.0
        %2746 = vmatprep.subr.mxu0 0.0
        %2747 = vmatpush1.msra.mxu0 0.0
        %2748 = vmatprep.subr.mxu0 0.0
        %2749 = vmatpush1.msra.mxu0 0.0
        %2750 = vmatprep.subr.mxu0 0.0
        %2751 = vmatpush1.msra.mxu0 0.0
        %2752 = vmatprep.subr.mxu0 0.0
        %2753 = vmatpush1.msra.mxu0 0.0
        %2754 = vmatprep.subr.mxu0 0.0
        %2755 = vmatpush1.msra.mxu0 0.0
        %2756 = vmatprep.subr.mxu0 0.0
        %2757 = vmatpush1.msra.mxu0 0.0
        %2758 = vmatprep.subr.mxu0 0.0
        %2759 = vmatpush1.msra.mxu0 0.0
        %2760 = vmatprep.subr.mxu0 0.0
        %2761 = vmatpush1.msra.mxu0 0.0
        %2762 = vmatprep.subr.mxu0 0.0
        %2763 = vmatpush1.msra.mxu0 0.0
        %2764 = vmatprep.subr.mxu0 0.0
        %2765 = vmatpush1.msra.mxu0 0.0
        %2766 = vmatprep.subr.mxu0 0.0
        %2767 = vmatpush1.msra.mxu0 0.0
        %2768 = vmatprep.subr.mxu0 0.0
        %2769 = vmatpush1.msra.mxu0 0.0
        %2770 = vmatprep.subr.mxu0 0.0
        %2771 = vmatpush1.msra.mxu0 0.0
        %2772 = vmatprep.subr.mxu0 0.0
        %2773 = vmatpush1.msra.mxu0 0.0
        %2774 = vmatprep.subr.mxu0 0.0
        %2775 = vmatpush1.msra.mxu0 0.0
        %2776 = vmatprep.subr.mxu0 0.0
        %2777 = vmatpush1.msra.mxu0 0.0
        %2778 = vmatprep.subr.mxu0 0.0
        %2779 = vmatpush1.msra.mxu0 0.0
        %2780 = vmatprep.subr.mxu0 0.0
        %2781 = vmatpush1.msra.mxu0 0.0
        %2782 = vmatprep.subr.mxu0 0.0
        %2783 = vmatpush1.msra.mxu0 0.0
        %2784 = vmatprep.subr.mxu0 0.0
        %2785 = vmatpush1.msra.mxu0 0.0
        %2786 = vmatprep.subr.mxu0 0.0
        %2787 = vmatpush1.msra.mxu0 0.0
        %2788 = vmatprep.subr.mxu0 0.0
        %2789 = vmatpush1.msra.mxu0 0.0
        %2790 = vmatprep.mubr.f32.mxu0 0.0
        %2791 = vmatmul.mubr.f32.gmra.mrb[0].mxu0 %v565
        %v2792 = vpop.f32.mrb[0].mxu0
        %v2793 = vadd.f32 %v546, %v2792
        %v2794 = vpop.f32.mrb[0].mxu0
        %2795 = vmatprep.mubr.f32.mxu0 0.0
        %2796 = vmatmul.mubr.f32.gmra.mrb[0].mxu0 %v568
        %v2797 = vpop.f32.mrb[0].mxu0
        %v2798 = vadd.f32 %v551, %v2797
        %v2799 = vpop.f32.mrb[0].mxu0
        %2800 = vmatprep.mubr.f32.mxu0 0.0
        %2801 = vmatmul.mubr.f32.gmra.mrb[0].mxu0 %v571
        %v2802 = vpop.f32.mrb[0].mxu0
        %v2803 = vadd.f32 %v556, %v2802
        %v2804 = vpop.f32.mrb[0].mxu0
        %2805 = vmatprep.mubr.f32.mxu0 0.0
        %2806 = vmatmul.mubr.f32.gmra.mrb[0].mxu0 %v574
        %v2807 = vpop.f32.mrb[0].mxu0
        %v2808 = vadd.f32 %v561, %v2807
        %v2809 = vpop.f32.mrb[0].mxu0
        %2810 = vdwg.mxu0
        %vm2811 = vcmp.gt.f32.partialorder %v2793, 0.0
        %vm2812 = vcmp.gt.f32.partialorder %v2798, 0.0
        %vm2813 = vcmp.gt.f32.partialorder %v2803, 0.0
        %vm2814 = vcmp.gt.f32.partialorder %v2808, 0.0
        %v2815 = vmul.f32 %v2793, 0.02
        %v2816 = vmul.f32 %v2798, 0.02
        %v2817 = vmul.f32 %v2803, 0.02
        %v2818 = vmul.f32 %v2808, 0.02
        %v2819 = vsel %vm2811, %v2793, %v2815
        %v2820 = vsel %vm2812, %v2798, %v2816
        %v2821 = vsel %vm2813, %v2803, %v2817
        %v2822 = vsel %vm2814, %v2808, %v2818
        %v2823 = vpack.c.bf16 %v2820, %v2819
        %v2824 = vpack.c.bf16 %v2822, %v2821
        %2825 = vmatprep.subr.bf16.mxu0 0
        %2826 = vmatpush1.bf16.msra.mxu0 %v2823
        %2827 = vmatprep.subr.bf16.mxu0 0
        %2828 = vmatpush1.bf16.msra.mxu0 %v2824
        %2829 = vmatprep.subr.bf16.mxu0 0
        %2830 = vmatpush1.bf16.msra.mxu0 0
        %2831 = vmatprep.subr.bf16.mxu0 0
        %2832 = vmatpush1.bf16.msra.mxu0 0
        %2833 = vmatprep.subr.bf16.mxu0 0
        %2834 = vmatpush1.bf16.msra.mxu0 0
        %2835 = vmatprep.subr.bf16.mxu0 0
        %2836 = vmatpush1.bf16.msra.mxu0 0
        %2837 = vmatprep.subr.bf16.mxu0 0
        %2838 = vmatpush1.bf16.msra.mxu0 0
        %2839 = vmatprep.subr.bf16.mxu0 0
        %2840 = vmatpush1.bf16.msra.mxu0 0
        %2841 = vmatprep.subr.bf16.mxu0 0
        %2842 = vmatpush1.bf16.msra.mxu0 0
        %2843 = vmatprep.subr.bf16.mxu0 0
        %2844 = vmatpush1.bf16.msra.mxu0 0
        %2845 = vmatprep.subr.bf16.mxu0 0
        %2846 = vmatpush1.bf16.msra.mxu0 0
        %2847 = vmatprep.subr.bf16.mxu0 0
        %2848 = vmatpush1.bf16.msra.mxu0 0
        %2849 = vmatprep.subr.bf16.mxu0 0
        %2850 = vmatpush1.bf16.msra.mxu0 0
        %2851 = vmatprep.subr.bf16.mxu0 0
        %2852 = vmatpush1.bf16.msra.mxu0 0
        %2853 = vmatprep.subr.bf16.mxu0 0
        %2854 = vmatpush1.bf16.msra.mxu0 0
        %2855 = vmatprep.subr.bf16.mxu0 0
        %2856 = vmatpush1.bf16.msra.mxu0 0
        %2857 = vmatprep.mubr.bf16.mxu0 0
        %2858 = vmatmul.mubr.bf16.gmra.mrb[0].mxu0 %v757
        %v2859 = vpop.f32.mrb[0].mxu0
        %v2860 = vadd.f32 %v698, %v2859
        %v2861 = vpop.f32.mrb[0].mxu0
        %v2862 = vpop.f32.mrb[0].mxu0
        %v2863 = vadd.f32 %v703, %v2862
        %v2864 = vpop.f32.mrb[0].mxu0
        %2865 = vmatprep.mubr.bf16.mxu0 0
        %2866 = vmatmul.mubr.bf16.gmra.mrb[0].mxu0 %v760
        %v2867 = vpop.f32.mrb[0].mxu0
        %v2868 = vadd.f32 %v708, %v2867
        %v2869 = vpop.f32.mrb[0].mxu0
        %v2870 = vpop.f32.mrb[0].mxu0
        %v2871 = vadd.f32 %v713, %v2870
        %v2872 = vpop.f32.mrb[0].mxu0
        %2873 = vmatprep.mubr.bf16.mxu0 0
        %2874 = vmatmul.mubr.bf16.gmra.mrb[0].mxu0 %v763
        %v2875 = vpop.f32.mrb[0].mxu0
        %v2876 = vadd.f32 %v718, %v2875
        %v2877 = vpop.f32.mrb[0].mxu0
        %v2878 = vpop.f32.mrb[0].mxu0
        %v2879 = vadd.f32 %v723, %v2878
        %v2880 = vpop.f32.mrb[0].mxu0
        %2881 = vmatprep.mubr.bf16.mxu0 0
        %2882 = vmatmul.mubr.bf16.gmra.mrb[0].mxu0 %v766
        %v2883 = vpop.f32.mrb[0].mxu0
        %v2884 = vadd.f32 %v728, %v2883
        %v2885 = vpop.f32.mrb[0].mxu0
        %v2886 = vpop.f32.mrb[0].mxu0
        %v2887 = vadd.f32 %v733, %v2886
        %v2888 = vpop.f32.mrb[0].mxu0
        %2889 = vdwg.mxu0
        %vm2890 = vcmp.gt.f32.partialorder %v2860, 0.0
        %vm2891 = vcmp.gt.f32.partialorder %v2863, 0.0
        %vm2892 = vcmp.gt.f32.partialorder %v2868, 0.0
        %vm2893 = vcmp.gt.f32.partialorder %v2871, 0.0
        %vm2894 = vcmp.gt.f32.partialorder %v2876, 0.0
        %vm2895 = vcmp.gt.f32.partialorder %v2879, 0.0
        %vm2896 = vcmp.gt.f32.partialorder %v2884, 0.0
        %vm2897 = vcmp.gt.f32.partialorder %v2887, 0.0
        %v2898 = vmul.f32 %v2860, 0.02
        %v2899 = vmul.f32 %v2863, 0.02
        %v2900 = vmul.f32 %v2868, 0.02
        %v2901 = vmul.f32 %v2871, 0.02
        %v2902 = vmul.f32 %v2876, 0.02
        %v2903 = vmul.f32 %v2879, 0.02
        %v2904 = vmul.f32 %v2884, 0.02
        %v2905 = vmul.f32 %v2887, 0.02
        %v2906 = vsel %vm2890, %v2860, %v2898
        %v2907 = vsel %vm2891, %v2863, %v2899
        %v2908 = vsel %vm2892, %v2868, %v2900
        %v2909 = vsel %vm2893, %v2871, %v2901
        %v2910 = vsel %vm2894, %v2876, %v2902
        %v2911 = vsel %vm2895, %v2879, %v2903
        %v2912 = vsel %vm2896, %v2884, %v2904
        %v2913 = vsel %vm2897, %v2887, %v2905
        %v2914 = vpack.c.bf16 %v2907, %v2906
        %v2915 = vpack.c.bf16 %v2909, %v2908
        %v2916 = vpack.c.bf16 %v2911, %v2910
        %v2917 = vpack.c.bf16 %v2913, %v2912
        %2918 = vmatprep.subr.bf16.mxu0 0
        %2919 = vmatpush1.bf16.msra.mxu0 %v2914
        %2920 = vmatprep.subr.bf16.mxu0 0
        %2921 = vmatpush1.bf16.msra.mxu0 %v2915
        %2922 = vmatprep.subr.bf16.mxu0 0
        %2923 = vmatpush1.bf16.msra.mxu0 %v2916
        %2924 = vmatprep.subr.bf16.mxu0 0
        %2925 = vmatpush1.bf16.msra.mxu0 %v2917
        %2926 = vmatprep.subr.bf16.mxu0 0
        %2927 = vmatpush1.bf16.msra.mxu0 0
        %2928 = vmatprep.subr.bf16.mxu0 0
        %2929 = vmatpush1.bf16.msra.mxu0 0
        %2930 = vmatprep.subr.bf16.mxu0 0
        %2931 = vmatpush1.bf16.msra.mxu0 0
        %2932 = vmatprep.subr.bf16.mxu0 0
        %2933 = vmatpush1.bf16.msra.mxu0 0
        %2934 = vmatprep.subr.bf16.mxu0 0
        %2935 = vmatpush1.bf16.msra.mxu0 0
        %2936 = vmatprep.subr.bf16.mxu0 0
        %2937 = vmatpush1.bf16.msra.mxu0 0
        %2938 = vmatprep.subr.bf16.mxu0 0
        %2939 = vmatpush1.bf16.msra.mxu0 0
        %2940 = vmatprep.subr.bf16.mxu0 0
        %2941 = vmatpush1.bf16.msra.mxu0 0
        %2942 = vmatprep.subr.bf16.mxu0 0
        %2943 = vmatpush1.bf16.msra.mxu0 0
        %2944 = vmatprep.subr.bf16.mxu0 0
        %2945 = vmatpush1.bf16.msra.mxu0 0
        %2946 = vmatprep.subr.bf16.mxu0 0
        %2947 = vmatpush1.bf16.msra.mxu0 0
        %2948 = vmatprep.subr.bf16.mxu0 0
        %2949 = vmatpush1.bf16.msra.mxu0 0
        %2950 = vmatprep.mubr.bf16.mxu0 0
        %2951 = vmatmul.mubr.bf16.gmra.mrb[0].mxu0 %v1015
        %v2952 = vpop.f32.mrb[0].mxu0
        %v2953 = vadd.f32 %v896, %v2952
        %v2954 = vpop.f32.mrb[0].mxu0
        %v2955 = vpop.f32.mrb[0].mxu0
        %v2956 = vadd.f32 %v901, %v2955
        %v2957 = vpop.f32.mrb[0].mxu0
        %2958 = vmatprep.mubr.bf16.mxu0 0
        %2959 = vmatmul.mubr.bf16.gmra.mrb[0].mxu0 %v1018
        %v2960 = vpop.f32.mrb[0].mxu0
        %v2961 = vadd.f32 %v906, %v2960
        %v2962 = vpop.f32.mrb[0].mxu0
        %v2963 = vpop.f32.mrb[0].mxu0
        %v2964 = vadd.f32 %v911, %v2963
        %v2965 = vpop.f32.mrb[0].mxu0
        %2966 = vmatprep.mubr.bf16.mxu0 0
        %2967 = vmatmul.mubr.bf16.gmra.mrb[0].mxu0 %v1021
        %v2968 = vpop.f32.mrb[0].mxu0
        %v2969 = vadd.f32 %v916, %v2968
        %v2970 = vpop.f32.mrb[0].mxu0
        %v2971 = vpop.f32.mrb[0].mxu0
        %v2972 = vadd.f32 %v921, %v2971
        %v2973 = vpop.f32.mrb[0].mxu0
        %2974 = vmatprep.mubr.bf16.mxu0 0
        %2975 = vmatmul.mubr.bf16.gmra.mrb[0].mxu0 %v1024
        %v2976 = vpop.f32.mrb[0].mxu0
        %v2977 = vadd.f32 %v926, %v2976
        %v2978 = vpop.f32.mrb[0].mxu0
        %v2979 = vpop.f32.mrb[0].mxu0
        %v2980 = vadd.f32 %v931, %v2979
        %v2981 = vpop.f32.mrb[0].mxu0
        %2982 = vmatprep.mubr.bf16.mxu0 0
        %2983 = vmatmul.mubr.bf16.gmra.mrb[0].mxu0 %v1027
        %v2984 = vpop.f32.mrb[0].mxu0
        %v2985 = vadd.f32 %v936, %v2984
        %v2986 = vpop.f32.mrb[0].mxu0
        %v2987 = vpop.f32.mrb[0].mxu0
        %v2988 = vadd.f32 %v941, %v2987
        %v2989 = vpop.f32.mrb[0].mxu0
        %2990 = vmatprep.mubr.bf16.mxu0 0
        %2991 = vmatmul.mubr.bf16.gmra.mrb[0].mxu0 %v1030
        %v2992 = vpop.f32.mrb[0].mxu0
        %v2993 = vadd.f32 %v946, %v2992
        %v2994 = vpop.f32.mrb[0].mxu0
        %v2995 = vpop.f32.mrb[0].mxu0
        %v2996 = vadd.f32 %v951, %v2995
        %v2997 = vpop.f32.mrb[0].mxu0
        %2998 = vmatprep.mubr.bf16.mxu0 0
        %2999 = vmatmul.mubr.bf16.gmra.mrb[0].mxu0 %v1033
        %v3000 = vpop.f32.mrb[0].mxu0
        %v3001 = vadd.f32 %v956, %v3000
        %v3002 = vpop.f32.mrb[0].mxu0
        %v3003 = vpop.f32.mrb[0].mxu0
        %v3004 = vadd.f32 %v961, %v3003
        %v3005 = vpop.f32.mrb[0].mxu0
        %3006 = vmatprep.mubr.bf16.mxu0 0
        %3007 = vmatmul.mubr.bf16.gmra.mrb[0].mxu0 %v1036
        %v3008 = vpop.f32.mrb[0].mxu0
        %v3009 = vadd.f32 %v966, %v3008
        %v3010 = vpop.f32.mrb[0].mxu0
        %v3011 = vpop.f32.mrb[0].mxu0
        %v3012 = vadd.f32 %v971, %v3011
        %v3013 = vpop.f32.mrb[0].mxu0
        %3014 = vdwg.mxu0
        %vm3015 = vcmp.gt.f32.partialorder %v2953, 0.0
        %vm3016 = vcmp.gt.f32.partialorder %v2956, 0.0
        %vm3017 = vcmp.gt.f32.partialorder %v2961, 0.0
        %vm3018 = vcmp.gt.f32.partialorder %v2964, 0.0
        %vm3019 = vcmp.gt.f32.partialorder %v2969, 0.0
        %vm3020 = vcmp.gt.f32.partialorder %v2972, 0.0
        %vm3021 = vcmp.gt.f32.partialorder %v2977, 0.0
        %vm3022 = vcmp.gt.f32.partialorder %v2980, 0.0
        %vm3023 = vcmp.gt.f32.partialorder %v2985, 0.0
        %vm3024 = vcmp.gt.f32.partialorder %v2988, 0.0
        %vm3025 = vcmp.gt.f32.partialorder %v2993, 0.0
        %vm3026 = vcmp.gt.f32.partialorder %v2996, 0.0
        %vm3027 = vcmp.gt.f32.partialorder %v3001, 0.0
        %vm3028 = vcmp.gt.f32.partialorder %v3004, 0.0
        %vm3029 = vcmp.gt.f32.partialorder %v3009, 0.0
        %vm3030 = vcmp.gt.f32.partialorder %v3012, 0.0
        %v3031 = vmul.f32 %v2953, 0.02
        %v3032 = vmul.f32 %v2956, 0.02
        %v3033 = vmul.f32 %v2961, 0.02
        %v3034 = vmul.f32 %v2964, 0.02
        %v3035 = vmul.f32 %v2969, 0.02
        %v3036 = vmul.f32 %v2972, 0.02
        %v3037 = vmul.f32 %v2977, 0.02
        %v3038 = vmul.f32 %v2980, 0.02
        %v3039 = vmul.f32 %v2985, 0.02
        %v3040 = vmul.f32 %v2988, 0.02
        %v3041 = vmul.f32 %v2993, 0.02
        %v3042 = vmul.f32 %v2996, 0.02
        %v3043 = vmul.f32 %v3001, 0.02
        %v3044 = vmul.f32 %v3004, 0.02
        %v3045 = vmul.f32 %v3009, 0.02
        %v3046 = vmul.f32 %v3012, 0.02
        %v3047 = vsel %vm3015, %v2953, %v3031
        %v3048 = vsel %vm3016, %v2956, %v3032
        %v3049 = vsel %vm3017, %v2961, %v3033
        %v3050 = vsel %vm3018, %v2964, %v3034
        %v3051 = vsel %vm3019, %v2969, %v3035
        %v3052 = vsel %vm3020, %v2972, %v3036
        %v3053 = vsel %vm3021, %v2977, %v3037
        %v3054 = vsel %vm3022, %v2980, %v3038
        %v3055 = vsel %vm3023, %v2985, %v3039
        %v3056 = vsel %vm3024, %v2988, %v3040
        %v3057 = vsel %vm3025, %v2993, %v3041
        %v3058 = vsel %vm3026, %v2996, %v3042
        %v3059 = vsel %vm3027, %v3001, %v3043
        %v3060 = vsel %vm3028, %v3004, %v3044
        %v3061 = vsel %vm3029, %v3009, %v3045
        %v3062 = vsel %vm3030, %v3012, %v3046
        %3063 = vmax.xlane.f32.xlu0 %v3047
        %v3064 = vpop.xlane.xlu0 %3063
        %3065 = vmax.xlane.f32.xlu0 %v3048
        %v3066 = vpop.xlane.xlu0 %3065
        %3067 = vmax.xlane.f32.xlu0 %v3049
        %v3068 = vpop.xlane.xlu0 %3067
        %3069 = vmax.xlane.f32.xlu0 %v3050
        %v3070 = vpop.xlane.xlu0 %3069
        %3071 = vmax.xlane.f32.xlu0 %v3051
        %v3072 = vpop.xlane.xlu0 %3071
        %3073 = vmax.xlane.f32.xlu0 %v3052
        %v3074 = vpop.xlane.xlu0 %3073
        %3075 = vmax.xlane.f32.xlu0 %v3053
        %v3076 = vpop.xlane.xlu0 %3075
        %3077 = vmax.xlane.f32.xlu0 %v3054
        %v3078 = vpop.xlane.xlu0 %3077
        %3079 = vmax.xlane.f32.xlu0 %v3055
        %v3080 = vpop.xlane.xlu0 %3079
        %3081 = vmax.xlane.f32.xlu0 %v3056
        %v3082 = vpop.xlane.xlu0 %3081
        %3083 = vmax.xlane.f32.xlu0 %v3057
        %v3084 = vpop.xlane.xlu0 %3083
        %3085 = vmax.xlane.f32.xlu0 %v3058
        %v3086 = vpop.xlane.xlu0 %3085
        %3087 = vmax.xlane.f32.xlu0 %v3059
        %v3088 = vpop.xlane.xlu0 %3087
        %3089 = vmax.xlane.f32.xlu0 %v3060
        %v3090 = vpop.xlane.xlu0 %3089
        %3091 = vmax.xlane.f32.xlu0 %v3061
        %v3092 = vpop.xlane.xlu0 %3091
        %3093 = vmax.xlane.f32.xlu0 %v3062
        %v3094 = vpop.xlane.xlu0 %3093
        %s3095 = scalar_lea.vmem %s488, 144 [#allocation3]
        %v3096 = vld [vmem:[%s3095] sm:$0xff]
        %v3097 = vld [vmem:[%s3095 + $0x8] sm:$0xff]
        %v3098 = vld [vmem:[%s3095 + $0x10] sm:$0x7]
        %v3100 = vsel %vm576, %v3098, 0
        %3102 = vmatprep.subr.mxu0 0.0
        %3103 = vmatpush1.msra.mxu0 %v3096
        %3104 = vmatprep.subr.mxu0 0.0
        %3105 = vmatpush1.msra.mxu0 %v3097
        %3106 = vmatprep.subr.mxu0 0.0
        %3107 = vmatpush1.msra.mxu0 %v3100
        %3108 = vmatprep.subr.mxu0 0.0
        %3109 = vmatpush1.msra.mxu0 0.0
        %3110 = vmatprep.subr.mxu0 0.0
        %3111 = vmatpush1.msra.mxu0 0.0
        %3112 = vmatprep.subr.mxu0 0.0
        %3113 = vmatpush1.msra.mxu0 0.0
        %3114 = vmatprep.subr.mxu0 0.0
        %3115 = vmatpush1.msra.mxu0 0.0
        %3116 = vmatprep.subr.mxu0 0.0
        %3117 = vmatpush1.msra.mxu0 0.0
        %3118 = vmatprep.subr.mxu0 0.0
        %3119 = vmatpush1.msra.mxu0 0.0
        %3120 = vmatprep.subr.mxu0 0.0
        %3121 = vmatpush1.msra.mxu0 0.0
        %3122 = vmatprep.subr.mxu0 0.0
        %3123 = vmatpush1.msra.mxu0 0.0
        %3124 = vmatprep.subr.mxu0 0.0
        %3125 = vmatpush1.msra.mxu0 0.0
        %3126 = vmatprep.subr.mxu0 0.0
        %3127 = vmatpush1.msra.mxu0 0.0
        %3128 = vmatprep.subr.mxu0 0.0
        %3129 = vmatpush1.msra.mxu0 0.0
        %3130 = vmatprep.subr.mxu0 0.0
        %3131 = vmatpush1.msra.mxu0 0.0
        %3132 = vmatprep.subr.mxu0 0.0
        %3133 = vmatpush1.msra.mxu0 0.0
        %3134 = vmatprep.subr.mxu0 0.0
        %3135 = vmatpush1.msra.mxu0 0.0
        %3136 = vmatprep.subr.mxu0 0.0
        %3137 = vmatpush1.msra.mxu0 0.0
        %3138 = vmatprep.subr.mxu0 0.0
        %3139 = vmatpush1.msra.mxu0 0.0
        %3140 = vmatprep.subr.mxu0 0.0
        %3141 = vmatpush1.msra.mxu0 0.0
        %3142 = vmatprep.subr.mxu0 0.0
        %3143 = vmatpush1.msra.mxu0 0.0
        %3144 = vmatprep.subr.mxu0 0.0
        %3145 = vmatpush1.msra.mxu0 0.0
        %3146 = vmatprep.subr.mxu0 0.0
        %3147 = vmatpush1.msra.mxu0 0.0
        %3148 = vmatprep.subr.mxu0 0.0
        %3149 = vmatpush1.msra.mxu0 0.0
        %3150 = vmatprep.subr.mxu0 0.0
        %3151 = vmatpush1.msra.mxu0 0.0
        %3152 = vmatprep.subr.mxu0 0.0
        %3153 = vmatpush1.msra.mxu0 0.0
        %3154 = vmatprep.subr.mxu0 0.0
        %3155 = vmatpush1.msra.mxu0 0.0
        %3156 = vmatprep.subr.mxu0 0.0
        %3157 = vmatpush1.msra.mxu0 0.0
        %3158 = vmatprep.subr.mxu0 0.0
        %3159 = vmatpush1.msra.mxu0 0.0
        %3160 = vmatprep.subr.mxu0 0.0
        %3161 = vmatpush1.msra.mxu0 0.0
        %3162 = vmatprep.subr.mxu0 0.0
        %3163 = vmatpush1.msra.mxu0 0.0
        %3164 = vmatprep.subr.mxu0 0.0
        %3165 = vmatpush1.msra.mxu0 0.0
        %3166 = vmatprep.mubr.f32.mxu0 0.0
        %3167 = vmatmul.mubr.f32.gmra.mrb[0].mxu0 %v565
        %v3168 = vpop.f32.mrb[0].mxu0
        %v3169 = vadd.f32 %v546, %v3168
        %v3170 = vpop.f32.mrb[0].mxu0
        %3171 = vmatprep.mubr.f32.mxu0 0.0
        %3172 = vmatmul.mubr.f32.gmra.mrb[0].mxu0 %v568
        %v3173 = vpop.f32.mrb[0].mxu0
        %v3174 = vadd.f32 %v551, %v3173
        %v3175 = vpop.f32.mrb[0].mxu0
        %3176 = vmatprep.mubr.f32.mxu0 0.0
        %3177 = vmatmul.mubr.f32.gmra.mrb[0].mxu0 %v571
        %v3178 = vpop.f32.mrb[0].mxu0
        %v3179 = vadd.f32 %v556, %v3178
        %v3180 = vpop.f32.mrb[0].mxu0
        %3181 = vmatprep.mubr.f32.mxu0 0.0
        %3182 = vmatmul.mubr.f32.gmra.mrb[0].mxu0 %v574
        %v3183 = vpop.f32.mrb[0].mxu0
        %v3184 = vadd.f32 %v561, %v3183
        %v3185 = vpop.f32.mrb[0].mxu0
        %3186 = vdwg.mxu0
        %vm3187 = vcmp.gt.f32.partialorder %v3169, 0.0
        %vm3188 = vcmp.gt.f32.partialorder %v3174, 0.0
        %vm3189 = vcmp.gt.f32.partialorder %v3179, 0.0
        %vm3190 = vcmp.gt.f32.partialorder %v3184, 0.0
        %v3191 = vmul.f32 %v3169, 0.02
        %v3192 = vmul.f32 %v3174, 0.02
        %v3193 = vmul.f32 %v3179, 0.02
        %v3194 = vmul.f32 %v3184, 0.02
        %v3195 = vsel %vm3187, %v3169, %v3191
        %v3196 = vsel %vm3188, %v3174, %v3192
        %v3197 = vsel %vm3189, %v3179, %v3193
        %v3198 = vsel %vm3190, %v3184, %v3194
        %v3199 = vpack.c.bf16 %v3196, %v3195
        %v3200 = vpack.c.bf16 %v3198, %v3197
        %3201 = vmatprep.subr.bf16.mxu0 0
        %3202 = vmatpush1.bf16.msra.mxu0 %v3199
        %3203 = vmatprep.subr.bf16.mxu0 0
        %3204 = vmatpush1.bf16.msra.mxu0 %v3200
        %3205 = vmatprep.subr.bf16.mxu0 0
        %3206 = vmatpush1.bf16.msra.mxu0 0
        %3207 = vmatprep.subr.bf16.mxu0 0
        %3208 = vmatpush1.bf16.msra.mxu0 0
        %3209 = vmatprep.subr.bf16.mxu0 0
        %3210 = vmatpush1.bf16.msra.mxu0 0
        %3211 = vmatprep.subr.bf16.mxu0 0
        %3212 = vmatpush1.bf16.msra.mxu0 0
        %3213 = vmatprep.subr.bf16.mxu0 0
        %3214 = vmatpush1.bf16.msra.mxu0 0
        %3215 = vmatprep.subr.bf16.mxu0 0
        %3216 = vmatpush1.bf16.msra.mxu0 0
        %3217 = vmatprep.subr.bf16.mxu0 0
        %3218 = vmatpush1.bf16.msra.mxu0 0
        %3219 = vmatprep.subr.bf16.mxu0 0
        %3220 = vmatpush1.bf16.msra.mxu0 0
        %3221 = vmatprep.subr.bf16.mxu0 0
        %3222 = vmatpush1.bf16.msra.mxu0 0
        %3223 = vmatprep.subr.bf16.mxu0 0
        %3224 = vmatpush1.bf16.msra.mxu0 0
        %3225 = vmatprep.subr.bf16.mxu0 0
        %3226 = vmatpush1.bf16.msra.mxu0 0
        %3227 = vmatprep.subr.bf16.mxu0 0
        %3228 = vmatpush1.bf16.msra.mxu0 0
        %3229 = vmatprep.subr.bf16.mxu0 0
        %3230 = vmatpush1.bf16.msra.mxu0 0
        %3231 = vmatprep.subr.bf16.mxu0 0
        %3232 = vmatpush1.bf16.msra.mxu0 0
        %3233 = vmatprep.mubr.bf16.mxu0 0
        %3234 = vmatmul.mubr.bf16.gmra.mrb[0].mxu0 %v757
        %v3235 = vpop.f32.mrb[0].mxu0
        %v3236 = vadd.f32 %v698, %v3235
        %v3237 = vpop.f32.mrb[0].mxu0
        %v3238 = vpop.f32.mrb[0].mxu0
        %v3239 = vadd.f32 %v703, %v3238
        %v3240 = vpop.f32.mrb[0].mxu0
        %3241 = vmatprep.mubr.bf16.mxu0 0
        %3242 = vmatmul.mubr.bf16.gmra.mrb[0].mxu0 %v760
        %v3243 = vpop.f32.mrb[0].mxu0
        %v3244 = vadd.f32 %v708, %v3243
        %v3245 = vpop.f32.mrb[0].mxu0
        %v3246 = vpop.f32.mrb[0].mxu0
        %v3247 = vadd.f32 %v713, %v3246
        %v3248 = vpop.f32.mrb[0].mxu0
        %3249 = vmatprep.mubr.bf16.mxu0 0
        %3250 = vmatmul.mubr.bf16.gmra.mrb[0].mxu0 %v763
        %v3251 = vpop.f32.mrb[0].mxu0
        %v3252 = vadd.f32 %v718, %v3251
        %v3253 = vpop.f32.mrb[0].mxu0
        %v3254 = vpop.f32.mrb[0].mxu0
        %v3255 = vadd.f32 %v723, %v3254
        %v3256 = vpop.f32.mrb[0].mxu0
        %3257 = vmatprep.mubr.bf16.mxu0 0
        %3258 = vmatmul.mubr.bf16.gmra.mrb[0].mxu0 %v766
        %v3259 = vpop.f32.mrb[0].mxu0
        %v3260 = vadd.f32 %v728, %v3259
        %v3261 = vpop.f32.mrb[0].mxu0
        %v3262 = vpop.f32.mrb[0].mxu0
        %v3263 = vadd.f32 %v733, %v3262
        %v3264 = vpop.f32.mrb[0].mxu0
        %3265 = vdwg.mxu0
        %vm3266 = vcmp.gt.f32.partialorder %v3236, 0.0
        %vm3267 = vcmp.gt.f32.partialorder %v3239, 0.0
        %vm3268 = vcmp.gt.f32.partialorder %v3244, 0.0
        %vm3269 = vcmp.gt.f32.partialorder %v3247, 0.0
        %vm3270 = vcmp.gt.f32.partialorder %v3252, 0.0
        %vm3271 = vcmp.gt.f32.partialorder %v3255, 0.0
        %vm3272 = vcmp.gt.f32.partialorder %v3260, 0.0
        %vm3273 = vcmp.gt.f32.partialorder %v3263, 0.0
        %v3274 = vmul.f32 %v3236, 0.02
        %v3275 = vmul.f32 %v3239, 0.02
        %v3276 = vmul.f32 %v3244, 0.02
        %v3277 = vmul.f32 %v3247, 0.02
        %v3278 = vmul.f32 %v3252, 0.02
        %v3279 = vmul.f32 %v3255, 0.02
        %v3280 = vmul.f32 %v3260, 0.02
        %v3281 = vmul.f32 %v3263, 0.02
        %v3282 = vsel %vm3266, %v3236, %v3274
        %v3283 = vsel %vm3267, %v3239, %v3275
        %v3284 = vsel %vm3268, %v3244, %v3276
        %v3285 = vsel %vm3269, %v3247, %v3277
        %v3286 = vsel %vm3270, %v3252, %v3278
        %v3287 = vsel %vm3271, %v3255, %v3279
        %v3288 = vsel %vm3272, %v3260, %v3280
        %v3289 = vsel %vm3273, %v3263, %v3281
        %v3290 = vpack.c.bf16 %v3283, %v3282
        %v3291 = vpack.c.bf16 %v3285, %v3284
        %v3292 = vpack.c.bf16 %v3287, %v3286
        %v3293 = vpack.c.bf16 %v3289, %v3288
        %3294 = vmatprep.subr.bf16.mxu0 0
        %3295 = vmatpush1.bf16.msra.mxu0 %v3290
        %3296 = vmatprep.subr.bf16.mxu0 0
        %3297 = vmatpush1.bf16.msra.mxu0 %v3291
        %3298 = vmatprep.subr.bf16.mxu0 0
        %3299 = vmatpush1.bf16.msra.mxu0 %v3292
        %3300 = vmatprep.subr.bf16.mxu0 0
        %3301 = vmatpush1.bf16.msra.mxu0 %v3293
        %3302 = vmatprep.subr.bf16.mxu0 0
        %3303 = vmatpush1.bf16.msra.mxu0 0
        %3304 = vmatprep.subr.bf16.mxu0 0
        %3305 = vmatpush1.bf16.msra.mxu0 0
        %3306 = vmatprep.subr.bf16.mxu0 0
        %3307 = vmatpush1.bf16.msra.mxu0 0
        %3308 = vmatprep.subr.bf16.mxu0 0
        %3309 = vmatpush1.bf16.msra.mxu0 0
        %3310 = vmatprep.subr.bf16.mxu0 0
        %3311 = vmatpush1.bf16.msra.mxu0 0
        %3312 = vmatprep.subr.bf16.mxu0 0
        %3313 = vmatpush1.bf16.msra.mxu0 0
        %3314 = vmatprep.subr.bf16.mxu0 0
        %3315 = vmatpush1.bf16.msra.mxu0 0
        %3316 = vmatprep.subr.bf16.mxu0 0
        %3317 = vmatpush1.bf16.msra.mxu0 0
        %3318 = vmatprep.subr.bf16.mxu0 0
        %3319 = vmatpush1.bf16.msra.mxu0 0
        %3320 = vmatprep.subr.bf16.mxu0 0
        %3321 = vmatpush1.bf16.msra.mxu0 0
        %3322 = vmatprep.subr.bf16.mxu0 0
        %3323 = vmatpush1.bf16.msra.mxu0 0
        %3324 = vmatprep.subr.bf16.mxu0 0
        %3325 = vmatpush1.bf16.msra.mxu0 0
        %3326 = vmatprep.mubr.bf16.mxu0 0
        %3327 = vmatmul.mubr.bf16.gmra.mrb[0].mxu0 %v1015
        %v3328 = vpop.f32.mrb[0].mxu0
        %v3329 = vadd.f32 %v896, %v3328
        %v3330 = vpop.f32.mrb[0].mxu0
        %v3331 = vpop.f32.mrb[0].mxu0
        %v3332 = vadd.f32 %v901, %v3331
        %v3333 = vpop.f32.mrb[0].mxu0
        %3334 = vmatprep.mubr.bf16.mxu0 0
        %3335 = vmatmul.mubr.bf16.gmra.mrb[0].mxu0 %v1018
        %v3336 = vpop.f32.mrb[0].mxu0
        %v3337 = vadd.f32 %v906, %v3336
        %v3338 = vpop.f32.mrb[0].mxu0
        %v3339 = vpop.f32.mrb[0].mxu0
        %v3340 = vadd.f32 %v911, %v3339
        %v3341 = vpop.f32.mrb[0].mxu0
        %3342 = vmatprep.mubr.bf16.mxu0 0
        %3343 = vmatmul.mubr.bf16.gmra.mrb[0].mxu0 %v1021
        %v3344 = vpop.f32.mrb[0].mxu0
        %v3345 = vadd.f32 %v916, %v3344
        %v3346 = vpop.f32.mrb[0].mxu0
        %v3347 = vpop.f32.mrb[0].mxu0
        %v3348 = vadd.f32 %v921, %v3347
        %v3349 = vpop.f32.mrb[0].mxu0
        %3350 = vmatprep.mubr.bf16.mxu0 0
        %3351 = vmatmul.mubr.bf16.gmra.mrb[0].mxu0 %v1024
        %v3352 = vpop.f32.mrb[0].mxu0
        %v3353 = vadd.f32 %v926, %v3352
        %v3354 = vpop.f32.mrb[0].mxu0
        %v3355 = vpop.f32.mrb[0].mxu0
        %v3356 = vadd.f32 %v931, %v3355
        %v3357 = vpop.f32.mrb[0].mxu0
        %3358 = vmatprep.mubr.bf16.mxu0 0
        %3359 = vmatmul.mubr.bf16.gmra.mrb[0].mxu0 %v1027
        %v3360 = vpop.f32.mrb[0].mxu0
        %v3361 = vadd.f32 %v936, %v3360
        %v3362 = vpop.f32.mrb[0].mxu0
        %v3363 = vpop.f32.mrb[0].mxu0
        %v3364 = vadd.f32 %v941, %v3363
        %v3365 = vpop.f32.mrb[0].mxu0
        %3366 = vmatprep.mubr.bf16.mxu0 0
        %3367 = vmatmul.mubr.bf16.gmra.mrb[0].mxu0 %v1030
        %v3368 = vpop.f32.mrb[0].mxu0
        %v3369 = vadd.f32 %v946, %v3368
        %v3370 = vpop.f32.mrb[0].mxu0
        %v3371 = vpop.f32.mrb[0].mxu0
        %v3372 = vadd.f32 %v951, %v3371
        %v3373 = vpop.f32.mrb[0].mxu0
        %3374 = vmatprep.mubr.bf16.mxu0 0
        %3375 = vmatmul.mubr.bf16.gmra.mrb[0].mxu0 %v1033
        %v3376 = vpop.f32.mrb[0].mxu0
        %v3377 = vadd.f32 %v956, %v3376
        %v3378 = vpop.f32.mrb[0].mxu0
        %v3379 = vpop.f32.mrb[0].mxu0
        %v3380 = vadd.f32 %v961, %v3379
        %v3381 = vpop.f32.mrb[0].mxu0
        %3382 = vmatprep.mubr.bf16.mxu0 0
        %3383 = vmatmul.mubr.bf16.gmra.mrb[0].mxu0 %v1036
        %v3384 = vpop.f32.mrb[0].mxu0
        %v3385 = vadd.f32 %v966, %v3384
        %v3386 = vpop.f32.mrb[0].mxu0
        %v3387 = vpop.f32.mrb[0].mxu0
        %v3388 = vadd.f32 %v971, %v3387
        %v3389 = vpop.f32.mrb[0].mxu0
        %3390 = vdwg.mxu0
        %vm3391 = vcmp.gt.f32.partialorder %v3329, 0.0
        %vm3392 = vcmp.gt.f32.partialorder %v3332, 0.0
        %vm3393 = vcmp.gt.f32.partialorder %v3337, 0.0
        %vm3394 = vcmp.gt.f32.partialorder %v3340, 0.0
        %vm3395 = vcmp.gt.f32.partialorder %v3345, 0.0
        %vm3396 = vcmp.gt.f32.partialorder %v3348, 0.0
        %vm3397 = vcmp.gt.f32.partialorder %v3353, 0.0
        %vm3398 = vcmp.gt.f32.partialorder %v3356, 0.0
        %vm3399 = vcmp.gt.f32.partialorder %v3361, 0.0
        %vm3400 = vcmp.gt.f32.partialorder %v3364, 0.0
        %vm3401 = vcmp.gt.f32.partialorder %v3369, 0.0
        %vm3402 = vcmp.gt.f32.partialorder %v3372, 0.0
        %vm3403 = vcmp.gt.f32.partialorder %v3377, 0.0
        %vm3404 = vcmp.gt.f32.partialorder %v3380, 0.0
        %vm3405 = vcmp.gt.f32.partialorder %v3385, 0.0
        %vm3406 = vcmp.gt.f32.partialorder %v3388, 0.0
        %v3407 = vmul.f32 %v3329, 0.02
        %v3408 = vmul.f32 %v3332, 0.02
        %v3409 = vmul.f32 %v3337, 0.02
        %v3410 = vmul.f32 %v3340, 0.02
        %v3411 = vmul.f32 %v3345, 0.02
        %v3412 = vmul.f32 %v3348, 0.02
        %v3413 = vmul.f32 %v3353, 0.02
        %v3414 = vmul.f32 %v3356, 0.02
        %v3415 = vmul.f32 %v3361, 0.02
        %v3416 = vmul.f32 %v3364, 0.02
        %v3417 = vmul.f32 %v3369, 0.02
        %v3418 = vmul.f32 %v3372, 0.02
        %v3419 = vmul.f32 %v3377, 0.02
        %v3420 = vmul.f32 %v3380, 0.02
        %v3421 = vmul.f32 %v3385, 0.02
        %v3422 = vmul.f32 %v3388, 0.02
        %v3423 = vsel %vm3391, %v3329, %v3407
        %v3424 = vsel %vm3392, %v3332, %v3408
        %v3425 = vsel %vm3393, %v3337, %v3409
        %v3426 = vsel %vm3394, %v3340, %v3410
        %v3427 = vsel %vm3395, %v3345, %v3411
        %v3428 = vsel %vm3396, %v3348, %v3412
        %v3429 = vsel %vm3397, %v3353, %v3413
        %v3430 = vsel %vm3398, %v3356, %v3414
        %v3431 = vsel %vm3399, %v3361, %v3415
        %v3432 = vsel %vm3400, %v3364, %v3416
        %v3433 = vsel %vm3401, %v3369, %v3417
        %v3434 = vsel %vm3402, %v3372, %v3418
        %v3435 = vsel %vm3403, %v3377, %v3419
        %v3436 = vsel %vm3404, %v3380, %v3420
        %v3437 = vsel %vm3405, %v3385, %v3421
        %v3438 = vsel %vm3406, %v3388, %v3422
        %3439 = vmax.xlane.f32.xlu0 %v3423
        %v3440 = vpop.xlane.xlu0 %3439
        %3441 = vmax.xlane.f32.xlu0 %v3424
        %v3442 = vpop.xlane.xlu0 %3441
        %3443 = vmax.xlane.f32.xlu0 %v3425
        %v3444 = vpop.xlane.xlu0 %3443
        %3445 = vmax.xlane.f32.xlu0 %v3426
        %v3446 = vpop.xlane.xlu0 %3445
        %3447 = vmax.xlane.f32.xlu0 %v3427
        %v3448 = vpop.xlane.xlu0 %3447
        %3449 = vmax.xlane.f32.xlu0 %v3428
        %v3450 = vpop.xlane.xlu0 %3449
        %3451 = vmax.xlane.f32.xlu0 %v3429
        %v3452 = vpop.xlane.xlu0 %3451
        %3453 = vmax.xlane.f32.xlu0 %v3430
        %v3454 = vpop.xlane.xlu0 %3453
        %3455 = vmax.xlane.f32.xlu0 %v3431
        %v3456 = vpop.xlane.xlu0 %3455
        %3457 = vmax.xlane.f32.xlu0 %v3432
        %v3458 = vpop.xlane.xlu0 %3457
        %3459 = vmax.xlane.f32.xlu0 %v3433
        %v3460 = vpop.xlane.xlu0 %3459
        %3461 = vmax.xlane.f32.xlu0 %v3434
        %v3462 = vpop.xlane.xlu0 %3461
        %3463 = vmax.xlane.f32.xlu0 %v3435
        %v3464 = vpop.xlane.xlu0 %3463
        %3465 = vmax.xlane.f32.xlu0 %v3436
        %v3466 = vpop.xlane.xlu0 %3465
        %3467 = vmax.xlane.f32.xlu0 %v3437
        %v3468 = vpop.xlane.xlu0 %3467
        %3469 = vmax.xlane.f32.xlu0 %v3438
        %v3470 = vpop.xlane.xlu0 %3469
        %s3471 = scalar_lea.vmem %s488, 168 [#allocation3]
        %v3472 = vld [vmem:[%s3471] sm:$0xff]
        %v3473 = vld [vmem:[%s3471 + $0x8] sm:$0xff]
        %v3474 = vld [vmem:[%s3471 + $0x10] sm:$0x7]
        %v3476 = vsel %vm576, %v3474, 0
        %3478 = vmatprep.subr.mxu0 0.0
        %3479 = vmatpush1.msra.mxu0 %v3472
        %3480 = vmatprep.subr.mxu0 0.0
        %3481 = vmatpush1.msra.mxu0 %v3473
        %3482 = vmatprep.subr.mxu0 0.0
        %3483 = vmatpush1.msra.mxu0 %v3476
        %3484 = vmatprep.subr.mxu0 0.0
        %3485 = vmatpush1.msra.mxu0 0.0
        %3486 = vmatprep.subr.mxu0 0.0
        %3487 = vmatpush1.msra.mxu0 0.0
        %3488 = vmatprep.subr.mxu0 0.0
        %3489 = vmatpush1.msra.mxu0 0.0
        %3490 = vmatprep.subr.mxu0 0.0
        %3491 = vmatpush1.msra.mxu0 0.0
        %3492 = vmatprep.subr.mxu0 0.0
        %3493 = vmatpush1.msra.mxu0 0.0
        %3494 = vmatprep.subr.mxu0 0.0
        %3495 = vmatpush1.msra.mxu0 0.0
        %3496 = vmatprep.subr.mxu0 0.0
        %3497 = vmatpush1.msra.mxu0 0.0
        %3498 = vmatprep.subr.mxu0 0.0
        %3499 = vmatpush1.msra.mxu0 0.0
        %3500 = vmatprep.subr.mxu0 0.0
        %3501 = vmatpush1.msra.mxu0 0.0
        %3502 = vmatprep.subr.mxu0 0.0
        %3503 = vmatpush1.msra.mxu0 0.0
        %3504 = vmatprep.subr.mxu0 0.0
        %3505 = vmatpush1.msra.mxu0 0.0
        %3506 = vmatprep.subr.mxu0 0.0
        %3507 = vmatpush1.msra.mxu0 0.0
        %3508 = vmatprep.subr.mxu0 0.0
        %3509 = vmatpush1.msra.mxu0 0.0
        %3510 = vmatprep.subr.mxu0 0.0
        %3511 = vmatpush1.msra.mxu0 0.0
        %3512 = vmatprep.subr.mxu0 0.0
        %3513 = vmatpush1.msra.mxu0 0.0
        %3514 = vmatprep.subr.mxu0 0.0
        %3515 = vmatpush1.msra.mxu0 0.0
        %3516 = vmatprep.subr.mxu0 0.0
        %3517 = vmatpush1.msra.mxu0 0.0
        %3518 = vmatprep.subr.mxu0 0.0
        %3519 = vmatpush1.msra.mxu0 0.0
        %3520 = vmatprep.subr.mxu0 0.0
        %3521 = vmatpush1.msra.mxu0 0.0
        %3522 = vmatprep.subr.mxu0 0.0
        %3523 = vmatpush1.msra.mxu0 0.0
        %3524 = vmatprep.subr.mxu0 0.0
        %3525 = vmatpush1.msra.mxu0 0.0
        %3526 = vmatprep.subr.mxu0 0.0
        %3527 = vmatpush1.msra.mxu0 0.0
        %3528 = vmatprep.subr.mxu0 0.0
        %3529 = vmatpush1.msra.mxu0 0.0
        %3530 = vmatprep.subr.mxu0 0.0
        %3531 = vmatpush1.msra.mxu0 0.0
        %3532 = vmatprep.subr.mxu0 0.0
        %3533 = vmatpush1.msra.mxu0 0.0
        %3534 = vmatprep.subr.mxu0 0.0
        %3535 = vmatpush1.msra.mxu0 0.0
        %3536 = vmatprep.subr.mxu0 0.0
        %3537 = vmatpush1.msra.mxu0 0.0
        %3538 = vmatprep.subr.mxu0 0.0
        %3539 = vmatpush1.msra.mxu0 0.0
        %3540 = vmatprep.subr.mxu0 0.0
        %3541 = vmatpush1.msra.mxu0 0.0
        %3542 = vmatprep.mubr.f32.mxu0 0.0
        %3543 = vmatmul.mubr.f32.gmra.mrb[0].mxu0 %v565
        %v3544 = vpop.f32.mrb[0].mxu0
        %v3545 = vadd.f32 %v546, %v3544
        %v3546 = vpop.f32.mrb[0].mxu0
        %3547 = vmatprep.mubr.f32.mxu0 0.0
        %3548 = vmatmul.mubr.f32.gmra.mrb[0].mxu0 %v568
        %v3549 = vpop.f32.mrb[0].mxu0
        %v3550 = vadd.f32 %v551, %v3549
        %v3551 = vpop.f32.mrb[0].mxu0
        %3552 = vmatprep.mubr.f32.mxu0 0.0
        %3553 = vmatmul.mubr.f32.gmra.mrb[0].mxu0 %v571
        %v3554 = vpop.f32.mrb[0].mxu0
        %v3555 = vadd.f32 %v556, %v3554
        %v3556 = vpop.f32.mrb[0].mxu0
        %3557 = vmatprep.mubr.f32.mxu0 0.0
        %3558 = vmatmul.mubr.f32.gmra.mrb[0].mxu0 %v574
        %v3559 = vpop.f32.mrb[0].mxu0
        %v3560 = vadd.f32 %v561, %v3559
        %v3561 = vpop.f32.mrb[0].mxu0
        %3562 = vdwg.mxu0
        %vm3563 = vcmp.gt.f32.partialorder %v3545, 0.0
        %vm3564 = vcmp.gt.f32.partialorder %v3550, 0.0
        %vm3565 = vcmp.gt.f32.partialorder %v3555, 0.0
        %vm3566 = vcmp.gt.f32.partialorder %v3560, 0.0
        %v3567 = vmul.f32 %v3545, 0.02
        %v3568 = vmul.f32 %v3550, 0.02
        %v3569 = vmul.f32 %v3555, 0.02
        %v3570 = vmul.f32 %v3560, 0.02
        %v3571 = vsel %vm3563, %v3545, %v3567
        %v3572 = vsel %vm3564, %v3550, %v3568
        %v3573 = vsel %vm3565, %v3555, %v3569
        %v3574 = vsel %vm3566, %v3560, %v3570
        %v3575 = vpack.c.bf16 %v3572, %v3571
        %v3576 = vpack.c.bf16 %v3574, %v3573
        %3577 = vmatprep.subr.bf16.mxu0 0
        %3578 = vmatpush1.bf16.msra.mxu0 %v3575
        %3579 = vmatprep.subr.bf16.mxu0 0
        %3580 = vmatpush1.bf16.msra.mxu0 %v3576
        %3581 = vmatprep.subr.bf16.mxu0 0
        %3582 = vmatpush1.bf16.msra.mxu0 0
        %3583 = vmatprep.subr.bf16.mxu0 0
        %3584 = vmatpush1.bf16.msra.mxu0 0
        %3585 = vmatprep.subr.bf16.mxu0 0
        %3586 = vmatpush1.bf16.msra.mxu0 0
        %3587 = vmatprep.subr.bf16.mxu0 0
        %3588 = vmatpush1.bf16.msra.mxu0 0
        %3589 = vmatprep.subr.bf16.mxu0 0
        %3590 = vmatpush1.bf16.msra.mxu0 0
        %3591 = vmatprep.subr.bf16.mxu0 0
        %3592 = vmatpush1.bf16.msra.mxu0 0
        %3593 = vmatprep.subr.bf16.mxu0 0
        %3594 = vmatpush1.bf16.msra.mxu0 0
        %3595 = vmatprep.subr.bf16.mxu0 0
        %3596 = vmatpush1.bf16.msra.mxu0 0
        %3597 = vmatprep.subr.bf16.mxu0 0
        %3598 = vmatpush1.bf16.msra.mxu0 0
        %3599 = vmatprep.subr.bf16.mxu0 0
        %3600 = vmatpush1.bf16.msra.mxu0 0
        %3601 = vmatprep.subr.bf16.mxu0 0
        %3602 = vmatpush1.bf16.msra.mxu0 0
        %3603 = vmatprep.subr.bf16.mxu0 0
        %3604 = vmatpush1.bf16.msra.mxu0 0
        %3605 = vmatprep.subr.bf16.mxu0 0
        %3606 = vmatpush1.bf16.msra.mxu0 0
        %3607 = vmatprep.subr.bf16.mxu0 0
        %3608 = vmatpush1.bf16.msra.mxu0 0
        %3609 = vmatprep.mubr.bf16.mxu0 0
        %3610 = vmatmul.mubr.bf16.gmra.mrb[0].mxu0 %v757
        %v3611 = vpop.f32.mrb[0].mxu0
        %v3612 = vadd.f32 %v698, %v3611
        %v3613 = vpop.f32.mrb[0].mxu0
        %v3614 = vpop.f32.mrb[0].mxu0
        %v3615 = vadd.f32 %v703, %v3614
        %v3616 = vpop.f32.mrb[0].mxu0
        %3617 = vmatprep.mubr.bf16.mxu0 0
        %3618 = vmatmul.mubr.bf16.gmra.mrb[0].mxu0 %v760
        %v3619 = vpop.f32.mrb[0].mxu0
        %v3620 = vadd.f32 %v708, %v3619
        %v3621 = vpop.f32.mrb[0].mxu0
        %v3622 = vpop.f32.mrb[0].mxu0
        %v3623 = vadd.f32 %v713, %v3622
        %v3624 = vpop.f32.mrb[0].mxu0
        %3625 = vmatprep.mubr.bf16.mxu0 0
        %3626 = vmatmul.mubr.bf16.gmra.mrb[0].mxu0 %v763
        %v3627 = vpop.f32.mrb[0].mxu0
        %v3628 = vadd.f32 %v718, %v3627
        %v3629 = vpop.f32.mrb[0].mxu0
        %v3630 = vpop.f32.mrb[0].mxu0
        %v3631 = vadd.f32 %v723, %v3630
        %v3632 = vpop.f32.mrb[0].mxu0
        %3633 = vmatprep.mubr.bf16.mxu0 0
        %3634 = vmatmul.mubr.bf16.gmra.mrb[0].mxu0 %v766
        %v3635 = vpop.f32.mrb[0].mxu0
        %v3636 = vadd.f32 %v728, %v3635
        %v3637 = vpop.f32.mrb[0].mxu0
        %v3638 = vpop.f32.mrb[0].mxu0
        %v3639 = vadd.f32 %v733, %v3638
        %v3640 = vpop.f32.mrb[0].mxu0
        %3641 = vdwg.mxu0
        %vm3642 = vcmp.gt.f32.partialorder %v3612, 0.0
        %vm3643 = vcmp.gt.f32.partialorder %v3615, 0.0
        %vm3644 = vcmp.gt.f32.partialorder %v3620, 0.0
        %vm3645 = vcmp.gt.f32.partialorder %v3623, 0.0
        %vm3646 = vcmp.gt.f32.partialorder %v3628, 0.0
        %vm3647 = vcmp.gt.f32.partialorder %v3631, 0.0
        %vm3648 = vcmp.gt.f32.partialorder %v3636, 0.0
        %vm3649 = vcmp.gt.f32.partialorder %v3639, 0.0
        %v3650 = vmul.f32 %v3612, 0.02
        %v3651 = vmul.f32 %v3615, 0.02
        %v3652 = vmul.f32 %v3620, 0.02
        %v3653 = vmul.f32 %v3623, 0.02
        %v3654 = vmul.f32 %v3628, 0.02
        %v3655 = vmul.f32 %v3631, 0.02
        %v3656 = vmul.f32 %v3636, 0.02
        %v3657 = vmul.f32 %v3639, 0.02
        %v3658 = vsel %vm3642, %v3612, %v3650
        %v3659 = vsel %vm3643, %v3615, %v3651
        %v3660 = vsel %vm3644, %v3620, %v3652
        %v3661 = vsel %vm3645, %v3623, %v3653
        %v3662 = vsel %vm3646, %v3628, %v3654
        %v3663 = vsel %vm3647, %v3631, %v3655
        %v3664 = vsel %vm3648, %v3636, %v3656
        %v3665 = vsel %vm3649, %v3639, %v3657
        %v3666 = vpack.c.bf16 %v3659, %v3658
        %v3667 = vpack.c.bf16 %v3661, %v3660
        %v3668 = vpack.c.bf16 %v3663, %v3662
        %v3669 = vpack.c.bf16 %v3665, %v3664
        %3670 = vmatprep.subr.bf16.mxu0 0
        %3671 = vmatpush1.bf16.msra.mxu0 %v3666
        %3672 = vmatprep.subr.bf16.mxu0 0
        %3673 = vmatpush1.bf16.msra.mxu0 %v3667
        %3674 = vmatprep.subr.bf16.mxu0 0
        %3675 = vmatpush1.bf16.msra.mxu0 %v3668
        %3676 = vmatprep.subr.bf16.mxu0 0
        %3677 = vmatpush1.bf16.msra.mxu0 %v3669
        %3678 = vmatprep.subr.bf16.mxu0 0
        %3679 = vmatpush1.bf16.msra.mxu0 0
        %3680 = vmatprep.subr.bf16.mxu0 0
        %3681 = vmatpush1.bf16.msra.mxu0 0
        %3682 = vmatprep.subr.bf16.mxu0 0
        %3683 = vmatpush1.bf16.msra.mxu0 0
        %3684 = vmatprep.subr.bf16.mxu0 0
        %3685 = vmatpush1.bf16.msra.mxu0 0
        %3686 = vmatprep.subr.bf16.mxu0 0
        %3687 = vmatpush1.bf16.msra.mxu0 0
        %3688 = vmatprep.subr.bf16.mxu0 0
        %3689 = vmatpush1.bf16.msra.mxu0 0
        %3690 = vmatprep.subr.bf16.mxu0 0
        %3691 = vmatpush1.bf16.msra.mxu0 0
        %3692 = vmatprep.subr.bf16.mxu0 0
        %3693 = vmatpush1.bf16.msra.mxu0 0
        %3694 = vmatprep.subr.bf16.mxu0 0
        %3695 = vmatpush1.bf16.msra.mxu0 0
        %3696 = vmatprep.subr.bf16.mxu0 0
        %3697 = vmatpush1.bf16.msra.mxu0 0
        %3698 = vmatprep.subr.bf16.mxu0 0
        %3699 = vmatpush1.bf16.msra.mxu0 0
        %3700 = vmatprep.subr.bf16.mxu0 0
        %3701 = vmatpush1.bf16.msra.mxu0 0
        %3702 = vmatprep.mubr.bf16.mxu0 0
        %3703 = vmatmul.mubr.bf16.gmra.mrb[0].mxu0 %v1015
        %v3704 = vpop.f32.mrb[0].mxu0
        %v3705 = vadd.f32 %v896, %v3704
        %v3706 = vpop.f32.mrb[0].mxu0
        %v3707 = vpop.f32.mrb[0].mxu0
        %v3708 = vadd.f32 %v901, %v3707
        %v3709 = vpop.f32.mrb[0].mxu0
        %3710 = vmatprep.mubr.bf16.mxu0 0
        %3711 = vmatmul.mubr.bf16.gmra.mrb[0].mxu0 %v1018
        %v3712 = vpop.f32.mrb[0].mxu0
        %v3713 = vadd.f32 %v906, %v3712
        %v3714 = vpop.f32.mrb[0].mxu0
        %v3715 = vpop.f32.mrb[0].mxu0
        %v3716 = vadd.f32 %v911, %v3715
        %v3717 = vpop.f32.mrb[0].mxu0
        %3718 = vmatprep.mubr.bf16.mxu0 0
        %3719 = vmatmul.mubr.bf16.gmra.mrb[0].mxu0 %v1021
        %v3720 = vpop.f32.mrb[0].mxu0
        %v3721 = vadd.f32 %v916, %v3720
        %v3722 = vpop.f32.mrb[0].mxu0
        %v3723 = vpop.f32.mrb[0].mxu0
        %v3724 = vadd.f32 %v921, %v3723
        %v3725 = vpop.f32.mrb[0].mxu0
        %3726 = vmatprep.mubr.bf16.mxu0 0
        %3727 = vmatmul.mubr.bf16.gmra.mrb[0].mxu0 %v1024
        %v3728 = vpop.f32.mrb[0].mxu0
        %v3729 = vadd.f32 %v926, %v3728
        %v3730 = vpop.f32.mrb[0].mxu0
        %v3731 = vpop.f32.mrb[0].mxu0
        %v3732 = vadd.f32 %v931, %v3731
        %v3733 = vpop.f32.mrb[0].mxu0
        %3734 = vmatprep.mubr.bf16.mxu0 0
        %3735 = vmatmul.mubr.bf16.gmra.mrb[0].mxu0 %v1027
        %v3736 = vpop.f32.mrb[0].mxu0
        %v3737 = vadd.f32 %v936, %v3736
        %v3738 = vpop.f32.mrb[0].mxu0
        %v3739 = vpop.f32.mrb[0].mxu0
        %v3740 = vadd.f32 %v941, %v3739
        %v3741 = vpop.f32.mrb[0].mxu0
        %3742 = vmatprep.mubr.bf16.mxu0 0
        %3743 = vmatmul.mubr.bf16.gmra.mrb[0].mxu0 %v1030
        %v3744 = vpop.f32.mrb[0].mxu0
        %v3745 = vadd.f32 %v946, %v3744
        %v3746 = vpop.f32.mrb[0].mxu0
        %v3747 = vpop.f32.mrb[0].mxu0
        %v3748 = vadd.f32 %v951, %v3747
        %v3749 = vpop.f32.mrb[0].mxu0
        %3750 = vmatprep.mubr.bf16.mxu0 0
        %3751 = vmatmul.mubr.bf16.gmra.mrb[0].mxu0 %v1033
        %v3752 = vpop.f32.mrb[0].mxu0
        %v3753 = vadd.f32 %v956, %v3752
        %v3754 = vpop.f32.mrb[0].mxu0
        %v3755 = vpop.f32.mrb[0].mxu0
        %v3756 = vadd.f32 %v961, %v3755
        %v3757 = vpop.f32.mrb[0].mxu0
        %3758 = vmatprep.mubr.bf16.mxu0 0
        %3759 = vmatmul.mubr.bf16.gmra.mrb[0].mxu0 %v1036
        %v3760 = vpop.f32.mrb[0].mxu0
        %v3761 = vadd.f32 %v966, %v3760
        %v3762 = vpop.f32.mrb[0].mxu0
        %v3763 = vpop.f32.mrb[0].mxu0
        %v3764 = vadd.f32 %v971, %v3763
        %v3765 = vpop.f32.mrb[0].mxu0
        %3766 = vdwg.mxu0
        %vm3767 = vcmp.gt.f32.partialorder %v3705, 0.0
        %vm3768 = vcmp.gt.f32.partialorder %v3708, 0.0
        %vm3769 = vcmp.gt.f32.partialorder %v3713, 0.0
        %vm3770 = vcmp.gt.f32.partialorder %v3716, 0.0
        %vm3771 = vcmp.gt.f32.partialorder %v3721, 0.0
        %vm3772 = vcmp.gt.f32.partialorder %v3724, 0.0
        %vm3773 = vcmp.gt.f32.partialorder %v3729, 0.0
        %vm3774 = vcmp.gt.f32.partialorder %v3732, 0.0
        %vm3775 = vcmp.gt.f32.partialorder %v3737, 0.0
        %vm3776 = vcmp.gt.f32.partialorder %v3740, 0.0
        %vm3777 = vcmp.gt.f32.partialorder %v3745, 0.0
        %vm3778 = vcmp.gt.f32.partialorder %v3748, 0.0
        %vm3779 = vcmp.gt.f32.partialorder %v3753, 0.0
        %vm3780 = vcmp.gt.f32.partialorder %v3756, 0.0
        %vm3781 = vcmp.gt.f32.partialorder %v3761, 0.0
        %vm3782 = vcmp.gt.f32.partialorder %v3764, 0.0
        %v3783 = vmul.f32 %v3705, 0.02
        %v3784 = vmul.f32 %v3708, 0.02
        %v3785 = vmul.f32 %v3713, 0.02
        %v3786 = vmul.f32 %v3716, 0.02
        %v3787 = vmul.f32 %v3721, 0.02
        %v3788 = vmul.f32 %v3724, 0.02
        %v3789 = vmul.f32 %v3729, 0.02
        %v3790 = vmul.f32 %v3732, 0.02
        %v3791 = vmul.f32 %v3737, 0.02
        %v3792 = vmul.f32 %v3740, 0.02
        %v3793 = vmul.f32 %v3745, 0.02
        %v3794 = vmul.f32 %v3748, 0.02
        %v3795 = vmul.f32 %v3753, 0.02
        %v3796 = vmul.f32 %v3756, 0.02
        %v3797 = vmul.f32 %v3761, 0.02
        %v3798 = vmul.f32 %v3764, 0.02
        %v3799 = vsel %vm3767, %v3705, %v3783
        %v3800 = vsel %vm3768, %v3708, %v3784
        %v3801 = vsel %vm3769, %v3713, %v3785
        %v3802 = vsel %vm3770, %v3716, %v3786
        %v3803 = vsel %vm3771, %v3721, %v3787
        %v3804 = vsel %vm3772, %v3724, %v3788
        %v3805 = vsel %vm3773, %v3729, %v3789
        %v3806 = vsel %vm3774, %v3732, %v3790
        %v3807 = vsel %vm3775, %v3737, %v3791
        %v3808 = vsel %vm3776, %v3740, %v3792
        %v3809 = vsel %vm3777, %v3745, %v3793
        %v3810 = vsel %vm3778, %v3748, %v3794
        %v3811 = vsel %vm3779, %v3753, %v3795
        %v3812 = vsel %vm3780, %v3756, %v3796
        %v3813 = vsel %vm3781, %v3761, %v3797
        %v3814 = vsel %vm3782, %v3764, %v3798
        %3815 = vmax.xlane.f32.xlu0 %v3799
        %v3816 = vpop.xlane.xlu0 %3815
        %3817 = vmax.xlane.f32.xlu0 %v3800
        %v3818 = vpop.xlane.xlu0 %3817
        %3819 = vmax.xlane.f32.xlu0 %v3801
        %v3820 = vpop.xlane.xlu0 %3819
        %3821 = vmax.xlane.f32.xlu0 %v3802
        %v3822 = vpop.xlane.xlu0 %3821
        %3823 = vmax.xlane.f32.xlu0 %v3803
        %v3824 = vpop.xlane.xlu0 %3823
        %3825 = vmax.xlane.f32.xlu0 %v3804
        %v3826 = vpop.xlane.xlu0 %3825
        %3827 = vmax.xlane.f32.xlu0 %v3805
        %v3828 = vpop.xlane.xlu0 %3827
        %3829 = vmax.xlane.f32.xlu0 %v3806
        %v3830 = vpop.xlane.xlu0 %3829
        %3831 = vmax.xlane.f32.xlu0 %v3807
        %v3832 = vpop.xlane.xlu0 %3831
        %3833 = vmax.xlane.f32.xlu0 %v3808
        %v3834 = vpop.xlane.xlu0 %3833
        %3835 = vmax.xlane.f32.xlu0 %v3809
        %v3836 = vpop.xlane.xlu0 %3835
        %3837 = vmax.xlane.f32.xlu0 %v3810
        %v3838 = vpop.xlane.xlu0 %3837
        %3839 = vmax.xlane.f32.xlu0 %v3811
        %v3840 = vpop.xlane.xlu0 %3839
        %3841 = vmax.xlane.f32.xlu0 %v3812
        %v3842 = vpop.xlane.xlu0 %3841
        %3843 = vmax.xlane.f32.xlu0 %v3813
        %v3844 = vpop.xlane.xlu0 %3843
        %3845 = vmax.xlane.f32.xlu0 %v3814
        %v3846 = vpop.xlane.xlu0 %3845
        %vm3847 = vcmask 7168
        %v3848 = vsel %vm3847, %v1184, %v1560
        %v3849 = vsel %vm3847, %v1186, %v1562
        %v3850 = vsel %vm3847, %v1188, %v1564
        %v3851 = vsel %vm3847, %v1190, %v1566
        %v3852 = vsel %vm3847, %v1192, %v1568
        %v3853 = vsel %vm3847, %v1194, %v1570
        %v3854 = vsel %vm3847, %v1196, %v1572
        %v3855 = vsel %vm3847, %v1198, %v1574
        %v3856 = vsel %vm3847, %v1200, %v1576
        %v3857 = vsel %vm3847, %v1202, %v1578
        %v3858 = vsel %vm3847, %v1204, %v1580
        %v3859 = vsel %vm3847, %v1206, %v1582
        %v3860 = vsel %vm3847, %v1208, %v1584
        %v3861 = vsel %vm3847, %v1210, %v1586
        %v3862 = vsel %vm3847, %v1212, %v1588
        %v3863 = vsel %vm3847, %v1214, %v1590
        %vm3864 = vcmask 15360
        %v3865 = vsel %vm3864, %v3848, %v1936
        %v3866 = vsel %vm3864, %v3849, %v1938
        %v3867 = vsel %vm3864, %v3850, %v1940
        %v3868 = vsel %vm3864, %v3851, %v1942
        %v3869 = vsel %vm3864, %v3852, %v1944
        %v3870 = vsel %vm3864, %v3853, %v1946
        %v3871 = vsel %vm3864, %v3854, %v1948
        %v3872 = vsel %vm3864, %v3855, %v1950
        %v3873 = vsel %vm3864, %v3856, %v1952
        %v3874 = vsel %vm3864, %v3857, %v1954
        %v3875 = vsel %vm3864, %v3858, %v1956
        %v3876 = vsel %vm3864, %v3859, %v1958
        %v3877 = vsel %vm3864, %v3860, %v1960
        %v3878 = vsel %vm3864, %v3861, %v1962
        %v3879 = vsel %vm3864, %v3862, %v1964
        %v3880 = vsel %vm3864, %v3863, %v1966
        %vm3881 = vcmask 23552
        %v3882 = vsel %vm3881, %v3865, %v2312
        %v3883 = vsel %vm3881, %v3866, %v2314
        %v3884 = vsel %vm3881, %v3867, %v2316
        %v3885 = vsel %vm3881, %v3868, %v2318
        %v3886 = vsel %vm3881, %v3869, %v2320
        %v3887 = vsel %vm3881, %v3870, %v2322
        %v3888 = vsel %vm3881, %v3871, %v2324
        %v3889 = vsel %vm3881, %v3872, %v2326
        %v3890 = vsel %vm3881, %v3873, %v2328
        %v3891 = vsel %vm3881, %v3874, %v2330
        %v3892 = vsel %vm3881, %v3875, %v2332
        %v3893 = vsel %vm3881, %v3876, %v2334
        %v3894 = vsel %vm3881, %v3877, %v2336
        %v3895 = vsel %vm3881, %v3878, %v2338
        %v3896 = vsel %vm3881, %v3879, %v2340
        %v3897 = vsel %vm3881, %v3880, %v2342
        %vm3898 = vcmask 31744
        %v3899 = vsel %vm3898, %v3882, %v2688
        %v3900 = vsel %vm3898, %v3883, %v2690
        %v3901 = vsel %vm3898, %v3884, %v2692
        %v3902 = vsel %vm3898, %v3885, %v2694
        %v3903 = vsel %vm3898, %v3886, %v2696
        %v3904 = vsel %vm3898, %v3887, %v2698
        %v3905 = vsel %vm3898, %v3888, %v2700
        %v3906 = vsel %vm3898, %v3889, %v2702
        %v3907 = vsel %vm3898, %v3890, %v2704
        %v3908 = vsel %vm3898, %v3891, %v2706
        %v3909 = vsel %vm3898, %v3892, %v2708
        %v3910 = vsel %vm3898, %v3893, %v2710
        %v3911 = vsel %vm3898, %v3894, %v2712
        %v3912 = vsel %vm3898, %v3895, %v2714
        %v3913 = vsel %vm3898, %v3896, %v2716
        %v3914 = vsel %vm3898, %v3897, %v2718
        %vm3915 = vcmask 39936
        %v3916 = vsel %vm3915, %v3899, %v3064
        %v3917 = vsel %vm3915, %v3900, %v3066
        %v3918 = vsel %vm3915, %v3901, %v3068
        %v3919 = vsel %vm3915, %v3902, %v3070
        %v3920 = vsel %vm3915, %v3903, %v3072
        %v3921 = vsel %vm3915, %v3904, %v3074
        %v3922 = vsel %vm3915, %v3905, %v3076
        %v3923 = vsel %vm3915, %v3906, %v3078
        %v3924 = vsel %vm3915, %v3907, %v3080
        %v3925 = vsel %vm3915, %v3908, %v3082
        %v3926 = vsel %vm3915, %v3909, %v3084
        %v3927 = vsel %vm3915, %v3910, %v3086
        %v3928 = vsel %vm3915, %v3911, %v3088
        %v3929 = vsel %vm3915, %v3912, %v3090
        %v3930 = vsel %vm3915, %v3913, %v3092
        %v3931 = vsel %vm3915, %v3914, %v3094
        %vm3932 = vcmask 48128
        %v3933 = vsel %vm3932, %v3916, %v3440
        %v3934 = vsel %vm3932, %v3917, %v3442
        %v3935 = vsel %vm3932, %v3918, %v3444
        %v3936 = vsel %vm3932, %v3919, %v3446
        %v3937 = vsel %vm3932, %v3920, %v3448
        %v3938 = vsel %vm3932, %v3921, %v3450
        %v3939 = vsel %vm3932, %v3922, %v3452
        %v3940 = vsel %vm3932, %v3923, %v3454
        %v3941 = vsel %vm3932, %v3924, %v3456
        %v3942 = vsel %vm3932, %v3925, %v3458
        %v3943 = vsel %vm3932, %v3926, %v3460
        %v3944 = vsel %vm3932, %v3927, %v3462
        %v3945 = vsel %vm3932, %v3928, %v3464
        %v3946 = vsel %vm3932, %v3929, %v3466
        %v3947 = vsel %vm3932, %v3930, %v3468
        %v3948 = vsel %vm3932, %v3931, %v3470
        %vm3949 = vcmask 56320
        %v3950 = vsel %vm3949, %v3933, %v3816
        %v3951 = vsel %vm3949, %v3934, %v3818
        %v3952 = vsel %vm3949, %v3935, %v3820
        %v3953 = vsel %vm3949, %v3936, %v3822
        %v3954 = vsel %vm3949, %v3937, %v3824
        %v3955 = vsel %vm3949, %v3938, %v3826
        %v3956 = vsel %vm3949, %v3939, %v3828
        %v3957 = vsel %vm3949, %v3940, %v3830
        %v3958 = vsel %vm3949, %v3941, %v3832
        %v3959 = vsel %vm3949, %v3942, %v3834
        %v3960 = vsel %vm3949, %v3943, %v3836
        %v3961 = vsel %vm3949, %v3944, %v3838
        %v3962 = vsel %vm3949, %v3945, %v3840
        %v3963 = vsel %vm3949, %v3946, %v3842
        %v3964 = vsel %vm3949, %v3947, %v3844
        %v3965 = vsel %vm3949, %v3948, %v3846
        %p3966 = scmp.eq.s32.totalorder %s27, 0
        // Predicated region
        $region103: #{generator_forward.1} parent=97 // pred_check
          %p3967 = pneg %p3966
        $region104: #{generator_forward.1} parent=97 // pred_check_branch
          %3969 = sbr.rel (%p3967) target = $region106
        $region105: #{generator_forward.1} parent=97 // pred_region
          %vm3970 = vcmask 64512
          %3971 = vst.msk [vmem:[#allocation2] sm:$0xff] %vm3970, %v3950
          %3972 = vst.msk [vmem:[#allocation2 + $0x8] sm:$0xff] %vm3970, %v3951
          %3973 = vst.msk [vmem:[#allocation2 + $0x10] sm:$0xff] %vm3970, %v3952
          %3974 = vst.msk [vmem:[#allocation2 + $0x18] sm:$0xff] %vm3970, %v3953
          %3975 = vst.msk [vmem:[#allocation2 + $0x20] sm:$0xff] %vm3970, %v3954
          %3976 = vst.msk [vmem:[#allocation2 + $0x28] sm:$0xff] %vm3970, %v3955
          %3977 = vst.msk [vmem:[#allocation2 + $0x30] sm:$0xff] %vm3970, %v3956
          %3978 = vst.msk [vmem:[#allocation2 + $0x38] sm:$0xff] %vm3970, %v3957
          %3979 = vst.msk [vmem:[#allocation2 + $0x40] sm:$0xff] %vm3970, %v3958
          %3980 = vst.msk [vmem:[#allocation2 + $0x48] sm:$0xff] %vm3970, %v3959
          %3981 = vst.msk [vmem:[#allocation2 + $0x50] sm:$0xff] %vm3970, %v3960
          %3982 = vst.msk [vmem:[#allocation2 + $0x58] sm:$0xff] %vm3970, %v3961
          %3983 = vst.msk [vmem:[#allocation2 + $0x60] sm:$0xff] %vm3970, %v3962
          %3984 = vst.msk [vmem:[#allocation2 + $0x68] sm:$0xff] %vm3970, %v3963
          %3985 = vst.msk [vmem:[#allocation2 + $0x70] sm:$0xff] %vm3970, %v3964
          %3986 = vst.msk [vmem:[#allocation2 + $0x78] sm:$0xff] %vm3970, %v3965
        $region106: #{generator_forward.1} parent=97 // pred_fallthru
          _
        %p3987 = scmp.ne.s32.totalorder %s27, 0
        // Predicated region
        $region107: #{generator_forward.1} parent=97 // pred_check
          %p3988 = pneg %p3987
        $region108: #{generator_forward.1} parent=97 // pred_check_branch
          %3990 = sbr.rel (%p3988) target = $region110
        $region109: #{generator_forward.1} parent=97 // pred_region
          %v3991 = vld [vmem:[#allocation2] sm:$0xff]
          %v3992 = vld [vmem:[#allocation2 + $0x8] sm:$0xff]
          %v3993 = vld [vmem:[#allocation2 + $0x10] sm:$0xff]
          %v3994 = vld [vmem:[#allocation2 + $0x18] sm:$0xff]
          %v3995 = vld [vmem:[#allocation2 + $0x20] sm:$0xff]
          %v3996 = vld [vmem:[#allocation2 + $0x28] sm:$0xff]
          %v3997 = vld [vmem:[#allocation2 + $0x30] sm:$0xff]
          %v3998 = vld [vmem:[#allocation2 + $0x38] sm:$0xff]
          %v3999 = vld [vmem:[#allocation2 + $0x40] sm:$0xff]
          %v4000 = vld [vmem:[#allocation2 + $0x48] sm:$0xff]
          %v4001 = vld [vmem:[#allocation2 + $0x50] sm:$0xff]
          %v4002 = vld [vmem:[#allocation2 + $0x58] sm:$0xff]
          %v4003 = vld [vmem:[#allocation2 + $0x60] sm:$0xff]
          %v4004 = vld [vmem:[#allocation2 + $0x68] sm:$0xff]
          %v4005 = vld [vmem:[#allocation2 + $0x70] sm:$0xff]
          %v4006 = vld [vmem:[#allocation2 + $0x78] sm:$0xff]
          %v4007 = vmax.f32 %v3991, %v3950
          %v4008 = vmax.f32 %v3992, %v3951
          %v4009 = vmax.f32 %v3993, %v3952
          %v4010 = vmax.f32 %v3994, %v3953
          %v4011 = vmax.f32 %v3995, %v3954
          %v4012 = vmax.f32 %v3996, %v3955
          %v4013 = vmax.f32 %v3997, %v3956
          %v4014 = vmax.f32 %v3998, %v3957
          %v4015 = vmax.f32 %v3999, %v3958
          %v4016 = vmax.f32 %v4000, %v3959
          %v4017 = vmax.f32 %v4001, %v3960
          %v4018 = vmax.f32 %v4002, %v3961
          %v4019 = vmax.f32 %v4003, %v3962
          %v4020 = vmax.f32 %v4004, %v3963
          %v4021 = vmax.f32 %v4005, %v3964
          %v4022 = vmax.f32 %v4006, %v3965
          %vm4023 = vcmask 64512
          %4024 = vst.msk [vmem:[#allocation2] sm:$0xff] %vm4023, %v4007
          %4025 = vst.msk [vmem:[#allocation2 + $0x8] sm:$0xff] %vm4023, %v4008
          %4026 = vst.msk [vmem:[#allocation2 + $0x10] sm:$0xff] %vm4023, %v4009
          %4027 = vst.msk [vmem:[#allocation2 + $0x18] sm:$0xff] %vm4023, %v4010
          %4028 = vst.msk [vmem:[#allocation2 + $0x20] sm:$0xff] %vm4023, %v4011
          %4029 = vst.msk [vmem:[#allocation2 + $0x28] sm:$0xff] %vm4023, %v4012
          %4030 = vst.msk [vmem:[#allocation2 + $0x30] sm:$0xff] %vm4023, %v4013
          %4031 = vst.msk [vmem:[#allocation2 + $0x38] sm:$0xff] %vm4023, %v4014
          %4032 = vst.msk [vmem:[#allocation2 + $0x40] sm:$0xff] %vm4023, %v4015
          %4033 = vst.msk [vmem:[#allocation2 + $0x48] sm:$0xff] %vm4023, %v4016
          %4034 = vst.msk [vmem:[#allocation2 + $0x50] sm:$0xff] %vm4023, %v4017
          %4035 = vst.msk [vmem:[#allocation2 + $0x58] sm:$0xff] %vm4023, %v4018
          %4036 = vst.msk [vmem:[#allocation2 + $0x60] sm:$0xff] %vm4023, %v4019
          %4037 = vst.msk [vmem:[#allocation2 + $0x68] sm:$0xff] %vm4023, %v4020
          %4038 = vst.msk [vmem:[#allocation2 + $0x70] sm:$0xff] %vm4023, %v4021
          %4039 = vst.msk [vmem:[#allocation2 + $0x78] sm:$0xff] %vm4023, %v4022
        $region110: #{generator_forward.1} parent=97 // pred_fallthru
          _
        %p4040 = scmp.eq.s32.totalorder %s27, 1
        // Predicated region
        $region111: #{generator_forward.1} parent=97 // pred_check
          %p4041 = pneg %p4040
        $region112: #{generator_forward.1} parent=97 // pred_check_branch
          %4043 = sbr.rel (%p4041) target = $region114
        $region113: #{generator_forward.1} parent=97 // pred_region
          %v4044 = vld [vmem:[#allocation2] sm:$0xff]
          %v4045 = vld [vmem:[#allocation2 + $0x8] sm:$0xff]
          %v4046 = vld [vmem:[#allocation2 + $0x10] sm:$0xff]
          %v4047 = vld [vmem:[#allocation2 + $0x18] sm:$0xff]
          %v4048 = vld [vmem:[#allocation2 + $0x20] sm:$0xff]
          %v4049 = vld [vmem:[#allocation2 + $0x28] sm:$0xff]
          %v4050 = vld [vmem:[#allocation2 + $0x30] sm:$0xff]
          %v4051 = vld [vmem:[#allocation2 + $0x38] sm:$0xff]
          %v4052 = vld [vmem:[#allocation2 + $0x40] sm:$0xff]
          %v4053 = vld [vmem:[#allocation2 + $0x48] sm:$0xff]
          %v4054 = vld [vmem:[#allocation2 + $0x50] sm:$0xff]
          %v4055 = vld [vmem:[#allocation2 + $0x58] sm:$0xff]
          %v4056 = vld [vmem:[#allocation2 + $0x60] sm:$0xff]
          %v4057 = vld [vmem:[#allocation2 + $0x68] sm:$0xff]
          %v4058 = vld [vmem:[#allocation2 + $0x70] sm:$0xff]
          %v4059 = vld [vmem:[#allocation2 + $0x78] sm:$0xff]
          %4060 = vxpose.xlu0.b32.start [1/16] %v4044, 128
          %4061 = vxpose.xlu0.b32.cont [2/16] %v4045, 128
          %4062 = vxpose.xlu0.b32.cont [3/16] %v4046, 128
          %4063 = vxpose.xlu0.b32.cont [4/16] %v4047, 128
          %4064 = vxpose.xlu0.b32.cont [5/16] %v4048, 128
          %4065 = vxpose.xlu0.b32.cont [6/16] %v4049, 128
          %4066 = vxpose.xlu0.b32.cont [7/16] %v4050, 128
          %4067 = vxpose.xlu0.b32.cont [8/16] %v4051, 128
          %4068 = vxpose.xlu0.b32.cont [9/16] %v4052, 128
          %4069 = vxpose.xlu0.b32.cont [10/16] %v4053, 128
          %4070 = vxpose.xlu0.b32.cont [11/16] %v4054, 128
          %4071 = vxpose.xlu0.b32.cont [12/16] %v4055, 128
          %4072 = vxpose.xlu0.b32.cont [13/16] %v4056, 128
          %4073 = vxpose.xlu0.b32.cont [14/16] %v4057, 128
          %4074 = vxpose.xlu0.b32.cont [15/16] %v4058, 128
          %4075 = vxpose.xlu0.b32.end [16/16] %v4059, 128
          %v4076 = vpop.trf.xlu0
          %v4077 = vpop.trf.xlu0
          %v4078 = vpop.trf.xlu0
          %v4079 = vpop.trf.xlu0
          %v4080 = vpop.trf.xlu0
          %v4081 = vpop.trf.xlu0
          %v4082 = vpop.trf.xlu0
          %v4083 = vpop.trf.xlu0
          %v4084 = vpop.trf.xlu0
          %v4085 = vpop.trf.xlu0
          %v4086 = vpop.trf.xlu0
          %v4087 = vpop.trf.xlu0
          %v4088 = vpop.trf.xlu0
          %v4089 = vpop.trf.xlu0
          %v4090 = vpop.trf.xlu0
          %v4091 = vpop.trf.xlu0
          %v4092 = vpack.c.bf16 %v4076, %v4076
          %v4093 = vld [vmem:[%s7] sm:$0xff]
          %v4094 = vld [vmem:[%s7 + $0x8] sm:$0xff]
          %v4095 = vld [vmem:[%s7 + $0x10] sm:$0xff]
          %v4096 = vld [vmem:[%s7 + $0x18] sm:$0xff]
          %v4097 = vld [vmem:[%s7 + $0x20] sm:$0xff]
          %v4098 = vld [vmem:[%s7 + $0x28] sm:$0xff]
          %v4099 = vld [vmem:[%s7 + $0x30] sm:$0xff]
          %v4100 = vld [vmem:[%s7 + $0x38] sm:$0xff]
          %v4101 = vld [vmem:[%s7 + $0x40] sm:$0xff]
          %v4102 = vld [vmem:[%s7 + $0x48] sm:$0xff]
          %v4103 = vld [vmem:[%s7 + $0x50] sm:$0xff]
          %v4104 = vld [vmem:[%s7 + $0x58] sm:$0xff]
          %v4105 = vld [vmem:[%s7 + $0x60] sm:$0xff]
          %v4106 = vld [vmem:[%s7 + $0x68] sm:$0xff]
          %v4107 = vld [vmem:[%s7 + $0x70] sm:$0xff]
          %v4108 = vld [vmem:[%s7 + $0x78] sm:$0xff]
          %v4109 = vld [vmem:[%s8] sm:$0x3]
          %v4111 = vlaneseq
          %v4112 = vshrl.u32 %v4111, 7
          %v4113 = vsub.s32 0, %v4112
          %v4114 = vrot.slane %v4109, %v4113
          %v4115 = vlaneseq
          %v4116 = vshrl.u32 %v4115, 7
          %v4117 = vsub.s32 1, %v4116
          %v4118 = vrot.slane %v4109, %v4117
          %v4137 = vunpack.c.l.b16 %v4093
          %v4138 = vunpack.c.h.b16 %v4093
          %v4139 = vunpack.c.l.b16 %v4094
          %v4140 = vunpack.c.h.b16 %v4094
          %v4141 = vunpack.c.l.b16 %v4095
          %v4142 = vunpack.c.h.b16 %v4095
          %v4143 = vunpack.c.l.b16 %v4096
          %v4144 = vunpack.c.h.b16 %v4096
          %v4145 = vunpack.c.l.b16 %v4097
          %v4146 = vunpack.c.h.b16 %v4097
          %v4147 = vunpack.c.l.b16 %v4098
          %v4148 = vunpack.c.h.b16 %v4098
          %v4149 = vunpack.c.l.b16 %v4099
          %v4150 = vunpack.c.h.b16 %v4099
          %v4151 = vunpack.c.l.b16 %v4100
          %v4152 = vunpack.c.h.b16 %v4100
          %v4153 = vunpack.c.l.b16 %v4101
          %v4154 = vunpack.c.h.b16 %v4101
          %v4155 = vunpack.c.l.b16 %v4102
          %v4156 = vunpack.c.h.b16 %v4102
          %v4157 = vunpack.c.l.b16 %v4103
          %v4158 = vunpack.c.h.b16 %v4103
          %v4159 = vunpack.c.l.b16 %v4104
          %v4160 = vunpack.c.h.b16 %v4104
          %v4161 = vunpack.c.l.b16 %v4105
          %v4162 = vunpack.c.h.b16 %v4105
          %v4163 = vunpack.c.l.b16 %v4106
          %v4164 = vunpack.c.h.b16 %v4106
          %v4165 = vunpack.c.l.b16 %v4107
          %v4166 = vunpack.c.h.b16 %v4107
          %v4167 = vunpack.c.l.b16 %v4108
          %v4168 = vunpack.c.h.b16 %v4108
          %v4169 = vpack.c.b16 %v4139, %v4137
          %v4170 = vpack.c.b16 %v4140, %v4138
          %v4171 = vpack.c.b16 %v4143, %v4141
          %v4172 = vpack.c.b16 %v4144, %v4142
          %v4173 = vpack.c.b16 %v4147, %v4145
          %v4174 = vpack.c.b16 %v4148, %v4146
          %v4175 = vpack.c.b16 %v4151, %v4149
          %v4176 = vpack.c.b16 %v4152, %v4150
          %v4177 = vpack.c.b16 %v4155, %v4153
          %v4178 = vpack.c.b16 %v4156, %v4154
          %v4179 = vpack.c.b16 %v4159, %v4157
          %v4180 = vpack.c.b16 %v4160, %v4158
          %v4181 = vpack.c.b16 %v4163, %v4161
          %v4182 = vpack.c.b16 %v4164, %v4162
          %v4183 = vpack.c.b16 %v4167, %v4165
          %v4184 = vpack.c.b16 %v4168, %v4166
          %4201 = vmatprep.subr.bf16.mxu0 %v4170
          %4202 = vmatpush1.bf16.msra.mxu0 %v4169
          %4203 = vmatprep.subr.bf16.mxu0 %v4172
          %4204 = vmatpush1.bf16.msra.mxu0 %v4171
          %4205 = vmatprep.subr.bf16.mxu0 %v4174
          %4206 = vmatpush1.bf16.msra.mxu0 %v4173
          %4207 = vmatprep.subr.bf16.mxu0 %v4176
          %4208 = vmatpush1.bf16.msra.mxu0 %v4175
          %4209 = vmatprep.subr.bf16.mxu0 %v4178
          %4210 = vmatpush1.bf16.msra.mxu0 %v4177
          %4211 = vmatprep.subr.bf16.mxu0 %v4180
          %4212 = vmatpush1.bf16.msra.mxu0 %v4179
          %4213 = vmatprep.subr.bf16.mxu0 %v4182
          %4214 = vmatpush1.bf16.msra.mxu0 %v4181
          %4215 = vmatprep.subr.bf16.mxu0 %v4184
          %4216 = vmatpush1.bf16.msra.mxu0 %v4183
          %4217 = vmatprep.subr.bf16.mxu0 0
          %4218 = vmatpush1.bf16.msra.mxu0 0
          %4219 = vmatprep.subr.bf16.mxu0 0
          %4220 = vmatpush1.bf16.msra.mxu0 0
          %4221 = vmatprep.subr.bf16.mxu0 0
          %4222 = vmatpush1.bf16.msra.mxu0 0
          %4223 = vmatprep.subr.bf16.mxu0 0
          %4224 = vmatpush1.bf16.msra.mxu0 0
          %4225 = vmatprep.subr.bf16.mxu0 0
          %4226 = vmatpush1.bf16.msra.mxu0 0
          %4227 = vmatprep.subr.bf16.mxu0 0
          %4228 = vmatpush1.bf16.msra.mxu0 0
          %4229 = vmatprep.subr.bf16.mxu0 0
          %4230 = vmatpush1.bf16.msra.mxu0 0
          %4231 = vmatprep.subr.bf16.mxu0 0
          %4232 = vmatpush1.bf16.msra.mxu0 0
          %4233 = vmatprep.mubr.bf16.mxu0 0
          %4234 = vmatmul.mubr.bf16.gmra.mrb[0].mxu0 %v4092
          %v4235 = vpop.f32.mrb[0].mxu0
          %v4236 = vadd.f32 %v4114, %v4235
          %v4237 = vpop.f32.mrb[0].mxu0
          %v4238 = vadd.f32 %v4118, %v4237
          %v4239 = vpop.f32.mrb[0].mxu0
          %v4240 = vpop.f32.mrb[0].mxu0
          %4241 = vdwg.mxu0
          %vm4242 = vcmp.gt.f32.partialorder %v4236, 0.0
          %vm4243 = vcmp.gt.f32.partialorder %v4238, 0.0
          %v4244 = vmul.f32 %v4236, 0.02
          %v4245 = vmul.f32 %v4238, 0.02
          %v4246 = vsel %vm4242, %v4236, %v4244
          %v4247 = vsel %vm4243, %v4238, %v4245
          %v4248 = vpack.c.bf16 %v4246, %v4246
          %v4249 = vpack.c.bf16 %v4247, %v4247
          %v4250 = vld [vmem:[%s9] sm:$0xff]
          %v4251 = vld [vmem:[%s9 + $0x8] sm:$0xff]
          %v4252 = vld [vmem:[%s9 + $0x10] sm:$0xff]
          %v4253 = vld [vmem:[%s9 + $0x18] sm:$0xff]
          %v4254 = vld [vmem:[%s9 + $0x20] sm:$0xff]
          %v4255 = vld [vmem:[%s9 + $0x28] sm:$0xff]
          %v4256 = vld [vmem:[%s9 + $0x30] sm:$0xff]
          %v4257 = vld [vmem:[%s9 + $0x38] sm:$0xff]
          %v4258 = vld [vmem:[%s9 + $0x40] sm:$0xff]
          %v4259 = vld [vmem:[%s9 + $0x48] sm:$0xff]
          %v4260 = vld [vmem:[%s9 + $0x50] sm:$0xff]
          %v4261 = vld [vmem:[%s9 + $0x58] sm:$0xff]
          %v4262 = vld [vmem:[%s9 + $0x60] sm:$0xff]
          %v4263 = vld [vmem:[%s9 + $0x68] sm:$0xff]
          %v4264 = vld [vmem:[%s9 + $0x70] sm:$0xff]
          %v4265 = vld [vmem:[%s9 + $0x78] sm:$0xff]
          %v4266 = vld [vmem:[%s9 + $0x80] sm:$0xff]
          %v4267 = vld [vmem:[%s9 + $0x88] sm:$0xff]
          %v4268 = vld [vmem:[%s9 + $0x90] sm:$0xff]
          %v4269 = vld [vmem:[%s9 + $0x98] sm:$0xff]
          %v4270 = vld [vmem:[%s9 + $0xa0] sm:$0xff]
          %v4271 = vld [vmem:[%s9 + $0xa8] sm:$0xff]
          %v4272 = vld [vmem:[%s9 + $0xb0] sm:$0xff]
          %v4273 = vld [vmem:[%s9 + $0xb8] sm:$0xff]
          %v4274 = vld [vmem:[%s9 + $0xc0] sm:$0xff]
          %v4275 = vld [vmem:[%s9 + $0xc8] sm:$0xff]
          %v4276 = vld [vmem:[%s9 + $0xd0] sm:$0xff]
          %v4277 = vld [vmem:[%s9 + $0xd8] sm:$0xff]
          %v4278 = vld [vmem:[%s9 + $0xe0] sm:$0xff]
          %v4279 = vld [vmem:[%s9 + $0xe8] sm:$0xff]
          %v4280 = vld [vmem:[%s9 + $0xf0] sm:$0xff]
          %v4281 = vld [vmem:[%s9 + $0xf8] sm:$0xff]
          %v4282 = vld [vmem:[%s9 + $0x100] sm:$0xff]
          %v4283 = vld [vmem:[%s9 + $0x108] sm:$0xff]
          %v4284 = vld [vmem:[%s9 + $0x110] sm:$0xff]
          %v4285 = vld [vmem:[%s9 + $0x118] sm:$0xff]
          %v4286 = vld [vmem:[%s9 + $0x120] sm:$0xff]
          %v4287 = vld [vmem:[%s9 + $0x128] sm:$0xff]
          %v4288 = vld [vmem:[%s9 + $0x130] sm:$0xff]
          %v4289 = vld [vmem:[%s9 + $0x138] sm:$0xff]
          %v4290 = vld [vmem:[%s9 + $0x140] sm:$0xff]
          %v4291 = vld [vmem:[%s9 + $0x148] sm:$0xff]
          %v4292 = vld [vmem:[%s9 + $0x150] sm:$0xff]
          %v4293 = vld [vmem:[%s9 + $0x158] sm:$0xff]
          %v4294 = vld [vmem:[%s9 + $0x160] sm:$0xff]
          %v4295 = vld [vmem:[%s9 + $0x168] sm:$0xff]
          %v4296 = vld [vmem:[%s9 + $0x170] sm:$0xff]
          %v4297 = vld [vmem:[%s9 + $0x178] sm:$0xff]
          %v4298 = vld [vmem:[%s9 + $0x180] sm:$0xff]
          %v4299 = vld [vmem:[%s9 + $0x188] sm:$0xff]
          %v4300 = vld [vmem:[%s9 + $0x190] sm:$0xff]
          %v4301 = vld [vmem:[%s9 + $0x198] sm:$0xff]
          %v4302 = vld [vmem:[%s9 + $0x1a0] sm:$0xff]
          %v4303 = vld [vmem:[%s9 + $0x1a8] sm:$0xff]
          %v4304 = vld [vmem:[%s9 + $0x1b0] sm:$0xff]
          %v4305 = vld [vmem:[%s9 + $0x1b8] sm:$0xff]
          %v4306 = vld [vmem:[%s9 + $0x1c0] sm:$0xff]
          %v4307 = vld [vmem:[%s9 + $0x1c8] sm:$0xff]
          %v4308 = vld [vmem:[%s9 + $0x1d0] sm:$0xff]
          %v4309 = vld [vmem:[%s9 + $0x1d8] sm:$0xff]
          %v4310 = vld [vmem:[%s9 + $0x1e0] sm:$0xff]
          %v4311 = vld [vmem:[%s9 + $0x1e8] sm:$0xff]
          %v4312 = vld [vmem:[%s9 + $0x1f0] sm:$0xff]
          %v4313 = vld [vmem:[%s9 + $0x1f8] sm:$0xff]
          %v4314 = vld [vmem:[%s9 + $0x200] sm:$0xff]
          %v4315 = vld [vmem:[%s9 + $0x208] sm:$0xff]
          %v4316 = vld [vmem:[%s9 + $0x210] sm:$0xff]
          %v4317 = vld [vmem:[%s9 + $0x218] sm:$0xff]
          %v4318 = vld [vmem:[%s9 + $0x220] sm:$0xff]
          %v4319 = vld [vmem:[%s9 + $0x228] sm:$0xff]
          %v4320 = vld [vmem:[%s9 + $0x230] sm:$0xff]
          %v4321 = vld [vmem:[%s9 + $0x238] sm:$0xff]
          %v4322 = vld [vmem:[%s9 + $0x240] sm:$0xff]
          %v4323 = vld [vmem:[%s9 + $0x248] sm:$0xff]
          %v4324 = vld [vmem:[%s9 + $0x250] sm:$0xff]
          %v4325 = vld [vmem:[%s9 + $0x258] sm:$0xff]
          %v4326 = vld [vmem:[%s9 + $0x260] sm:$0xff]
          %v4327 = vld [vmem:[%s9 + $0x268] sm:$0xff]
          %v4328 = vld [vmem:[%s9 + $0x270] sm:$0xff]
          %v4329 = vld [vmem:[%s9 + $0x278] sm:$0xff]
          %v4330 = vld [vmem:[%s9 + $0x280] sm:$0xff]
          %v4331 = vld [vmem:[%s9 + $0x288] sm:$0xff]
          %v4332 = vld [vmem:[%s9 + $0x290] sm:$0xff]
          %v4333 = vld [vmem:[%s9 + $0x298] sm:$0xff]
          %v4334 = vld [vmem:[%s9 + $0x2a0] sm:$0xff]
          %v4335 = vld [vmem:[%s9 + $0x2a8] sm:$0xff]
          %v4336 = vld [vmem:[%s9 + $0x2b0] sm:$0xff]
          %v4337 = vld [vmem:[%s9 + $0x2b8] sm:$0xff]
          %v4338 = vld [vmem:[%s9 + $0x2c0] sm:$0xff]
          %v4339 = vld [vmem:[%s9 + $0x2c8] sm:$0xff]
          %v4340 = vld [vmem:[%s9 + $0x2d0] sm:$0xff]
          %v4341 = vld [vmem:[%s9 + $0x2d8] sm:$0xff]
          %v4342 = vld [vmem:[%s9 + $0x2e0] sm:$0xff]
          %v4343 = vld [vmem:[%s9 + $0x2e8] sm:$0xff]
          %v4344 = vld [vmem:[%s9 + $0x2f0] sm:$0xff]
          %v4345 = vld [vmem:[%s9 + $0x2f8] sm:$0xff]
          %v4346 = vld [vmem:[%s9 + $0x300] sm:$0xff]
          %v4347 = vld [vmem:[%s9 + $0x308] sm:$0xff]
          %v4348 = vld [vmem:[%s9 + $0x310] sm:$0xff]
          %v4349 = vld [vmem:[%s9 + $0x318] sm:$0xff]
          %v4350 = vld [vmem:[%s9 + $0x320] sm:$0xff]
          %v4351 = vld [vmem:[%s9 + $0x328] sm:$0xff]
          %v4352 = vld [vmem:[%s9 + $0x330] sm:$0xff]
          %v4353 = vld [vmem:[%s9 + $0x338] sm:$0xff]
          %v4354 = vld [vmem:[%s9 + $0x340] sm:$0xff]
          %v4355 = vld [vmem:[%s9 + $0x348] sm:$0xff]
          %v4356 = vld [vmem:[%s9 + $0x350] sm:$0xff]
          %v4357 = vld [vmem:[%s9 + $0x358] sm:$0xff]
          %v4358 = vld [vmem:[%s9 + $0x360] sm:$0xff]
          %v4359 = vld [vmem:[%s9 + $0x368] sm:$0xff]
          %v4360 = vld [vmem:[%s9 + $0x370] sm:$0xff]
          %v4361 = vld [vmem:[%s9 + $0x378] sm:$0xff]
          %v4362 = vld [vmem:[%s9 + $0x380] sm:$0xff]
          %v4363 = vld [vmem:[%s9 + $0x388] sm:$0xff]
          %v4364 = vld [vmem:[%s9 + $0x390] sm:$0xff]
          %v4365 = vld [vmem:[%s9 + $0x398] sm:$0xff]
          %v4366 = vld [vmem:[%s9 + $0x3a0] sm:$0xff]
          %v4367 = vld [vmem:[%s9 + $0x3a8] sm:$0xff]
          %v4368 = vld [vmem:[%s9 + $0x3b0] sm:$0xff]
          %v4369 = vld [vmem:[%s9 + $0x3b8] sm:$0xff]
          %v4370 = vld [vmem:[%s9 + $0x3c0] sm:$0xff]
          %v4371 = vld [vmem:[%s9 + $0x3c8] sm:$0xff]
          %v4372 = vld [vmem:[%s9 + $0x3d0] sm:$0xff]
          %v4373 = vld [vmem:[%s9 + $0x3d8] sm:$0xff]
          %v4374 = vld [vmem:[%s9 + $0x3e0] sm:$0xff]
          %v4375 = vld [vmem:[%s9 + $0x3e8] sm:$0xff]
          %v4376 = vld [vmem:[%s9 + $0x3f0] sm:$0xff]
          %v4377 = vld [vmem:[%s9 + $0x3f8] sm:$0xff]
          %v4378 = vld [vmem:[%s9 + $0x400] sm:$0xff]
          %v4379 = vld [vmem:[%s9 + $0x408] sm:$0xff]
          %v4380 = vld [vmem:[%s9 + $0x410] sm:$0xff]
          %v4381 = vld [vmem:[%s9 + $0x418] sm:$0xff]
          %v4382 = vld [vmem:[%s9 + $0x420] sm:$0xff]
          %v4383 = vld [vmem:[%s9 + $0x428] sm:$0xff]
          %v4384 = vld [vmem:[%s9 + $0x430] sm:$0xff]
          %v4385 = vld [vmem:[%s9 + $0x438] sm:$0xff]
          %v4386 = vld [vmem:[%s9 + $0x440] sm:$0xff]
          %v4387 = vld [vmem:[%s9 + $0x448] sm:$0xff]
          %v4388 = vld [vmem:[%s9 + $0x450] sm:$0xff]
          %v4389 = vld [vmem:[%s9 + $0x458] sm:$0xff]
          %v4390 = vld [vmem:[%s9 + $0x460] sm:$0xff]
          %v4391 = vld [vmem:[%s9 + $0x468] sm:$0xff]
          %v4392 = vld [vmem:[%s9 + $0x470] sm:$0xff]
          %v4393 = vld [vmem:[%s9 + $0x478] sm:$0xff]
          %v4394 = vld [vmem:[%s9 + $0x480] sm:$0xff]
          %v4395 = vld [vmem:[%s9 + $0x488] sm:$0xff]
          %v4396 = vld [vmem:[%s9 + $0x490] sm:$0xff]
          %v4397 = vld [vmem:[%s9 + $0x498] sm:$0xff]
          %v4398 = vld [vmem:[%s9 + $0x4a0] sm:$0xff]
          %v4399 = vld [vmem:[%s9 + $0x4a8] sm:$0xff]
          %v4400 = vld [vmem:[%s9 + $0x4b0] sm:$0xff]
          %v4401 = vld [vmem:[%s9 + $0x4b8] sm:$0xff]
          %v4402 = vld [vmem:[%s9 + $0x4c0] sm:$0xff]
          %v4403 = vld [vmem:[%s9 + $0x4c8] sm:$0xff]
          %v4404 = vld [vmem:[%s9 + $0x4d0] sm:$0xff]
          %v4405 = vld [vmem:[%s9 + $0x4d8] sm:$0xff]
          %v4406 = vld [vmem:[%s9 + $0x4e0] sm:$0xff]
          %v4407 = vld [vmem:[%s9 + $0x4e8] sm:$0xff]
          %v4408 = vld [vmem:[%s9 + $0x4f0] sm:$0xff]
          %v4409 = vld [vmem:[%s9 + $0x4f8] sm:$0xff]
          %v4410 = vld [vmem:[%s9 + $0x500] sm:$0xff]
          %v4411 = vld [vmem:[%s9 + $0x508] sm:$0xff]
          %v4412 = vld [vmem:[%s9 + $0x510] sm:$0xff]
          %v4413 = vld [vmem:[%s9 + $0x518] sm:$0xff]
          %v4414 = vld [vmem:[%s9 + $0x520] sm:$0xff]
          %v4415 = vld [vmem:[%s9 + $0x528] sm:$0xff]
          %v4416 = vld [vmem:[%s9 + $0x530] sm:$0xff]
          %v4417 = vld [vmem:[%s9 + $0x538] sm:$0xff]
          %v4418 = vld [vmem:[%s9 + $0x540] sm:$0xff]
          %v4419 = vld [vmem:[%s9 + $0x548] sm:$0xff]
          %v4420 = vld [vmem:[%s9 + $0x550] sm:$0xff]
          %v4421 = vld [vmem:[%s9 + $0x558] sm:$0xff]
          %v4422 = vld [vmem:[%s9 + $0x560] sm:$0xff]
          %v4423 = vld [vmem:[%s9 + $0x568] sm:$0xff]
          %v4424 = vld [vmem:[%s9 + $0x570] sm:$0xff]
          %v4425 = vld [vmem:[%s9 + $0x578] sm:$0xff]
          %v4426 = vld [vmem:[%s9 + $0x580] sm:$0xff]
          %v4427 = vld [vmem:[%s9 + $0x588] sm:$0xff]
          %v4428 = vld [vmem:[%s9 + $0x590] sm:$0xff]
          %v4429 = vld [vmem:[%s9 + $0x598] sm:$0xff]
          %v4430 = vld [vmem:[%s9 + $0x5a0] sm:$0xff]
          %v4431 = vld [vmem:[%s9 + $0x5a8] sm:$0xff]
          %v4432 = vld [vmem:[%s9 + $0x5b0] sm:$0xff]
          %v4433 = vld [vmem:[%s9 + $0x5b8] sm:$0xff]
          %v4434 = vld [vmem:[%s9 + $0x5c0] sm:$0xff]
          %v4435 = vld [vmem:[%s9 + $0x5c8] sm:$0xff]
          %v4436 = vld [vmem:[%s9 + $0x5d0] sm:$0xff]
          %v4437 = vld [vmem:[%s9 + $0x5d8] sm:$0xff]
          %v4438 = vld [vmem:[%s9 + $0x5e0] sm:$0xff]
          %v4439 = vld [vmem:[%s9 + $0x5e8] sm:$0xff]
          %v4440 = vld [vmem:[%s9 + $0x5f0] sm:$0xff]
          %v4441 = vld [vmem:[%s9 + $0x5f8] sm:$0xff]
          %v4442 = vld [vmem:[%s9 + $0x600] sm:$0xff]
          %v4443 = vld [vmem:[%s9 + $0x608] sm:$0xff]
          %v4444 = vld [vmem:[%s9 + $0x610] sm:$0xff]
          %v4445 = vld [vmem:[%s9 + $0x618] sm:$0xff]
          %v4446 = vld [vmem:[%s9 + $0x620] sm:$0xff]
          %v4447 = vld [vmem:[%s9 + $0x628] sm:$0xff]
          %v4448 = vld [vmem:[%s9 + $0x630] sm:$0xff]
          %v4449 = vld [vmem:[%s9 + $0x638] sm:$0xff]
          %v4450 = vld [vmem:[%s9 + $0x640] sm:$0xff]
          %v4451 = vld [vmem:[%s9 + $0x648] sm:$0xff]
          %v4452 = vld [vmem:[%s9 + $0x650] sm:$0xff]
          %v4453 = vld [vmem:[%s9 + $0x658] sm:$0xff]
          %v4454 = vld [vmem:[%s9 + $0x660] sm:$0xff]
          %v4455 = vld [vmem:[%s9 + $0x668] sm:$0xff]
          %v4456 = vld [vmem:[%s9 + $0x670] sm:$0xff]
          %v4457 = vld [vmem:[%s9 + $0x678] sm:$0xff]
          %v4458 = vld [vmem:[%s9 + $0x680] sm:$0xff]
          %v4459 = vld [vmem:[%s9 + $0x688] sm:$0xff]
          %v4460 = vld [vmem:[%s9 + $0x690] sm:$0xff]
          %v4461 = vld [vmem:[%s9 + $0x698] sm:$0xff]
          %v4462 = vld [vmem:[%s9 + $0x6a0] sm:$0xff]
          %v4463 = vld [vmem:[%s9 + $0x6a8] sm:$0xff]
          %v4464 = vld [vmem:[%s9 + $0x6b0] sm:$0xff]
          %v4465 = vld [vmem:[%s9 + $0x6b8] sm:$0xff]
          %v4466 = vld [vmem:[%s9 + $0x6c0] sm:$0xff]
          %v4467 = vld [vmem:[%s9 + $0x6c8] sm:$0xff]
          %v4468 = vld [vmem:[%s9 + $0x6d0] sm:$0xff]
          %v4469 = vld [vmem:[%s9 + $0x6d8] sm:$0xff]
          %v4470 = vld [vmem:[%s9 + $0x6e0] sm:$0xff]
          %v4471 = vld [vmem:[%s9 + $0x6e8] sm:$0xff]
          %v4472 = vld [vmem:[%s9 + $0x6f0] sm:$0xff]
          %v4473 = vld [vmem:[%s9 + $0x6f8] sm:$0xff]
          %v4474 = vld [vmem:[%s9 + $0x700] sm:$0xff]
          %v4475 = vld [vmem:[%s9 + $0x708] sm:$0xff]
          %v4476 = vld [vmem:[%s9 + $0x710] sm:$0xff]
          %v4477 = vld [vmem:[%s9 + $0x718] sm:$0xff]
          %v4478 = vld [vmem:[%s9 + $0x720] sm:$0xff]
          %v4479 = vld [vmem:[%s9 + $0x728] sm:$0xff]
          %v4480 = vld [vmem:[%s9 + $0x730] sm:$0xff]
          %v4481 = vld [vmem:[%s9 + $0x738] sm:$0xff]
          %v4482 = vld [vmem:[%s9 + $0x740] sm:$0xff]
          %v4483 = vld [vmem:[%s9 + $0x748] sm:$0xff]
          %v4484 = vld [vmem:[%s9 + $0x750] sm:$0xff]
          %v4485 = vld [vmem:[%s9 + $0x758] sm:$0xff]
          %v4486 = vld [vmem:[%s9 + $0x760] sm:$0xff]
          %v4487 = vld [vmem:[%s9 + $0x768] sm:$0xff]
          %v4488 = vld [vmem:[%s9 + $0x770] sm:$0xff]
          %v4489 = vld [vmem:[%s9 + $0x778] sm:$0xff]
          %v4490 = vld [vmem:[%s9 + $0x780] sm:$0xff]
          %v4491 = vld [vmem:[%s9 + $0x788] sm:$0xff]
          %v4492 = vld [vmem:[%s9 + $0x790] sm:$0xff]
          %v4493 = vld [vmem:[%s9 + $0x798] sm:$0xff]
          %v4494 = vld [vmem:[%s9 + $0x7a0] sm:$0xff]
          %v4495 = vld [vmem:[%s9 + $0x7a8] sm:$0xff]
          %v4496 = vld [vmem:[%s9 + $0x7b0] sm:$0xff]
          %v4497 = vld [vmem:[%s9 + $0x7b8] sm:$0xff]
          %v4498 = vld [vmem:[%s9 + $0x7c0] sm:$0xff]
          %v4499 = vld [vmem:[%s9 + $0x7c8] sm:$0xff]
          %v4500 = vld [vmem:[%s9 + $0x7d0] sm:$0xff]
          %v4501 = vld [vmem:[%s9 + $0x7d8] sm:$0xff]
          %v4502 = vld [vmem:[%s9 + $0x7e0] sm:$0xff]
          %v4503 = vld [vmem:[%s9 + $0x7e8] sm:$0xff]
          %v4504 = vld [vmem:[%s9 + $0x7f0] sm:$0xff]
          %v4505 = vld [vmem:[%s9 + $0x7f8] sm:$0xff]
          %v4506 = vld [vmem:[%s9 + $0x800] sm:$0xff]
          %v4507 = vld [vmem:[%s9 + $0x808] sm:$0xff]
          %v4508 = vld [vmem:[%s9 + $0x810] sm:$0xff]
          %v4509 = vld [vmem:[%s9 + $0x818] sm:$0xff]
          %v4510 = vld [vmem:[%s9 + $0x820] sm:$0xff]
          %v4511 = vld [vmem:[%s9 + $0x828] sm:$0xff]
          %v4512 = vld [vmem:[%s9 + $0x830] sm:$0xff]
          %v4513 = vld [vmem:[%s9 + $0x838] sm:$0xff]
          %v4514 = vld [vmem:[%s9 + $0x840] sm:$0xff]
          %v4515 = vld [vmem:[%s9 + $0x848] sm:$0xff]
          %v4516 = vld [vmem:[%s9 + $0x850] sm:$0xff]
          %v4517 = vld [vmem:[%s9 + $0x858] sm:$0xff]
          %v4518 = vld [vmem:[%s9 + $0x860] sm:$0xff]
          %v4519 = vld [vmem:[%s9 + $0x868] sm:$0xff]
          %v4520 = vld [vmem:[%s9 + $0x870] sm:$0xff]
          %v4521 = vld [vmem:[%s9 + $0x878] sm:$0xff]
          %v4522 = vld [vmem:[%s9 + $0x880] sm:$0xff]
          %v4523 = vld [vmem:[%s9 + $0x888] sm:$0xff]
          %v4524 = vld [vmem:[%s9 + $0x890] sm:$0xff]
          %v4525 = vld [vmem:[%s9 + $0x898] sm:$0xff]
          %v4526 = vld [vmem:[%s9 + $0x8a0] sm:$0xff]
          %v4527 = vld [vmem:[%s9 + $0x8a8] sm:$0xff]
          %v4528 = vld [vmem:[%s9 + $0x8b0] sm:$0xff]
          %v4529 = vld [vmem:[%s9 + $0x8b8] sm:$0xff]
          %v4530 = vld [vmem:[%s9 + $0x8c0] sm:$0xff]
          %v4531 = vld [vmem:[%s9 + $0x8c8] sm:$0xff]
          %v4532 = vld [vmem:[%s9 + $0x8d0] sm:$0xff]
          %v4533 = vld [vmem:[%s9 + $0x8d8] sm:$0xff]
          %v4534 = vld [vmem:[%s9 + $0x8e0] sm:$0xff]
          %v4535 = vld [vmem:[%s9 + $0x8e8] sm:$0xff]
          %v4536 = vld [vmem:[%s9 + $0x8f0] sm:$0xff]
          %v4537 = vld [vmem:[%s9 + $0x8f8] sm:$0xff]
          %v4538 = vld [vmem:[%s9 + $0x900] sm:$0xff]
          %v4539 = vld [vmem:[%s9 + $0x908] sm:$0xff]
          %v4540 = vld [vmem:[%s9 + $0x910] sm:$0xff]
          %v4541 = vld [vmem:[%s9 + $0x918] sm:$0xff]
          %v4542 = vld [vmem:[%s9 + $0x920] sm:$0xff]
          %v4543 = vld [vmem:[%s9 + $0x928] sm:$0xff]
          %v4544 = vld [vmem:[%s9 + $0x930] sm:$0xff]
          %v4545 = vld [vmem:[%s9 + $0x938] sm:$0xff]
          %v4546 = vld [vmem:[%s9 + $0x940] sm:$0xff]
          %v4547 = vld [vmem:[%s9 + $0x948] sm:$0xff]
          %v4548 = vld [vmem:[%s9 + $0x950] sm:$0xff]
          %v4549 = vld [vmem:[%s9 + $0x958] sm:$0xff]
          %v4550 = vld [vmem:[%s9 + $0x960] sm:$0xff]
          %v4551 = vld [vmem:[%s9 + $0x968] sm:$0xff]
          %v4552 = vld [vmem:[%s9 + $0x970] sm:$0xff]
          %v4553 = vld [vmem:[%s9 + $0x978] sm:$0xff]
          %v4554 = vld [vmem:[%s9 + $0x980] sm:$0xff]
          %v4555 = vld [vmem:[%s9 + $0x988] sm:$0xff]
          %v4556 = vld [vmem:[%s9 + $0x990] sm:$0xff]
          %v4557 = vld [vmem:[%s9 + $0x998] sm:$0xff]
          %v4558 = vld [vmem:[%s9 + $0x9a0] sm:$0xff]
          %v4559 = vld [vmem:[%s9 + $0x9a8] sm:$0xff]
          %v4560 = vld [vmem:[%s9 + $0x9b0] sm:$0xff]
          %v4561 = vld [vmem:[%s9 + $0x9b8] sm:$0xff]
          %v4562 = vld [vmem:[%s9 + $0x9c0] sm:$0xff]
          %v4563 = vld [vmem:[%s9 + $0x9c8] sm:$0xff]
          %v4564 = vld [vmem:[%s9 + $0x9d0] sm:$0xff]
          %v4565 = vld [vmem:[%s9 + $0x9d8] sm:$0xff]
          %v4566 = vld [vmem:[%s9 + $0x9e0] sm:$0xff]
          %v4567 = vld [vmem:[%s9 + $0x9e8] sm:$0xff]
          %v4568 = vld [vmem:[%s9 + $0x9f0] sm:$0xff]
          %v4569 = vld [vmem:[%s9 + $0x9f8] sm:$0xff]
          %v4570 = vld [vmem:[%s9 + $0xa00] sm:$0xff]
          %v4571 = vld [vmem:[%s9 + $0xa08] sm:$0xff]
          %v4572 = vld [vmem:[%s9 + $0xa10] sm:$0xff]
          %v4573 = vld [vmem:[%s9 + $0xa18] sm:$0xff]
          %v4574 = vld [vmem:[%s9 + $0xa20] sm:$0xff]
          %v4575 = vld [vmem:[%s9 + $0xa28] sm:$0xff]
          %v4576 = vld [vmem:[%s9 + $0xa30] sm:$0xff]
          %v4577 = vld [vmem:[%s9 + $0xa38] sm:$0xff]
          %v4578 = vld [vmem:[%s9 + $0xa40] sm:$0xff]
          %v4579 = vld [vmem:[%s9 + $0xa48] sm:$0xff]
          %v4580 = vld [vmem:[%s9 + $0xa50] sm:$0xff]
          %v4581 = vld [vmem:[%s9 + $0xa58] sm:$0xff]
          %v4582 = vld [vmem:[%s9 + $0xa60] sm:$0xff]
          %v4583 = vld [vmem:[%s9 + $0xa68] sm:$0xff]
          %v4584 = vld [vmem:[%s9 + $0xa70] sm:$0xff]
          %v4585 = vld [vmem:[%s9 + $0xa78] sm:$0xff]
          %v4586 = vld [vmem:[%s9 + $0xa80] sm:$0xff]
          %v4587 = vld [vmem:[%s9 + $0xa88] sm:$0xff]
          %v4588 = vld [vmem:[%s9 + $0xa90] sm:$0xff]
          %v4589 = vld [vmem:[%s9 + $0xa98] sm:$0xff]
          %v4590 = vld [vmem:[%s9 + $0xaa0] sm:$0xff]
          %v4591 = vld [vmem:[%s9 + $0xaa8] sm:$0xff]
          %v4592 = vld [vmem:[%s9 + $0xab0] sm:$0xff]
          %v4593 = vld [vmem:[%s9 + $0xab8] sm:$0xff]
          %v4594 = vld [vmem:[%s9 + $0xac0] sm:$0xff]
          %v4595 = vld [vmem:[%s9 + $0xac8] sm:$0xff]
          %v4596 = vld [vmem:[%s9 + $0xad0] sm:$0xff]
          %v4597 = vld [vmem:[%s9 + $0xad8] sm:$0xff]
          %v4598 = vld [vmem:[%s9 + $0xae0] sm:$0xff]
          %v4599 = vld [vmem:[%s9 + $0xae8] sm:$0xff]
          %v4600 = vld [vmem:[%s9 + $0xaf0] sm:$0xff]
          %v4601 = vld [vmem:[%s9 + $0xaf8] sm:$0xff]
          %v4602 = vld [vmem:[%s9 + $0xb00] sm:$0xff]
          %v4603 = vld [vmem:[%s9 + $0xb08] sm:$0xff]
          %v4604 = vld [vmem:[%s9 + $0xb10] sm:$0xff]
          %v4605 = vld [vmem:[%s9 + $0xb18] sm:$0xff]
          %v4606 = vld [vmem:[%s9 + $0xb20] sm:$0xff]
          %v4607 = vld [vmem:[%s9 + $0xb28] sm:$0xff]
          %v4608 = vld [vmem:[%s9 + $0xb30] sm:$0xff]
          %v4609 = vld [vmem:[%s9 + $0xb38] sm:$0xff]
          %v4610 = vld [vmem:[%s9 + $0xb40] sm:$0xff]
          %v4611 = vld [vmem:[%s9 + $0xb48] sm:$0xff]
          %v4612 = vld [vmem:[%s9 + $0xb50] sm:$0xff]
          %v4613 = vld [vmem:[%s9 + $0xb58] sm:$0xff]
          %v4614 = vld [vmem:[%s9 + $0xb60] sm:$0xff]
          %v4615 = vld [vmem:[%s9 + $0xb68] sm:$0xff]
          %v4616 = vld [vmem:[%s9 + $0xb70] sm:$0xff]
          %v4617 = vld [vmem:[%s9 + $0xb78] sm:$0xff]
          %v4618 = vld [vmem:[%s9 + $0xb80] sm:$0xff]
          %v4619 = vld [vmem:[%s9 + $0xb88] sm:$0xff]
          %v4620 = vld [vmem:[%s9 + $0xb90] sm:$0xff]
          %v4621 = vld [vmem:[%s9 + $0xb98] sm:$0xff]
          %v4622 = vld [vmem:[%s9 + $0xba0] sm:$0xff]
          %v4623 = vld [vmem:[%s9 + $0xba8] sm:$0xff]
          %v4624 = vld [vmem:[%s9 + $0xbb0] sm:$0xff]
          %v4625 = vld [vmem:[%s9 + $0xbb8] sm:$0xff]
          %v4626 = vld [vmem:[%s9 + $0xbc0] sm:$0xff]
          %v4627 = vld [vmem:[%s9 + $0xbc8] sm:$0xff]
          %v4628 = vld [vmem:[%s9 + $0xbd0] sm:$0xff]
          %v4629 = vld [vmem:[%s9 + $0xbd8] sm:$0xff]
          %v4630 = vld [vmem:[%s9 + $0xbe0] sm:$0xff]
          %v4631 = vld [vmem:[%s9 + $0xbe8] sm:$0xff]
          %v4632 = vld [vmem:[%s9 + $0xbf0] sm:$0xff]
          %v4633 = vld [vmem:[%s9 + $0xbf8] sm:$0xff]
          %v4634 = vld [vmem:[%s10] sm:$0xff]
          %v4635 = vld [vmem:[%s10 + $0x8] sm:$0xff]
          %v4636 = vld [vmem:[%s10 + $0x10] sm:$0xff]
          %v4640 = vlaneseq
          %v4641 = vshrl.u32 %v4640, 7
          %v4642 = vsub.s32 0, %v4641
          %v4643 = vrot.slane %v4634, %v4642
          %v4644 = vlaneseq
          %v4645 = vshrl.u32 %v4644, 7
          %v4646 = vsub.s32 1, %v4645
          %v4647 = vrot.slane %v4634, %v4646
          %v4648 = vlaneseq
          %v4649 = vshrl.u32 %v4648, 7
          %v4650 = vsub.s32 2, %v4649
          %v4651 = vrot.slane %v4634, %v4650
          %v4652 = vlaneseq
          %v4653 = vshrl.u32 %v4652, 7
          %v4654 = vsub.s32 3, %v4653
          %v4655 = vrot.slane %v4634, %v4654
          %v4656 = vlaneseq
          %v4657 = vshrl.u32 %v4656, 7
          %v4658 = vsub.s32 4, %v4657
          %v4659 = vrot.slane %v4634, %v4658
          %v4660 = vlaneseq
          %v4661 = vshrl.u32 %v4660, 7
          %v4662 = vsub.s32 5, %v4661
          %v4663 = vrot.slane %v4634, %v4662
          %v4664 = vlaneseq
          %v4665 = vshrl.u32 %v4664, 7
          %v4666 = vsub.s32 6, %v4665
          %v4667 = vrot.slane %v4634, %v4666
          %v4668 = vlaneseq
          %v4669 = vshrl.u32 %v4668, 7
          %v4670 = vsub.s32 7, %v4669
          %v4671 = vrot.slane %v4634, %v4670
          %v4672 = vlaneseq
          %v4673 = vshrl.u32 %v4672, 7
          %v4674 = vsub.s32 0, %v4673
          %v4675 = vrot.slane %v4635, %v4674
          %v4676 = vlaneseq
          %v4677 = vshrl.u32 %v4676, 7
          %v4678 = vsub.s32 1, %v4677
          %v4679 = vrot.slane %v4635, %v4678
          %v4680 = vlaneseq
          %v4681 = vshrl.u32 %v4680, 7
          %v4682 = vsub.s32 2, %v4681
          %v4683 = vrot.slane %v4635, %v4682
          %v4684 = vlaneseq
          %v4685 = vshrl.u32 %v4684, 7
          %v4686 = vsub.s32 3, %v4685
          %v4687 = vrot.slane %v4635, %v4686
          %v4688 = vlaneseq
          %v4689 = vshrl.u32 %v4688, 7
          %v4690 = vsub.s32 4, %v4689
          %v4691 = vrot.slane %v4635, %v4690
          %v4692 = vlaneseq
          %v4693 = vshrl.u32 %v4692, 7
          %v4694 = vsub.s32 5, %v4693
          %v4695 = vrot.slane %v4635, %v4694
          %v4696 = vlaneseq
          %v4697 = vshrl.u32 %v4696, 7
          %v4698 = vsub.s32 6, %v4697
          %v4699 = vrot.slane %v4635, %v4698
          %v4700 = vlaneseq
          %v4701 = vshrl.u32 %v4700, 7
          %v4702 = vsub.s32 7, %v4701
          %v4703 = vrot.slane %v4635, %v4702
          %v4704 = vlaneseq
          %v4705 = vshrl.u32 %v4704, 7
          %v4706 = vsub.s32 0, %v4705
          %v4707 = vrot.slane %v4636, %v4706
          %v4708 = vlaneseq
          %v4709 = vshrl.u32 %v4708, 7
          %v4710 = vsub.s32 1, %v4709
          %v4711 = vrot.slane %v4636, %v4710
          %v4712 = vlaneseq
          %v4713 = vshrl.u32 %v4712, 7
          %v4714 = vsub.s32 2, %v4713
          %v4715 = vrot.slane %v4636, %v4714
          %v4716 = vlaneseq
          %v4717 = vshrl.u32 %v4716, 7
          %v4718 = vsub.s32 3, %v4717
          %v4719 = vrot.slane %v4636, %v4718
          %v4720 = vlaneseq
          %v4721 = vshrl.u32 %v4720, 7
          %v4722 = vsub.s32 4, %v4721
          %v4723 = vrot.slane %v4636, %v4722
          %v4724 = vlaneseq
          %v4725 = vshrl.u32 %v4724, 7
          %v4726 = vsub.s32 5, %v4725
          %v4727 = vrot.slane %v4636, %v4726
          %v4728 = vlaneseq
          %v4729 = vshrl.u32 %v4728, 7
          %v4730 = vsub.s32 6, %v4729
          %v4731 = vrot.slane %v4636, %v4730
          %v4732 = vlaneseq
          %v4733 = vshrl.u32 %v4732, 7
          %v4734 = vsub.s32 7, %v4733
          %v4735 = vrot.slane %v4636, %v4734
          %v5144 = vunpack.c.l.b16 %v4250
          %v5145 = vunpack.c.h.b16 %v4250
          %v5146 = vunpack.c.l.b16 %v4251
          %v5147 = vunpack.c.h.b16 %v4251
          %v5148 = vunpack.c.l.b16 %v4252
          %v5149 = vunpack.c.h.b16 %v4252
          %v5150 = vunpack.c.l.b16 %v4253
          %v5151 = vunpack.c.h.b16 %v4253
          %v5152 = vunpack.c.l.b16 %v4254
          %v5153 = vunpack.c.h.b16 %v4254
          %v5154 = vunpack.c.l.b16 %v4255
          %v5155 = vunpack.c.h.b16 %v4255
          %v5156 = vunpack.c.l.b16 %v4256
          %v5157 = vunpack.c.h.b16 %v4256
          %v5158 = vunpack.c.l.b16 %v4257
          %v5159 = vunpack.c.h.b16 %v4257
          %v5160 = vunpack.c.l.b16 %v4258
          %v5161 = vunpack.c.h.b16 %v4258
          %v5162 = vunpack.c.l.b16 %v4259
          %v5163 = vunpack.c.h.b16 %v4259
          %v5164 = vunpack.c.l.b16 %v4260
          %v5165 = vunpack.c.h.b16 %v4260
          %v5166 = vunpack.c.l.b16 %v4261
          %v5167 = vunpack.c.h.b16 %v4261
          %v5168 = vunpack.c.l.b16 %v4262
          %v5169 = vunpack.c.h.b16 %v4262
          %v5170 = vunpack.c.l.b16 %v4263
          %v5171 = vunpack.c.h.b16 %v4263
          %v5172 = vunpack.c.l.b16 %v4264
          %v5173 = vunpack.c.h.b16 %v4264
          %v5174 = vunpack.c.l.b16 %v4265
          %v5175 = vunpack.c.h.b16 %v4265
          %v5176 = vunpack.c.l.b16 %v4266
          %v5177 = vunpack.c.h.b16 %v4266
          %v5178 = vunpack.c.l.b16 %v4267
          %v5179 = vunpack.c.h.b16 %v4267
          %v5180 = vunpack.c.l.b16 %v4268
          %v5181 = vunpack.c.h.b16 %v4268
          %v5182 = vunpack.c.l.b16 %v4269
          %v5183 = vunpack.c.h.b16 %v4269
          %v5184 = vunpack.c.l.b16 %v4270
          %v5185 = vunpack.c.h.b16 %v4270
          %v5186 = vunpack.c.l.b16 %v4271
          %v5187 = vunpack.c.h.b16 %v4271
          %v5188 = vunpack.c.l.b16 %v4272
          %v5189 = vunpack.c.h.b16 %v4272
          %v5190 = vunpack.c.l.b16 %v4273
          %v5191 = vunpack.c.h.b16 %v4273
          %v5192 = vunpack.c.l.b16 %v4274
          %v5193 = vunpack.c.h.b16 %v4274
          %v5194 = vunpack.c.l.b16 %v4275
          %v5195 = vunpack.c.h.b16 %v4275
          %v5196 = vunpack.c.l.b16 %v4276
          %v5197 = vunpack.c.h.b16 %v4276
          %v5198 = vunpack.c.l.b16 %v4277
          %v5199 = vunpack.c.h.b16 %v4277
          %v5200 = vunpack.c.l.b16 %v4278
          %v5201 = vunpack.c.h.b16 %v4278
          %v5202 = vunpack.c.l.b16 %v4279
          %v5203 = vunpack.c.h.b16 %v4279
          %v5204 = vunpack.c.l.b16 %v4280
          %v5205 = vunpack.c.h.b16 %v4280
          %v5206 = vunpack.c.l.b16 %v4281
          %v5207 = vunpack.c.h.b16 %v4281
          %v5208 = vunpack.c.l.b16 %v4282
          %v5209 = vunpack.c.h.b16 %v4282
          %v5210 = vunpack.c.l.b16 %v4283
          %v5211 = vunpack.c.h.b16 %v4283
          %v5212 = vunpack.c.l.b16 %v4284
          %v5213 = vunpack.c.h.b16 %v4284
          %v5214 = vunpack.c.l.b16 %v4285
          %v5215 = vunpack.c.h.b16 %v4285
          %v5216 = vunpack.c.l.b16 %v4286
          %v5217 = vunpack.c.h.b16 %v4286
          %v5218 = vunpack.c.l.b16 %v4287
          %v5219 = vunpack.c.h.b16 %v4287
          %v5220 = vunpack.c.l.b16 %v4288
          %v5221 = vunpack.c.h.b16 %v4288
          %v5222 = vunpack.c.l.b16 %v4289
          %v5223 = vunpack.c.h.b16 %v4289
          %v5224 = vunpack.c.l.b16 %v4290
          %v5225 = vunpack.c.h.b16 %v4290
          %v5226 = vunpack.c.l.b16 %v4291
          %v5227 = vunpack.c.h.b16 %v4291
          %v5228 = vunpack.c.l.b16 %v4292
          %v5229 = vunpack.c.h.b16 %v4292
          %v5230 = vunpack.c.l.b16 %v4293
          %v5231 = vunpack.c.h.b16 %v4293
          %v5232 = vunpack.c.l.b16 %v4294
          %v5233 = vunpack.c.h.b16 %v4294
          %v5234 = vunpack.c.l.b16 %v4295
          %v5235 = vunpack.c.h.b16 %v4295
          %v5236 = vunpack.c.l.b16 %v4296
          %v5237 = vunpack.c.h.b16 %v4296
          %v5238 = vunpack.c.l.b16 %v4297
          %v5239 = vunpack.c.h.b16 %v4297
          %v5240 = vunpack.c.l.b16 %v4298
          %v5241 = vunpack.c.h.b16 %v4298
          %v5242 = vunpack.c.l.b16 %v4299
          %v5243 = vunpack.c.h.b16 %v4299
          %v5244 = vunpack.c.l.b16 %v4300
          %v5245 = vunpack.c.h.b16 %v4300
          %v5246 = vunpack.c.l.b16 %v4301
          %v5247 = vunpack.c.h.b16 %v4301
          %v5248 = vunpack.c.l.b16 %v4302
          %v5249 = vunpack.c.h.b16 %v4302
          %v5250 = vunpack.c.l.b16 %v4303
          %v5251 = vunpack.c.h.b16 %v4303
          %v5252 = vunpack.c.l.b16 %v4304
          %v5253 = vunpack.c.h.b16 %v4304
          %v5254 = vunpack.c.l.b16 %v4305
          %v5255 = vunpack.c.h.b16 %v4305
          %v5256 = vunpack.c.l.b16 %v4306
          %v5257 = vunpack.c.h.b16 %v4306
          %v5258 = vunpack.c.l.b16 %v4307
          %v5259 = vunpack.c.h.b16 %v4307
          %v5260 = vunpack.c.l.b16 %v4308
          %v5261 = vunpack.c.h.b16 %v4308
          %v5262 = vunpack.c.l.b16 %v4309
          %v5263 = vunpack.c.h.b16 %v4309
          %v5264 = vunpack.c.l.b16 %v4310
          %v5265 = vunpack.c.h.b16 %v4310
          %v5266 = vunpack.c.l.b16 %v4311
          %v5267 = vunpack.c.h.b16 %v4311
          %v5268 = vunpack.c.l.b16 %v4312
          %v5269 = vunpack.c.h.b16 %v4312
          %v5270 = vunpack.c.l.b16 %v4313
          %v5271 = vunpack.c.h.b16 %v4313
          %v5272 = vunpack.c.l.b16 %v4314
          %v5273 = vunpack.c.h.b16 %v4314
          %v5274 = vunpack.c.l.b16 %v4315
          %v5275 = vunpack.c.h.b16 %v4315
          %v5276 = vunpack.c.l.b16 %v4316
          %v5277 = vunpack.c.h.b16 %v4316
          %v5278 = vunpack.c.l.b16 %v4317
          %v5279 = vunpack.c.h.b16 %v4317
          %v5280 = vunpack.c.l.b16 %v4318
          %v5281 = vunpack.c.h.b16 %v4318
          %v5282 = vunpack.c.l.b16 %v4319
          %v5283 = vunpack.c.h.b16 %v4319
          %v5284 = vunpack.c.l.b16 %v4320
          %v5285 = vunpack.c.h.b16 %v4320
          %v5286 = vunpack.c.l.b16 %v4321
          %v5287 = vunpack.c.h.b16 %v4321
          %v5288 = vunpack.c.l.b16 %v4322
          %v5289 = vunpack.c.h.b16 %v4322
          %v5290 = vunpack.c.l.b16 %v4323
          %v5291 = vunpack.c.h.b16 %v4323
          %v5292 = vunpack.c.l.b16 %v4324
          %v5293 = vunpack.c.h.b16 %v4324
          %v5294 = vunpack.c.l.b16 %v4325
          %v5295 = vunpack.c.h.b16 %v4325
          %v5296 = vunpack.c.l.b16 %v4326
          %v5297 = vunpack.c.h.b16 %v4326
          %v5298 = vunpack.c.l.b16 %v4327
          %v5299 = vunpack.c.h.b16 %v4327
          %v5300 = vunpack.c.l.b16 %v4328
          %v5301 = vunpack.c.h.b16 %v4328
          %v5302 = vunpack.c.l.b16 %v4329
          %v5303 = vunpack.c.h.b16 %v4329
          %v5304 = vunpack.c.l.b16 %v4330
          %v5305 = vunpack.c.h.b16 %v4330
          %v5306 = vunpack.c.l.b16 %v4331
          %v5307 = vunpack.c.h.b16 %v4331
          %v5308 = vunpack.c.l.b16 %v4332
          %v5309 = vunpack.c.h.b16 %v4332
          %v5310 = vunpack.c.l.b16 %v4333
          %v5311 = vunpack.c.h.b16 %v4333
          %v5312 = vunpack.c.l.b16 %v4334
          %v5313 = vunpack.c.h.b16 %v4334
          %v5314 = vunpack.c.l.b16 %v4335
          %v5315 = vunpack.c.h.b16 %v4335
          %v5316 = vunpack.c.l.b16 %v4336
          %v5317 = vunpack.c.h.b16 %v4336
          %v5318 = vunpack.c.l.b16 %v4337
          %v5319 = vunpack.c.h.b16 %v4337
          %v5320 = vunpack.c.l.b16 %v4338
          %v5321 = vunpack.c.h.b16 %v4338
          %v5322 = vunpack.c.l.b16 %v4339
          %v5323 = vunpack.c.h.b16 %v4339
          %v5324 = vunpack.c.l.b16 %v4340
          %v5325 = vunpack.c.h.b16 %v4340
          %v5326 = vunpack.c.l.b16 %v4341
          %v5327 = vunpack.c.h.b16 %v4341
          %v5328 = vunpack.c.l.b16 %v4342
          %v5329 = vunpack.c.h.b16 %v4342
          %v5330 = vunpack.c.l.b16 %v4343
          %v5331 = vunpack.c.h.b16 %v4343
          %v5332 = vunpack.c.l.b16 %v4344
          %v5333 = vunpack.c.h.b16 %v4344
          %v5334 = vunpack.c.l.b16 %v4345
          %v5335 = vunpack.c.h.b16 %v4345
          %v5336 = vunpack.c.l.b16 %v4346
          %v5337 = vunpack.c.h.b16 %v4346
          %v5338 = vunpack.c.l.b16 %v4347
          %v5339 = vunpack.c.h.b16 %v4347
          %v5340 = vunpack.c.l.b16 %v4348
          %v5341 = vunpack.c.h.b16 %v4348
          %v5342 = vunpack.c.l.b16 %v4349
          %v5343 = vunpack.c.h.b16 %v4349
          %v5344 = vunpack.c.l.b16 %v4350
          %v5345 = vunpack.c.h.b16 %v4350
          %v5346 = vunpack.c.l.b16 %v4351
          %v5347 = vunpack.c.h.b16 %v4351
          %v5348 = vunpack.c.l.b16 %v4352
          %v5349 = vunpack.c.h.b16 %v4352
          %v5350 = vunpack.c.l.b16 %v4353
          %v5351 = vunpack.c.h.b16 %v4353
          %v5352 = vunpack.c.l.b16 %v4354
          %v5353 = vunpack.c.h.b16 %v4354
          %v5354 = vunpack.c.l.b16 %v4355
          %v5355 = vunpack.c.h.b16 %v4355
          %v5356 = vunpack.c.l.b16 %v4356
          %v5357 = vunpack.c.h.b16 %v4356
          %v5358 = vunpack.c.l.b16 %v4357
          %v5359 = vunpack.c.h.b16 %v4357
          %v5360 = vunpack.c.l.b16 %v4358
          %v5361 = vunpack.c.h.b16 %v4358
          %v5362 = vunpack.c.l.b16 %v4359
          %v5363 = vunpack.c.h.b16 %v4359
          %v5364 = vunpack.c.l.b16 %v4360
          %v5365 = vunpack.c.h.b16 %v4360
          %v5366 = vunpack.c.l.b16 %v4361
          %v5367 = vunpack.c.h.b16 %v4361
          %v5368 = vunpack.c.l.b16 %v4362
          %v5369 = vunpack.c.h.b16 %v4362
          %v5370 = vunpack.c.l.b16 %v4363
          %v5371 = vunpack.c.h.b16 %v4363
          %v5372 = vunpack.c.l.b16 %v4364
          %v5373 = vunpack.c.h.b16 %v4364
          %v5374 = vunpack.c.l.b16 %v4365
          %v5375 = vunpack.c.h.b16 %v4365
          %v5376 = vunpack.c.l.b16 %v4366
          %v5377 = vunpack.c.h.b16 %v4366
          %v5378 = vunpack.c.l.b16 %v4367
          %v5379 = vunpack.c.h.b16 %v4367
          %v5380 = vunpack.c.l.b16 %v4368
          %v5381 = vunpack.c.h.b16 %v4368
          %v5382 = vunpack.c.l.b16 %v4369
          %v5383 = vunpack.c.h.b16 %v4369
          %v5384 = vunpack.c.l.b16 %v4370
          %v5385 = vunpack.c.h.b16 %v4370
          %v5386 = vunpack.c.l.b16 %v4371
          %v5387 = vunpack.c.h.b16 %v4371
          %v5388 = vunpack.c.l.b16 %v4372
          %v5389 = vunpack.c.h.b16 %v4372
          %v5390 = vunpack.c.l.b16 %v4373
          %v5391 = vunpack.c.h.b16 %v4373
          %v5392 = vunpack.c.l.b16 %v4374
          %v5393 = vunpack.c.h.b16 %v4374
          %v5394 = vunpack.c.l.b16 %v4375
          %v5395 = vunpack.c.h.b16 %v4375
          %v5396 = vunpack.c.l.b16 %v4376
          %v5397 = vunpack.c.h.b16 %v4376
          %v5398 = vunpack.c.l.b16 %v4377
          %v5399 = vunpack.c.h.b16 %v4377
          %v5400 = vunpack.c.l.b16 %v4378
          %v5401 = vunpack.c.h.b16 %v4378
          %v5402 = vunpack.c.l.b16 %v4379
          %v5403 = vunpack.c.h.b16 %v4379
          %v5404 = vunpack.c.l.b16 %v4380
          %v5405 = vunpack.c.h.b16 %v4380
          %v5406 = vunpack.c.l.b16 %v4381
          %v5407 = vunpack.c.h.b16 %v4381
          %v5408 = vunpack.c.l.b16 %v4382
          %v5409 = vunpack.c.h.b16 %v4382
          %v5410 = vunpack.c.l.b16 %v4383
          %v5411 = vunpack.c.h.b16 %v4383
          %v5412 = vunpack.c.l.b16 %v4384
          %v5413 = vunpack.c.h.b16 %v4384
          %v5414 = vunpack.c.l.b16 %v4385
          %v5415 = vunpack.c.h.b16 %v4385
          %v5416 = vunpack.c.l.b16 %v4386
          %v5417 = vunpack.c.h.b16 %v4386
          %v5418 = vunpack.c.l.b16 %v4387
          %v5419 = vunpack.c.h.b16 %v4387
          %v5420 = vunpack.c.l.b16 %v4388
          %v5421 = vunpack.c.h.b16 %v4388
          %v5422 = vunpack.c.l.b16 %v4389
          %v5423 = vunpack.c.h.b16 %v4389
          %v5424 = vunpack.c.l.b16 %v4390
          %v5425 = vunpack.c.h.b16 %v4390
          %v5426 = vunpack.c.l.b16 %v4391
          %v5427 = vunpack.c.h.b16 %v4391
          %v5428 = vunpack.c.l.b16 %v4392
          %v5429 = vunpack.c.h.b16 %v4392
          %v5430 = vunpack.c.l.b16 %v4393
          %v5431 = vunpack.c.h.b16 %v4393
          %v5432 = vunpack.c.l.b16 %v4394
          %v5433 = vunpack.c.h.b16 %v4394
          %v5434 = vunpack.c.l.b16 %v4395
          %v5435 = vunpack.c.h.b16 %v4395
          %v5436 = vunpack.c.l.b16 %v4396
          %v5437 = vunpack.c.h.b16 %v4396
          %v5438 = vunpack.c.l.b16 %v4397
          %v5439 = vunpack.c.h.b16 %v4397
          %v5440 = vunpack.c.l.b16 %v4398
          %v5441 = vunpack.c.h.b16 %v4398
          %v5442 = vunpack.c.l.b16 %v4399
          %v5443 = vunpack.c.h.b16 %v4399
          %v5444 = vunpack.c.l.b16 %v4400
          %v5445 = vunpack.c.h.b16 %v4400
          %v5446 = vunpack.c.l.b16 %v4401
          %v5447 = vunpack.c.h.b16 %v4401
          %v5448 = vunpack.c.l.b16 %v4402
          %v5449 = vunpack.c.h.b16 %v4402
          %v5450 = vunpack.c.l.b16 %v4403
          %v5451 = vunpack.c.h.b16 %v4403
          %v5452 = vunpack.c.l.b16 %v4404
          %v5453 = vunpack.c.h.b16 %v4404
          %v5454 = vunpack.c.l.b16 %v4405
          %v5455 = vunpack.c.h.b16 %v4405
          %v5456 = vunpack.c.l.b16 %v4406
          %v5457 = vunpack.c.h.b16 %v4406
          %v5458 = vunpack.c.l.b16 %v4407
          %v5459 = vunpack.c.h.b16 %v4407
          %v5460 = vunpack.c.l.b16 %v4408
          %v5461 = vunpack.c.h.b16 %v4408
          %v5462 = vunpack.c.l.b16 %v4409
          %v5463 = vunpack.c.h.b16 %v4409
          %v5464 = vunpack.c.l.b16 %v4410
          %v5465 = vunpack.c.h.b16 %v4410
          %v5466 = vunpack.c.l.b16 %v4411
          %v5467 = vunpack.c.h.b16 %v4411
          %v5468 = vunpack.c.l.b16 %v4412
          %v5469 = vunpack.c.h.b16 %v4412
          %v5470 = vunpack.c.l.b16 %v4413
          %v5471 = vunpack.c.h.b16 %v4413
          %v5472 = vunpack.c.l.b16 %v4414
          %v5473 = vunpack.c.h.b16 %v4414
          %v5474 = vunpack.c.l.b16 %v4415
          %v5475 = vunpack.c.h.b16 %v4415
          %v5476 = vunpack.c.l.b16 %v4416
          %v5477 = vunpack.c.h.b16 %v4416
          %v5478 = vunpack.c.l.b16 %v4417
          %v5479 = vunpack.c.h.b16 %v4417
          %v5480 = vunpack.c.l.b16 %v4418
          %v5481 = vunpack.c.h.b16 %v4418
          %v5482 = vunpack.c.l.b16 %v4419
          %v5483 = vunpack.c.h.b16 %v4419
          %v5484 = vunpack.c.l.b16 %v4420
          %v5485 = vunpack.c.h.b16 %v4420
          %v5486 = vunpack.c.l.b16 %v4421
          %v5487 = vunpack.c.h.b16 %v4421
          %v5488 = vunpack.c.l.b16 %v4422
          %v5489 = vunpack.c.h.b16 %v4422
          %v5490 = vunpack.c.l.b16 %v4423
          %v5491 = vunpack.c.h.b16 %v4423
          %v5492 = vunpack.c.l.b16 %v4424
          %v5493 = vunpack.c.h.b16 %v4424
          %v5494 = vunpack.c.l.b16 %v4425
          %v5495 = vunpack.c.h.b16 %v4425
          %v5496 = vunpack.c.l.b16 %v4426
          %v5497 = vunpack.c.h.b16 %v4426
          %v5498 = vunpack.c.l.b16 %v4427
          %v5499 = vunpack.c.h.b16 %v4427
          %v5500 = vunpack.c.l.b16 %v4428
          %v5501 = vunpack.c.h.b16 %v4428
          %v5502 = vunpack.c.l.b16 %v4429
          %v5503 = vunpack.c.h.b16 %v4429
          %v5504 = vunpack.c.l.b16 %v4430
          %v5505 = vunpack.c.h.b16 %v4430
          %v5506 = vunpack.c.l.b16 %v4431
          %v5507 = vunpack.c.h.b16 %v4431
          %v5508 = vunpack.c.l.b16 %v4432
          %v5509 = vunpack.c.h.b16 %v4432
          %v5510 = vunpack.c.l.b16 %v4433
          %v5511 = vunpack.c.h.b16 %v4433
          %v5512 = vunpack.c.l.b16 %v4434
          %v5513 = vunpack.c.h.b16 %v4434
          %v5514 = vunpack.c.l.b16 %v4435
          %v5515 = vunpack.c.h.b16 %v4435
          %v5516 = vunpack.c.l.b16 %v4436
          %v5517 = vunpack.c.h.b16 %v4436
          %v5518 = vunpack.c.l.b16 %v4437
          %v5519 = vunpack.c.h.b16 %v4437
          %v5520 = vunpack.c.l.b16 %v4438
          %v5521 = vunpack.c.h.b16 %v4438
          %v5522 = vunpack.c.l.b16 %v4439
          %v5523 = vunpack.c.h.b16 %v4439
          %v5524 = vunpack.c.l.b16 %v4440
          %v5525 = vunpack.c.h.b16 %v4440
          %v5526 = vunpack.c.l.b16 %v4441
          %v5527 = vunpack.c.h.b16 %v4441
          %v5528 = vunpack.c.l.b16 %v4442
          %v5529 = vunpack.c.h.b16 %v4442
          %v5530 = vunpack.c.l.b16 %v4443
          %v5531 = vunpack.c.h.b16 %v4443
          %v5532 = vunpack.c.l.b16 %v4444
          %v5533 = vunpack.c.h.b16 %v4444
          %v5534 = vunpack.c.l.b16 %v4445
          %v5535 = vunpack.c.h.b16 %v4445
          %v5536 = vunpack.c.l.b16 %v4446
          %v5537 = vunpack.c.h.b16 %v4446
          %v5538 = vunpack.c.l.b16 %v4447
          %v5539 = vunpack.c.h.b16 %v4447
          %v5540 = vunpack.c.l.b16 %v4448
          %v5541 = vunpack.c.h.b16 %v4448
          %v5542 = vunpack.c.l.b16 %v4449
          %v5543 = vunpack.c.h.b16 %v4449
          %v5544 = vunpack.c.l.b16 %v4450
          %v5545 = vunpack.c.h.b16 %v4450
          %v5546 = vunpack.c.l.b16 %v4451
          %v5547 = vunpack.c.h.b16 %v4451
          %v5548 = vunpack.c.l.b16 %v4452
          %v5549 = vunpack.c.h.b16 %v4452
          %v5550 = vunpack.c.l.b16 %v4453
          %v5551 = vunpack.c.h.b16 %v4453
          %v5552 = vunpack.c.l.b16 %v4454
          %v5553 = vunpack.c.h.b16 %v4454
          %v5554 = vunpack.c.l.b16 %v4455
          %v5555 = vunpack.c.h.b16 %v4455
          %v5556 = vunpack.c.l.b16 %v4456
          %v5557 = vunpack.c.h.b16 %v4456
          %v5558 = vunpack.c.l.b16 %v4457
          %v5559 = vunpack.c.h.b16 %v4457
          %v5560 = vunpack.c.l.b16 %v4458
          %v5561 = vunpack.c.h.b16 %v4458
          %v5562 = vunpack.c.l.b16 %v4459
          %v5563 = vunpack.c.h.b16 %v4459
          %v5564 = vunpack.c.l.b16 %v4460
          %v5565 = vunpack.c.h.b16 %v4460
          %v5566 = vunpack.c.l.b16 %v4461
          %v5567 = vunpack.c.h.b16 %v4461
          %v5568 = vunpack.c.l.b16 %v4462
          %v5569 = vunpack.c.h.b16 %v4462
          %v5570 = vunpack.c.l.b16 %v4463
          %v5571 = vunpack.c.h.b16 %v4463
          %v5572 = vunpack.c.l.b16 %v4464
          %v5573 = vunpack.c.h.b16 %v4464
          %v5574 = vunpack.c.l.b16 %v4465
          %v5575 = vunpack.c.h.b16 %v4465
          %v5576 = vunpack.c.l.b16 %v4466
          %v5577 = vunpack.c.h.b16 %v4466
          %v5578 = vunpack.c.l.b16 %v4467
          %v5579 = vunpack.c.h.b16 %v4467
          %v5580 = vunpack.c.l.b16 %v4468
          %v5581 = vunpack.c.h.b16 %v4468
          %v5582 = vunpack.c.l.b16 %v4469
          %v5583 = vunpack.c.h.b16 %v4469
          %v5584 = vunpack.c.l.b16 %v4470
          %v5585 = vunpack.c.h.b16 %v4470
          %v5586 = vunpack.c.l.b16 %v4471
          %v5587 = vunpack.c.h.b16 %v4471
          %v5588 = vunpack.c.l.b16 %v4472
          %v5589 = vunpack.c.h.b16 %v4472
          %v5590 = vunpack.c.l.b16 %v4473
          %v5591 = vunpack.c.h.b16 %v4473
          %v5592 = vunpack.c.l.b16 %v4474
          %v5593 = vunpack.c.h.b16 %v4474
          %v5594 = vunpack.c.l.b16 %v4475
          %v5595 = vunpack.c.h.b16 %v4475
          %v5596 = vunpack.c.l.b16 %v4476
          %v5597 = vunpack.c.h.b16 %v4476
          %v5598 = vunpack.c.l.b16 %v4477
          %v5599 = vunpack.c.h.b16 %v4477
          %v5600 = vunpack.c.l.b16 %v4478
          %v5601 = vunpack.c.h.b16 %v4478
          %v5602 = vunpack.c.l.b16 %v4479
          %v5603 = vunpack.c.h.b16 %v4479
          %v5604 = vunpack.c.l.b16 %v4480
          %v5605 = vunpack.c.h.b16 %v4480
          %v5606 = vunpack.c.l.b16 %v4481
          %v5607 = vunpack.c.h.b16 %v4481
          %v5608 = vunpack.c.l.b16 %v4482
          %v5609 = vunpack.c.h.b16 %v4482
          %v5610 = vunpack.c.l.b16 %v4483
          %v5611 = vunpack.c.h.b16 %v4483
          %v5612 = vunpack.c.l.b16 %v4484
          %v5613 = vunpack.c.h.b16 %v4484
          %v5614 = vunpack.c.l.b16 %v4485
          %v5615 = vunpack.c.h.b16 %v4485
          %v5616 = vunpack.c.l.b16 %v4486
          %v5617 = vunpack.c.h.b16 %v4486
          %v5618 = vunpack.c.l.b16 %v4487
          %v5619 = vunpack.c.h.b16 %v4487
          %v5620 = vunpack.c.l.b16 %v4488
          %v5621 = vunpack.c.h.b16 %v4488
          %v5622 = vunpack.c.l.b16 %v4489
          %v5623 = vunpack.c.h.b16 %v4489
          %v5624 = vunpack.c.l.b16 %v4490
          %v5625 = vunpack.c.h.b16 %v4490
          %v5626 = vunpack.c.l.b16 %v4491
          %v5627 = vunpack.c.h.b16 %v4491
          %v5628 = vunpack.c.l.b16 %v4492
          %v5629 = vunpack.c.h.b16 %v4492
          %v5630 = vunpack.c.l.b16 %v4493
          %v5631 = vunpack.c.h.b16 %v4493
          %v5632 = vunpack.c.l.b16 %v4494
          %v5633 = vunpack.c.h.b16 %v4494
          %v5634 = vunpack.c.l.b16 %v4495
          %v5635 = vunpack.c.h.b16 %v4495
          %v5636 = vunpack.c.l.b16 %v4496
          %v5637 = vunpack.c.h.b16 %v4496
          %v5638 = vunpack.c.l.b16 %v4497
          %v5639 = vunpack.c.h.b16 %v4497
          %v5640 = vunpack.c.l.b16 %v4498
          %v5641 = vunpack.c.h.b16 %v4498
          %v5642 = vunpack.c.l.b16 %v4499
          %v5643 = vunpack.c.h.b16 %v4499
          %v5644 = vunpack.c.l.b16 %v4500
          %v5645 = vunpack.c.h.b16 %v4500
          %v5646 = vunpack.c.l.b16 %v4501
          %v5647 = vunpack.c.h.b16 %v4501
          %v5648 = vunpack.c.l.b16 %v4502
          %v5649 = vunpack.c.h.b16 %v4502
          %v5650 = vunpack.c.l.b16 %v4503
          %v5651 = vunpack.c.h.b16 %v4503
          %v5652 = vunpack.c.l.b16 %v4504
          %v5653 = vunpack.c.h.b16 %v4504
          %v5654 = vunpack.c.l.b16 %v4505
          %v5655 = vunpack.c.h.b16 %v4505
          %v5656 = vunpack.c.l.b16 %v4506
          %v5657 = vunpack.c.h.b16 %v4506
          %v5658 = vunpack.c.l.b16 %v4507
          %v5659 = vunpack.c.h.b16 %v4507
          %v5660 = vunpack.c.l.b16 %v4508
          %v5661 = vunpack.c.h.b16 %v4508
          %v5662 = vunpack.c.l.b16 %v4509
          %v5663 = vunpack.c.h.b16 %v4509
          %v5664 = vunpack.c.l.b16 %v4510
          %v5665 = vunpack.c.h.b16 %v4510
          %v5666 = vunpack.c.l.b16 %v4511
          %v5667 = vunpack.c.h.b16 %v4511
          %v5668 = vunpack.c.l.b16 %v4512
          %v5669 = vunpack.c.h.b16 %v4512
          %v5670 = vunpack.c.l.b16 %v4513
          %v5671 = vunpack.c.h.b16 %v4513
          %v5672 = vunpack.c.l.b16 %v4514
          %v5673 = vunpack.c.h.b16 %v4514
          %v5674 = vunpack.c.l.b16 %v4515
          %v5675 = vunpack.c.h.b16 %v4515
          %v5676 = vunpack.c.l.b16 %v4516
          %v5677 = vunpack.c.h.b16 %v4516
          %v5678 = vunpack.c.l.b16 %v4517
          %v5679 = vunpack.c.h.b16 %v4517
          %v5680 = vunpack.c.l.b16 %v4518
          %v5681 = vunpack.c.h.b16 %v4518
          %v5682 = vunpack.c.l.b16 %v4519
          %v5683 = vunpack.c.h.b16 %v4519
          %v5684 = vunpack.c.l.b16 %v4520
          %v5685 = vunpack.c.h.b16 %v4520
          %v5686 = vunpack.c.l.b16 %v4521
          %v5687 = vunpack.c.h.b16 %v4521
          %v5688 = vunpack.c.l.b16 %v4522
          %v5689 = vunpack.c.h.b16 %v4522
          %v5690 = vunpack.c.l.b16 %v4523
          %v5691 = vunpack.c.h.b16 %v4523
          %v5692 = vunpack.c.l.b16 %v4524
          %v5693 = vunpack.c.h.b16 %v4524
          %v5694 = vunpack.c.l.b16 %v4525
          %v5695 = vunpack.c.h.b16 %v4525
          %v5696 = vunpack.c.l.b16 %v4526
          %v5697 = vunpack.c.h.b16 %v4526
          %v5698 = vunpack.c.l.b16 %v4527
          %v5699 = vunpack.c.h.b16 %v4527
          %v5700 = vunpack.c.l.b16 %v4528
          %v5701 = vunpack.c.h.b16 %v4528
          %v5702 = vunpack.c.l.b16 %v4529
          %v5703 = vunpack.c.h.b16 %v4529
          %v5704 = vunpack.c.l.b16 %v4530
          %v5705 = vunpack.c.h.b16 %v4530
          %v5706 = vunpack.c.l.b16 %v4531
          %v5707 = vunpack.c.h.b16 %v4531
          %v5708 = vunpack.c.l.b16 %v4532
          %v5709 = vunpack.c.h.b16 %v4532
          %v5710 = vunpack.c.l.b16 %v4533
          %v5711 = vunpack.c.h.b16 %v4533
          %v5712 = vunpack.c.l.b16 %v4534
          %v5713 = vunpack.c.h.b16 %v4534
          %v5714 = vunpack.c.l.b16 %v4535
          %v5715 = vunpack.c.h.b16 %v4535
          %v5716 = vunpack.c.l.b16 %v4536
          %v5717 = vunpack.c.h.b16 %v4536
          %v5718 = vunpack.c.l.b16 %v4537
          %v5719 = vunpack.c.h.b16 %v4537
          %v5720 = vunpack.c.l.b16 %v4538
          %v5721 = vunpack.c.h.b16 %v4538
          %v5722 = vunpack.c.l.b16 %v4539
          %v5723 = vunpack.c.h.b16 %v4539
          %v5724 = vunpack.c.l.b16 %v4540
          %v5725 = vunpack.c.h.b16 %v4540
          %v5726 = vunpack.c.l.b16 %v4541
          %v5727 = vunpack.c.h.b16 %v4541
          %v5728 = vunpack.c.l.b16 %v4542
          %v5729 = vunpack.c.h.b16 %v4542
          %v5730 = vunpack.c.l.b16 %v4543
          %v5731 = vunpack.c.h.b16 %v4543
          %v5732 = vunpack.c.l.b16 %v4544
          %v5733 = vunpack.c.h.b16 %v4544
          %v5734 = vunpack.c.l.b16 %v4545
          %v5735 = vunpack.c.h.b16 %v4545
          %v5736 = vunpack.c.l.b16 %v4546
          %v5737 = vunpack.c.h.b16 %v4546
          %v5738 = vunpack.c.l.b16 %v4547
          %v5739 = vunpack.c.h.b16 %v4547
          %v5740 = vunpack.c.l.b16 %v4548
          %v5741 = vunpack.c.h.b16 %v4548
          %v5742 = vunpack.c.l.b16 %v4549
          %v5743 = vunpack.c.h.b16 %v4549
          %v5744 = vunpack.c.l.b16 %v4550
          %v5745 = vunpack.c.h.b16 %v4550
          %v5746 = vunpack.c.l.b16 %v4551
          %v5747 = vunpack.c.h.b16 %v4551
          %v5748 = vunpack.c.l.b16 %v4552
          %v5749 = vunpack.c.h.b16 %v4552
          %v5750 = vunpack.c.l.b16 %v4553
          %v5751 = vunpack.c.h.b16 %v4553
          %v5752 = vunpack.c.l.b16 %v4554
          %v5753 = vunpack.c.h.b16 %v4554
          %v5754 = vunpack.c.l.b16 %v4555
          %v5755 = vunpack.c.h.b16 %v4555
          %v5756 = vunpack.c.l.b16 %v4556
          %v5757 = vunpack.c.h.b16 %v4556
          %v5758 = vunpack.c.l.b16 %v4557
          %v5759 = vunpack.c.h.b16 %v4557
          %v5760 = vunpack.c.l.b16 %v4558
          %v5761 = vunpack.c.h.b16 %v4558
          %v5762 = vunpack.c.l.b16 %v4559
          %v5763 = vunpack.c.h.b16 %v4559
          %v5764 = vunpack.c.l.b16 %v4560
          %v5765 = vunpack.c.h.b16 %v4560
          %v5766 = vunpack.c.l.b16 %v4561
          %v5767 = vunpack.c.h.b16 %v4561
          %v5768 = vunpack.c.l.b16 %v4562
          %v5769 = vunpack.c.h.b16 %v4562
          %v5770 = vunpack.c.l.b16 %v4563
          %v5771 = vunpack.c.h.b16 %v4563
          %v5772 = vunpack.c.l.b16 %v4564
          %v5773 = vunpack.c.h.b16 %v4564
          %v5774 = vunpack.c.l.b16 %v4565
          %v5775 = vunpack.c.h.b16 %v4565
          %v5776 = vunpack.c.l.b16 %v4566
          %v5777 = vunpack.c.h.b16 %v4566
          %v5778 = vunpack.c.l.b16 %v4567
          %v5779 = vunpack.c.h.b16 %v4567
          %v5780 = vunpack.c.l.b16 %v4568
          %v5781 = vunpack.c.h.b16 %v4568
          %v5782 = vunpack.c.l.b16 %v4569
          %v5783 = vunpack.c.h.b16 %v4569
          %v5784 = vunpack.c.l.b16 %v4570
          %v5785 = vunpack.c.h.b16 %v4570
          %v5786 = vunpack.c.l.b16 %v4571
          %v5787 = vunpack.c.h.b16 %v4571
          %v5788 = vunpack.c.l.b16 %v4572
          %v5789 = vunpack.c.h.b16 %v4572
          %v5790 = vunpack.c.l.b16 %v4573
          %v5791 = vunpack.c.h.b16 %v4573
          %v5792 = vunpack.c.l.b16 %v4574
          %v5793 = vunpack.c.h.b16 %v4574
          %v5794 = vunpack.c.l.b16 %v4575
          %v5795 = vunpack.c.h.b16 %v4575
          %v5796 = vunpack.c.l.b16 %v4576
          %v5797 = vunpack.c.h.b16 %v4576
          %v5798 = vunpack.c.l.b16 %v4577
          %v5799 = vunpack.c.h.b16 %v4577
          %v5800 = vunpack.c.l.b16 %v4578
          %v5801 = vunpack.c.h.b16 %v4578
          %v5802 = vunpack.c.l.b16 %v4579
          %v5803 = vunpack.c.h.b16 %v4579
          %v5804 = vunpack.c.l.b16 %v4580
          %v5805 = vunpack.c.h.b16 %v4580
          %v5806 = vunpack.c.l.b16 %v4581
          %v5807 = vunpack.c.h.b16 %v4581
          %v5808 = vunpack.c.l.b16 %v4582
          %v5809 = vunpack.c.h.b16 %v4582
          %v5810 = vunpack.c.l.b16 %v4583
          %v5811 = vunpack.c.h.b16 %v4583
          %v5812 = vunpack.c.l.b16 %v4584
          %v5813 = vunpack.c.h.b16 %v4584
          %v5814 = vunpack.c.l.b16 %v4585
          %v5815 = vunpack.c.h.b16 %v4585
          %v5816 = vunpack.c.l.b16 %v4586
          %v5817 = vunpack.c.h.b16 %v4586
          %v5818 = vunpack.c.l.b16 %v4587
          %v5819 = vunpack.c.h.b16 %v4587
          %v5820 = vunpack.c.l.b16 %v4588
          %v5821 = vunpack.c.h.b16 %v4588
          %v5822 = vunpack.c.l.b16 %v4589
          %v5823 = vunpack.c.h.b16 %v4589
          %v5824 = vunpack.c.l.b16 %v4590
          %v5825 = vunpack.c.h.b16 %v4590
          %v5826 = vunpack.c.l.b16 %v4591
          %v5827 = vunpack.c.h.b16 %v4591
          %v5828 = vunpack.c.l.b16 %v4592
          %v5829 = vunpack.c.h.b16 %v4592
          %v5830 = vunpack.c.l.b16 %v4593
          %v5831 = vunpack.c.h.b16 %v4593
          %v5832 = vunpack.c.l.b16 %v4594
          %v5833 = vunpack.c.h.b16 %v4594
          %v5834 = vunpack.c.l.b16 %v4595
          %v5835 = vunpack.c.h.b16 %v4595
          %v5836 = vunpack.c.l.b16 %v4596
          %v5837 = vunpack.c.h.b16 %v4596
          %v5838 = vunpack.c.l.b16 %v4597
          %v5839 = vunpack.c.h.b16 %v4597
          %v5840 = vunpack.c.l.b16 %v4598
          %v5841 = vunpack.c.h.b16 %v4598
          %v5842 = vunpack.c.l.b16 %v4599
          %v5843 = vunpack.c.h.b16 %v4599
          %v5844 = vunpack.c.l.b16 %v4600
          %v5845 = vunpack.c.h.b16 %v4600
          %v5846 = vunpack.c.l.b16 %v4601
          %v5847 = vunpack.c.h.b16 %v4601
          %v5848 = vunpack.c.l.b16 %v4602
          %v5849 = vunpack.c.h.b16 %v4602
          %v5850 = vunpack.c.l.b16 %v4603
          %v5851 = vunpack.c.h.b16 %v4603
          %v5852 = vunpack.c.l.b16 %v4604
          %v5853 = vunpack.c.h.b16 %v4604
          %v5854 = vunpack.c.l.b16 %v4605
          %v5855 = vunpack.c.h.b16 %v4605
          %v5856 = vunpack.c.l.b16 %v4606
          %v5857 = vunpack.c.h.b16 %v4606
          %v5858 = vunpack.c.l.b16 %v4607
          %v5859 = vunpack.c.h.b16 %v4607
          %v5860 = vunpack.c.l.b16 %v4608
          %v5861 = vunpack.c.h.b16 %v4608
          %v5862 = vunpack.c.l.b16 %v4609
          %v5863 = vunpack.c.h.b16 %v4609
          %v5864 = vunpack.c.l.b16 %v4610
          %v5865 = vunpack.c.h.b16 %v4610
          %v5866 = vunpack.c.l.b16 %v4611
          %v5867 = vunpack.c.h.b16 %v4611
          %v5868 = vunpack.c.l.b16 %v4612
          %v5869 = vunpack.c.h.b16 %v4612
          %v5870 = vunpack.c.l.b16 %v4613
          %v5871 = vunpack.c.h.b16 %v4613
          %v5872 = vunpack.c.l.b16 %v4614
          %v5873 = vunpack.c.h.b16 %v4614
          %v5874 = vunpack.c.l.b16 %v4615
          %v5875 = vunpack.c.h.b16 %v4615
          %v5876 = vunpack.c.l.b16 %v4616
          %v5877 = vunpack.c.h.b16 %v4616
          %v5878 = vunpack.c.l.b16 %v4617
          %v5879 = vunpack.c.h.b16 %v4617
          %v5880 = vunpack.c.l.b16 %v4618
          %v5881 = vunpack.c.h.b16 %v4618
          %v5882 = vunpack.c.l.b16 %v4619
          %v5883 = vunpack.c.h.b16 %v4619
          %v5884 = vunpack.c.l.b16 %v4620
          %v5885 = vunpack.c.h.b16 %v4620
          %v5886 = vunpack.c.l.b16 %v4621
          %v5887 = vunpack.c.h.b16 %v4621
          %v5888 = vunpack.c.l.b16 %v4622
          %v5889 = vunpack.c.h.b16 %v4622
          %v5890 = vunpack.c.l.b16 %v4623
          %v5891 = vunpack.c.h.b16 %v4623
          %v5892 = vunpack.c.l.b16 %v4624
          %v5893 = vunpack.c.h.b16 %v4624
          %v5894 = vunpack.c.l.b16 %v4625
          %v5895 = vunpack.c.h.b16 %v4625
          %v5896 = vunpack.c.l.b16 %v4626
          %v5897 = vunpack.c.h.b16 %v4626
          %v5898 = vunpack.c.l.b16 %v4627
          %v5899 = vunpack.c.h.b16 %v4627
          %v5900 = vunpack.c.l.b16 %v4628
          %v5901 = vunpack.c.h.b16 %v4628
          %v5902 = vunpack.c.l.b16 %v4629
          %v5903 = vunpack.c.h.b16 %v4629
          %v5904 = vunpack.c.l.b16 %v4630
          %v5905 = vunpack.c.h.b16 %v4630
          %v5906 = vunpack.c.l.b16 %v4631
          %v5907 = vunpack.c.h.b16 %v4631
          %v5908 = vunpack.c.l.b16 %v4632
          %v5909 = vunpack.c.h.b16 %v4632
          %v5910 = vunpack.c.l.b16 %v4633
          %v5911 = vunpack.c.h.b16 %v4633
          %v5912 = vpack.c.b16 %v5168, %v5144
          %v5913 = vpack.c.b16 %v5169, %v5145
          %v5914 = vpack.c.b16 %v5170, %v5146
          %v5915 = vpack.c.b16 %v5171, %v5147
          %v5916 = vpack.c.b16 %v5172, %v5148
          %v5917 = vpack.c.b16 %v5173, %v5149
          %v5918 = vpack.c.b16 %v5174, %v5150
          %v5919 = vpack.c.b16 %v5175, %v5151
          %v5920 = vpack.c.b16 %v5176, %v5152
          %v5921 = vpack.c.b16 %v5177, %v5153
          %v5922 = vpack.c.b16 %v5178, %v5154
          %v5923 = vpack.c.b16 %v5179, %v5155
          %v5924 = vpack.c.b16 %v5180, %v5156
          %v5925 = vpack.c.b16 %v5181, %v5157
          %v5926 = vpack.c.b16 %v5182, %v5158
          %v5927 = vpack.c.b16 %v5183, %v5159
          %v5928 = vpack.c.b16 %v5184, %v5160
          %v5929 = vpack.c.b16 %v5185, %v5161
          %v5930 = vpack.c.b16 %v5186, %v5162
          %v5931 = vpack.c.b16 %v5187, %v5163
          %v5932 = vpack.c.b16 %v5188, %v5164
          %v5933 = vpack.c.b16 %v5189, %v5165
          %v5934 = vpack.c.b16 %v5190, %v5166
          %v5935 = vpack.c.b16 %v5191, %v5167
          %v5936 = vpack.c.b16 %v5216, %v5192
          %v5937 = vpack.c.b16 %v5217, %v5193
          %v5938 = vpack.c.b16 %v5218, %v5194
          %v5939 = vpack.c.b16 %v5219, %v5195
          %v5940 = vpack.c.b16 %v5220, %v5196
          %v5941 = vpack.c.b16 %v5221, %v5197
          %v5942 = vpack.c.b16 %v5222, %v5198
          %v5943 = vpack.c.b16 %v5223, %v5199
          %v5944 = vpack.c.b16 %v5224, %v5200
          %v5945 = vpack.c.b16 %v5225, %v5201
          %v5946 = vpack.c.b16 %v5226, %v5202
          %v5947 = vpack.c.b16 %v5227, %v5203
          %v5948 = vpack.c.b16 %v5228, %v5204
          %v5949 = vpack.c.b16 %v5229, %v5205
          %v5950 = vpack.c.b16 %v5230, %v5206
          %v5951 = vpack.c.b16 %v5231, %v5207
          %v5952 = vpack.c.b16 %v5232, %v5208
          %v5953 = vpack.c.b16 %v5233, %v5209
          %v5954 = vpack.c.b16 %v5234, %v5210
          %v5955 = vpack.c.b16 %v5235, %v5211
          %v5956 = vpack.c.b16 %v5236, %v5212
          %v5957 = vpack.c.b16 %v5237, %v5213
          %v5958 = vpack.c.b16 %v5238, %v5214
          %v5959 = vpack.c.b16 %v5239, %v5215
          %v5960 = vpack.c.b16 %v5264, %v5240
          %v5961 = vpack.c.b16 %v5265, %v5241
          %v5962 = vpack.c.b16 %v5266, %v5242
          %v5963 = vpack.c.b16 %v5267, %v5243
          %v5964 = vpack.c.b16 %v5268, %v5244
          %v5965 = vpack.c.b16 %v5269, %v5245
          %v5966 = vpack.c.b16 %v5270, %v5246
          %v5967 = vpack.c.b16 %v5271, %v5247
          %v5968 = vpack.c.b16 %v5272, %v5248
          %v5969 = vpack.c.b16 %v5273, %v5249
          %v5970 = vpack.c.b16 %v5274, %v5250
          %v5971 = vpack.c.b16 %v5275, %v5251
          %v5972 = vpack.c.b16 %v5276, %v5252
          %v5973 = vpack.c.b16 %v5277, %v5253
          %v5974 = vpack.c.b16 %v5278, %v5254
          %v5975 = vpack.c.b16 %v5279, %v5255
          %v5976 = vpack.c.b16 %v5280, %v5256
          %v5977 = vpack.c.b16 %v5281, %v5257
          %v5978 = vpack.c.b16 %v5282, %v5258
          %v5979 = vpack.c.b16 %v5283, %v5259
          %v5980 = vpack.c.b16 %v5284, %v5260
          %v5981 = vpack.c.b16 %v5285, %v5261
          %v5982 = vpack.c.b16 %v5286, %v5262
          %v5983 = vpack.c.b16 %v5287, %v5263
          %v5984 = vpack.c.b16 %v5312, %v5288
          %v5985 = vpack.c.b16 %v5313, %v5289
          %v5986 = vpack.c.b16 %v5314, %v5290
          %v5987 = vpack.c.b16 %v5315, %v5291
          %v5988 = vpack.c.b16 %v5316, %v5292
          %v5989 = vpack.c.b16 %v5317, %v5293
          %v5990 = vpack.c.b16 %v5318, %v5294
          %v5991 = vpack.c.b16 %v5319, %v5295
          %v5992 = vpack.c.b16 %v5320, %v5296
          %v5993 = vpack.c.b16 %v5321, %v5297
          %v5994 = vpack.c.b16 %v5322, %v5298
          %v5995 = vpack.c.b16 %v5323, %v5299
          %v5996 = vpack.c.b16 %v5324, %v5300
          %v5997 = vpack.c.b16 %v5325, %v5301
          %v5998 = vpack.c.b16 %v5326, %v5302
          %v5999 = vpack.c.b16 %v5327, %v5303
          %v6000 = vpack.c.b16 %v5328, %v5304
          %v6001 = vpack.c.b16 %v5329, %v5305
          %v6002 = vpack.c.b16 %v5330, %v5306
          %v6003 = vpack.c.b16 %v5331, %v5307
          %v6004 = vpack.c.b16 %v5332, %v5308
          %v6005 = vpack.c.b16 %v5333, %v5309
          %v6006 = vpack.c.b16 %v5334, %v5310
          %v6007 = vpack.c.b16 %v5335, %v5311
          %v6008 = vpack.c.b16 %v5360, %v5336
          %v6009 = vpack.c.b16 %v5361, %v5337
          %v6010 = vpack.c.b16 %v5362, %v5338
          %v6011 = vpack.c.b16 %v5363, %v5339
          %v6012 = vpack.c.b16 %v5364, %v5340
          %v6013 = vpack.c.b16 %v5365, %v5341
          %v6014 = vpack.c.b16 %v5366, %v5342
          %v6015 = vpack.c.b16 %v5367, %v5343
          %v6016 = vpack.c.b16 %v5368, %v5344
          %v6017 = vpack.c.b16 %v5369, %v5345
          %v6018 = vpack.c.b16 %v5370, %v5346
          %v6019 = vpack.c.b16 %v5371, %v5347
          %v6020 = vpack.c.b16 %v5372, %v5348
          %v6021 = vpack.c.b16 %v5373, %v5349
          %v6022 = vpack.c.b16 %v5374, %v5350
          %v6023 = vpack.c.b16 %v5375, %v5351
          %v6024 = vpack.c.b16 %v5376, %v5352
          %v6025 = vpack.c.b16 %v5377, %v5353
          %v6026 = vpack.c.b16 %v5378, %v5354
          %v6027 = vpack.c.b16 %v5379, %v5355
          %v6028 = vpack.c.b16 %v5380, %v5356
          %v6029 = vpack.c.b16 %v5381, %v5357
          %v6030 = vpack.c.b16 %v5382, %v5358
          %v6031 = vpack.c.b16 %v5383, %v5359
          %v6032 = vpack.c.b16 %v5408, %v5384
          %v6033 = vpack.c.b16 %v5409, %v5385
          %v6034 = vpack.c.b16 %v5410, %v5386
          %v6035 = vpack.c.b16 %v5411, %v5387
          %v6036 = vpack.c.b16 %v5412, %v5388
          %v6037 = vpack.c.b16 %v5413, %v5389
          %v6038 = vpack.c.b16 %v5414, %v5390
          %v6039 = vpack.c.b16 %v5415, %v5391
          %v6040 = vpack.c.b16 %v5416, %v5392
          %v6041 = vpack.c.b16 %v5417, %v5393
          %v6042 = vpack.c.b16 %v5418, %v5394
          %v6043 = vpack.c.b16 %v5419, %v5395
          %v6044 = vpack.c.b16 %v5420, %v5396
          %v6045 = vpack.c.b16 %v5421, %v5397
          %v6046 = vpack.c.b16 %v5422, %v5398
          %v6047 = vpack.c.b16 %v5423, %v5399
          %v6048 = vpack.c.b16 %v5424, %v5400
          %v6049 = vpack.c.b16 %v5425, %v5401
          %v6050 = vpack.c.b16 %v5426, %v5402
          %v6051 = vpack.c.b16 %v5427, %v5403
          %v6052 = vpack.c.b16 %v5428, %v5404
          %v6053 = vpack.c.b16 %v5429, %v5405
          %v6054 = vpack.c.b16 %v5430, %v5406
          %v6055 = vpack.c.b16 %v5431, %v5407
          %v6056 = vpack.c.b16 %v5456, %v5432
          %v6057 = vpack.c.b16 %v5457, %v5433
          %v6058 = vpack.c.b16 %v5458, %v5434
          %v6059 = vpack.c.b16 %v5459, %v5435
          %v6060 = vpack.c.b16 %v5460, %v5436
          %v6061 = vpack.c.b16 %v5461, %v5437
          %v6062 = vpack.c.b16 %v5462, %v5438
          %v6063 = vpack.c.b16 %v5463, %v5439
          %v6064 = vpack.c.b16 %v5464, %v5440
          %v6065 = vpack.c.b16 %v5465, %v5441
          %v6066 = vpack.c.b16 %v5466, %v5442
          %v6067 = vpack.c.b16 %v5467, %v5443
          %v6068 = vpack.c.b16 %v5468, %v5444
          %v6069 = vpack.c.b16 %v5469, %v5445
          %v6070 = vpack.c.b16 %v5470, %v5446
          %v6071 = vpack.c.b16 %v5471, %v5447
          %v6072 = vpack.c.b16 %v5472, %v5448
          %v6073 = vpack.c.b16 %v5473, %v5449
          %v6074 = vpack.c.b16 %v5474, %v5450
          %v6075 = vpack.c.b16 %v5475, %v5451
          %v6076 = vpack.c.b16 %v5476, %v5452
          %v6077 = vpack.c.b16 %v5477, %v5453
          %v6078 = vpack.c.b16 %v5478, %v5454
          %v6079 = vpack.c.b16 %v5479, %v5455
          %v6080 = vpack.c.b16 %v5504, %v5480
          %v6081 = vpack.c.b16 %v5505, %v5481
          %v6082 = vpack.c.b16 %v5506, %v5482
          %v6083 = vpack.c.b16 %v5507, %v5483
          %v6084 = vpack.c.b16 %v5508, %v5484
          %v6085 = vpack.c.b16 %v5509, %v5485
          %v6086 = vpack.c.b16 %v5510, %v5486
          %v6087 = vpack.c.b16 %v5511, %v5487
          %v6088 = vpack.c.b16 %v5512, %v5488
          %v6089 = vpack.c.b16 %v5513, %v5489
          %v6090 = vpack.c.b16 %v5514, %v5490
          %v6091 = vpack.c.b16 %v5515, %v5491
          %v6092 = vpack.c.b16 %v5516, %v5492
          %v6093 = vpack.c.b16 %v5517, %v5493
          %v6094 = vpack.c.b16 %v5518, %v5494
          %v6095 = vpack.c.b16 %v5519, %v5495
          %v6096 = vpack.c.b16 %v5520, %v5496
          %v6097 = vpack.c.b16 %v5521, %v5497
          %v6098 = vpack.c.b16 %v5522, %v5498
          %v6099 = vpack.c.b16 %v5523, %v5499
          %v6100 = vpack.c.b16 %v5524, %v5500
          %v6101 = vpack.c.b16 %v5525, %v5501
          %v6102 = vpack.c.b16 %v5526, %v5502
          %v6103 = vpack.c.b16 %v5527, %v5503
          %v6104 = vpack.c.b16 %v5552, %v5528
          %v6105 = vpack.c.b16 %v5553, %v5529
          %v6106 = vpack.c.b16 %v5554, %v5530
          %v6107 = vpack.c.b16 %v5555, %v5531
          %v6108 = vpack.c.b16 %v5556, %v5532
          %v6109 = vpack.c.b16 %v5557, %v5533
          %v6110 = vpack.c.b16 %v5558, %v5534
          %v6111 = vpack.c.b16 %v5559, %v5535
          %v6112 = vpack.c.b16 %v5560, %v5536
          %v6113 = vpack.c.b16 %v5561, %v5537
          %v6114 = vpack.c.b16 %v5562, %v5538
          %v6115 = vpack.c.b16 %v5563, %v5539
          %v6116 = vpack.c.b16 %v5564, %v5540
          %v6117 = vpack.c.b16 %v5565, %v5541
          %v6118 = vpack.c.b16 %v5566, %v5542
          %v6119 = vpack.c.b16 %v5567, %v5543
          %v6120 = vpack.c.b16 %v5568, %v5544
          %v6121 = vpack.c.b16 %v5569, %v5545
          %v6122 = vpack.c.b16 %v5570, %v5546
          %v6123 = vpack.c.b16 %v5571, %v5547
          %v6124 = vpack.c.b16 %v5572, %v5548
          %v6125 = vpack.c.b16 %v5573, %v5549
          %v6126 = vpack.c.b16 %v5574, %v5550
          %v6127 = vpack.c.b16 %v5575, %v5551
          %v6128 = vpack.c.b16 %v5600, %v5576
          %v6129 = vpack.c.b16 %v5601, %v5577
          %v6130 = vpack.c.b16 %v5602, %v5578
          %v6131 = vpack.c.b16 %v5603, %v5579
          %v6132 = vpack.c.b16 %v5604, %v5580
          %v6133 = vpack.c.b16 %v5605, %v5581
          %v6134 = vpack.c.b16 %v5606, %v5582
          %v6135 = vpack.c.b16 %v5607, %v5583
          %v6136 = vpack.c.b16 %v5608, %v5584
          %v6137 = vpack.c.b16 %v5609, %v5585
          %v6138 = vpack.c.b16 %v5610, %v5586
          %v6139 = vpack.c.b16 %v5611, %v5587
          %v6140 = vpack.c.b16 %v5612, %v5588
          %v6141 = vpack.c.b16 %v5613, %v5589
          %v6142 = vpack.c.b16 %v5614, %v5590
          %v6143 = vpack.c.b16 %v5615, %v5591
          %v6144 = vpack.c.b16 %v5616, %v5592
          %v6145 = vpack.c.b16 %v5617, %v5593
          %v6146 = vpack.c.b16 %v5618, %v5594
          %v6147 = vpack.c.b16 %v5619, %v5595
          %v6148 = vpack.c.b16 %v5620, %v5596
          %v6149 = vpack.c.b16 %v5621, %v5597
          %v6150 = vpack.c.b16 %v5622, %v5598
          %v6151 = vpack.c.b16 %v5623, %v5599
          %v6152 = vpack.c.b16 %v5648, %v5624
          %v6153 = vpack.c.b16 %v5649, %v5625
          %v6154 = vpack.c.b16 %v5650, %v5626
          %v6155 = vpack.c.b16 %v5651, %v5627
          %v6156 = vpack.c.b16 %v5652, %v5628
          %v6157 = vpack.c.b16 %v5653, %v5629
          %v6158 = vpack.c.b16 %v5654, %v5630
          %v6159 = vpack.c.b16 %v5655, %v5631
          %v6160 = vpack.c.b16 %v5656, %v5632
          %v6161 = vpack.c.b16 %v5657, %v5633
          %v6162 = vpack.c.b16 %v5658, %v5634
          %v6163 = vpack.c.b16 %v5659, %v5635
          %v6164 = vpack.c.b16 %v5660, %v5636
          %v6165 = vpack.c.b16 %v5661, %v5637
          %v6166 = vpack.c.b16 %v5662, %v5638
          %v6167 = vpack.c.b16 %v5663, %v5639
          %v6168 = vpack.c.b16 %v5664, %v5640
          %v6169 = vpack.c.b16 %v5665, %v5641
          %v6170 = vpack.c.b16 %v5666, %v5642
          %v6171 = vpack.c.b16 %v5667, %v5643
          %v6172 = vpack.c.b16 %v5668, %v5644
          %v6173 = vpack.c.b16 %v5669, %v5645
          %v6174 = vpack.c.b16 %v5670, %v5646
          %v6175 = vpack.c.b16 %v5671, %v5647
          %v6176 = vpack.c.b16 %v5696, %v5672
          %v6177 = vpack.c.b16 %v5697, %v5673
          %v6178 = vpack.c.b16 %v5698, %v5674
          %v6179 = vpack.c.b16 %v5699, %v5675
          %v6180 = vpack.c.b16 %v5700, %v5676
          %v6181 = vpack.c.b16 %v5701, %v5677
          %v6182 = vpack.c.b16 %v5702, %v5678
          %v6183 = vpack.c.b16 %v5703, %v5679
          %v6184 = vpack.c.b16 %v5704, %v5680
          %v6185 = vpack.c.b16 %v5705, %v5681
          %v6186 = vpack.c.b16 %v5706, %v5682
          %v6187 = vpack.c.b16 %v5707, %v5683
          %v6188 = vpack.c.b16 %v5708, %v5684
          %v6189 = vpack.c.b16 %v5709, %v5685
          %v6190 = vpack.c.b16 %v5710, %v5686
          %v6191 = vpack.c.b16 %v5711, %v5687
          %v6192 = vpack.c.b16 %v5712, %v5688
          %v6193 = vpack.c.b16 %v5713, %v5689
          %v6194 = vpack.c.b16 %v5714, %v5690
          %v6195 = vpack.c.b16 %v5715, %v5691
          %v6196 = vpack.c.b16 %v5716, %v5692
          %v6197 = vpack.c.b16 %v5717, %v5693
          %v6198 = vpack.c.b16 %v5718, %v5694
          %v6199 = vpack.c.b16 %v5719, %v5695
          %v6200 = vpack.c.b16 %v5744, %v5720
          %v6201 = vpack.c.b16 %v5745, %v5721
          %v6202 = vpack.c.b16 %v5746, %v5722
          %v6203 = vpack.c.b16 %v5747, %v5723
          %v6204 = vpack.c.b16 %v5748, %v5724
          %v6205 = vpack.c.b16 %v5749, %v5725
          %v6206 = vpack.c.b16 %v5750, %v5726
          %v6207 = vpack.c.b16 %v5751, %v5727
          %v6208 = vpack.c.b16 %v5752, %v5728
          %v6209 = vpack.c.b16 %v5753, %v5729
          %v6210 = vpack.c.b16 %v5754, %v5730
          %v6211 = vpack.c.b16 %v5755, %v5731
          %v6212 = vpack.c.b16 %v5756, %v5732
          %v6213 = vpack.c.b16 %v5757, %v5733
          %v6214 = vpack.c.b16 %v5758, %v5734
          %v6215 = vpack.c.b16 %v5759, %v5735
          %v6216 = vpack.c.b16 %v5760, %v5736
          %v6217 = vpack.c.b16 %v5761, %v5737
          %v6218 = vpack.c.b16 %v5762, %v5738
          %v6219 = vpack.c.b16 %v5763, %v5739
          %v6220 = vpack.c.b16 %v5764, %v5740
          %v6221 = vpack.c.b16 %v5765, %v5741
          %v6222 = vpack.c.b16 %v5766, %v5742
          %v6223 = vpack.c.b16 %v5767, %v5743
          %v6224 = vpack.c.b16 %v5792, %v5768
          %v6225 = vpack.c.b16 %v5793, %v5769
          %v6226 = vpack.c.b16 %v5794, %v5770
          %v6227 = vpack.c.b16 %v5795, %v5771
          %v6228 = vpack.c.b16 %v5796, %v5772
          %v6229 = vpack.c.b16 %v5797, %v5773
          %v6230 = vpack.c.b16 %v5798, %v5774
          %v6231 = vpack.c.b16 %v5799, %v5775
          %v6232 = vpack.c.b16 %v5800, %v5776
          %v6233 = vpack.c.b16 %v5801, %v5777
          %v6234 = vpack.c.b16 %v5802, %v5778
          %v6235 = vpack.c.b16 %v5803, %v5779
          %v6236 = vpack.c.b16 %v5804, %v5780
          %v6237 = vpack.c.b16 %v5805, %v5781
          %v6238 = vpack.c.b16 %v5806, %v5782
          %v6239 = vpack.c.b16 %v5807, %v5783
          %v6240 = vpack.c.b16 %v5808, %v5784
          %v6241 = vpack.c.b16 %v5809, %v5785
          %v6242 = vpack.c.b16 %v5810, %v5786
          %v6243 = vpack.c.b16 %v5811, %v5787
          %v6244 = vpack.c.b16 %v5812, %v5788
          %v6245 = vpack.c.b16 %v5813, %v5789
          %v6246 = vpack.c.b16 %v5814, %v5790
          %v6247 = vpack.c.b16 %v5815, %v5791
          %v6248 = vpack.c.b16 %v5840, %v5816
          %v6249 = vpack.c.b16 %v5841, %v5817
          %v6250 = vpack.c.b16 %v5842, %v5818
          %v6251 = vpack.c.b16 %v5843, %v5819
          %v6252 = vpack.c.b16 %v5844, %v5820
          %v6253 = vpack.c.b16 %v5845, %v5821
          %v6254 = vpack.c.b16 %v5846, %v5822
          %v6255 = vpack.c.b16 %v5847, %v5823
          %v6256 = vpack.c.b16 %v5848, %v5824
          %v6257 = vpack.c.b16 %v5849, %v5825
          %v6258 = vpack.c.b16 %v5850, %v5826
          %v6259 = vpack.c.b16 %v5851, %v5827
          %v6260 = vpack.c.b16 %v5852, %v5828
          %v6261 = vpack.c.b16 %v5853, %v5829
          %v6262 = vpack.c.b16 %v5854, %v5830
          %v6263 = vpack.c.b16 %v5855, %v5831
          %v6264 = vpack.c.b16 %v5856, %v5832
          %v6265 = vpack.c.b16 %v5857, %v5833
          %v6266 = vpack.c.b16 %v5858, %v5834
          %v6267 = vpack.c.b16 %v5859, %v5835
          %v6268 = vpack.c.b16 %v5860, %v5836
          %v6269 = vpack.c.b16 %v5861, %v5837
          %v6270 = vpack.c.b16 %v5862, %v5838
          %v6271 = vpack.c.b16 %v5863, %v5839
          %v6272 = vpack.c.b16 %v5888, %v5864
          %v6273 = vpack.c.b16 %v5889, %v5865
          %v6274 = vpack.c.b16 %v5890, %v5866
          %v6275 = vpack.c.b16 %v5891, %v5867
          %v6276 = vpack.c.b16 %v5892, %v5868
          %v6277 = vpack.c.b16 %v5893, %v5869
          %v6278 = vpack.c.b16 %v5894, %v5870
          %v6279 = vpack.c.b16 %v5895, %v5871
          %v6280 = vpack.c.b16 %v5896, %v5872
          %v6281 = vpack.c.b16 %v5897, %v5873
          %v6282 = vpack.c.b16 %v5898, %v5874
          %v6283 = vpack.c.b16 %v5899, %v5875
          %v6284 = vpack.c.b16 %v5900, %v5876
          %v6285 = vpack.c.b16 %v5901, %v5877
          %v6286 = vpack.c.b16 %v5902, %v5878
          %v6287 = vpack.c.b16 %v5903, %v5879
          %v6288 = vpack.c.b16 %v5904, %v5880
          %v6289 = vpack.c.b16 %v5905, %v5881
          %v6290 = vpack.c.b16 %v5906, %v5882
          %v6291 = vpack.c.b16 %v5907, %v5883
          %v6292 = vpack.c.b16 %v5908, %v5884
          %v6293 = vpack.c.b16 %v5909, %v5885
          %v6294 = vpack.c.b16 %v5910, %v5886
          %v6295 = vpack.c.b16 %v5911, %v5887
          %6680 = vmatprep.subr.bf16.mxu0 %v5913
          %6681 = vmatpush1.bf16.msra.mxu0 %v5912
          %6682 = vmatprep.subr.bf16.mxu0 %v5937
          %6683 = vmatpush1.bf16.msra.mxu0 %v5936
          %6684 = vmatprep.subr.bf16.mxu0 %v5961
          %6685 = vmatpush1.bf16.msra.mxu0 %v5960
          %6686 = vmatprep.subr.bf16.mxu0 %v5985
          %6687 = vmatpush1.bf16.msra.mxu0 %v5984
          %6688 = vmatprep.subr.bf16.mxu0 %v6009
          %6689 = vmatpush1.bf16.msra.mxu0 %v6008
          %6690 = vmatprep.subr.bf16.mxu0 %v6033
          %6691 = vmatpush1.bf16.msra.mxu0 %v6032
          %6692 = vmatprep.subr.bf16.mxu0 %v6057
          %6693 = vmatpush1.bf16.msra.mxu0 %v6056
          %6694 = vmatprep.subr.bf16.mxu0 %v6081
          %6695 = vmatpush1.bf16.msra.mxu0 %v6080
          %6696 = vmatprep.subr.bf16.mxu0 %v6105
          %6697 = vmatpush1.bf16.msra.mxu0 %v6104
          %6698 = vmatprep.subr.bf16.mxu0 %v6129
          %6699 = vmatpush1.bf16.msra.mxu0 %v6128
          %6700 = vmatprep.subr.bf16.mxu0 %v6153
          %6701 = vmatpush1.bf16.msra.mxu0 %v6152
          %6702 = vmatprep.subr.bf16.mxu0 %v6177
          %6703 = vmatpush1.bf16.msra.mxu0 %v6176
          %6704 = vmatprep.subr.bf16.mxu0 %v6201
          %6705 = vmatpush1.bf16.msra.mxu0 %v6200
          %6706 = vmatprep.subr.bf16.mxu0 %v6225
          %6707 = vmatpush1.bf16.msra.mxu0 %v6224
          %6708 = vmatprep.subr.bf16.mxu0 %v6249
          %6709 = vmatpush1.bf16.msra.mxu0 %v6248
          %6710 = vmatprep.subr.bf16.mxu0 %v6273
          %6711 = vmatpush1.bf16.msra.mxu0 %v6272
          %6712 = vmatprep.mubr.bf16.mxu0 %v4249
          %6713 = vmatmul.mubr.bf16.gmra.mrb[0].mxu0 %v4248
          %v6714 = vpop.f32.mrb[0].mxu0
          %v6715 = vadd.f32 %v4643, %v6714
          %v6716 = vpop.f32.mrb[0].mxu0
          %v6717 = vadd.f32 %v4647, %v6716
          %v6718 = vpop.f32.mrb[0].mxu0
          %v6719 = vpop.f32.mrb[0].mxu0
          %6720 = vdwg.mxu0
          %6721 = vmatprep.subr.bf16.mxu0 %v5915
          %6722 = vmatpush1.bf16.msra.mxu0 %v5914
          %6723 = vmatprep.subr.bf16.mxu0 %v5939
          %6724 = vmatpush1.bf16.msra.mxu0 %v5938
          %6725 = vmatprep.subr.bf16.mxu0 %v5963
          %6726 = vmatpush1.bf16.msra.mxu0 %v5962
          %6727 = vmatprep.subr.bf16.mxu0 %v5987
          %6728 = vmatpush1.bf16.msra.mxu0 %v5986
          %6729 = vmatprep.subr.bf16.mxu0 %v6011
          %6730 = vmatpush1.bf16.msra.mxu0 %v6010
          %6731 = vmatprep.subr.bf16.mxu0 %v6035
          %6732 = vmatpush1.bf16.msra.mxu0 %v6034
          %6733 = vmatprep.subr.bf16.mxu0 %v6059
          %6734 = vmatpush1.bf16.msra.mxu0 %v6058
          %6735 = vmatprep.subr.bf16.mxu0 %v6083
          %6736 = vmatpush1.bf16.msra.mxu0 %v6082
          %6737 = vmatprep.subr.bf16.mxu0 %v6107
          %6738 = vmatpush1.bf16.msra.mxu0 %v6106
          %6739 = vmatprep.subr.bf16.mxu0 %v6131
          %6740 = vmatpush1.bf16.msra.mxu0 %v6130
          %6741 = vmatprep.subr.bf16.mxu0 %v6155
          %6742 = vmatpush1.bf16.msra.mxu0 %v6154
          %6743 = vmatprep.subr.bf16.mxu0 %v6179
          %6744 = vmatpush1.bf16.msra.mxu0 %v6178
          %6745 = vmatprep.subr.bf16.mxu0 %v6203
          %6746 = vmatpush1.bf16.msra.mxu0 %v6202
          %6747 = vmatprep.subr.bf16.mxu0 %v6227
          %6748 = vmatpush1.bf16.msra.mxu0 %v6226
          %6749 = vmatprep.subr.bf16.mxu0 %v6251
          %6750 = vmatpush1.bf16.msra.mxu0 %v6250
          %6751 = vmatprep.subr.bf16.mxu0 %v6275
          %6752 = vmatpush1.bf16.msra.mxu0 %v6274
          %6753 = vmatprep.mubr.bf16.mxu0 %v4249
          %6754 = vmatmul.mubr.bf16.gmra.mrb[0].mxu0 %v4248
          %v6755 = vpop.f32.mrb[0].mxu0
          %v6756 = vadd.f32 %v4651, %v6755
          %v6757 = vpop.f32.mrb[0].mxu0
          %v6758 = vadd.f32 %v4655, %v6757
          %v6759 = vpop.f32.mrb[0].mxu0
          %v6760 = vpop.f32.mrb[0].mxu0
          %6761 = vdwg.mxu0
          %6762 = vmatprep.subr.bf16.mxu0 %v5917
          %6763 = vmatpush1.bf16.msra.mxu0 %v5916
          %6764 = vmatprep.subr.bf16.mxu0 %v5941
          %6765 = vmatpush1.bf16.msra.mxu0 %v5940
          %6766 = vmatprep.subr.bf16.mxu0 %v5965
          %6767 = vmatpush1.bf16.msra.mxu0 %v5964
          %6768 = vmatprep.subr.bf16.mxu0 %v5989
          %6769 = vmatpush1.bf16.msra.mxu0 %v5988
          %6770 = vmatprep.subr.bf16.mxu0 %v6013
          %6771 = vmatpush1.bf16.msra.mxu0 %v6012
          %6772 = vmatprep.subr.bf16.mxu0 %v6037
          %6773 = vmatpush1.bf16.msra.mxu0 %v6036
          %6774 = vmatprep.subr.bf16.mxu0 %v6061
          %6775 = vmatpush1.bf16.msra.mxu0 %v6060
          %6776 = vmatprep.subr.bf16.mxu0 %v6085
          %6777 = vmatpush1.bf16.msra.mxu0 %v6084
          %6778 = vmatprep.subr.bf16.mxu0 %v6109
          %6779 = vmatpush1.bf16.msra.mxu0 %v6108
          %6780 = vmatprep.subr.bf16.mxu0 %v6133
          %6781 = vmatpush1.bf16.msra.mxu0 %v6132
          %6782 = vmatprep.subr.bf16.mxu0 %v6157
          %6783 = vmatpush1.bf16.msra.mxu0 %v6156
          %6784 = vmatprep.subr.bf16.mxu0 %v6181
          %6785 = vmatpush1.bf16.msra.mxu0 %v6180
          %6786 = vmatprep.subr.bf16.mxu0 %v6205
          %6787 = vmatpush1.bf16.msra.mxu0 %v6204
          %6788 = vmatprep.subr.bf16.mxu0 %v6229
          %6789 = vmatpush1.bf16.msra.mxu0 %v6228
          %6790 = vmatprep.subr.bf16.mxu0 %v6253
          %6791 = vmatpush1.bf16.msra.mxu0 %v6252
          %6792 = vmatprep.subr.bf16.mxu0 %v6277
          %6793 = vmatpush1.bf16.msra.mxu0 %v6276
          %6794 = vmatprep.mubr.bf16.mxu0 %v4249
          %6795 = vmatmul.mubr.bf16.gmra.mrb[0].mxu0 %v4248
          %v6796 = vpop.f32.mrb[0].mxu0
          %v6797 = vadd.f32 %v4659, %v6796
          %v6798 = vpop.f32.mrb[0].mxu0
          %v6799 = vadd.f32 %v4663, %v6798
          %v6800 = vpop.f32.mrb[0].mxu0
          %v6801 = vpop.f32.mrb[0].mxu0
          %6802 = vdwg.mxu0
          %6803 = vmatprep.subr.bf16.mxu0 %v5919
          %6804 = vmatpush1.bf16.msra.mxu0 %v5918
          %6805 = vmatprep.subr.bf16.mxu0 %v5943
          %6806 = vmatpush1.bf16.msra.mxu0 %v5942
          %6807 = vmatprep.subr.bf16.mxu0 %v5967
          %6808 = vmatpush1.bf16.msra.mxu0 %v5966
          %6809 = vmatprep.subr.bf16.mxu0 %v5991
          %6810 = vmatpush1.bf16.msra.mxu0 %v5990
          %6811 = vmatprep.subr.bf16.mxu0 %v6015
          %6812 = vmatpush1.bf16.msra.mxu0 %v6014
          %6813 = vmatprep.subr.bf16.mxu0 %v6039
          %6814 = vmatpush1.bf16.msra.mxu0 %v6038
          %6815 = vmatprep.subr.bf16.mxu0 %v6063
          %6816 = vmatpush1.bf16.msra.mxu0 %v6062
          %6817 = vmatprep.subr.bf16.mxu0 %v6087
          %6818 = vmatpush1.bf16.msra.mxu0 %v6086
          %6819 = vmatprep.subr.bf16.mxu0 %v6111
          %6820 = vmatpush1.bf16.msra.mxu0 %v6110
          %6821 = vmatprep.subr.bf16.mxu0 %v6135
          %6822 = vmatpush1.bf16.msra.mxu0 %v6134
          %6823 = vmatprep.subr.bf16.mxu0 %v6159
          %6824 = vmatpush1.bf16.msra.mxu0 %v6158
          %6825 = vmatprep.subr.bf16.mxu0 %v6183
          %6826 = vmatpush1.bf16.msra.mxu0 %v6182
          %6827 = vmatprep.subr.bf16.mxu0 %v6207
          %6828 = vmatpush1.bf16.msra.mxu0 %v6206
          %6829 = vmatprep.subr.bf16.mxu0 %v6231
          %6830 = vmatpush1.bf16.msra.mxu0 %v6230
          %6831 = vmatprep.subr.bf16.mxu0 %v6255
          %6832 = vmatpush1.bf16.msra.mxu0 %v6254
          %6833 = vmatprep.subr.bf16.mxu0 %v6279
          %6834 = vmatpush1.bf16.msra.mxu0 %v6278
          %6835 = vmatprep.mubr.bf16.mxu0 %v4249
          %6836 = vmatmul.mubr.bf16.gmra.mrb[0].mxu0 %v4248
          %v6837 = vpop.f32.mrb[0].mxu0
          %v6838 = vadd.f32 %v4667, %v6837
          %v6839 = vpop.f32.mrb[0].mxu0
          %v6840 = vadd.f32 %v4671, %v6839
          %v6841 = vpop.f32.mrb[0].mxu0
          %v6842 = vpop.f32.mrb[0].mxu0
          %6843 = vdwg.mxu0
          %6844 = vmatprep.subr.bf16.mxu0 %v5921
          %6845 = vmatpush1.bf16.msra.mxu0 %v5920
          %6846 = vmatprep.subr.bf16.mxu0 %v5945
          %6847 = vmatpush1.bf16.msra.mxu0 %v5944
          %6848 = vmatprep.subr.bf16.mxu0 %v5969
          %6849 = vmatpush1.bf16.msra.mxu0 %v5968
          %6850 = vmatprep.subr.bf16.mxu0 %v5993
          %6851 = vmatpush1.bf16.msra.mxu0 %v5992
          %6852 = vmatprep.subr.bf16.mxu0 %v6017
          %6853 = vmatpush1.bf16.msra.mxu0 %v6016
          %6854 = vmatprep.subr.bf16.mxu0 %v6041
          %6855 = vmatpush1.bf16.msra.mxu0 %v6040
          %6856 = vmatprep.subr.bf16.mxu0 %v6065
          %6857 = vmatpush1.bf16.msra.mxu0 %v6064
          %6858 = vmatprep.subr.bf16.mxu0 %v6089
          %6859 = vmatpush1.bf16.msra.mxu0 %v6088
          %6860 = vmatprep.subr.bf16.mxu0 %v6113
          %6861 = vmatpush1.bf16.msra.mxu0 %v6112
          %6862 = vmatprep.subr.bf16.mxu0 %v6137
          %6863 = vmatpush1.bf16.msra.mxu0 %v6136
          %6864 = vmatprep.subr.bf16.mxu0 %v6161
          %6865 = vmatpush1.bf16.msra.mxu0 %v6160
          %6866 = vmatprep.subr.bf16.mxu0 %v6185
          %6867 = vmatpush1.bf16.msra.mxu0 %v6184
          %6868 = vmatprep.subr.bf16.mxu0 %v6209
          %6869 = vmatpush1.bf16.msra.mxu0 %v6208
          %6870 = vmatprep.subr.bf16.mxu0 %v6233
          %6871 = vmatpush1.bf16.msra.mxu0 %v6232
          %6872 = vmatprep.subr.bf16.mxu0 %v6257
          %6873 = vmatpush1.bf16.msra.mxu0 %v6256
          %6874 = vmatprep.subr.bf16.mxu0 %v6281
          %6875 = vmatpush1.bf16.msra.mxu0 %v6280
          %6876 = vmatprep.mubr.bf16.mxu0 %v4249
          %6877 = vmatmul.mubr.bf16.gmra.mrb[0].mxu0 %v4248
          %v6878 = vpop.f32.mrb[0].mxu0
          %v6879 = vadd.f32 %v4675, %v6878
          %v6880 = vpop.f32.mrb[0].mxu0
          %v6881 = vadd.f32 %v4679, %v6880
          %v6882 = vpop.f32.mrb[0].mxu0
          %v6883 = vpop.f32.mrb[0].mxu0
          %6884 = vdwg.mxu0
          %6885 = vmatprep.subr.bf16.mxu0 %v5923
          %6886 = vmatpush1.bf16.msra.mxu0 %v5922
          %6887 = vmatprep.subr.bf16.mxu0 %v5947
          %6888 = vmatpush1.bf16.msra.mxu0 %v5946
          %6889 = vmatprep.subr.bf16.mxu0 %v5971
          %6890 = vmatpush1.bf16.msra.mxu0 %v5970
          %6891 = vmatprep.subr.bf16.mxu0 %v5995
          %6892 = vmatpush1.bf16.msra.mxu0 %v5994
          %6893 = vmatprep.subr.bf16.mxu0 %v6019
          %6894 = vmatpush1.bf16.msra.mxu0 %v6018
          %6895 = vmatprep.subr.bf16.mxu0 %v6043
          %6896 = vmatpush1.bf16.msra.mxu0 %v6042
          %6897 = vmatprep.subr.bf16.mxu0 %v6067
          %6898 = vmatpush1.bf16.msra.mxu0 %v6066
          %6899 = vmatprep.subr.bf16.mxu0 %v6091
          %6900 = vmatpush1.bf16.msra.mxu0 %v6090
          %6901 = vmatprep.subr.bf16.mxu0 %v6115
          %6902 = vmatpush1.bf16.msra.mxu0 %v6114
          %6903 = vmatprep.subr.bf16.mxu0 %v6139
          %6904 = vmatpush1.bf16.msra.mxu0 %v6138
          %6905 = vmatprep.subr.bf16.mxu0 %v6163
          %6906 = vmatpush1.bf16.msra.mxu0 %v6162
          %6907 = vmatprep.subr.bf16.mxu0 %v6187
          %6908 = vmatpush1.bf16.msra.mxu0 %v6186
          %6909 = vmatprep.subr.bf16.mxu0 %v6211
          %6910 = vmatpush1.bf16.msra.mxu0 %v6210
          %6911 = vmatprep.subr.bf16.mxu0 %v6235
          %6912 = vmatpush1.bf16.msra.mxu0 %v6234
          %6913 = vmatprep.subr.bf16.mxu0 %v6259
          %6914 = vmatpush1.bf16.msra.mxu0 %v6258
          %6915 = vmatprep.subr.bf16.mxu0 %v6283
          %6916 = vmatpush1.bf16.msra.mxu0 %v6282
          %6917 = vmatprep.mubr.bf16.mxu0 %v4249
          %6918 = vmatmul.mubr.bf16.gmra.mrb[0].mxu0 %v4248
          %v6919 = vpop.f32.mrb[0].mxu0
          %v6920 = vadd.f32 %v4683, %v6919
          %v6921 = vpop.f32.mrb[0].mxu0
          %v6922 = vadd.f32 %v4687, %v6921
          %v6923 = vpop.f32.mrb[0].mxu0
          %v6924 = vpop.f32.mrb[0].mxu0
          %6925 = vdwg.mxu0
          %6926 = vmatprep.subr.bf16.mxu0 %v5925
          %6927 = vmatpush1.bf16.msra.mxu0 %v5924
          %6928 = vmatprep.subr.bf16.mxu0 %v5949
          %6929 = vmatpush1.bf16.msra.mxu0 %v5948
          %6930 = vmatprep.subr.bf16.mxu0 %v5973
          %6931 = vmatpush1.bf16.msra.mxu0 %v5972
          %6932 = vmatprep.subr.bf16.mxu0 %v5997
          %6933 = vmatpush1.bf16.msra.mxu0 %v5996
          %6934 = vmatprep.subr.bf16.mxu0 %v6021
          %6935 = vmatpush1.bf16.msra.mxu0 %v6020
          %6936 = vmatprep.subr.bf16.mxu0 %v6045
          %6937 = vmatpush1.bf16.msra.mxu0 %v6044
          %6938 = vmatprep.subr.bf16.mxu0 %v6069
          %6939 = vmatpush1.bf16.msra.mxu0 %v6068
          %6940 = vmatprep.subr.bf16.mxu0 %v6093
          %6941 = vmatpush1.bf16.msra.mxu0 %v6092
          %6942 = vmatprep.subr.bf16.mxu0 %v6117
          %6943 = vmatpush1.bf16.msra.mxu0 %v6116
          %6944 = vmatprep.subr.bf16.mxu0 %v6141
          %6945 = vmatpush1.bf16.msra.mxu0 %v6140
          %6946 = vmatprep.subr.bf16.mxu0 %v6165
          %6947 = vmatpush1.bf16.msra.mxu0 %v6164
          %6948 = vmatprep.subr.bf16.mxu0 %v6189
          %6949 = vmatpush1.bf16.msra.mxu0 %v6188
          %6950 = vmatprep.subr.bf16.mxu0 %v6213
          %6951 = vmatpush1.bf16.msra.mxu0 %v6212
          %6952 = vmatprep.subr.bf16.mxu0 %v6237
          %6953 = vmatpush1.bf16.msra.mxu0 %v6236
          %6954 = vmatprep.subr.bf16.mxu0 %v6261
          %6955 = vmatpush1.bf16.msra.mxu0 %v6260
          %6956 = vmatprep.subr.bf16.mxu0 %v6285
          %6957 = vmatpush1.bf16.msra.mxu0 %v6284
          %6958 = vmatprep.mubr.bf16.mxu0 %v4249
          %6959 = vmatmul.mubr.bf16.gmra.mrb[0].mxu0 %v4248
          %v6960 = vpop.f32.mrb[0].mxu0
          %v6961 = vadd.f32 %v4691, %v6960
          %v6962 = vpop.f32.mrb[0].mxu0
          %v6963 = vadd.f32 %v4695, %v6962
          %v6964 = vpop.f32.mrb[0].mxu0
          %v6965 = vpop.f32.mrb[0].mxu0
          %6966 = vdwg.mxu0
          %6967 = vmatprep.subr.bf16.mxu0 %v5927
          %6968 = vmatpush1.bf16.msra.mxu0 %v5926
          %6969 = vmatprep.subr.bf16.mxu0 %v5951
          %6970 = vmatpush1.bf16.msra.mxu0 %v5950
          %6971 = vmatprep.subr.bf16.mxu0 %v5975
          %6972 = vmatpush1.bf16.msra.mxu0 %v5974
          %6973 = vmatprep.subr.bf16.mxu0 %v5999
          %6974 = vmatpush1.bf16.msra.mxu0 %v5998
          %6975 = vmatprep.subr.bf16.mxu0 %v6023
          %6976 = vmatpush1.bf16.msra.mxu0 %v6022
          %6977 = vmatprep.subr.bf16.mxu0 %v6047
          %6978 = vmatpush1.bf16.msra.mxu0 %v6046
          %6979 = vmatprep.subr.bf16.mxu0 %v6071
          %6980 = vmatpush1.bf16.msra.mxu0 %v6070
          %6981 = vmatprep.subr.bf16.mxu0 %v6095
          %6982 = vmatpush1.bf16.msra.mxu0 %v6094
          %6983 = vmatprep.subr.bf16.mxu0 %v6119
          %6984 = vmatpush1.bf16.msra.mxu0 %v6118
          %6985 = vmatprep.subr.bf16.mxu0 %v6143
          %6986 = vmatpush1.bf16.msra.mxu0 %v6142
          %6987 = vmatprep.subr.bf16.mxu0 %v6167
          %6988 = vmatpush1.bf16.msra.mxu0 %v6166
          %6989 = vmatprep.subr.bf16.mxu0 %v6191
          %6990 = vmatpush1.bf16.msra.mxu0 %v6190
          %6991 = vmatprep.subr.bf16.mxu0 %v6215
          %6992 = vmatpush1.bf16.msra.mxu0 %v6214
          %6993 = vmatprep.subr.bf16.mxu0 %v6239
          %6994 = vmatpush1.bf16.msra.mxu0 %v6238
          %6995 = vmatprep.subr.bf16.mxu0 %v6263
          %6996 = vmatpush1.bf16.msra.mxu0 %v6262
          %6997 = vmatprep.subr.bf16.mxu0 %v6287
          %6998 = vmatpush1.bf16.msra.mxu0 %v6286
          %6999 = vmatprep.mubr.bf16.mxu0 %v4249
          %7000 = vmatmul.mubr.bf16.gmra.mrb[0].mxu0 %v4248
          %v7001 = vpop.f32.mrb[0].mxu0
          %v7002 = vadd.f32 %v4699, %v7001
          %v7003 = vpop.f32.mrb[0].mxu0
          %v7004 = vadd.f32 %v4703, %v7003
          %v7005 = vpop.f32.mrb[0].mxu0
          %v7006 = vpop.f32.mrb[0].mxu0
          %7007 = vdwg.mxu0
          %7008 = vmatprep.subr.bf16.mxu0 %v5929
          %7009 = vmatpush1.bf16.msra.mxu0 %v5928
          %7010 = vmatprep.subr.bf16.mxu0 %v5953
          %7011 = vmatpush1.bf16.msra.mxu0 %v5952
          %7012 = vmatprep.subr.bf16.mxu0 %v5977
          %7013 = vmatpush1.bf16.msra.mxu0 %v5976
          %7014 = vmatprep.subr.bf16.mxu0 %v6001
          %7015 = vmatpush1.bf16.msra.mxu0 %v6000
          %7016 = vmatprep.subr.bf16.mxu0 %v6025
          %7017 = vmatpush1.bf16.msra.mxu0 %v6024
          %7018 = vmatprep.subr.bf16.mxu0 %v6049
          %7019 = vmatpush1.bf16.msra.mxu0 %v6048
          %7020 = vmatprep.subr.bf16.mxu0 %v6073
          %7021 = vmatpush1.bf16.msra.mxu0 %v6072
          %7022 = vmatprep.subr.bf16.mxu0 %v6097
          %7023 = vmatpush1.bf16.msra.mxu0 %v6096
          %7024 = vmatprep.subr.bf16.mxu0 %v6121
          %7025 = vmatpush1.bf16.msra.mxu0 %v6120
          %7026 = vmatprep.subr.bf16.mxu0 %v6145
          %7027 = vmatpush1.bf16.msra.mxu0 %v6144
          %7028 = vmatprep.subr.bf16.mxu0 %v6169
          %7029 = vmatpush1.bf16.msra.mxu0 %v6168
          %7030 = vmatprep.subr.bf16.mxu0 %v6193
          %7031 = vmatpush1.bf16.msra.mxu0 %v6192
          %7032 = vmatprep.subr.bf16.mxu0 %v6217
          %7033 = vmatpush1.bf16.msra.mxu0 %v6216
          %7034 = vmatprep.subr.bf16.mxu0 %v6241
          %7035 = vmatpush1.bf16.msra.mxu0 %v6240
          %7036 = vmatprep.subr.bf16.mxu0 %v6265
          %7037 = vmatpush1.bf16.msra.mxu0 %v6264
          %7038 = vmatprep.subr.bf16.mxu0 %v6289
          %7039 = vmatpush1.bf16.msra.mxu0 %v6288
          %7040 = vmatprep.mubr.bf16.mxu0 %v4249
          %7041 = vmatmul.mubr.bf16.gmra.mrb[0].mxu0 %v4248
          %v7042 = vpop.f32.mrb[0].mxu0
          %v7043 = vadd.f32 %v4707, %v7042
          %v7044 = vpop.f32.mrb[0].mxu0
          %v7045 = vadd.f32 %v4711, %v7044
          %v7046 = vpop.f32.mrb[0].mxu0
          %v7047 = vpop.f32.mrb[0].mxu0
          %7048 = vdwg.mxu0
          %7049 = vmatprep.subr.bf16.mxu0 %v5931
          %7050 = vmatpush1.bf16.msra.mxu0 %v5930
          %7051 = vmatprep.subr.bf16.mxu0 %v5955
          %7052 = vmatpush1.bf16.msra.mxu0 %v5954
          %7053 = vmatprep.subr.bf16.mxu0 %v5979
          %7054 = vmatpush1.bf16.msra.mxu0 %v5978
          %7055 = vmatprep.subr.bf16.mxu0 %v6003
          %7056 = vmatpush1.bf16.msra.mxu0 %v6002
          %7057 = vmatprep.subr.bf16.mxu0 %v6027
          %7058 = vmatpush1.bf16.msra.mxu0 %v6026
          %7059 = vmatprep.subr.bf16.mxu0 %v6051
          %7060 = vmatpush1.bf16.msra.mxu0 %v6050
          %7061 = vmatprep.subr.bf16.mxu0 %v6075
          %7062 = vmatpush1.bf16.msra.mxu0 %v6074
          %7063 = vmatprep.subr.bf16.mxu0 %v6099
          %7064 = vmatpush1.bf16.msra.mxu0 %v6098
          %7065 = vmatprep.subr.bf16.mxu0 %v6123
          %7066 = vmatpush1.bf16.msra.mxu0 %v6122
          %7067 = vmatprep.subr.bf16.mxu0 %v6147
          %7068 = vmatpush1.bf16.msra.mxu0 %v6146
          %7069 = vmatprep.subr.bf16.mxu0 %v6171
          %7070 = vmatpush1.bf16.msra.mxu0 %v6170
          %7071 = vmatprep.subr.bf16.mxu0 %v6195
          %7072 = vmatpush1.bf16.msra.mxu0 %v6194
          %7073 = vmatprep.subr.bf16.mxu0 %v6219
          %7074 = vmatpush1.bf16.msra.mxu0 %v6218
          %7075 = vmatprep.subr.bf16.mxu0 %v6243
          %7076 = vmatpush1.bf16.msra.mxu0 %v6242
          %7077 = vmatprep.subr.bf16.mxu0 %v6267
          %7078 = vmatpush1.bf16.msra.mxu0 %v6266
          %7079 = vmatprep.subr.bf16.mxu0 %v6291
          %7080 = vmatpush1.bf16.msra.mxu0 %v6290
          %7081 = vmatprep.mubr.bf16.mxu0 %v4249
          %7082 = vmatmul.mubr.bf16.gmra.mrb[0].mxu0 %v4248
          %v7083 = vpop.f32.mrb[0].mxu0
          %v7084 = vadd.f32 %v4715, %v7083
          %v7085 = vpop.f32.mrb[0].mxu0
          %v7086 = vadd.f32 %v4719, %v7085
          %v7087 = vpop.f32.mrb[0].mxu0
          %v7088 = vpop.f32.mrb[0].mxu0
          %7089 = vdwg.mxu0
          %7090 = vmatprep.subr.bf16.mxu0 %v5933
          %7091 = vmatpush1.bf16.msra.mxu0 %v5932
          %7092 = vmatprep.subr.bf16.mxu0 %v5957
          %7093 = vmatpush1.bf16.msra.mxu0 %v5956
          %7094 = vmatprep.subr.bf16.mxu0 %v5981
          %7095 = vmatpush1.bf16.msra.mxu0 %v5980
          %7096 = vmatprep.subr.bf16.mxu0 %v6005
          %7097 = vmatpush1.bf16.msra.mxu0 %v6004
          %7098 = vmatprep.subr.bf16.mxu0 %v6029
          %7099 = vmatpush1.bf16.msra.mxu0 %v6028
          %7100 = vmatprep.subr.bf16.mxu0 %v6053
          %7101 = vmatpush1.bf16.msra.mxu0 %v6052
          %7102 = vmatprep.subr.bf16.mxu0 %v6077
          %7103 = vmatpush1.bf16.msra.mxu0 %v6076
          %7104 = vmatprep.subr.bf16.mxu0 %v6101
          %7105 = vmatpush1.bf16.msra.mxu0 %v6100
          %7106 = vmatprep.subr.bf16.mxu0 %v6125
          %7107 = vmatpush1.bf16.msra.mxu0 %v6124
          %7108 = vmatprep.subr.bf16.mxu0 %v6149
          %7109 = vmatpush1.bf16.msra.mxu0 %v6148
          %7110 = vmatprep.subr.bf16.mxu0 %v6173
          %7111 = vmatpush1.bf16.msra.mxu0 %v6172
          %7112 = vmatprep.subr.bf16.mxu0 %v6197
          %7113 = vmatpush1.bf16.msra.mxu0 %v6196
          %7114 = vmatprep.subr.bf16.mxu0 %v6221
          %7115 = vmatpush1.bf16.msra.mxu0 %v6220
          %7116 = vmatprep.subr.bf16.mxu0 %v6245
          %7117 = vmatpush1.bf16.msra.mxu0 %v6244
          %7118 = vmatprep.subr.bf16.mxu0 %v6269
          %7119 = vmatpush1.bf16.msra.mxu0 %v6268
          %7120 = vmatprep.subr.bf16.mxu0 %v6293
          %7121 = vmatpush1.bf16.msra.mxu0 %v6292
          %7122 = vmatprep.mubr.bf16.mxu0 %v4249
          %7123 = vmatmul.mubr.bf16.gmra.mrb[0].mxu0 %v4248
          %v7124 = vpop.f32.mrb[0].mxu0
          %v7125 = vadd.f32 %v4723, %v7124
          %v7126 = vpop.f32.mrb[0].mxu0
          %v7127 = vadd.f32 %v4727, %v7126
          %v7128 = vpop.f32.mrb[0].mxu0
          %v7129 = vpop.f32.mrb[0].mxu0
          %7130 = vdwg.mxu0
          %7131 = vmatprep.subr.bf16.mxu0 %v5935
          %7132 = vmatpush1.bf16.msra.mxu0 %v5934
          %7133 = vmatprep.subr.bf16.mxu0 %v5959
          %7134 = vmatpush1.bf16.msra.mxu0 %v5958
          %7135 = vmatprep.subr.bf16.mxu0 %v5983
          %7136 = vmatpush1.bf16.msra.mxu0 %v5982
          %7137 = vmatprep.subr.bf16.mxu0 %v6007
          %7138 = vmatpush1.bf16.msra.mxu0 %v6006
          %7139 = vmatprep.subr.bf16.mxu0 %v6031
          %7140 = vmatpush1.bf16.msra.mxu0 %v6030
          %7141 = vmatprep.subr.bf16.mxu0 %v6055
          %7142 = vmatpush1.bf16.msra.mxu0 %v6054
          %7143 = vmatprep.subr.bf16.mxu0 %v6079
          %7144 = vmatpush1.bf16.msra.mxu0 %v6078
          %7145 = vmatprep.subr.bf16.mxu0 %v6103
          %7146 = vmatpush1.bf16.msra.mxu0 %v6102
          %7147 = vmatprep.subr.bf16.mxu0 %v6127
          %7148 = vmatpush1.bf16.msra.mxu0 %v6126
          %7149 = vmatprep.subr.bf16.mxu0 %v6151
          %7150 = vmatpush1.bf16.msra.mxu0 %v6150
          %7151 = vmatprep.subr.bf16.mxu0 %v6175
          %7152 = vmatpush1.bf16.msra.mxu0 %v6174
          %7153 = vmatprep.subr.bf16.mxu0 %v6199
          %7154 = vmatpush1.bf16.msra.mxu0 %v6198
          %7155 = vmatprep.subr.bf16.mxu0 %v6223
          %7156 = vmatpush1.bf16.msra.mxu0 %v6222
          %7157 = vmatprep.subr.bf16.mxu0 %v6247
          %7158 = vmatpush1.bf16.msra.mxu0 %v6246
          %7159 = vmatprep.subr.bf16.mxu0 %v6271
          %7160 = vmatpush1.bf16.msra.mxu0 %v6270
          %7161 = vmatprep.subr.bf16.mxu0 %v6295
          %7162 = vmatpush1.bf16.msra.mxu0 %v6294
          %7163 = vmatprep.mubr.bf16.mxu0 %v4249
          %7164 = vmatmul.mubr.bf16.gmra.mrb[0].mxu0 %v4248
          %v7165 = vpop.f32.mrb[0].mxu0
          %v7166 = vadd.f32 %v4731, %v7165
          %v7167 = vpop.f32.mrb[0].mxu0
          %v7168 = vadd.f32 %v4735, %v7167
          %v7169 = vpop.f32.mrb[0].mxu0
          %v7170 = vpop.f32.mrb[0].mxu0
          %7171 = vdwg.mxu0
          %7172 = vst [vmem:[%s530] sm:$0xff] %v6715
          %7173 = vst [vmem:[%s530 + $0x8] sm:$0xff] %v6717
          %7174 = vst [vmem:[%s530 + $0x10] sm:$0xff] %v6756
          %7175 = vst [vmem:[%s530 + $0x18] sm:$0xff] %v6758
          %7176 = vst [vmem:[%s530 + $0x20] sm:$0xff] %v6797
          %7177 = vst [vmem:[%s530 + $0x28] sm:$0xff] %v6799
          %7178 = vst [vmem:[%s530 + $0x30] sm:$0xff] %v6838
          %7179 = vst [vmem:[%s530 + $0x38] sm:$0xff] %v6840
          %7180 = vst [vmem:[%s530 + $0x40] sm:$0xff] %v6879
          %7181 = vst [vmem:[%s530 + $0x48] sm:$0xff] %v6881
          %7182 = vst [vmem:[%s530 + $0x50] sm:$0xff] %v6920
          %7183 = vst [vmem:[%s530 + $0x58] sm:$0xff] %v6922
          %7184 = vst [vmem:[%s530 + $0x60] sm:$0xff] %v6961
          %7185 = vst [vmem:[%s530 + $0x68] sm:$0xff] %v6963
          %7186 = vst [vmem:[%s530 + $0x70] sm:$0xff] %v7002
          %7187 = vst [vmem:[%s530 + $0x78] sm:$0xff] %v7004
          %7188 = vst [vmem:[%s530 + $0x80] sm:$0xff] %v7043
          %7189 = vst [vmem:[%s530 + $0x88] sm:$0xff] %v7045
          %7190 = vst [vmem:[%s530 + $0x90] sm:$0xff] %v7084
          %7191 = vst [vmem:[%s530 + $0x98] sm:$0xff] %v7086
          %7192 = vst [vmem:[%s530 + $0xa0] sm:$0xff] %v7125
          %7193 = vst [vmem:[%s530 + $0xa8] sm:$0xff] %v7127
          %7194 = vst [vmem:[%s530 + $0xb0] sm:$0xff] %v7166
          %7195 = vst [vmem:[%s530 + $0xb8] sm:$0xff] %v7168
        $region114: #{generator_forward.1} parent=97 // pred_fallthru
          _
        %p7196 = scmp.lt.s32.totalorder %s26, 1
        %s7197 = scalar_select %p7196, %s26, 1
        %s7198 = smul.addr %s7197, 24
        %s7199 = smul.addr %s7198, 8
        %s7200 = scalar_lea.vmem %s11, %s7199
        // Predicated region
        $region115: #{generator_forward.1} parent=97 // pred_check
          %p7201 = pneg %p290
        $region116: #{generator_forward.1} parent=97 // pred_check_branch
          %7203 = sbr.rel (%p7201) target = $region118
        $region117: #{generator_forward.1} parent=97 // pred_region
          _
        $region118: #{generator_forward.1} parent=97 // pred_fallthru
          _
      $region98: #{generator_forward.1} parent=5 // pred_fallthru
        _
      %p7204 = scmp.le.s32.totalorder 2, %s17
      // Predicated region
      $region119: #{generator_forward.1} parent=5 // pred_check
        %p7205 = pneg %p7204
      $region120: #{generator_forward.1} parent=5 // pred_check_branch
        %7207 = sbr.rel (%p7205) target = $region122
      $region121: #{generator_forward.1} parent=5 // pred_region
        %s7208 = ssub.s32 %s17, 2
        // Predicated region
        $region123: #{generator_forward.1} parent=121 // pred_check
          %p7209 = pneg %p296
        $region124: #{generator_forward.1} parent=121 // pred_check_branch
          %7211 = sbr.rel (%p7209) target = $region126
        $region125: #{generator_forward.1} parent=121 // pred_region
          %p7212 = scmp.lt.s32.totalorder %s28, 1
          %s7213 = scalar_select %p7212, %s28, 1
          %s7214 = smul.addr %s7213, 24
          %s7215 = smul.addr %s7214, 8
          %s7216 = scalar_lea.vmem %s11, %s7215
        $region126: #{generator_forward.1} parent=121 // pred_fallthru
          _
      $region122: #{generator_forward.1} parent=5 // pred_fallthru
        _
    $region6: #{generator_forward.1} parent=1 // loop_footer
      %s21 = sadd.s32 1, %s17
    $region7: #{generator_forward.1} parent=1 // loop_footer_branch
      %16 = sbr.rel target = $region3
    $region8: #{generator_forward.1} parent=1 // loop_exit
      _

</llo_original>
